<compile_context>
chip_gen: v7x
topology: tpu7x:2x2x1
jax: 0.10.0
libtpu: 0.0.40
codegen_flags: <defaults>
</compile_context>

<pallas_src>
import functools

import jax
import jax.numpy as jnp
from jax import lax
from jax.experimental import pallas as pl
from jax.experimental.pallas import tpu as pltpu


def _round_up(x, m):
    return (x + m - 1) // m * m


# ---------------------------------------------------------------------------
# Pallas kernel: single full-K matmul tile + bias (+ReLU)
# ---------------------------------------------------------------------------

def _matmul_bias_act_kernel(x_ref, w_ref, b_ref, o_ref, *, apply_relu):
    # x: (tm, K) bf16, w: (K, N) bf16 (resident), b: (1, N) f32, o: (tm, N)
    acc = jnp.dot(x_ref[...], w_ref[...], preferred_element_type=jnp.float32)
    out = acc + b_ref[...]
    if apply_relu:
        out = jnp.maximum(out, 0.0)
    o_ref[...] = out.astype(o_ref.dtype)


def matmul_bias_act(x, w, b, *, apply_relu, out_dtype):
    # x: (M, K), w: (K, N), b: (N,) -> (M, N) in out_dtype.
    M, K = x.shape
    K2, N = w.shape
    assert K == K2

    # M tile: multiple of 16 (bf16 sublane pack).  If that would leave a single
    # grid step, split M so the "parallel" axis has >= 2 steps (v7x: 2 TCs).
    if M < 16:
        tm = M                                   # full-dim block, always legal
    else:
        tm = min(256, _round_up(M, 16))
        if pl.cdiv(M, tm) < 2:
            tm = max(16, _round_up(pl.cdiv(M, 2), 16))
    grid_m = pl.cdiv(M, tm)

    xb = x.astype(jnp.bfloat16)                  # MXU operands in bf16
    wb = w.astype(jnp.bfloat16)
    b2 = b.astype(jnp.float32).reshape(1, N)

    cost = pl.CostEstimate(
        flops=2 * M * N * K,
        transcendentals=0,
        bytes_accessed=(M * K + K * N) * 2
        + M * N * jnp.dtype(out_dtype).itemsize + N * 4,
    )

    kernel = functools.partial(_matmul_bias_act_kernel, apply_relu=apply_relu)
    return pl.pallas_call(
        kernel,
        out_shape=jax.ShapeDtypeStruct((M, N), out_dtype),
        grid=(grid_m,),
        in_specs=[
            pl.BlockSpec((tm, K), lambda i: (i, 0)),   # LHS tile, full K
            pl.BlockSpec((K, N), lambda i: (0, 0)),    # whole RHS, stays resident
            pl.BlockSpec((1, N), lambda i: (0, 0)),    # bias
        ],
        out_specs=pl.BlockSpec((tm, N), lambda i: (i, 0)),
        compiler_params=pltpu.CompilerParams(
            dimension_semantics=("parallel",),
            vmem_limit_bytes=32 * 1024 * 1024,   # safe on v5e/v6e/v7x
        ),
        cost_estimate=cost,
    )(xb, wb, b2)


# ---------------------------------------------------------------------------
# Pallas kernel: 3x3 stride-2 max pool (floor mode), one image per grid step
# ---------------------------------------------------------------------------

def _maxpool3x3s2_kernel(x_ref, o_ref, *, ho, wo, c):
    # x_ref: (Hp//2, 2, Wp//2, 2C) -- even/odd reinterpretation of (Hp, Wp, C)
    # o_ref: (Ho, Wo, C)
    x = x_ref[...]
    r0 = x[0:ho, 0]                         # rows 2i
    r1 = x[0:ho, 1]                         # rows 2i+1
    r2 = x[1:ho + 1, 0]                     # rows 2i+2
    rm = jnp.maximum(jnp.maximum(r0, r1), r2)       # (Ho, Wp//2, 2C)
    c0 = rm[:, 0:wo, 0:c]                   # cols 2j
    c1 = rm[:, 0:wo, c:2 * c]               # cols 2j+1
    c2 = rm[:, 1:wo + 1, 0:c]               # cols 2j+2
    o_ref[...] = jnp.maximum(jnp.maximum(c0, c1), c2)


def maxpool2d_nhwc(x, k=3, stride=2):
    # PyTorch MaxPool2d(kernel_size=3, stride=2), no padding, floor mode.
    assert k == 3 and stride == 2
    N, H, W, C = x.shape
    Ho = (H - k) // stride + 1
    Wo = (W - k) // stride + 1
    # Even spatial dims with at most one guard row/col; the guard is never read
    # by the window math, so its value is irrelevant.
    Hp, Wp = 2 * (Ho + 1), 2 * (Wo + 1)
    xp = x if (Hp == H and Wp == W) else jnp.pad(
        x, ((0, 0), (0, Hp - H), (0, Wp - W), (0, 0)))
    # Free contiguous reinterpretation: (N, Hp, Wp, C) -> (N*Hp/2, 2, Wp/2, 2C).
    xr = xp.reshape(N * (Hp // 2), 2, Wp // 2, 2 * C)

    kernel = functools.partial(_maxpool3x3s2_kernel, ho=Ho, wo=Wo, c=C)
    out = pl.pallas_call(
        kernel,
        out_shape=jax.ShapeDtypeStruct((N * Ho, Wo, C), x.dtype),
        grid=(N,),
        in_specs=[pl.BlockSpec((Hp // 2, 2, Wp // 2, 2 * C),
                               lambda n: (n, 0, 0, 0))],
        out_specs=pl.BlockSpec((Ho, Wo, C), lambda n: (n, 0, 0)),
        compiler_params=pltpu.CompilerParams(
            dimension_semantics=("parallel",)),
    )(xr)
    return out.reshape(N, Ho, Wo, C)


# ---------------------------------------------------------------------------
# Glue: fused XLA patch gather (im2col) and conv wrapper
# ---------------------------------------------------------------------------

def conv2d_nhwc(x, w_oikk, b, *, stride, pad, apply_relu, out_dtype):
    # w_oikk: (Cout, Cin, kH, kW) in PyTorch layout; b: (Cout,)
    N = x.shape[0]
    Cout, Cin, kH, kW = w_oikk.shape
    assert x.shape[-1] == Cin
    # One fused XLA gather instead of k*k strided slices + concat.  Output
    # channel order is (c, ky, kx) -- channel major -- which matches the
    # row-major flattening of the PyTorch weight below.
    patches = lax.conv_general_dilated_patches(
        x.astype(jnp.bfloat16),
        filter_shape=(kH, kW),
        window_strides=(stride, stride),
        padding=((pad, pad), (pad, pad)),
        dimension_numbers=("NHWC", "HWIO", "NHWC"),
    )                                              # (N, Ho, Wo, Cin*kH*kW)
    _, Ho, Wo, K = patches.shape
    patches = patches.reshape(N * Ho * Wo, K)      # free: leading dims only
    w_mat = w_oikk.reshape(Cout, K).T              # (K, Cout), (c, ky, kx) order
    out = matmul_bias_act(patches, w_mat, b,
                          apply_relu=apply_relu, out_dtype=out_dtype)
    return out.reshape(N, Ho, Wo, Cout)            # free: leading dims only


# ---------------------------------------------------------------------------
# Model: AlexNet features[:7]
# ---------------------------------------------------------------------------

def init_params(key):
    keys = jax.random.split(key, 6)

    def w(k, shape, scale=0.05):
        return jax.random.normal(k, shape, jnp.float32) * scale

    return {
        "w1": w(keys[0], (64, 3, 11, 11)),
        "b1": w(keys[1], (64,)),
        "w2": w(keys[2], (192, 64, 5, 5)),
        "b2": w(keys[3], (192,)),
        "w3": w(keys[4], (384, 192, 3, 3)),
        "b3": w(keys[5], (384,)),
    }


def alnet_feature_extractor(x_nchw, params):
    # NCHW -> NHWC for the internal pipeline.
    x = jnp.transpose(x_nchw, (0, 2, 3, 1)).astype(jnp.float32)
    # Conv1 + ReLU + MaxPool   (bf16 activations: only feed pool -> im2col)
    x = conv2d_nhwc(x, params["w1"], params["b1"], stride=4, pad=2,
                    apply_relu=True, out_dtype=jnp.bfloat16)
    x = maxpool2d_nhwc(x, 3, 2)
    # Conv2 + ReLU + MaxPool
    x = conv2d_nhwc(x, params["w2"], params["b2"], stride=1, pad=2,
                    apply_relu=True, out_dtype=jnp.bfloat16)
    x = maxpool2d_nhwc(x, 3, 2)
    # Conv3 (no ReLU; features[7] is excluded by [:7]) -- f32 final output.
    x = conv2d_nhwc(x, params["w3"], params["b3"], stride=1, pad=1,
                    apply_relu=False, out_dtype=jnp.float32)
    # Back to NCHW to match the PyTorch output convention.
    return jnp.transpose(x, (0, 3, 1, 2))


if __name__ == "__main__":
    key = jax.random.PRNGKey(0)
    k_x, k_p = jax.random.split(key)

    # Small AlexNet-compatible input: (N=2, C=3, H=67, W=67)
    # -> conv1: 16x16 -> pool: 7x7 -> conv2: 7x7 -> pool: 3x3 -> conv3: 3x3
    x = jax.random.normal(k_x, (2, 3, 67, 67), jnp.float32)
    params = init_params(k_p)

    fwd = jax.jit(alnet_feature_extractor)
    out = jax.block_until_ready(fwd(x, params))

    assert out.shape == (2, 384, 3, 3), out.shape
    assert out.dtype == jnp.float32
    assert bool(jnp.all(jnp.isfinite(out)))
    print("KERNEL_OK")
</pallas_src>

<mosaic_0001>
module attributes {stable_mosaic.version = 11 : i64} {
  func.func @_matmul_bias_act_kernel(%arg0: i32, %arg1: memref<256x363xbf16, #tpu.memory_space<vmem>>, %arg2: memref<363x64xbf16, #tpu.memory_space<vmem>>, %arg3: memref<1x64xf32, #tpu.memory_space<vmem>>, %arg4: memref<256x64xbf16, #tpu.memory_space<vmem>>) attributes {dimension_semantics = [#tpu.dimension_semantics<parallel>], iteration_bounds = array<i64: 2>, scalar_prefetch = 0 : i64, scratch_operands = 0 : i64, tpu.core_type = #tpu.core_type<tc>, window_params = [{transform_indices = @transform_0, window_bounds = array<i64: 256, 363>}, {pipeline_mode = #tpu.pipeline_mode<synchronous>, transform_indices = @transform_1, window_bounds = array<i64: 363, 64>}, {pipeline_mode = #tpu.pipeline_mode<synchronous>, transform_indices = @transform_2, window_bounds = array<i64: 1, 64>}, {transform_indices = @transform_3, window_bounds = array<i64: 256, 64>}]} {
    %c0 = arith.constant 0 : index
    %c0_0 = arith.constant 0 : index
    %0 = vector.load %arg1[%c0, %c0_0] : memref<256x363xbf16, #tpu.memory_space<vmem>>, vector<256x363xbf16>
    %c0_1 = arith.constant 0 : index
    %c0_2 = arith.constant 0 : index
    %1 = vector.load %arg2[%c0_1, %c0_2] : memref<363x64xbf16, #tpu.memory_space<vmem>>, vector<363x64xbf16>
    %cst = arith.constant dense<0.000000e+00> : vector<256x64xf32>
    %2 = tpu.matmul %0, %1, %cst {dimension_numbers = #tpu.dot_dimension_numbers<[1], [0], [0], [1], [0, 0, 1, 1], [], []>} : vector<256x363xbf16>, vector<363x64xbf16>, vector<256x64xf32> -> vector<256x64xf32>
    %c0_3 = arith.constant 0 : index
    %c0_4 = arith.constant 0 : index
    %3 = vector.load %arg3[%c0_3, %c0_4] : memref<1x64xf32, #tpu.memory_space<vmem>>, vector<1x64xf32>
    %4 = vector.broadcast %3 : vector<1x64xf32> to vector<256x64xf32>
    %5 = arith.addf %2, %4 : vector<256x64xf32>
    %cst_5 = arith.constant 0.000000e+00 : f32
    %6 = vector.broadcast %cst_5 : f32 to vector<256x64xf32>
    %7 = arith.maximumf %5, %6 : vector<256x64xf32>
    %8 = arith.truncf %7 : vector<256x64xf32> to vector<256x64xbf16>
    %c0_6 = arith.constant 0 : index
    %c0_7 = arith.constant 0 : index
    %9 = vector.load %arg4[%c0_6, %c0_7] : memref<256x64xbf16, #tpu.memory_space<vmem>>, vector<256x64xbf16>
    tpu.vector_store %arg4[%c0_6, %c0_7], %8 {strides = array<i32>} : memref<256x64xbf16, #tpu.memory_space<vmem>>, vector<256x64xbf16>,
    return
  }
  func.func @transform_0(%arg0: i32) -> (i32, i32) {
    %c0_i32 = arith.constant 0 : i32
    %c0_i32_0 = arith.constant 0 : i32
    return %arg0, %c0_i32 : i32, i32
  }
  func.func @transform_1(%arg0: i32) -> (i32, i32) {
    %c0_i32 = arith.constant 0 : i32
    %c0_i32_0 = arith.constant 0 : i32
    %c0_i32_1 = arith.constant 0 : i32
    return %c0_i32, %c0_i32_0 : i32, i32
  }
  func.func @transform_2(%arg0: i32) -> (i32, i32) {
    %c0_i32 = arith.constant 0 : i32
    %c0_i32_0 = arith.constant 0 : i32
    %c0_i32_1 = arith.constant 0 : i32
    return %c0_i32, %c0_i32_0 : i32, i32
  }
  func.func @transform_3(%arg0: i32) -> (i32, i32) {
    %c0_i32 = arith.constant 0 : i32
    %c0_i32_0 = arith.constant 0 : i32
    return %arg0, %c0_i32 : i32, i32
  }
}

module attributes {stable_mosaic.version = 11 : i64} {
  func.func @_maxpool3x3s2_kernel(%arg0: i32, %arg1: memref<8x2x8x128xbf16, #tpu.memory_space<vmem>>, %arg2: memref<7x7x64xbf16, #tpu.memory_space<vmem>>) attributes {dimension_semantics = [#tpu.dimension_semantics<parallel>], iteration_bounds = array<i64: 2>, scalar_prefetch = 0 : i64, scratch_operands = 0 : i64, tpu.core_type = #tpu.core_type<tc>, window_params = [{transform_indices = @transform_0, window_bounds = array<i64: 8, 2, 8, 128>}, {transform_indices = @transform_1, window_bounds = array<i64: 7, 7, 64>}]} {
    %c0 = arith.constant 0 : index
    %c0_0 = arith.constant 0 : index
    %c0_1 = arith.constant 0 : index
    %c0_2 = arith.constant 0 : index
    %0 = vector.load %arg1[%c0, %c0_0, %c0_1, %c0_2] : memref<8x2x8x128xbf16, #tpu.memory_space<vmem>>, vector<8x2x8x128xbf16>
    %1 = vector.extract_strided_slice %0 {offsets = [0, 0, 0, 0], sizes = [7, 1, 8, 128], strides = [1, 1, 1, 1]} : vector<8x2x8x128xbf16> to vector<7x1x8x128xbf16>
    %2 = vector.shape_cast %1 : vector<7x1x8x128xbf16> to vector<7x8x128xbf16>
    %3 = vector.extract_strided_slice %0 {offsets = [0, 1, 0, 0], sizes = [7, 1, 8, 128], strides = [1, 1, 1, 1]} : vector<8x2x8x128xbf16> to vector<7x1x8x128xbf16>
    %4 = vector.shape_cast %3 : vector<7x1x8x128xbf16> to vector<7x8x128xbf16>
    %5 = vector.extract_strided_slice %0 {offsets = [1, 0, 0, 0], sizes = [7, 1, 8, 128], strides = [1, 1, 1, 1]} : vector<8x2x8x128xbf16> to vector<7x1x8x128xbf16>
    %6 = vector.shape_cast %5 : vector<7x1x8x128xbf16> to vector<7x8x128xbf16>
    %7 = arith.maximumf %2, %4 : vector<7x8x128xbf16>
    %8 = arith.maximumf %7, %6 : vector<7x8x128xbf16>
    %9 = vector.extract_strided_slice %8 {offsets = [0, 0, 0], sizes = [7, 7, 64], strides = [1, 1, 1]} : vector<7x8x128xbf16> to vector<7x7x64xbf16>
    %10 = vector.extract_strided_slice %8 {offsets = [0, 0, 64], sizes = [7, 7, 64], strides = [1, 1, 1]} : vector<7x8x128xbf16> to vector<7x7x64xbf16>
    %11 = vector.extract_strided_slice %8 {offsets = [0, 1, 0], sizes = [7, 7, 64], strides = [1, 1, 1]} : vector<7x8x128xbf16> to vector<7x7x64xbf16>
    %12 = arith.maximumf %9, %10 : vector<7x7x64xbf16>
    %13 = arith.maximumf %12, %11 : vector<7x7x64xbf16>
    %c0_3 = arith.constant 0 : index
    %c0_4 = arith.constant 0 : index
    %c0_5 = arith.constant 0 : index
    %14 = vector.load %arg2[%c0_3, %c0_4, %c0_5] : memref<7x7x64xbf16, #tpu.memory_space<vmem>>, vector<7x7x64xbf16>
    tpu.vector_store %arg2[%c0_3, %c0_4, %c0_5], %13 {strides = array<i32>} : memref<7x7x64xbf16, #tpu.memory_space<vmem>>, vector<7x7x64xbf16>,
    return
  }
  func.func @transform_0(%arg0: i32) -> (i32, i32, i32, i32) {
    %c0_i32 = arith.constant 0 : i32
    %c0_i32_0 = arith.constant 0 : i32
    %c0_i32_1 = arith.constant 0 : i32
    %c0_i32_2 = arith.constant 0 : i32
    return %arg0, %c0_i32, %c0_i32_0, %c0_i32_1 : i32, i32, i32, i32
  }
  func.func @transform_1(%arg0: i32) -> (i32, i32, i32) {
    %c0_i32 = arith.constant 0 : i32
    %c0_i32_0 = arith.constant 0 : i32
    %c0_i32_1 = arith.constant 0 : i32
    return %arg0, %c0_i32, %c0_i32_0 : i32, i32, i32
  }
}

module attributes {stable_mosaic.version = 11 : i64} {
  func.func @_matmul_bias_act_kernel(%arg0: i32, %arg1: memref<64x1600xbf16, #tpu.memory_space<vmem>>, %arg2: memref<1600x192xbf16, #tpu.memory_space<vmem>>, %arg3: memref<1x192xf32, #tpu.memory_space<vmem>>, %arg4: memref<64x192xbf16, #tpu.memory_space<vmem>>) attributes {dimension_semantics = [#tpu.dimension_semantics<parallel>], iteration_bounds = array<i64: 2>, scalar_prefetch = 0 : i64, scratch_operands = 0 : i64, tpu.core_type = #tpu.core_type<tc>, window_params = [{transform_indices = @transform_0, window_bounds = array<i64: 64, 1600>}, {pipeline_mode = #tpu.pipeline_mode<synchronous>, transform_indices = @transform_1, window_bounds = array<i64: 1600, 192>}, {pipeline_mode = #tpu.pipeline_mode<synchronous>, transform_indices = @transform_2, window_bounds = array<i64: 1, 192>}, {transform_indices = @transform_3, window_bounds = array<i64: 64, 192>}]} {
    %c0 = arith.constant 0 : index
    %c0_0 = arith.constant 0 : index
    %0 = vector.load %arg1[%c0, %c0_0] : memref<64x1600xbf16, #tpu.memory_space<vmem>>, vector<64x1600xbf16>
    %c0_1 = arith.constant 0 : index
    %c0_2 = arith.constant 0 : index
    %1 = vector.load %arg2[%c0_1, %c0_2] : memref<1600x192xbf16, #tpu.memory_space<vmem>>, vector<1600x192xbf16>
    %cst = arith.constant dense<0.000000e+00> : vector<64x192xf32>
    %2 = tpu.matmul %0, %1, %cst {dimension_numbers = #tpu.dot_dimension_numbers<[1], [0], [0], [1], [0, 0, 1, 1], [], []>} : vector<64x1600xbf16>, vector<1600x192xbf16>, vector<64x192xf32> -> vector<64x192xf32>
    %c0_3 = arith.constant 0 : index
    %c0_4 = arith.constant 0 : index
    %3 = vector.load %arg3[%c0_3, %c0_4] : memref<1x192xf32, #tpu.memory_space<vmem>>, vector<1x192xf32>
    %4 = vector.broadcast %3 : vector<1x192xf32> to vector<64x192xf32>
    %5 = arith.addf %2, %4 : vector<64x192xf32>
    %cst_5 = arith.constant 0.000000e+00 : f32
    %6 = vector.broadcast %cst_5 : f32 to vector<64x192xf32>
    %7 = arith.maximumf %5, %6 : vector<64x192xf32>
    %8 = arith.truncf %7 : vector<64x192xf32> to vector<64x192xbf16>
    %c0_6 = arith.constant 0 : index
    %c0_7 = arith.constant 0 : index
    %9 = vector.load %arg4[%c0_6, %c0_7] : memref<64x192xbf16, #tpu.memory_space<vmem>>, vector<64x192xbf16>
    tpu.vector_store %arg4[%c0_6, %c0_7], %8 {strides = array<i32>} : memref<64x192xbf16, #tpu.memory_space<vmem>>, vector<64x192xbf16>,
    return
  }
  func.func @transform_0(%arg0: i32) -> (i32, i32) {
    %c0_i32 = arith.constant 0 : i32
    %c0_i32_0 = arith.constant 0 : i32
    return %arg0, %c0_i32 : i32, i32
  }
  func.func @transform_1(%arg0: i32) -> (i32, i32) {
    %c0_i32 = arith.constant 0 : i32
    %c0_i32_0 = arith.constant 0 : i32
    %c0_i32_1 = arith.constant 0 : i32
    return %c0_i32, %c0_i32_0 : i32, i32
  }
  func.func @transform_2(%arg0: i32) -> (i32, i32) {
    %c0_i32 = arith.constant 0 : i32
    %c0_i32_0 = arith.constant 0 : i32
    %c0_i32_1 = arith.constant 0 : i32
    return %c0_i32, %c0_i32_0 : i32, i32
  }
  func.func @transform_3(%arg0: i32) -> (i32, i32) {
    %c0_i32 = arith.constant 0 : i32
    %c0_i32_0 = arith.constant 0 : i32
    return %arg0, %c0_i32 : i32, i32
  }
}

module attributes {stable_mosaic.version = 11 : i64} {
  func.func @_maxpool3x3s2_kernel(%arg0: i32, %arg1: memref<4x2x4x384xbf16, #tpu.memory_space<vmem>>, %arg2: memref<3x3x192xbf16, #tpu.memory_space<vmem>>) attributes {dimension_semantics = [#tpu.dimension_semantics<parallel>], iteration_bounds = array<i64: 2>, scalar_prefetch = 0 : i64, scratch_operands = 0 : i64, tpu.core_type = #tpu.core_type<tc>, window_params = [{transform_indices = @transform_0, window_bounds = array<i64: 4, 2, 4, 384>}, {transform_indices = @transform_1, window_bounds = array<i64: 3, 3, 192>}]} {
    %c0 = arith.constant 0 : index
    %c0_0 = arith.constant 0 : index
    %c0_1 = arith.constant 0 : index
    %c0_2 = arith.constant 0 : index
    %0 = vector.load %arg1[%c0, %c0_0, %c0_1, %c0_2] : memref<4x2x4x384xbf16, #tpu.memory_space<vmem>>, vector<4x2x4x384xbf16>
    %1 = vector.extract_strided_slice %0 {offsets = [0, 0, 0, 0], sizes = [3, 1, 4, 384], strides = [1, 1, 1, 1]} : vector<4x2x4x384xbf16> to vector<3x1x4x384xbf16>
    %2 = vector.shape_cast %1 : vector<3x1x4x384xbf16> to vector<3x4x384xbf16>
    %3 = vector.extract_strided_slice %0 {offsets = [0, 1, 0, 0], sizes = [3, 1, 4, 384], strides = [1, 1, 1, 1]} : vector<4x2x4x384xbf16> to vector<3x1x4x384xbf16>
    %4 = vector.shape_cast %3 : vector<3x1x4x384xbf16> to vector<3x4x384xbf16>
    %5 = vector.extract_strided_slice %0 {offsets = [1, 0, 0, 0], sizes = [3, 1, 4, 384], strides = [1, 1, 1, 1]} : vector<4x2x4x384xbf16> to vector<3x1x4x384xbf16>
    %6 = vector.shape_cast %5 : vector<3x1x4x384xbf16> to vector<3x4x384xbf16>
    %7 = arith.maximumf %2, %4 : vector<3x4x384xbf16>
    %8 = arith.maximumf %7, %6 : vector<3x4x384xbf16>
    %9 = vector.extract_strided_slice %8 {offsets = [0, 0, 0], sizes = [3, 3, 192], strides = [1, 1, 1]} : vector<3x4x384xbf16> to vector<3x3x192xbf16>
    %10 = vector.extract_strided_slice %8 {offsets = [0, 0, 192], sizes = [3, 3, 192], strides = [1, 1, 1]} : vector<3x4x384xbf16> to vector<3x3x192xbf16>
    %11 = vector.extract_strided_slice %8 {offsets = [0, 1, 0], sizes = [3, 3, 192], strides = [1, 1, 1]} : vector<3x4x384xbf16> to vector<3x3x192xbf16>
    %12 = arith.maximumf %9, %10 : vector<3x3x192xbf16>
    %13 = arith.maximumf %12, %11 : vector<3x3x192xbf16>
    %c0_3 = arith.constant 0 : index
    %c0_4 = arith.constant 0 : index
    %c0_5 = arith.constant 0 : index
    %14 = vector.load %arg2[%c0_3, %c0_4, %c0_5] : memref<3x3x192xbf16, #tpu.memory_space<vmem>>, vector<3x3x192xbf16>
    tpu.vector_store %arg2[%c0_3, %c0_4, %c0_5], %13 {strides = array<i32>} : memref<3x3x192xbf16, #tpu.memory_space<vmem>>, vector<3x3x192xbf16>,
    return
  }
  func.func @transform_0(%arg0: i32) -> (i32, i32, i32, i32) {
    %c0_i32 = arith.constant 0 : i32
    %c0_i32_0 = arith.constant 0 : i32
    %c0_i32_1 = arith.constant 0 : i32
    %c0_i32_2 = arith.constant 0 : i32
    return %arg0, %c0_i32, %c0_i32_0, %c0_i32_1 : i32, i32, i32, i32
  }
  func.func @transform_1(%arg0: i32) -> (i32, i32, i32) {
    %c0_i32 = arith.constant 0 : i32
    %c0_i32_0 = arith.constant 0 : i32
    %c0_i32_1 = arith.constant 0 : i32
    return %arg0, %c0_i32, %c0_i32_0 : i32, i32, i32
  }
}

module attributes {stable_mosaic.version = 11 : i64} {
  func.func @_matmul_bias_act_kernel(%arg0: i32, %arg1: memref<16x1728xbf16, #tpu.memory_space<vmem>>, %arg2: memref<1728x384xbf16, #tpu.memory_space<vmem>>, %arg3: memref<1x384xf32, #tpu.memory_space<vmem>>, %arg4: memref<16x384xf32, #tpu.memory_space<vmem>>) attributes {dimension_semantics = [#tpu.dimension_semantics<parallel>], iteration_bounds = array<i64: 2>, scalar_prefetch = 0 : i64, scratch_operands = 0 : i64, tpu.core_type = #tpu.core_type<tc>, window_params = [{transform_indices = @transform_0, window_bounds = array<i64: 16, 1728>}, {pipeline_mode = #tpu.pipeline_mode<synchronous>, transform_indices = @transform_1, window_bounds = array<i64: 1728, 384>}, {pipeline_mode = #tpu.pipeline_mode<synchronous>, transform_indices = @transform_2, window_bounds = array<i64: 1, 384>}, {transform_indices = @transform_3, window_bounds = array<i64: 16, 384>}]} {
    %c0 = arith.constant 0 : index
    %c0_0 = arith.constant 0 : index
    %0 = vector.load %arg1[%c0, %c0_0] : memref<16x1728xbf16, #tpu.memory_space<vmem>>, vector<16x1728xbf16>
    %c0_1 = arith.constant 0 : index
    %c0_2 = arith.constant 0 : index
    %1 = vector.load %arg2[%c0_1, %c0_2] : memref<1728x384xbf16, #tpu.memory_space<vmem>>, vector<1728x384xbf16>
    %cst = arith.constant dense<0.000000e+00> : vector<16x384xf32>
    %2 = tpu.matmul %0, %1, %cst {dimension_numbers = #tpu.dot_dimension_numbers<[1], [0], [0], [1], [0, 0, 1, 1], [], []>} : vector<16x1728xbf16>, vector<1728x384xbf16>, vector<16x384xf32> -> vector<16x384xf32>
    %c0_3 = arith.constant 0 : index
    %c0_4 = arith.constant 0 : index
    %3 = vector.load %arg3[%c0_3, %c0_4] : memref<1x384xf32, #tpu.memory_space<vmem>>, vector<1x384xf32>
    %4 = vector.broadcast %3 : vector<1x384xf32> to vector<16x384xf32>
    %5 = arith.addf %2, %4 : vector<16x384xf32>
    %c0_5 = arith.constant 0 : index
    %c0_6 = arith.constant 0 : index
    %6 = vector.load %arg4[%c0_5, %c0_6] : memref<16x384xf32, #tpu.memory_space<vmem>>, vector<16x384xf32>
    tpu.vector_store %arg4[%c0_5, %c0_6], %5 {strides = array<i32>} : memref<16x384xf32, #tpu.memory_space<vmem>>, vector<16x384xf32>,
    return
  }
  func.func @transform_0(%arg0: i32) -> (i32, i32) {
    %c0_i32 = arith.constant 0 : i32
    %c0_i32_0 = arith.constant 0 : i32
    return %arg0, %c0_i32 : i32, i32
  }
  func.func @transform_1(%arg0: i32) -> (i32, i32) {
    %c0_i32 = arith.constant 0 : i32
    %c0_i32_0 = arith.constant 0 : i32
    %c0_i32_1 = arith.constant 0 : i32
    return %c0_i32, %c0_i32_0 : i32, i32
  }
  func.func @transform_2(%arg0: i32) -> (i32, i32) {
    %c0_i32 = arith.constant 0 : i32
    %c0_i32_0 = arith.constant 0 : i32
    %c0_i32_1 = arith.constant 0 : i32
    return %c0_i32, %c0_i32_0 : i32, i32
  }
  func.func @transform_3(%arg0: i32) -> (i32, i32) {
    %c0_i32 = arith.constant 0 : i32
    %c0_i32_0 = arith.constant 0 : i32
    return %arg0, %c0_i32 : i32, i32
  }
}

</mosaic_0001>

<llo_original>
// kernel: alnet_feature_extractor.6
$region0: #{alnet_feature_extractor.6}
  #allocation0 [shape = 'u32[]', space=smem, size = 0x4, offset = 0x4, fixed_abs, tag = 'smem constant byte address 0x4 - core index']
  #allocation1 [shape = 'u32[144,128]{1,0:T(1,128)}', space=vmem, size = 0x12000, scoped, tag = 'internal scratch']
  %s0 = inlined_call_operand.vmem [shape: bf16[16,2,8,128], index: 0, kind: input, shape index: {}]
  %s1 = inlined_call_operand.vmem [shape: bf16[14,7,64], index: 1, kind: output, shape index: {}]
  %s2 = sld [smem:[#allocation0]]
  $region37: #{alnet_feature_extractor.6} parent=0
    _
  %s4 = ssub.s32 1, %s2
  %s5 = scalar_select 0, %s4, %s2
  loop: start=0, step=1, limit=4
  $region2: #{alnet_feature_extractor.6} parent=0 // loop_pre_header
    _
  $region3: #{alnet_feature_extractor.6} parent=0 // loop_header
    %s7 = sphi 0, %s11
    %p8 = scmp.ge.s32.totalorder %s7, 4
    %s17 = sphi 0, %s19
    %s20 = sphi 0, %s17
    %s21 = sphi 0, %s20
    %s37 = sphi 0, %s21
    %s43 = sphi 0, %s45
    %s46 = sphi 0, %s43
    %s47 = sphi 0, %s46
    %s63 = sphi 0, %s47
  $region4: #{alnet_feature_extractor.6} parent=0 // loop_header_branch
    %10 = sbr.rel (%p8) target = $region8
  $region5: #{alnet_feature_extractor.6} parent=0 // loop_body
    %s12 = ssub.s32 %s7, 1
    %s13 = ssub.s32 %s7, 2
    %s14 = sadd.s32 %s7, 1
    %s15 = ssub.s32 %s7, %s14
    %p16 = scmp.eq.s32.totalorder %s15, 0
    %s18 = sadd.s32 %s17, 1
    %s19 = scalar_select %p16, %s17, %s18
    %p22 = pneg %p16
    %p23 = scmp.eq.s32.totalorder %s7, 1
    %p24 = por %p22, %p23
    %p25 = scmp.ne.s32.totalorder %s17, %s20
    %p26 = scmp.eq.s32.totalorder %s7, 0
    %p27 = por %p25, %p26
    %p28 = scmp.ne.s32.totalorder %s17, %s20
    %p29 = scmp.eq.s32.totalorder %s12, 1
    %p30 = por %p28, %p29
    %p31 = scmp.ne.s32.totalorder %s20, %s21
    %p32 = scmp.eq.s32.totalorder %s12, 0
    %p33 = por %p31, %p32
    %p34 = scmp.ne.s32.totalorder %s20, %s21
    %p35 = scmp.eq.s32.totalorder %s13, 1
    %p36 = por %p34, %p35
    %p38 = scmp.ne.s32.totalorder %s21, %s37
    %p39 = scmp.eq.s32.totalorder %s13, 0
    %p40 = por %p38, %p39
    %s41 = ssub.s32 %s7, %s14
    %p42 = scmp.eq.s32.totalorder %s41, 0
    %s44 = sadd.s32 %s43, 1
    %s45 = scalar_select %p42, %s43, %s44
    %p48 = pneg %p42
    %p49 = scmp.eq.s32.totalorder %s7, 1
    %p50 = por %p48, %p49
    %p51 = scmp.ne.s32.totalorder %s43, %s46
    %p52 = scmp.eq.s32.totalorder %s7, 0
    %p53 = por %p51, %p52
    %p54 = scmp.ne.s32.totalorder %s43, %s46
    %p55 = scmp.eq.s32.totalorder %s12, 1
    %p56 = por %p54, %p55
    %p57 = scmp.ne.s32.totalorder %s46, %s47
    %p58 = scmp.eq.s32.totalorder %s12, 0
    %p59 = por %p57, %p58
    %p60 = scmp.ne.s32.totalorder %s46, %s47
    %p61 = scmp.eq.s32.totalorder %s13, 1
    %p62 = por %p60, %p61
    %p64 = scmp.ne.s32.totalorder %s47, %s63
    %p65 = scmp.eq.s32.totalorder %s13, 0
    %p66 = por %p64, %p65
    %p67 = scmp.le.s32.totalorder 1, %s7
    %p68 = scmp.lt.s32.totalorder %s7, 3
    %p69 = pnand %p67, %p68
    %p70 = pneg %p69
    // Predicated region
    $region9: #{alnet_feature_extractor.6} parent=5 // pred_check
      _
    $region10: #{alnet_feature_extractor.6} parent=5 // pred_check_branch
      %72 = sbr.rel (%p69) target = $region12
    $region11: #{alnet_feature_extractor.6} parent=5 // pred_region
      %s73 = ssub.s32 %s7, 1
    $region12: #{alnet_feature_extractor.6} parent=5 // pred_fallthru
      _
    %p74 = scmp.lt.s32.totalorder %s7, 2
    // Predicated region
    $region13: #{alnet_feature_extractor.6} parent=5 // pred_check
      %p75 = pneg %p74
    $region14: #{alnet_feature_extractor.6} parent=5 // pred_check_branch
      %77 = sbr.rel (%p75) target = $region16
    $region15: #{alnet_feature_extractor.6} parent=5 // pred_region
      // Predicated region
      $region17: #{alnet_feature_extractor.6} parent=15 // pred_check
        %p78 = pneg %p27
      $region18: #{alnet_feature_extractor.6} parent=15 // pred_check_branch
        %80 = sbr.rel (%p78) target = $region20
      $region19: #{alnet_feature_extractor.6} parent=15 // pred_region
        %s81 = smul.u32 8, %s7
        %p82 = scmp.lt.s32.totalorder %s81, 15
        %s83 = scalar_select %p82, %s81, 15
        %s84 = smul.addr %s83, 2
        %s85 = smul.addr %s84, 4
        %s86 = scalar_lea.vmem %s0, %s85
        %s87 = smul.u32 8, %s7
      $region20: #{alnet_feature_extractor.6} parent=15 // pred_fallthru
        _
    $region16: #{alnet_feature_extractor.6} parent=5 // pred_fallthru
      _
    %p88 = scmp.le.s32.totalorder 1, %s7
    %p89 = scmp.lt.s32.totalorder %s7, 3
    %p90 = pnand %p88, %p89
    %p91 = pneg %p90
    // Predicated region
    $region21: #{alnet_feature_extractor.6} parent=5 // pred_check
      _
    $region22: #{alnet_feature_extractor.6} parent=5 // pred_check_branch
      %93 = sbr.rel (%p90) target = $region24
    $region23: #{alnet_feature_extractor.6} parent=5 // pred_region
      %s94 = ssub.s32 %s7, 1
      %s95 = smul.u32 8, %s12
      %p96 = scmp.lt.s32.totalorder %s95, 15
      %s97 = scalar_select %p96, %s95, 15
      %s98 = smul.addr %s97, 2
      %s99 = smul.addr %s98, 4
      %s100 = scalar_lea.vmem %s0, %s99
      %p101 = pneg %p33
      %p102 = pneg %p30
      %p103 = pneg %p59
      %p104 = pneg %p56
      %s105 = smul.u32 7, %s12
      %p106 = scmp.lt.s32.totalorder %s105, 13
      %s107 = scalar_select %p106, %s105, 13
      %s108 = smul.addr %s107, 4
      %s109 = scalar_lea.vmem %s1, %s108
      %s110 = smul.u32 8, %s12
      %p111 = scmp.lt.s32.totalorder %s110, 15
      %s112 = scalar_select %p111, %s110, 15
      %s113 = smul.addr %s112, 2
      %s114 = smul.addr %s113, 4
      %s115 = scalar_lea.vmem %s0, %s114
      %s116 = smul.u32 8, %s12
      %s117 = smul.u32 7, %s12
      %p118 = scmp.lt.s32.totalorder %s117, 13
      %s119 = scalar_select %p118, %s117, 13
      %s120 = smul.addr %s119, 4
      %s121 = scalar_lea.vmem %s1, %s120
      %s122 = smul.u32 7, %s12
      %v123 = vld [vmem:[%s115] sm:$0xf]
      %v124 = vld [vmem:[%s115 + $0x4] sm:$0xf]
      %v125 = vld [vmem:[%s115 + $0x8] sm:$0xf]
      %v126 = vld [vmem:[%s115 + $0xc] sm:$0xf]
      %v127 = vld [vmem:[%s115 + $0x10] sm:$0xf]
      %v128 = vld [vmem:[%s115 + $0x14] sm:$0xf]
      %v129 = vld [vmem:[%s115 + $0x18] sm:$0xf]
      %v130 = vld [vmem:[%s115 + $0x1c] sm:$0xf]
      %v131 = vld [vmem:[%s115 + $0x20] sm:$0xf]
      %v132 = vld [vmem:[%s115 + $0x24] sm:$0xf]
      %v133 = vld [vmem:[%s115 + $0x28] sm:$0xf]
      %v134 = vld [vmem:[%s115 + $0x2c] sm:$0xf]
      %v135 = vld [vmem:[%s115 + $0x30] sm:$0xf]
      %v136 = vld [vmem:[%s115 + $0x34] sm:$0xf]
      %v137 = vld [vmem:[%s115 + $0x38] sm:$0xf]
      %v138 = vmax.bf16 %v123, %v124
      %v139 = vmax.bf16 %v125, %v126
      %v140 = vmax.bf16 %v127, %v128
      %v141 = vmax.bf16 %v129, %v130
      %v142 = vmax.bf16 %v131, %v132
      %v143 = vmax.bf16 %v133, %v134
      %v144 = vmax.bf16 %v135, %v136
      %v145 = vmax.bf16 %v138, %v125
      %v146 = vmax.bf16 %v139, %v127
      %v147 = vmax.bf16 %v140, %v129
      %v148 = vmax.bf16 %v141, %v131
      %v149 = vmax.bf16 %v142, %v133
      %v150 = vmax.bf16 %v143, %v135
      %v151 = vmax.bf16 %v144, %v137
      %159 = vrot.lane.b32.xlu0 %v145, 64
      %v160 = vpop.permute.xlu0 %159
      %161 = vrot.lane.b32.xlu0 %v146, 64
      %v162 = vpop.permute.xlu0 %161
      %163 = vrot.lane.b32.xlu0 %v147, 64
      %v164 = vpop.permute.xlu0 %163
      %165 = vrot.lane.b32.xlu0 %v148, 64
      %v166 = vpop.permute.xlu0 %165
      %167 = vrot.lane.b32.xlu0 %v149, 64
      %v168 = vpop.permute.xlu0 %167
      %169 = vrot.lane.b32.xlu0 %v150, 64
      %v170 = vpop.permute.xlu0 %169
      %171 = vrot.lane.b32.xlu0 %v151, 64
      %v172 = vpop.permute.xlu0 %171
      %v180 = vmax.bf16 %v145, %v160
      %v181 = vmax.bf16 %v146, %v162
      %v182 = vmax.bf16 %v147, %v164
      %v183 = vmax.bf16 %v148, %v166
      %v184 = vmax.bf16 %v149, %v168
      %v185 = vmax.bf16 %v150, %v170
      %v186 = vmax.bf16 %v151, %v172
      %v188 = vshrl.u32 %v145, 16
      %v190 = vrot.slane %v188, 4
      %v191 = vshll.u32 %v145, 16
      %v193 = vrot.slane %v191, 5
      %v194 = vor.u32 %v190, %v193
      %v195 = vrot.slane %v194, 4
      %v197 = vshrl.u32 %v146, 16
      %v199 = vrot.slane %v197, 4
      %v200 = vshll.u32 %v146, 16
      %v202 = vrot.slane %v200, 5
      %v203 = vor.u32 %v199, %v202
      %v204 = vrot.slane %v203, 4
      %v206 = vshrl.u32 %v147, 16
      %v208 = vrot.slane %v206, 4
      %v209 = vshll.u32 %v147, 16
      %v211 = vrot.slane %v209, 5
      %v212 = vor.u32 %v208, %v211
      %v213 = vrot.slane %v212, 4
      %v215 = vshrl.u32 %v148, 16
      %v217 = vrot.slane %v215, 4
      %v218 = vshll.u32 %v148, 16
      %v220 = vrot.slane %v218, 5
      %v221 = vor.u32 %v217, %v220
      %v222 = vrot.slane %v221, 4
      %v224 = vshrl.u32 %v149, 16
      %v226 = vrot.slane %v224, 4
      %v227 = vshll.u32 %v149, 16
      %v229 = vrot.slane %v227, 5
      %v230 = vor.u32 %v226, %v229
      %v231 = vrot.slane %v230, 4
      %v233 = vshrl.u32 %v150, 16
      %v235 = vrot.slane %v233, 4
      %v236 = vshll.u32 %v150, 16
      %v238 = vrot.slane %v236, 5
      %v239 = vor.u32 %v235, %v238
      %v240 = vrot.slane %v239, 4
      %v242 = vshrl.u32 %v151, 16
      %v244 = vrot.slane %v242, 4
      %v245 = vshll.u32 %v151, 16
      %v247 = vrot.slane %v245, 5
      %v248 = vor.u32 %v244, %v247
      %v249 = vrot.slane %v248, 4
      %v257 = vmax.bf16 %v180, %v195
      %v258 = vmax.bf16 %v181, %v204
      %v259 = vmax.bf16 %v182, %v213
      %v260 = vmax.bf16 %v183, %v222
      %v261 = vmax.bf16 %v184, %v231
      %v262 = vmax.bf16 %v185, %v240
      %v263 = vmax.bf16 %v186, %v249
      %vm264 = vcmask 519168
      %vm265 = vsmask.f32 3328
      %vm266 = vmand %vm264, %vm265
      %v267 = vld [vmem:[%s121] sm:$0xf]
      %v268 = vsel %vm266, %v257, %v267
      %269 = vst [vmem:[%s121] sm:$0xf] %v268
      %v270 = vld [vmem:[%s121 + $0x4] sm:$0xf]
      %v271 = vsel %vm266, %v258, %v270
      %272 = vst [vmem:[%s121 + $0x4] sm:$0xf] %v271
      %v273 = vld [vmem:[%s121 + $0x8] sm:$0xf]
      %v274 = vsel %vm266, %v259, %v273
      %275 = vst [vmem:[%s121 + $0x8] sm:$0xf] %v274
      %v276 = vld [vmem:[%s121 + $0xc] sm:$0xf]
      %v277 = vsel %vm266, %v260, %v276
      %278 = vst [vmem:[%s121 + $0xc] sm:$0xf] %v277
      %v279 = vld [vmem:[%s121 + $0x10] sm:$0xf]
      %v280 = vsel %vm266, %v261, %v279
      %281 = vst [vmem:[%s121 + $0x10] sm:$0xf] %v280
      %v282 = vld [vmem:[%s121 + $0x14] sm:$0xf]
      %v283 = vsel %vm266, %v262, %v282
      %284 = vst [vmem:[%s121 + $0x14] sm:$0xf] %v283
      %v285 = vld [vmem:[%s121 + $0x18] sm:$0xf]
      %v286 = vsel %vm266, %v263, %v285
      %287 = vst [vmem:[%s121 + $0x18] sm:$0xf] %v286
      %s288 = smul.u32 7, %s12
      %p289 = scmp.lt.s32.totalorder %s288, 13
      %s290 = scalar_select %p289, %s288, 13
      %s291 = smul.addr %s290, 4
      %s292 = scalar_lea.vmem %s1, %s291
      // Predicated region
      $region25: #{alnet_feature_extractor.6} parent=23 // pred_check
        %p293 = pneg %p56
      $region26: #{alnet_feature_extractor.6} parent=23 // pred_check_branch
        %295 = sbr.rel (%p293) target = $region28
      $region27: #{alnet_feature_extractor.6} parent=23 // pred_region
        %s296 = smul.u32 7, %s12
      $region28: #{alnet_feature_extractor.6} parent=23 // pred_fallthru
        _
    $region24: #{alnet_feature_extractor.6} parent=5 // pred_fallthru
      _
    %p297 = scmp.le.s32.totalorder 2, %s7
    // Predicated region
    $region29: #{alnet_feature_extractor.6} parent=5 // pred_check
      %p298 = pneg %p297
    $region30: #{alnet_feature_extractor.6} parent=5 // pred_check_branch
      %300 = sbr.rel (%p298) target = $region32
    $region31: #{alnet_feature_extractor.6} parent=5 // pred_region
      %s301 = ssub.s32 %s7, 2
      // Predicated region
      $region33: #{alnet_feature_extractor.6} parent=31 // pred_check
        %p302 = pneg %p62
      $region34: #{alnet_feature_extractor.6} parent=31 // pred_check_branch
        %304 = sbr.rel (%p302) target = $region36
      $region35: #{alnet_feature_extractor.6} parent=31 // pred_region
        %s305 = smul.u32 7, %s13
        %p306 = scmp.lt.s32.totalorder %s305, 13
        %s307 = scalar_select %p306, %s305, 13
        %s308 = smul.addr %s307, 4
        %s309 = scalar_lea.vmem %s1, %s308
      $region36: #{alnet_feature_extractor.6} parent=31 // pred_fallthru
        _
    $region32: #{alnet_feature_extractor.6} parent=5 // pred_fallthru
      _
  $region6: #{alnet_feature_extractor.6} parent=0 // loop_footer
    %s11 = sadd.s32 1, %s7
  $region7: #{alnet_feature_extractor.6} parent=0 // loop_footer_branch
    %6 = sbr.rel target = $region3
  $region8: #{alnet_feature_extractor.6} parent=0 // loop_exit
    _

// kernel: alnet_feature_extractor.5
$region0: #{alnet_feature_extractor.5}
  #allocation0 [shape = 'u32[]', space=smem, size = 0x4, offset = 0x4, fixed_abs, tag = 'smem constant byte address 0x4 - core index']
  #allocation1 [shape = 'u32[144,128]{1,0:T(1,128)}', space=vmem, size = 0x12000, scoped, tag = 'internal scratch']
  %s0 = inlined_call_operand.vmem [shape: bf16[512,363], index: 0, kind: input, shape index: {}]
  %s1 = inlined_call_operand.vmem [shape: bf16[363,64], index: 1, kind: input, shape index: {}]
  %s2 = inlined_call_operand.vmem [shape: f32[1,64], index: 2, kind: input, shape index: {}]
  %s3 = inlined_call_operand.vmem [shape: bf16[512,64], index: 3, kind: output, shape index: {}]
  %s4 = sld [smem:[#allocation0]]
  $region45: #{alnet_feature_extractor.5} parent=0
    _
  %s6 = ssub.s32 1, %s4
  %s7 = scalar_select 0, %s6, %s4
  loop: start=0, step=1, limit=4
  $region2: #{alnet_feature_extractor.5} parent=0 // loop_pre_header
    _
  $region3: #{alnet_feature_extractor.5} parent=0 // loop_header
    %s9 = sphi 0, %s13
    %p10 = scmp.ge.s32.totalorder %s9, 4
    %s19 = sphi 0, %s21
    %s22 = sphi 0, %s19
    %s23 = sphi 0, %s22
    %s39 = sphi 0, %s23
    %s43 = sphi 0, %s43
    %s45 = sphi 0, %s43
    %s46 = sphi 0, %s45
    %s60 = sphi 0, %s46
    %s64 = sphi 0, %s64
    %s66 = sphi 0, %s64
    %s67 = sphi 0, %s66
    %s81 = sphi 0, %s67
    %s87 = sphi 0, %s89
    %s90 = sphi 0, %s87
    %s91 = sphi 0, %s90
    %s107 = sphi 0, %s91
  $region4: #{alnet_feature_extractor.5} parent=0 // loop_header_branch
    %12 = sbr.rel (%p10) target = $region8
  $region5: #{alnet_feature_extractor.5} parent=0 // loop_body
    %s14 = ssub.s32 %s9, 1
    %s15 = ssub.s32 %s9, 2
    %s16 = sadd.s32 %s9, 1
    %s17 = ssub.s32 %s9, %s16
    %p18 = scmp.eq.s32.totalorder %s17, 0
    %s20 = sadd.s32 %s19, 1
    %s21 = scalar_select %p18, %s19, %s20
    %p24 = pneg %p18
    %p25 = scmp.eq.s32.totalorder %s9, 1
    %p26 = por %p24, %p25
    %p27 = scmp.ne.s32.totalorder %s19, %s22
    %p28 = scmp.eq.s32.totalorder %s9, 0
    %p29 = por %p27, %p28
    %p30 = scmp.ne.s32.totalorder %s19, %s22
    %p31 = scmp.eq.s32.totalorder %s14, 1
    %p32 = por %p30, %p31
    %p33 = scmp.ne.s32.totalorder %s22, %s23
    %p34 = scmp.eq.s32.totalorder %s14, 0
    %p35 = por %p33, %p34
    %p36 = scmp.ne.s32.totalorder %s22, %s23
    %p37 = scmp.eq.s32.totalorder %s15, 1
    %p38 = por %p36, %p37
    %p40 = scmp.ne.s32.totalorder %s23, %s39
    %p41 = scmp.eq.s32.totalorder %s15, 0
    %p42 = por %p40, %p41
    %s44 = sadd.s32 %s43, 1
    %p47 = scmp.eq.s32.totalorder %s9, 1
    %p48 = scmp.ne.s32.totalorder %s43, %s45
    %p49 = scmp.eq.s32.totalorder %s9, 0
    %p50 = por %p48, %p49
    %p51 = scmp.ne.s32.totalorder %s43, %s45
    %p52 = scmp.eq.s32.totalorder %s14, 1
    %p53 = por %p51, %p52
    %p54 = scmp.ne.s32.totalorder %s45, %s46
    %p55 = scmp.eq.s32.totalorder %s14, 0
    %p56 = por %p54, %p55
    %p57 = scmp.ne.s32.totalorder %s45, %s46
    %p58 = scmp.eq.s32.totalorder %s15, 1
    %p59 = por %p57, %p58
    %p61 = scmp.ne.s32.totalorder %s46, %s60
    %p62 = scmp.eq.s32.totalorder %s15, 0
    %p63 = por %p61, %p62
    %s65 = sadd.s32 %s64, 1
    %p68 = scmp.eq.s32.totalorder %s9, 1
    %p69 = scmp.ne.s32.totalorder %s64, %s66
    %p70 = scmp.eq.s32.totalorder %s9, 0
    %p71 = por %p69, %p70
    %p72 = scmp.ne.s32.totalorder %s64, %s66
    %p73 = scmp.eq.s32.totalorder %s14, 1
    %p74 = por %p72, %p73
    %p75 = scmp.ne.s32.totalorder %s66, %s67
    %p76 = scmp.eq.s32.totalorder %s14, 0
    %p77 = por %p75, %p76
    %p78 = scmp.ne.s32.totalorder %s66, %s67
    %p79 = scmp.eq.s32.totalorder %s15, 1
    %p80 = por %p78, %p79
    %p82 = scmp.ne.s32.totalorder %s67, %s81
    %p83 = scmp.eq.s32.totalorder %s15, 0
    %p84 = por %p82, %p83
    %s85 = ssub.s32 %s9, %s16
    %p86 = scmp.eq.s32.totalorder %s85, 0
    %s88 = sadd.s32 %s87, 1
    %s89 = scalar_select %p86, %s87, %s88
    %p92 = pneg %p86
    %p93 = scmp.eq.s32.totalorder %s9, 1
    %p94 = por %p92, %p93
    %p95 = scmp.ne.s32.totalorder %s87, %s90
    %p96 = scmp.eq.s32.totalorder %s9, 0
    %p97 = por %p95, %p96
    %p98 = scmp.ne.s32.totalorder %s87, %s90
    %p99 = scmp.eq.s32.totalorder %s14, 1
    %p100 = por %p98, %p99
    %p101 = scmp.ne.s32.totalorder %s90, %s91
    %p102 = scmp.eq.s32.totalorder %s14, 0
    %p103 = por %p101, %p102
    %p104 = scmp.ne.s32.totalorder %s90, %s91
    %p105 = scmp.eq.s32.totalorder %s15, 1
    %p106 = por %p104, %p105
    %p108 = scmp.ne.s32.totalorder %s91, %s107
    %p109 = scmp.eq.s32.totalorder %s15, 0
    %p110 = por %p108, %p109
    %p111 = scmp.le.s32.totalorder 1, %s9
    %p112 = scmp.lt.s32.totalorder %s9, 3
    %p113 = pnand %p111, %p112
    %p114 = pneg %p113
    // Predicated region
    $region9: #{alnet_feature_extractor.5} parent=5 // pred_check
      _
    $region10: #{alnet_feature_extractor.5} parent=5 // pred_check_branch
      %116 = sbr.rel (%p113) target = $region12
    $region11: #{alnet_feature_extractor.5} parent=5 // pred_region
      %s117 = ssub.s32 %s9, 1
      // Predicated region
      $region13: #{alnet_feature_extractor.5} parent=11 // pred_check
        %p118 = pneg %p56
      $region14: #{alnet_feature_extractor.5} parent=11 // pred_check_branch
        %120 = sbr.rel (%p118) target = $region16
      $region15: #{alnet_feature_extractor.5} parent=11 // pred_region
        _
      $region16: #{alnet_feature_extractor.5} parent=11 // pred_fallthru
        _
      // Predicated region
      $region17: #{alnet_feature_extractor.5} parent=11 // pred_check
        %p121 = pneg %p77
      $region18: #{alnet_feature_extractor.5} parent=11 // pred_check_branch
        %123 = sbr.rel (%p121) target = $region20
      $region19: #{alnet_feature_extractor.5} parent=11 // pred_region
        _
      $region20: #{alnet_feature_extractor.5} parent=11 // pred_fallthru
        _
    $region12: #{alnet_feature_extractor.5} parent=5 // pred_fallthru
      _
    %p124 = scmp.lt.s32.totalorder %s9, 2
    // Predicated region
    $region21: #{alnet_feature_extractor.5} parent=5 // pred_check
      %p125 = pneg %p124
    $region22: #{alnet_feature_extractor.5} parent=5 // pred_check_branch
      %127 = sbr.rel (%p125) target = $region24
    $region23: #{alnet_feature_extractor.5} parent=5 // pred_region
      // Predicated region
      $region25: #{alnet_feature_extractor.5} parent=23 // pred_check
        %p128 = pneg %p29
      $region26: #{alnet_feature_extractor.5} parent=23 // pred_check_branch
        %130 = sbr.rel (%p128) target = $region28
      $region27: #{alnet_feature_extractor.5} parent=23 // pred_region
        %s131 = smul.u32 32, %s9
        %p132 = scmp.lt.s32.totalorder %s131, 63
        %s133 = scalar_select %p132, %s131, 63
        %s134 = smul.addr %s133, 3
        %s135 = smul.addr %s134, 4
        %s136 = scalar_lea.vmem %s0, %s135
        %s137 = smul.u32 32, %s9
      $region28: #{alnet_feature_extractor.5} parent=23 // pred_fallthru
        _
    $region24: #{alnet_feature_extractor.5} parent=5 // pred_fallthru
      _
    %p138 = scmp.le.s32.totalorder 1, %s9
    %p139 = scmp.lt.s32.totalorder %s9, 3
    %p140 = pnand %p138, %p139
    %p141 = pneg %p140
    // Predicated region
    $region29: #{alnet_feature_extractor.5} parent=5 // pred_check
      _
    $region30: #{alnet_feature_extractor.5} parent=5 // pred_check_branch
      %143 = sbr.rel (%p140) target = $region32
    $region31: #{alnet_feature_extractor.5} parent=5 // pred_region
      %s144 = ssub.s32 %s9, 1
      %s145 = smul.u32 32, %s14
      %p146 = scmp.lt.s32.totalorder %s145, 63
      %s147 = scalar_select %p146, %s145, 63
      %s148 = smul.addr %s147, 3
      %s149 = smul.addr %s148, 4
      %s150 = scalar_lea.vmem %s0, %s149
      %p151 = pneg %p35
      %p152 = pneg %p32
      %p153 = pneg %p56
      %p154 = pneg %p53
      %p155 = pneg %p77
      %p156 = pneg %p74
      %p157 = pneg %p103
      %p158 = pneg %p100
      %s159 = smul.u32 32, %s14
      %p160 = scmp.lt.s32.totalorder %s159, 63
      %s161 = scalar_select %p160, %s159, 63
      %s162 = smul.addr %s161, 4
      %s163 = scalar_lea.vmem %s3, %s162
      %s164 = smul.u32 32, %s14
      %p165 = scmp.lt.s32.totalorder %s164, 63
      %s166 = scalar_select %p165, %s164, 63
      %s167 = smul.addr %s166, 3
      %s168 = smul.addr %s167, 4
      %s169 = scalar_lea.vmem %s0, %s168
      %s170 = smul.u32 32, %s14
      %s171 = smul.u32 32, %s14
      %p172 = scmp.lt.s32.totalorder %s171, 63
      %s173 = scalar_select %p172, %s171, 63
      %s174 = smul.addr %s173, 4
      %s175 = scalar_lea.vmem %s3, %s174
      %s176 = smul.u32 32, %s14
      %v178 = vld [vmem:[%s169] sm:$0xff]
      %v179 = vld [vmem:[%s169 + $0x8] sm:$0xf]
      %v180 = vld [vmem:[%s169 + $0xc] sm:$0xff]
      %v181 = vld [vmem:[%s169 + $0x14] sm:$0xf]
      %v182 = vld [vmem:[%s169 + $0x18] sm:$0xff]
      %v183 = vld [vmem:[%s169 + $0x20] sm:$0xf]
      %v184 = vld [vmem:[%s169 + $0x24] sm:$0xff]
      %v185 = vld [vmem:[%s169 + $0x2c] sm:$0xf]
      %v186 = vld [vmem:[%s169 + $0x30] sm:$0xff]
      %v187 = vld [vmem:[%s169 + $0x38] sm:$0xf]
      %v188 = vld [vmem:[%s169 + $0x3c] sm:$0xff]
      %v189 = vld [vmem:[%s169 + $0x44] sm:$0xf]
      %v190 = vld [vmem:[%s169 + $0x48] sm:$0xff]
      %v191 = vld [vmem:[%s169 + $0x50] sm:$0xf]
      %v192 = vld [vmem:[%s169 + $0x54] sm:$0xff]
      %v193 = vld [vmem:[%s169 + $0x5c] sm:$0xf]
      %v194 = vld [vmem:[%s169 + $0x60] sm:$0xff]
      %v195 = vld [vmem:[%s169 + $0x68] sm:$0xf]
      %v196 = vld [vmem:[%s169 + $0x6c] sm:$0xff]
      %v197 = vld [vmem:[%s169 + $0x74] sm:$0xf]
      %v198 = vld [vmem:[%s169 + $0x78] sm:$0xff]
      %v199 = vld [vmem:[%s169 + $0x80] sm:$0xf]
      %v200 = vld [vmem:[%s169 + $0x84] sm:$0xff]
      %v201 = vld [vmem:[%s169 + $0x8c] sm:$0xf]
      %v202 = vld [vmem:[%s169 + $0x90] sm:$0xff]
      %v203 = vld [vmem:[%s169 + $0x98] sm:$0xf]
      %v204 = vld [vmem:[%s169 + $0x9c] sm:$0xff]
      %v205 = vld [vmem:[%s169 + $0xa4] sm:$0xf]
      %v206 = vld [vmem:[%s169 + $0xa8] sm:$0xff]
      %v207 = vld [vmem:[%s169 + $0xb0] sm:$0xf]
      %v208 = vld [vmem:[%s169 + $0xb4] sm:$0xff]
      %v209 = vld [vmem:[%s169 + $0xbc] sm:$0xf]
      %v210 = vld [vmem:[%s169 + $0xc0] sm:$0xff]
      %v211 = vld [vmem:[%s169 + $0xc8] sm:$0xf]
      %v212 = vld [vmem:[%s169 + $0xcc] sm:$0xff]
      %v213 = vld [vmem:[%s169 + $0xd4] sm:$0xf]
      %v214 = vld [vmem:[%s169 + $0xd8] sm:$0xff]
      %v215 = vld [vmem:[%s169 + $0xe0] sm:$0xf]
      %v216 = vld [vmem:[%s169 + $0xe4] sm:$0xff]
      %v217 = vld [vmem:[%s169 + $0xec] sm:$0xf]
      %v218 = vld [vmem:[%s169 + $0xf0] sm:$0xff]
      %v219 = vld [vmem:[%s169 + $0xf8] sm:$0xf]
      %v220 = vld [vmem:[%s169 + $0xfc] sm:$0xff]
      %v221 = vld [vmem:[%s169 + $0x104] sm:$0xf]
      %v222 = vld [vmem:[%s169 + $0x108] sm:$0xff]
      %v223 = vld [vmem:[%s169 + $0x110] sm:$0xf]
      %v224 = vld [vmem:[%s169 + $0x114] sm:$0xff]
      %v225 = vld [vmem:[%s169 + $0x11c] sm:$0xf]
      %v226 = vld [vmem:[%s169 + $0x120] sm:$0xff]
      %v227 = vld [vmem:[%s169 + $0x128] sm:$0xf]
      %v228 = vld [vmem:[%s169 + $0x12c] sm:$0xff]
      %v229 = vld [vmem:[%s169 + $0x134] sm:$0xf]
      %v230 = vld [vmem:[%s169 + $0x138] sm:$0xff]
      %v231 = vld [vmem:[%s169 + $0x140] sm:$0xf]
      %v232 = vld [vmem:[%s169 + $0x144] sm:$0xff]
      %v233 = vld [vmem:[%s169 + $0x14c] sm:$0xf]
      %v234 = vld [vmem:[%s169 + $0x150] sm:$0xff]
      %v235 = vld [vmem:[%s169 + $0x158] sm:$0xf]
      %v236 = vld [vmem:[%s169 + $0x15c] sm:$0xff]
      %v237 = vld [vmem:[%s169 + $0x164] sm:$0xf]
      %v238 = vld [vmem:[%s169 + $0x168] sm:$0xff]
      %v239 = vld [vmem:[%s169 + $0x170] sm:$0xf]
      %v240 = vld [vmem:[%s169 + $0x174] sm:$0xff]
      %v241 = vld [vmem:[%s169 + $0x17c] sm:$0xf]
      %v242 = vld [vmem:[%s1] sm:$0xf]
      %v243 = vld [vmem:[%s1 + $0x4] sm:$0xf]
      %v244 = vld [vmem:[%s1 + $0x8] sm:$0xf]
      %v245 = vld [vmem:[%s1 + $0xc] sm:$0xf]
      %v246 = vld [vmem:[%s1 + $0x10] sm:$0xf]
      %v247 = vld [vmem:[%s1 + $0x14] sm:$0xf]
      %v248 = vld [vmem:[%s1 + $0x18] sm:$0xf]
      %v249 = vld [vmem:[%s1 + $0x1c] sm:$0xf]
      %v250 = vld [vmem:[%s1 + $0x20] sm:$0xf]
      %v251 = vld [vmem:[%s1 + $0x24] sm:$0xf]
      %v252 = vld [vmem:[%s1 + $0x28] sm:$0xf]
      %v253 = vld [vmem:[%s1 + $0x2c] sm:$0xf]
      %v254 = vld [vmem:[%s1 + $0x30] sm:$0xf]
      %v255 = vld [vmem:[%s1 + $0x34] sm:$0xf]
      %v256 = vld [vmem:[%s1 + $0x38] sm:$0xf]
      %v257 = vld [vmem:[%s1 + $0x3c] sm:$0xf]
      %v258 = vld [vmem:[%s1 + $0x40] sm:$0xf]
      %v259 = vld [vmem:[%s1 + $0x44] sm:$0xf]
      %v260 = vld [vmem:[%s1 + $0x48] sm:$0xf]
      %v261 = vld [vmem:[%s1 + $0x4c] sm:$0xf]
      %v262 = vld [vmem:[%s1 + $0x50] sm:$0xf]
      %v263 = vld [vmem:[%s1 + $0x54] sm:$0xf]
      %v264 = vld [vmem:[%s1 + $0x58] sm:$0xf]
      %v265 = vld [vmem:[%s1 + $0x5c] sm:$0xf]
      %v266 = vld [vmem:[%s1 + $0x60] sm:$0xf]
      %v267 = vld [vmem:[%s1 + $0x64] sm:$0xf]
      %v268 = vld [vmem:[%s1 + $0x68] sm:$0xf]
      %v269 = vld [vmem:[%s1 + $0x6c] sm:$0xf]
      %v270 = vld [vmem:[%s1 + $0x70] sm:$0xf]
      %v271 = vld [vmem:[%s1 + $0x74] sm:$0xf]
      %v272 = vld [vmem:[%s1 + $0x78] sm:$0xf]
      %v273 = vld [vmem:[%s1 + $0x7c] sm:$0xf]
      %v274 = vld [vmem:[%s1 + $0x80] sm:$0xf]
      %v275 = vld [vmem:[%s1 + $0x84] sm:$0xf]
      %v276 = vld [vmem:[%s1 + $0x88] sm:$0xf]
      %v277 = vld [vmem:[%s1 + $0x8c] sm:$0xf]
      %v278 = vld [vmem:[%s1 + $0x90] sm:$0xf]
      %v279 = vld [vmem:[%s1 + $0x94] sm:$0xf]
      %v280 = vld [vmem:[%s1 + $0x98] sm:$0xf]
      %v281 = vld [vmem:[%s1 + $0x9c] sm:$0xf]
      %v282 = vld [vmem:[%s1 + $0xa0] sm:$0xf]
      %v283 = vld [vmem:[%s1 + $0xa4] sm:$0xf]
      %v284 = vld [vmem:[%s1 + $0xa8] sm:$0xf]
      %v285 = vld [vmem:[%s1 + $0xac] sm:$0xf]
      %v286 = vld [vmem:[%s1 + $0xb0] sm:$0xf]
      %v287 = vld [vmem:[%s1 + $0xb4] sm:$0x3]
      %v288 = vld [vmem:[%s2] sm:$0x1]
      %v290 = vlaneseq
      %v291 = vshrl.u32 %v290, 7
      %v292 = vsub.s32 0, %v291
      %v293 = vrot.slane %v288, %v292
      %v359 = vunpack.c.l.b16 %v178
      %v360 = vunpack.c.h.b16 %v178
      %v361 = vunpack.c.l.b16 %v179
      %v362 = vunpack.c.l.b16 %v180
      %v363 = vunpack.c.h.b16 %v180
      %v364 = vunpack.c.l.b16 %v181
      %v365 = vunpack.c.l.b16 %v182
      %v366 = vunpack.c.h.b16 %v182
      %v367 = vunpack.c.l.b16 %v183
      %v368 = vunpack.c.l.b16 %v184
      %v369 = vunpack.c.h.b16 %v184
      %v370 = vunpack.c.l.b16 %v185
      %v371 = vunpack.c.l.b16 %v186
      %v372 = vunpack.c.h.b16 %v186
      %v373 = vunpack.c.l.b16 %v187
      %v374 = vunpack.c.l.b16 %v188
      %v375 = vunpack.c.h.b16 %v188
      %v376 = vunpack.c.l.b16 %v189
      %v377 = vunpack.c.l.b16 %v190
      %v378 = vunpack.c.h.b16 %v190
      %v379 = vunpack.c.l.b16 %v191
      %v380 = vunpack.c.l.b16 %v192
      %v381 = vunpack.c.h.b16 %v192
      %v382 = vunpack.c.l.b16 %v193
      %v383 = vunpack.c.l.b16 %v194
      %v384 = vunpack.c.h.b16 %v194
      %v385 = vunpack.c.l.b16 %v195
      %v386 = vunpack.c.l.b16 %v196
      %v387 = vunpack.c.h.b16 %v196
      %v388 = vunpack.c.l.b16 %v197
      %v389 = vunpack.c.l.b16 %v198
      %v390 = vunpack.c.h.b16 %v198
      %v391 = vunpack.c.l.b16 %v199
      %v392 = vunpack.c.l.b16 %v200
      %v393 = vunpack.c.h.b16 %v200
      %v394 = vunpack.c.l.b16 %v201
      %v395 = vunpack.c.l.b16 %v202
      %v396 = vunpack.c.h.b16 %v202
      %v397 = vunpack.c.l.b16 %v203
      %v398 = vunpack.c.l.b16 %v204
      %v399 = vunpack.c.h.b16 %v204
      %v400 = vunpack.c.l.b16 %v205
      %v401 = vunpack.c.l.b16 %v206
      %v402 = vunpack.c.h.b16 %v206
      %v403 = vunpack.c.l.b16 %v207
      %v404 = vunpack.c.l.b16 %v208
      %v405 = vunpack.c.h.b16 %v208
      %v406 = vunpack.c.l.b16 %v209
      %v407 = vunpack.c.l.b16 %v210
      %v408 = vunpack.c.h.b16 %v210
      %v409 = vunpack.c.l.b16 %v211
      %v410 = vunpack.c.l.b16 %v212
      %v411 = vunpack.c.h.b16 %v212
      %v412 = vunpack.c.l.b16 %v213
      %v413 = vunpack.c.l.b16 %v214
      %v414 = vunpack.c.h.b16 %v214
      %v415 = vunpack.c.l.b16 %v215
      %v416 = vunpack.c.l.b16 %v216
      %v417 = vunpack.c.h.b16 %v216
      %v418 = vunpack.c.l.b16 %v217
      %v419 = vunpack.c.l.b16 %v218
      %v420 = vunpack.c.h.b16 %v218
      %v421 = vunpack.c.l.b16 %v219
      %v422 = vunpack.c.l.b16 %v220
      %v423 = vunpack.c.h.b16 %v220
      %v424 = vunpack.c.l.b16 %v221
      %v425 = vunpack.c.l.b16 %v222
      %v426 = vunpack.c.h.b16 %v222
      %v427 = vunpack.c.l.b16 %v223
      %v428 = vunpack.c.l.b16 %v224
      %v429 = vunpack.c.h.b16 %v224
      %v430 = vunpack.c.l.b16 %v225
      %v431 = vunpack.c.l.b16 %v226
      %v432 = vunpack.c.h.b16 %v226
      %v433 = vunpack.c.l.b16 %v227
      %v434 = vunpack.c.l.b16 %v228
      %v435 = vunpack.c.h.b16 %v228
      %v436 = vunpack.c.l.b16 %v229
      %v437 = vunpack.c.l.b16 %v230
      %v438 = vunpack.c.h.b16 %v230
      %v439 = vunpack.c.l.b16 %v231
      %v440 = vunpack.c.l.b16 %v232
      %v441 = vunpack.c.h.b16 %v232
      %v442 = vunpack.c.l.b16 %v233
      %v443 = vunpack.c.l.b16 %v234
      %v444 = vunpack.c.h.b16 %v234
      %v445 = vunpack.c.l.b16 %v235
      %v446 = vunpack.c.l.b16 %v236
      %v447 = vunpack.c.h.b16 %v236
      %v448 = vunpack.c.l.b16 %v237
      %v449 = vunpack.c.l.b16 %v238
      %v450 = vunpack.c.h.b16 %v238
      %v451 = vunpack.c.l.b16 %v239
      %v452 = vunpack.c.l.b16 %v240
      %v453 = vunpack.c.h.b16 %v240
      %v454 = vunpack.c.l.b16 %v241
      %v455 = vpack.c.b16 %v362, %v359
      %v456 = vpack.c.b16 %v363, %v360
      %v457 = vpack.c.b16 %v364, %v361
      %v458 = vpack.c.b16 %v368, %v365
      %v459 = vpack.c.b16 %v369, %v366
      %v460 = vpack.c.b16 %v370, %v367
      %v461 = vpack.c.b16 %v374, %v371
      %v462 = vpack.c.b16 %v375, %v372
      %v463 = vpack.c.b16 %v376, %v373
      %v464 = vpack.c.b16 %v380, %v377
      %v465 = vpack.c.b16 %v381, %v378
      %v466 = vpack.c.b16 %v382, %v379
      %v467 = vpack.c.b16 %v386, %v383
      %v468 = vpack.c.b16 %v387, %v384
      %v469 = vpack.c.b16 %v388, %v385
      %v470 = vpack.c.b16 %v392, %v389
      %v471 = vpack.c.b16 %v393, %v390
      %v472 = vpack.c.b16 %v394, %v391
      %v473 = vpack.c.b16 %v398, %v395
      %v474 = vpack.c.b16 %v399, %v396
      %v475 = vpack.c.b16 %v400, %v397
      %v476 = vpack.c.b16 %v404, %v401
      %v477 = vpack.c.b16 %v405, %v402
      %v478 = vpack.c.b16 %v406, %v403
      %v479 = vpack.c.b16 %v410, %v407
      %v480 = vpack.c.b16 %v411, %v408
      %v481 = vpack.c.b16 %v412, %v409
      %v482 = vpack.c.b16 %v416, %v413
      %v483 = vpack.c.b16 %v417, %v414
      %v484 = vpack.c.b16 %v418, %v415
      %v485 = vpack.c.b16 %v422, %v419
      %v486 = vpack.c.b16 %v423, %v420
      %v487 = vpack.c.b16 %v424, %v421
      %v488 = vpack.c.b16 %v428, %v425
      %v489 = vpack.c.b16 %v429, %v426
      %v490 = vpack.c.b16 %v430, %v427
      %v491 = vpack.c.b16 %v434, %v431
      %v492 = vpack.c.b16 %v435, %v432
      %v493 = vpack.c.b16 %v436, %v433
      %v494 = vpack.c.b16 %v440, %v437
      %v495 = vpack.c.b16 %v441, %v438
      %v496 = vpack.c.b16 %v442, %v439
      %v497 = vpack.c.b16 %v446, %v443
      %v498 = vpack.c.b16 %v447, %v444
      %v499 = vpack.c.b16 %v448, %v445
      %v500 = vpack.c.b16 %v452, %v449
      %v501 = vpack.c.b16 %v453, %v450
      %v502 = vpack.c.b16 %v454, %v451
      %v581 = vunpack.c.l.b16 %v242
      %v582 = vunpack.c.l.b16 %v243
      %v583 = vunpack.c.l.b16 %v244
      %v584 = vunpack.c.l.b16 %v245
      %v585 = vunpack.c.l.b16 %v246
      %v586 = vunpack.c.l.b16 %v247
      %v587 = vunpack.c.l.b16 %v248
      %v588 = vunpack.c.l.b16 %v249
      %v589 = vunpack.c.l.b16 %v250
      %v590 = vunpack.c.l.b16 %v251
      %v591 = vunpack.c.l.b16 %v252
      %v592 = vunpack.c.l.b16 %v253
      %v593 = vunpack.c.l.b16 %v254
      %v594 = vunpack.c.l.b16 %v255
      %v595 = vunpack.c.l.b16 %v256
      %v596 = vunpack.c.l.b16 %v257
      %v597 = vunpack.c.l.b16 %v258
      %v598 = vunpack.c.l.b16 %v259
      %v599 = vunpack.c.l.b16 %v260
      %v600 = vunpack.c.l.b16 %v261
      %v601 = vunpack.c.l.b16 %v262
      %v602 = vunpack.c.l.b16 %v263
      %v603 = vunpack.c.l.b16 %v264
      %v604 = vunpack.c.l.b16 %v265
      %v605 = vunpack.c.l.b16 %v266
      %v606 = vunpack.c.l.b16 %v267
      %v607 = vunpack.c.l.b16 %v268
      %v608 = vunpack.c.l.b16 %v269
      %v609 = vunpack.c.l.b16 %v270
      %v610 = vunpack.c.l.b16 %v271
      %v611 = vunpack.c.l.b16 %v272
      %v612 = vunpack.c.l.b16 %v273
      %v613 = vunpack.c.l.b16 %v274
      %v614 = vunpack.c.l.b16 %v275
      %v615 = vunpack.c.l.b16 %v276
      %v616 = vunpack.c.l.b16 %v277
      %v617 = vunpack.c.l.b16 %v278
      %v618 = vunpack.c.l.b16 %v279
      %v619 = vunpack.c.l.b16 %v280
      %v620 = vunpack.c.l.b16 %v281
      %v621 = vunpack.c.l.b16 %v282
      %v622 = vunpack.c.l.b16 %v283
      %v623 = vunpack.c.l.b16 %v284
      %v624 = vunpack.c.l.b16 %v285
      %v625 = vunpack.c.l.b16 %v286
      %v626 = vunpack.c.l.b16 %v287
      %v627 = vpack.c.b16 %v582, %v581
      %v628 = vpack.c.b16 %v584, %v583
      %v629 = vpack.c.b16 %v586, %v585
      %v630 = vpack.c.b16 %v588, %v587
      %v631 = vpack.c.b16 %v590, %v589
      %v632 = vpack.c.b16 %v592, %v591
      %v633 = vpack.c.b16 %v594, %v593
      %v634 = vpack.c.b16 %v596, %v595
      %v635 = vpack.c.b16 %v598, %v597
      %v636 = vpack.c.b16 %v600, %v599
      %v637 = vpack.c.b16 %v602, %v601
      %v638 = vpack.c.b16 %v604, %v603
      %v639 = vpack.c.b16 %v606, %v605
      %v640 = vpack.c.b16 %v608, %v607
      %v641 = vpack.c.b16 %v610, %v609
      %v642 = vpack.c.b16 %v612, %v611
      %v643 = vpack.c.b16 %v614, %v613
      %v644 = vpack.c.b16 %v616, %v615
      %v645 = vpack.c.b16 %v618, %v617
      %v646 = vpack.c.b16 %v620, %v619
      %v647 = vpack.c.b16 %v622, %v621
      %v648 = vpack.c.b16 %v624, %v623
      %v649 = vpack.c.b16 %v626, %v625
      %vm672 = vcmask 875520
      %v674 = vsel %vm672, %v457, 0
      %v677 = vsel %vm672, %v460, 0
      %v680 = vsel %vm672, %v463, 0
      %v683 = vsel %vm672, %v466, 0
      %v686 = vsel %vm672, %v469, 0
      %v689 = vsel %vm672, %v472, 0
      %v692 = vsel %vm672, %v475, 0
      %v695 = vsel %vm672, %v478, 0
      %v698 = vsel %vm672, %v481, 0
      %v701 = vsel %vm672, %v484, 0
      %v704 = vsel %vm672, %v487, 0
      %v707 = vsel %vm672, %v490, 0
      %v710 = vsel %vm672, %v493, 0
      %v713 = vsel %vm672, %v496, 0
      %v716 = vsel %vm672, %v499, 0
      %v719 = vsel %vm672, %v502, 0
      %vm721 = vcmask 1044480
      %vm722 = vcmask 1045504
      %v723 = vsel %vm721, 4294967295, 65535
      %v724 = vsel %vm722, %v723, 0
      %v726 = vand.u32 %v649, %v724
      %728 = vmatprep.subr.bf16.mxu0 0
      %729 = vmatpush1.bf16.msra.mxu0 %v627
      %730 = vmatprep.subr.bf16.mxu0 0
      %731 = vmatpush1.bf16.msra.mxu0 %v628
      %732 = vmatprep.subr.bf16.mxu0 0
      %733 = vmatpush1.bf16.msra.mxu0 %v629
      %734 = vmatprep.subr.bf16.mxu0 0
      %735 = vmatpush1.bf16.msra.mxu0 %v630
      %736 = vmatprep.subr.bf16.mxu0 0
      %737 = vmatpush1.bf16.msra.mxu0 %v631
      %738 = vmatprep.subr.bf16.mxu0 0
      %739 = vmatpush1.bf16.msra.mxu0 %v632
      %740 = vmatprep.subr.bf16.mxu0 0
      %741 = vmatpush1.bf16.msra.mxu0 %v633
      %742 = vmatprep.subr.bf16.mxu0 0
      %743 = vmatpush1.bf16.msra.mxu0 %v634
      %744 = vmatprep.subr.bf16.mxu0 0
      %745 = vmatpush1.bf16.msra.mxu0 %v635
      %746 = vmatprep.subr.bf16.mxu0 0
      %747 = vmatpush1.bf16.msra.mxu0 %v636
      %748 = vmatprep.subr.bf16.mxu0 0
      %749 = vmatpush1.bf16.msra.mxu0 %v637
      %750 = vmatprep.subr.bf16.mxu0 0
      %751 = vmatpush1.bf16.msra.mxu0 %v638
      %752 = vmatprep.subr.bf16.mxu0 0
      %753 = vmatpush1.bf16.msra.mxu0 %v639
      %754 = vmatprep.subr.bf16.mxu0 0
      %755 = vmatpush1.bf16.msra.mxu0 %v640
      %756 = vmatprep.subr.bf16.mxu0 0
      %757 = vmatpush1.bf16.msra.mxu0 %v641
      %758 = vmatprep.subr.bf16.mxu0 0
      %759 = vmatpush1.bf16.msra.mxu0 %v642
      %760 = vmatprep.mubr.bf16.mxu0 %v456
      %761 = vmatmul.mubr.bf16.gmra.mrb[0].mxu0 %v455
      %v762 = vpop.f32.mrb[0].mxu0
      %v763 = vadd.f32 %v293, %v762
      %v764 = vpop.f32.mrb[0].mxu0
      %v765 = vpop.f32.mrb[0].mxu0
      %v766 = vadd.f32 %v293, %v765
      %v767 = vpop.f32.mrb[0].mxu0
      %768 = vmatprep.mubr.bf16.mxu0 %v459
      %769 = vmatmul.mubr.bf16.gmra.mrb[0].mxu0 %v458
      %v770 = vpop.f32.mrb[0].mxu0
      %v771 = vadd.f32 %v293, %v770
      %v772 = vpop.f32.mrb[0].mxu0
      %v773 = vpop.f32.mrb[0].mxu0
      %v774 = vadd.f32 %v293, %v773
      %v775 = vpop.f32.mrb[0].mxu0
      %776 = vmatprep.mubr.bf16.mxu0 %v462
      %777 = vmatmul.mubr.bf16.gmra.mrb[0].mxu0 %v461
      %v778 = vpop.f32.mrb[0].mxu0
      %v779 = vadd.f32 %v293, %v778
      %v780 = vpop.f32.mrb[0].mxu0
      %v781 = vpop.f32.mrb[0].mxu0
      %v782 = vadd.f32 %v293, %v781
      %v783 = vpop.f32.mrb[0].mxu0
      %784 = vmatprep.mubr.bf16.mxu0 %v465
      %785 = vmatmul.mubr.bf16.gmra.mrb[0].mxu0 %v464
      %v786 = vpop.f32.mrb[0].mxu0
      %v787 = vadd.f32 %v293, %v786
      %v788 = vpop.f32.mrb[0].mxu0
      %v789 = vpop.f32.mrb[0].mxu0
      %v790 = vadd.f32 %v293, %v789
      %v791 = vpop.f32.mrb[0].mxu0
      %792 = vmatprep.mubr.bf16.mxu0 %v468
      %793 = vmatmul.mubr.bf16.gmra.mrb[0].mxu0 %v467
      %v794 = vpop.f32.mrb[0].mxu0
      %v795 = vadd.f32 %v293, %v794
      %v796 = vpop.f32.mrb[0].mxu0
      %v797 = vpop.f32.mrb[0].mxu0
      %v798 = vadd.f32 %v293, %v797
      %v799 = vpop.f32.mrb[0].mxu0
      %800 = vmatprep.mubr.bf16.mxu0 %v471
      %801 = vmatmul.mubr.bf16.gmra.mrb[0].mxu0 %v470
      %v802 = vpop.f32.mrb[0].mxu0
      %v803 = vadd.f32 %v293, %v802
      %v804 = vpop.f32.mrb[0].mxu0
      %v805 = vpop.f32.mrb[0].mxu0
      %v806 = vadd.f32 %v293, %v805
      %v807 = vpop.f32.mrb[0].mxu0
      %808 = vmatprep.mubr.bf16.mxu0 %v474
      %809 = vmatmul.mubr.bf16.gmra.mrb[0].mxu0 %v473
      %v810 = vpop.f32.mrb[0].mxu0
      %v811 = vadd.f32 %v293, %v810
      %v812 = vpop.f32.mrb[0].mxu0
      %v813 = vpop.f32.mrb[0].mxu0
      %v814 = vadd.f32 %v293, %v813
      %v815 = vpop.f32.mrb[0].mxu0
      %816 = vmatprep.mubr.bf16.mxu0 %v477
      %817 = vmatmul.mubr.bf16.gmra.mrb[0].mxu0 %v476
      %v818 = vpop.f32.mrb[0].mxu0
      %v819 = vadd.f32 %v293, %v818
      %v820 = vpop.f32.mrb[0].mxu0
      %v821 = vpop.f32.mrb[0].mxu0
      %v822 = vadd.f32 %v293, %v821
      %v823 = vpop.f32.mrb[0].mxu0
      %824 = vmatprep.mubr.bf16.mxu0 %v480
      %825 = vmatmul.mubr.bf16.gmra.mrb[0].mxu0 %v479
      %v826 = vpop.f32.mrb[0].mxu0
      %v827 = vadd.f32 %v293, %v826
      %v828 = vpop.f32.mrb[0].mxu0
      %v829 = vpop.f32.mrb[0].mxu0
      %v830 = vadd.f32 %v293, %v829
      %v831 = vpop.f32.mrb[0].mxu0
      %832 = vmatprep.mubr.bf16.mxu0 %v483
      %833 = vmatmul.mubr.bf16.gmra.mrb[0].mxu0 %v482
      %v834 = vpop.f32.mrb[0].mxu0
      %v835 = vadd.f32 %v293, %v834
      %v836 = vpop.f32.mrb[0].mxu0
      %v837 = vpop.f32.mrb[0].mxu0
      %v838 = vadd.f32 %v293, %v837
      %v839 = vpop.f32.mrb[0].mxu0
      %840 = vmatprep.mubr.bf16.mxu0 %v486
      %841 = vmatmul.mubr.bf16.gmra.mrb[0].mxu0 %v485
      %v842 = vpop.f32.mrb[0].mxu0
      %v843 = vadd.f32 %v293, %v842
      %v844 = vpop.f32.mrb[0].mxu0
      %v845 = vpop.f32.mrb[0].mxu0
      %v846 = vadd.f32 %v293, %v845
      %v847 = vpop.f32.mrb[0].mxu0
      %848 = vmatprep.mubr.bf16.mxu0 %v489
      %849 = vmatmul.mubr.bf16.gmra.mrb[0].mxu0 %v488
      %v850 = vpop.f32.mrb[0].mxu0
      %v851 = vadd.f32 %v293, %v850
      %v852 = vpop.f32.mrb[0].mxu0
      %v853 = vpop.f32.mrb[0].mxu0
      %v854 = vadd.f32 %v293, %v853
      %v855 = vpop.f32.mrb[0].mxu0
      %856 = vmatprep.mubr.bf16.mxu0 %v492
      %857 = vmatmul.mubr.bf16.gmra.mrb[0].mxu0 %v491
      %v858 = vpop.f32.mrb[0].mxu0
      %v859 = vadd.f32 %v293, %v858
      %v860 = vpop.f32.mrb[0].mxu0
      %v861 = vpop.f32.mrb[0].mxu0
      %v862 = vadd.f32 %v293, %v861
      %v863 = vpop.f32.mrb[0].mxu0
      %864 = vmatprep.mubr.bf16.mxu0 %v495
      %865 = vmatmul.mubr.bf16.gmra.mrb[0].mxu0 %v494
      %v866 = vpop.f32.mrb[0].mxu0
      %v867 = vadd.f32 %v293, %v866
      %v868 = vpop.f32.mrb[0].mxu0
      %v869 = vpop.f32.mrb[0].mxu0
      %v870 = vadd.f32 %v293, %v869
      %v871 = vpop.f32.mrb[0].mxu0
      %872 = vmatprep.mubr.bf16.mxu0 %v498
      %873 = vmatmul.mubr.bf16.gmra.mrb[0].mxu0 %v497
      %v874 = vpop.f32.mrb[0].mxu0
      %v875 = vadd.f32 %v293, %v874
      %v876 = vpop.f32.mrb[0].mxu0
      %v877 = vpop.f32.mrb[0].mxu0
      %v878 = vadd.f32 %v293, %v877
      %v879 = vpop.f32.mrb[0].mxu0
      %880 = vmatprep.mubr.bf16.mxu0 %v501
      %881 = vmatmul.mubr.bf16.gmra.mrb[0].mxu0 %v500
      %v882 = vpop.f32.mrb[0].mxu0
      %v883 = vadd.f32 %v293, %v882
      %v884 = vpop.f32.mrb[0].mxu0
      %v885 = vpop.f32.mrb[0].mxu0
      %v886 = vadd.f32 %v293, %v885
      %v887 = vpop.f32.mrb[0].mxu0
      %888 = vdwg.mxu0
      %889 = vmatprep.subr.bf16.mxu0 0
      %890 = vmatpush1.bf16.msra.mxu0 %v643
      %891 = vmatprep.subr.bf16.mxu0 0
      %892 = vmatpush1.bf16.msra.mxu0 %v644
      %893 = vmatprep.subr.bf16.mxu0 0
      %894 = vmatpush1.bf16.msra.mxu0 %v645
      %895 = vmatprep.subr.bf16.mxu0 0
      %896 = vmatpush1.bf16.msra.mxu0 %v646
      %897 = vmatprep.subr.bf16.mxu0 0
      %898 = vmatpush1.bf16.msra.mxu0 %v647
      %899 = vmatprep.subr.bf16.mxu0 0
      %900 = vmatpush1.bf16.msra.mxu0 %v648
      %901 = vmatprep.subr.bf16.mxu0 0
      %902 = vmatpush1.bf16.msra.mxu0 %v726
      %903 = vmatprep.subr.bf16.mxu0 0
      %904 = vmatpush1.bf16.msra.mxu0 0
      %905 = vmatprep.subr.bf16.mxu0 0
      %906 = vmatpush1.bf16.msra.mxu0 0
      %907 = vmatprep.subr.bf16.mxu0 0
      %908 = vmatpush1.bf16.msra.mxu0 0
      %909 = vmatprep.subr.bf16.mxu0 0
      %910 = vmatpush1.bf16.msra.mxu0 0
      %911 = vmatprep.subr.bf16.mxu0 0
      %912 = vmatpush1.bf16.msra.mxu0 0
      %913 = vmatprep.subr.bf16.mxu0 0
      %914 = vmatpush1.bf16.msra.mxu0 0
      %915 = vmatprep.subr.bf16.mxu0 0
      %916 = vmatpush1.bf16.msra.mxu0 0
      %917 = vmatprep.subr.bf16.mxu0 0
      %918 = vmatpush1.bf16.msra.mxu0 0
      %919 = vmatprep.subr.bf16.mxu0 0
      %920 = vmatpush1.bf16.msra.mxu0 0
      %921 = vmatprep.mubr.bf16.mxu0 0
      %922 = vmatmul.mubr.bf16.gmra.mrb[0].mxu0 %v674
      %v923 = vpop.f32.mrb[0].mxu0
      %v924 = vadd.f32 %v763, %v923
      %v925 = vpop.f32.mrb[0].mxu0
      %v926 = vpop.f32.mrb[0].mxu0
      %v927 = vadd.f32 %v766, %v926
      %v928 = vpop.f32.mrb[0].mxu0
      %929 = vmatprep.mubr.bf16.mxu0 0
      %930 = vmatmul.mubr.bf16.gmra.mrb[0].mxu0 %v677
      %v931 = vpop.f32.mrb[0].mxu0
      %v932 = vadd.f32 %v771, %v931
      %v933 = vpop.f32.mrb[0].mxu0
      %v934 = vpop.f32.mrb[0].mxu0
      %v935 = vadd.f32 %v774, %v934
      %v936 = vpop.f32.mrb[0].mxu0
      %937 = vmatprep.mubr.bf16.mxu0 0
      %938 = vmatmul.mubr.bf16.gmra.mrb[0].mxu0 %v680
      %v939 = vpop.f32.mrb[0].mxu0
      %v940 = vadd.f32 %v779, %v939
      %v941 = vpop.f32.mrb[0].mxu0
      %v942 = vpop.f32.mrb[0].mxu0
      %v943 = vadd.f32 %v782, %v942
      %v944 = vpop.f32.mrb[0].mxu0
      %945 = vmatprep.mubr.bf16.mxu0 0
      %946 = vmatmul.mubr.bf16.gmra.mrb[0].mxu0 %v683
      %v947 = vpop.f32.mrb[0].mxu0
      %v948 = vadd.f32 %v787, %v947
      %v949 = vpop.f32.mrb[0].mxu0
      %v950 = vpop.f32.mrb[0].mxu0
      %v951 = vadd.f32 %v790, %v950
      %v952 = vpop.f32.mrb[0].mxu0
      %953 = vmatprep.mubr.bf16.mxu0 0
      %954 = vmatmul.mubr.bf16.gmra.mrb[0].mxu0 %v686
      %v955 = vpop.f32.mrb[0].mxu0
      %v956 = vadd.f32 %v795, %v955
      %v957 = vpop.f32.mrb[0].mxu0
      %v958 = vpop.f32.mrb[0].mxu0
      %v959 = vadd.f32 %v798, %v958
      %v960 = vpop.f32.mrb[0].mxu0
      %961 = vmatprep.mubr.bf16.mxu0 0
      %962 = vmatmul.mubr.bf16.gmra.mrb[0].mxu0 %v689
      %v963 = vpop.f32.mrb[0].mxu0
      %v964 = vadd.f32 %v803, %v963
      %v965 = vpop.f32.mrb[0].mxu0
      %v966 = vpop.f32.mrb[0].mxu0
      %v967 = vadd.f32 %v806, %v966
      %v968 = vpop.f32.mrb[0].mxu0
      %969 = vmatprep.mubr.bf16.mxu0 0
      %970 = vmatmul.mubr.bf16.gmra.mrb[0].mxu0 %v692
      %v971 = vpop.f32.mrb[0].mxu0
      %v972 = vadd.f32 %v811, %v971
      %v973 = vpop.f32.mrb[0].mxu0
      %v974 = vpop.f32.mrb[0].mxu0
      %v975 = vadd.f32 %v814, %v974
      %v976 = vpop.f32.mrb[0].mxu0
      %977 = vmatprep.mubr.bf16.mxu0 0
      %978 = vmatmul.mubr.bf16.gmra.mrb[0].mxu0 %v695
      %v979 = vpop.f32.mrb[0].mxu0
      %v980 = vadd.f32 %v819, %v979
      %v981 = vpop.f32.mrb[0].mxu0
      %v982 = vpop.f32.mrb[0].mxu0
      %v983 = vadd.f32 %v822, %v982
      %v984 = vpop.f32.mrb[0].mxu0
      %985 = vmatprep.mubr.bf16.mxu0 0
      %986 = vmatmul.mubr.bf16.gmra.mrb[0].mxu0 %v698
      %v987 = vpop.f32.mrb[0].mxu0
      %v988 = vadd.f32 %v827, %v987
      %v989 = vpop.f32.mrb[0].mxu0
      %v990 = vpop.f32.mrb[0].mxu0
      %v991 = vadd.f32 %v830, %v990
      %v992 = vpop.f32.mrb[0].mxu0
      %993 = vmatprep.mubr.bf16.mxu0 0
      %994 = vmatmul.mubr.bf16.gmra.mrb[0].mxu0 %v701
      %v995 = vpop.f32.mrb[0].mxu0
      %v996 = vadd.f32 %v835, %v995
      %v997 = vpop.f32.mrb[0].mxu0
      %v998 = vpop.f32.mrb[0].mxu0
      %v999 = vadd.f32 %v838, %v998
      %v1000 = vpop.f32.mrb[0].mxu0
      %1001 = vmatprep.mubr.bf16.mxu0 0
      %1002 = vmatmul.mubr.bf16.gmra.mrb[0].mxu0 %v704
      %v1003 = vpop.f32.mrb[0].mxu0
      %v1004 = vadd.f32 %v843, %v1003
      %v1005 = vpop.f32.mrb[0].mxu0
      %v1006 = vpop.f32.mrb[0].mxu0
      %v1007 = vadd.f32 %v846, %v1006
      %v1008 = vpop.f32.mrb[0].mxu0
      %1009 = vmatprep.mubr.bf16.mxu0 0
      %1010 = vmatmul.mubr.bf16.gmra.mrb[0].mxu0 %v707
      %v1011 = vpop.f32.mrb[0].mxu0
      %v1012 = vadd.f32 %v851, %v1011
      %v1013 = vpop.f32.mrb[0].mxu0
      %v1014 = vpop.f32.mrb[0].mxu0
      %v1015 = vadd.f32 %v854, %v1014
      %v1016 = vpop.f32.mrb[0].mxu0
      %1017 = vmatprep.mubr.bf16.mxu0 0
      %1018 = vmatmul.mubr.bf16.gmra.mrb[0].mxu0 %v710
      %v1019 = vpop.f32.mrb[0].mxu0
      %v1020 = vadd.f32 %v859, %v1019
      %v1021 = vpop.f32.mrb[0].mxu0
      %v1022 = vpop.f32.mrb[0].mxu0
      %v1023 = vadd.f32 %v862, %v1022
      %v1024 = vpop.f32.mrb[0].mxu0
      %1025 = vmatprep.mubr.bf16.mxu0 0
      %1026 = vmatmul.mubr.bf16.gmra.mrb[0].mxu0 %v713
      %v1027 = vpop.f32.mrb[0].mxu0
      %v1028 = vadd.f32 %v867, %v1027
      %v1029 = vpop.f32.mrb[0].mxu0
      %v1030 = vpop.f32.mrb[0].mxu0
      %v1031 = vadd.f32 %v870, %v1030
      %v1032 = vpop.f32.mrb[0].mxu0
      %1033 = vmatprep.mubr.bf16.mxu0 0
      %1034 = vmatmul.mubr.bf16.gmra.mrb[0].mxu0 %v716
      %v1035 = vpop.f32.mrb[0].mxu0
      %v1036 = vadd.f32 %v875, %v1035
      %v1037 = vpop.f32.mrb[0].mxu0
      %v1038 = vpop.f32.mrb[0].mxu0
      %v1039 = vadd.f32 %v878, %v1038
      %v1040 = vpop.f32.mrb[0].mxu0
      %1041 = vmatprep.mubr.bf16.mxu0 0
      %1042 = vmatmul.mubr.bf16.gmra.mrb[0].mxu0 %v719
      %v1043 = vpop.f32.mrb[0].mxu0
      %v1044 = vadd.f32 %v883, %v1043
      %v1045 = vpop.f32.mrb[0].mxu0
      %v1046 = vpop.f32.mrb[0].mxu0
      %v1047 = vadd.f32 %v886, %v1046
      %v1048 = vpop.f32.mrb[0].mxu0
      %1049 = vdwg.mxu0
      %v1050 = vmax.f32 %v924, 0.0
      %v1051 = vmax.f32 %v927, 0.0
      %v1052 = vmax.f32 %v932, 0.0
      %v1053 = vmax.f32 %v935, 0.0
      %v1054 = vmax.f32 %v940, 0.0
      %v1055 = vmax.f32 %v943, 0.0
      %v1056 = vmax.f32 %v948, 0.0
      %v1057 = vmax.f32 %v951, 0.0
      %v1058 = vmax.f32 %v956, 0.0
      %v1059 = vmax.f32 %v959, 0.0
      %v1060 = vmax.f32 %v964, 0.0
      %v1061 = vmax.f32 %v967, 0.0
      %v1062 = vmax.f32 %v972, 0.0
      %v1063 = vmax.f32 %v975, 0.0
      %v1064 = vmax.f32 %v980, 0.0
      %v1065 = vmax.f32 %v983, 0.0
      %v1066 = vmax.f32 %v988, 0.0
      %v1067 = vmax.f32 %v991, 0.0
      %v1068 = vmax.f32 %v996, 0.0
      %v1069 = vmax.f32 %v999, 0.0
      %v1070 = vmax.f32 %v1004, 0.0
      %v1071 = vmax.f32 %v1007, 0.0
      %v1072 = vmax.f32 %v1012, 0.0
      %v1073 = vmax.f32 %v1015, 0.0
      %v1074 = vmax.f32 %v1020, 0.0
      %v1075 = vmax.f32 %v1023, 0.0
      %v1076 = vmax.f32 %v1028, 0.0
      %v1077 = vmax.f32 %v1031, 0.0
      %v1078 = vmax.f32 %v1036, 0.0
      %v1079 = vmax.f32 %v1039, 0.0
      %v1080 = vmax.f32 %v1044, 0.0
      %v1081 = vmax.f32 %v1047, 0.0
      %v1082 = vpack.c.bf16 %v1051, %v1050
      %v1083 = vpack.c.bf16 %v1053, %v1052
      %v1084 = vpack.c.bf16 %v1055, %v1054
      %v1085 = vpack.c.bf16 %v1057, %v1056
      %v1086 = vpack.c.bf16 %v1059, %v1058
      %v1087 = vpack.c.bf16 %v1061, %v1060
      %v1088 = vpack.c.bf16 %v1063, %v1062
      %v1089 = vpack.c.bf16 %v1065, %v1064
      %v1090 = vpack.c.bf16 %v1067, %v1066
      %v1091 = vpack.c.bf16 %v1069, %v1068
      %v1092 = vpack.c.bf16 %v1071, %v1070
      %v1093 = vpack.c.bf16 %v1073, %v1072
      %v1094 = vpack.c.bf16 %v1075, %v1074
      %v1095 = vpack.c.bf16 %v1077, %v1076
      %v1096 = vpack.c.bf16 %v1079, %v1078
      %v1097 = vpack.c.bf16 %v1081, %v1080
      %v1114 = vunpack.c.l.b16 %v1082
      %v1115 = vunpack.c.h.b16 %v1082
      %v1116 = vunpack.c.l.b16 %v1083
      %v1117 = vunpack.c.h.b16 %v1083
      %v1118 = vunpack.c.l.b16 %v1084
      %v1119 = vunpack.c.h.b16 %v1084
      %v1120 = vunpack.c.l.b16 %v1085
      %v1121 = vunpack.c.h.b16 %v1085
      %v1122 = vunpack.c.l.b16 %v1086
      %v1123 = vunpack.c.h.b16 %v1086
      %v1124 = vunpack.c.l.b16 %v1087
      %v1125 = vunpack.c.h.b16 %v1087
      %v1126 = vunpack.c.l.b16 %v1088
      %v1127 = vunpack.c.h.b16 %v1088
      %v1128 = vunpack.c.l.b16 %v1089
      %v1129 = vunpack.c.h.b16 %v1089
      %v1130 = vunpack.c.l.b16 %v1090
      %v1131 = vunpack.c.h.b16 %v1090
      %v1132 = vunpack.c.l.b16 %v1091
      %v1133 = vunpack.c.h.b16 %v1091
      %v1134 = vunpack.c.l.b16 %v1092
      %v1135 = vunpack.c.h.b16 %v1092
      %v1136 = vunpack.c.l.b16 %v1093
      %v1137 = vunpack.c.h.b16 %v1093
      %v1138 = vunpack.c.l.b16 %v1094
      %v1139 = vunpack.c.h.b16 %v1094
      %v1140 = vunpack.c.l.b16 %v1095
      %v1141 = vunpack.c.h.b16 %v1095
      %v1142 = vunpack.c.l.b16 %v1096
      %v1143 = vunpack.c.h.b16 %v1096
      %v1144 = vunpack.c.l.b16 %v1097
      %v1145 = vunpack.c.h.b16 %v1097
      %v1146 = vpack.c.b16 %v1114, %v1114
      %v1147 = vpack.c.b16 %v1115, %v1115
      %v1148 = vpack.c.b16 %v1116, %v1116
      %v1149 = vpack.c.b16 %v1117, %v1117
      %v1150 = vpack.c.b16 %v1118, %v1118
      %v1151 = vpack.c.b16 %v1119, %v1119
      %v1152 = vpack.c.b16 %v1120, %v1120
      %v1153 = vpack.c.b16 %v1121, %v1121
      %v1154 = vpack.c.b16 %v1122, %v1122
      %v1155 = vpack.c.b16 %v1123, %v1123
      %v1156 = vpack.c.b16 %v1124, %v1124
      %v1157 = vpack.c.b16 %v1125, %v1125
      %v1158 = vpack.c.b16 %v1126, %v1126
      %v1159 = vpack.c.b16 %v1127, %v1127
      %v1160 = vpack.c.b16 %v1128, %v1128
      %v1161 = vpack.c.b16 %v1129, %v1129
      %v1162 = vpack.c.b16 %v1130, %v1130
      %v1163 = vpack.c.b16 %v1131, %v1131
      %v1164 = vpack.c.b16 %v1132, %v1132
      %v1165 = vpack.c.b16 %v1133, %v1133
      %v1166 = vpack.c.b16 %v1134, %v1134
      %v1167 = vpack.c.b16 %v1135, %v1135
      %v1168 = vpack.c.b16 %v1136, %v1136
      %v1169 = vpack.c.b16 %v1137, %v1137
      %v1170 = vpack.c.b16 %v1138, %v1138
      %v1171 = vpack.c.b16 %v1139, %v1139
      %v1172 = vpack.c.b16 %v1140, %v1140
      %v1173 = vpack.c.b16 %v1141, %v1141
      %v1174 = vpack.c.b16 %v1142, %v1142
      %v1175 = vpack.c.b16 %v1143, %v1143
      %v1176 = vpack.c.b16 %v1144, %v1144
      %v1177 = vpack.c.b16 %v1145, %v1145
      %vm1210 = vcmask 519168
      %1211 = vst.msk [vmem:[%s175] sm:$0xf] %vm1210, %v1146
      %1212 = vst.msk [vmem:[%s175 + $0x4] sm:$0xf] %vm1210, %v1147
      %1213 = vst.msk [vmem:[%s175 + $0x8] sm:$0xf] %vm1210, %v1148
      %1214 = vst.msk [vmem:[%s175 + $0xc] sm:$0xf] %vm1210, %v1149
      %1215 = vst.msk [vmem:[%s175 + $0x10] sm:$0xf] %vm1210, %v1150
      %1216 = vst.msk [vmem:[%s175 + $0x14] sm:$0xf] %vm1210, %v1151
      %1217 = vst.msk [vmem:[%s175 + $0x18] sm:$0xf] %vm1210, %v1152
      %1218 = vst.msk [vmem:[%s175 + $0x1c] sm:$0xf] %vm1210, %v1153
      %1219 = vst.msk [vmem:[%s175 + $0x20] sm:$0xf] %vm1210, %v1154
      %1220 = vst.msk [vmem:[%s175 + $0x24] sm:$0xf] %vm1210, %v1155
      %1221 = vst.msk [vmem:[%s175 + $0x28] sm:$0xf] %vm1210, %v1156
      %1222 = vst.msk [vmem:[%s175 + $0x2c] sm:$0xf] %vm1210, %v1157
      %1223 = vst.msk [vmem:[%s175 + $0x30] sm:$0xf] %vm1210, %v1158
      %1224 = vst.msk [vmem:[%s175 + $0x34] sm:$0xf] %vm1210, %v1159
      %1225 = vst.msk [vmem:[%s175 + $0x38] sm:$0xf] %vm1210, %v1160
      %1226 = vst.msk [vmem:[%s175 + $0x3c] sm:$0xf] %vm1210, %v1161
      %1227 = vst.msk [vmem:[%s175 + $0x40] sm:$0xf] %vm1210, %v1162
      %1228 = vst.msk [vmem:[%s175 + $0x44] sm:$0xf] %vm1210, %v1163
      %1229 = vst.msk [vmem:[%s175 + $0x48] sm:$0xf] %vm1210, %v1164
      %1230 = vst.msk [vmem:[%s175 + $0x4c] sm:$0xf] %vm1210, %v1165
      %1231 = vst.msk [vmem:[%s175 + $0x50] sm:$0xf] %vm1210, %v1166
      %1232 = vst.msk [vmem:[%s175 + $0x54] sm:$0xf] %vm1210, %v1167
      %1233 = vst.msk [vmem:[%s175 + $0x58] sm:$0xf] %vm1210, %v1168
      %1234 = vst.msk [vmem:[%s175 + $0x5c] sm:$0xf] %vm1210, %v1169
      %1235 = vst.msk [vmem:[%s175 + $0x60] sm:$0xf] %vm1210, %v1170
      %1236 = vst.msk [vmem:[%s175 + $0x64] sm:$0xf] %vm1210, %v1171
      %1237 = vst.msk [vmem:[%s175 + $0x68] sm:$0xf] %vm1210, %v1172
      %1238 = vst.msk [vmem:[%s175 + $0x6c] sm:$0xf] %vm1210, %v1173
      %1239 = vst.msk [vmem:[%s175 + $0x70] sm:$0xf] %vm1210, %v1174
      %1240 = vst.msk [vmem:[%s175 + $0x74] sm:$0xf] %vm1210, %v1175
      %1241 = vst.msk [vmem:[%s175 + $0x78] sm:$0xf] %vm1210, %v1176
      %1242 = vst.msk [vmem:[%s175 + $0x7c] sm:$0xf] %vm1210, %v1177
      %s1243 = smul.u32 32, %s14
      %p1244 = scmp.lt.s32.totalorder %s1243, 63
      %s1245 = scalar_select %p1244, %s1243, 63
      %s1246 = smul.addr %s1245, 4
      %s1247 = scalar_lea.vmem %s3, %s1246
      // Predicated region
      $region33: #{alnet_feature_extractor.5} parent=31 // pred_check
        %p1248 = pneg %p100
      $region34: #{alnet_feature_extractor.5} parent=31 // pred_check_branch
        %1250 = sbr.rel (%p1248) target = $region36
      $region35: #{alnet_feature_extractor.5} parent=31 // pred_region
        %s1251 = smul.u32 32, %s14
      $region36: #{alnet_feature_extractor.5} parent=31 // pred_fallthru
        _
    $region32: #{alnet_feature_extractor.5} parent=5 // pred_fallthru
      _
    %p1252 = scmp.le.s32.totalorder 2, %s9
    // Predicated region
    $region37: #{alnet_feature_extractor.5} parent=5 // pred_check
      %p1253 = pneg %p1252
    $region38: #{alnet_feature_extractor.5} parent=5 // pred_check_branch
      %1255 = sbr.rel (%p1253) target = $region40
    $region39: #{alnet_feature_extractor.5} parent=5 // pred_region
      %s1256 = ssub.s32 %s9, 2
      // Predicated region
      $region41: #{alnet_feature_extractor.5} parent=39 // pred_check
        %p1257 = pneg %p106
      $region42: #{alnet_feature_extractor.5} parent=39 // pred_check_branch
        %1259 = sbr.rel (%p1257) target = $region44
      $region43: #{alnet_feature_extractor.5} parent=39 // pred_region
        %s1260 = smul.u32 32, %s15
        %p1261 = scmp.lt.s32.totalorder %s1260, 63
        %s1262 = scalar_select %p1261, %s1260, 63
        %s1263 = smul.addr %s1262, 4
        %s1264 = scalar_lea.vmem %s3, %s1263
      $region44: #{alnet_feature_extractor.5} parent=39 // pred_fallthru
        _
    $region40: #{alnet_feature_extractor.5} parent=5 // pred_fallthru
      _
  $region6: #{alnet_feature_extractor.5} parent=0 // loop_footer
    %s13 = sadd.s32 1, %s9
  $region7: #{alnet_feature_extractor.5} parent=0 // loop_footer_branch
    %8 = sbr.rel target = $region3
  $region8: #{alnet_feature_extractor.5} parent=0 // loop_exit
    _

// kernel: alnet_feature_extractor.7
$region0: #{alnet_feature_extractor.7}
  #allocation0 [shape = 'u32[]', space=smem, size = 0x4, offset = 0x4, fixed_abs, tag = 'smem constant byte address 0x4 - core index']
  #allocation1 [shape = 'u32[144,128]{1,0:T(1,128)}', space=vmem, size = 0x12000, scoped, tag = 'internal scratch']
  %s0 = inlined_call_operand.vmem [shape: bf16[98,1600], index: 0, kind: input, shape index: {}]
  %s1 = inlined_call_operand.vmem [shape: bf16[1600,192], index: 1, kind: input, shape index: {}]
  %s2 = inlined_call_operand.vmem [shape: f32[1,192], index: 2, kind: input, shape index: {}]
  %s3 = inlined_call_operand.vmem [shape: bf16[98,192], index: 3, kind: output, shape index: {}]
  %s4 = sld [smem:[#allocation0]]
  $region93: #{alnet_feature_extractor.7} parent=0
    _
  %s6 = ssub.s32 1, %s4
  %s7 = scalar_select 0, %s6, %s4
  $region1: #{alnet_feature_extractor.7} parent=0
    #allocation2 [shape = 'u8[65536]{0}', space=vmem, size = 0x10000, scoped, tag = 'output window, operand 0']
    loop: start=0, step=1, limit=4
    $region2: #{alnet_feature_extractor.7} parent=1 // loop_pre_header
      _
    $region3: #{alnet_feature_extractor.7} parent=1 // loop_header
      %s9 = sphi 0, %s13
      %p10 = scmp.ge.s32.totalorder %s9, 4
      %s19 = sphi 0, %s21
      %s22 = sphi 0, %s19
      %s23 = sphi 0, %s22
      %s39 = sphi 0, %s23
      %s43 = sphi 0, %s43
      %s45 = sphi 0, %s43
      %s46 = sphi 0, %s45
      %s60 = sphi 0, %s46
      %s64 = sphi 0, %s64
      %s66 = sphi 0, %s64
      %s67 = sphi 0, %s66
      %s81 = sphi 0, %s67
      %s87 = sphi 0, %s89
      %s90 = sphi 0, %s87
      %s91 = sphi 0, %s90
      %s107 = sphi 0, %s91
    $region4: #{alnet_feature_extractor.7} parent=1 // loop_header_branch
      %12 = sbr.rel (%p10) target = $region8
    $region5: #{alnet_feature_extractor.7} parent=1 // loop_body
      %s14 = ssub.s32 %s9, 1
      %s15 = ssub.s32 %s9, 2
      %s16 = sadd.s32 %s9, 1
      %s17 = ssub.s32 %s9, %s16
      %p18 = scmp.eq.s32.totalorder %s17, 0
      %s20 = sadd.s32 %s19, 1
      %s21 = scalar_select %p18, %s19, %s20
      %p24 = pneg %p18
      %p25 = scmp.eq.s32.totalorder %s9, 1
      %p26 = por %p24, %p25
      %p27 = scmp.ne.s32.totalorder %s19, %s22
      %p28 = scmp.eq.s32.totalorder %s9, 0
      %p29 = por %p27, %p28
      %p30 = scmp.ne.s32.totalorder %s19, %s22
      %p31 = scmp.eq.s32.totalorder %s14, 1
      %p32 = por %p30, %p31
      %p33 = scmp.ne.s32.totalorder %s22, %s23
      %p34 = scmp.eq.s32.totalorder %s14, 0
      %p35 = por %p33, %p34
      %p36 = scmp.ne.s32.totalorder %s22, %s23
      %p37 = scmp.eq.s32.totalorder %s15, 1
      %p38 = por %p36, %p37
      %p40 = scmp.ne.s32.totalorder %s23, %s39
      %p41 = scmp.eq.s32.totalorder %s15, 0
      %p42 = por %p40, %p41
      %s44 = sadd.s32 %s43, 1
      %p47 = scmp.eq.s32.totalorder %s9, 1
      %p48 = scmp.ne.s32.totalorder %s43, %s45
      %p49 = scmp.eq.s32.totalorder %s9, 0
      %p50 = por %p48, %p49
      %p51 = scmp.ne.s32.totalorder %s43, %s45
      %p52 = scmp.eq.s32.totalorder %s14, 1
      %p53 = por %p51, %p52
      %p54 = scmp.ne.s32.totalorder %s45, %s46
      %p55 = scmp.eq.s32.totalorder %s14, 0
      %p56 = por %p54, %p55
      %p57 = scmp.ne.s32.totalorder %s45, %s46
      %p58 = scmp.eq.s32.totalorder %s15, 1
      %p59 = por %p57, %p58
      %p61 = scmp.ne.s32.totalorder %s46, %s60
      %p62 = scmp.eq.s32.totalorder %s15, 0
      %p63 = por %p61, %p62
      %s65 = sadd.s32 %s64, 1
      %p68 = scmp.eq.s32.totalorder %s9, 1
      %p69 = scmp.ne.s32.totalorder %s64, %s66
      %p70 = scmp.eq.s32.totalorder %s9, 0
      %p71 = por %p69, %p70
      %p72 = scmp.ne.s32.totalorder %s64, %s66
      %p73 = scmp.eq.s32.totalorder %s14, 1
      %p74 = por %p72, %p73
      %p75 = scmp.ne.s32.totalorder %s66, %s67
      %p76 = scmp.eq.s32.totalorder %s14, 0
      %p77 = por %p75, %p76
      %p78 = scmp.ne.s32.totalorder %s66, %s67
      %p79 = scmp.eq.s32.totalorder %s15, 1
      %p80 = por %p78, %p79
      %p82 = scmp.ne.s32.totalorder %s67, %s81
      %p83 = scmp.eq.s32.totalorder %s15, 0
      %p84 = por %p82, %p83
      %s85 = ssub.s32 %s9, %s16
      %p86 = scmp.eq.s32.totalorder %s85, 0
      %s88 = sadd.s32 %s87, 1
      %s89 = scalar_select %p86, %s87, %s88
      %p92 = pneg %p86
      %p93 = scmp.eq.s32.totalorder %s9, 1
      %p94 = por %p92, %p93
      %p95 = scmp.ne.s32.totalorder %s87, %s90
      %p96 = scmp.eq.s32.totalorder %s9, 0
      %p97 = por %p95, %p96
      %p98 = scmp.ne.s32.totalorder %s87, %s90
      %p99 = scmp.eq.s32.totalorder %s14, 1
      %p100 = por %p98, %p99
      %p101 = scmp.ne.s32.totalorder %s90, %s91
      %p102 = scmp.eq.s32.totalorder %s14, 0
      %p103 = por %p101, %p102
      %p104 = scmp.ne.s32.totalorder %s90, %s91
      %p105 = scmp.eq.s32.totalorder %s15, 1
      %p106 = por %p104, %p105
      %p108 = scmp.ne.s32.totalorder %s91, %s107
      %p109 = scmp.eq.s32.totalorder %s15, 0
      %p110 = por %p108, %p109
      %p111 = scmp.le.s32.totalorder 1, %s9
      %p112 = scmp.lt.s32.totalorder %s9, 3
      %p113 = pnand %p111, %p112
      %p114 = pneg %p113
      // Predicated region
      $region9: #{alnet_feature_extractor.7} parent=5 // pred_check
        _
      $region10: #{alnet_feature_extractor.7} parent=5 // pred_check_branch
        %116 = sbr.rel (%p113) target = $region12
      $region11: #{alnet_feature_extractor.7} parent=5 // pred_region
        %s117 = ssub.s32 %s9, 1
        // Predicated region
        $region13: #{alnet_feature_extractor.7} parent=11 // pred_check
          %p118 = pneg %p56
        $region14: #{alnet_feature_extractor.7} parent=11 // pred_check_branch
          %120 = sbr.rel (%p118) target = $region16
        $region15: #{alnet_feature_extractor.7} parent=11 // pred_region
          _
        $region16: #{alnet_feature_extractor.7} parent=11 // pred_fallthru
          _
        // Predicated region
        $region17: #{alnet_feature_extractor.7} parent=11 // pred_check
          %p121 = pneg %p77
        $region18: #{alnet_feature_extractor.7} parent=11 // pred_check_branch
          %123 = sbr.rel (%p121) target = $region20
        $region19: #{alnet_feature_extractor.7} parent=11 // pred_region
          _
        $region20: #{alnet_feature_extractor.7} parent=11 // pred_fallthru
          _
      $region12: #{alnet_feature_extractor.7} parent=5 // pred_fallthru
        _
      %p124 = scmp.lt.s32.totalorder %s9, 2
      // Predicated region
      $region21: #{alnet_feature_extractor.7} parent=5 // pred_check
        %p125 = pneg %p124
      $region22: #{alnet_feature_extractor.7} parent=5 // pred_check_branch
        %127 = sbr.rel (%p125) target = $region24
      $region23: #{alnet_feature_extractor.7} parent=5 // pred_region
        // Predicated region
        $region25: #{alnet_feature_extractor.7} parent=23 // pred_check
          %p128 = pneg %p29
        $region26: #{alnet_feature_extractor.7} parent=23 // pred_check_branch
          %130 = sbr.rel (%p128) target = $region28
        $region27: #{alnet_feature_extractor.7} parent=23 // pred_region
          %s131 = smul.u32 8, %s9
          %s132 = ssub.s32 13, %s131
          %p133 = scmp.lt.s32.totalorder %s132, 8
          %s134 = scalar_select %p133, %s132, 8
          %s135 = smul.u32 64, %s134
          %s136 = smul.u32 %s135, 13
          %p137 = scmp.lt.s32.totalorder %s131, 12
          %s138 = scalar_select %p137, %s131, 12
          %s139 = smul.addr %s138, 13
          %s140 = smul.addr %s139, 4
          %s141 = scalar_lea.vmem %s0, %s140
          %s142 = smul.u32 8, %s9
          %s143 = ssub.s32 13, %s142
          %p144 = scmp.lt.s32.totalorder %s143, 8
          %s145 = scalar_select %p144, %s143, 8
          %s146 = smul.u32 64, %s145
          %s147 = smul.u32 %s146, 13
        $region28: #{alnet_feature_extractor.7} parent=23 // pred_fallthru
          _
      $region24: #{alnet_feature_extractor.7} parent=5 // pred_fallthru
        _
      %p148 = scmp.le.s32.totalorder 1, %s9
      %p149 = scmp.lt.s32.totalorder %s9, 3
      %p150 = pnand %p148, %p149
      %p151 = pneg %p150
      // Predicated region
      $region29: #{alnet_feature_extractor.7} parent=5 // pred_check
        _
      $region30: #{alnet_feature_extractor.7} parent=5 // pred_check_branch
        %153 = sbr.rel (%p150) target = $region32
      $region31: #{alnet_feature_extractor.7} parent=5 // pred_region
        %s154 = ssub.s32 %s9, 1
        %s155 = smul.u32 8, %s14
        %s156 = ssub.s32 13, %s155
        %p157 = scmp.lt.s32.totalorder %s156, 8
        %s158 = scalar_select %p157, %s156, 8
        %s159 = smul.u32 64, %s158
        %s160 = smul.u32 %s159, 13
        %p161 = scmp.lt.s32.totalorder %s155, 12
        %s162 = scalar_select %p161, %s155, 12
        %s163 = smul.addr %s162, 13
        %s164 = smul.addr %s163, 4
        %s165 = scalar_lea.vmem %s0, %s164
        %p166 = pneg %p35
        %p167 = pneg %p32
        %p168 = pneg %p56
        %p169 = pneg %p53
        %p170 = pneg %p77
        %p171 = pneg %p74
        %p172 = pneg %p103
        %p173 = pneg %p100
        %s174 = sand.u32 %s90, 1
        %s175 = sand.u32 %s90, 1
        %s176 = smul.addr %s175, 64
        %s177 = scalar_lea.vmem [#allocation2], %s176
        %s178 = smul.u32 8, %s14
        %s179 = ssub.s32 13, %s178
        %p180 = scmp.lt.s32.totalorder %s179, 8
        %s181 = scalar_select %p180, %s179, 8
        %s182 = smul.u32 64, %s181
        %s183 = smul.u32 %s182, 13
        %p184 = scmp.lt.s32.totalorder %s178, 12
        %s185 = scalar_select %p184, %s178, 12
        %s186 = smul.addr %s185, 13
        %s187 = smul.addr %s186, 4
        %s188 = scalar_lea.vmem %s0, %s187
        %s189 = smul.u32 8, %s14
        %s190 = ssub.s32 13, %s189
        %p191 = scmp.lt.s32.totalorder %s190, 8
        %s192 = scalar_select %p191, %s190, 8
        %s193 = smul.u32 64, %s192
        %s194 = smul.u32 %s193, 13
        %s195 = smul.u32 8, %s14
        %s196 = ssub.s32 13, %s195
        %p197 = scmp.lt.s32.totalorder %s196, 8
        %s198 = scalar_select %p197, %s196, 8
        %s199 = smul.u32 64, %s198
        %s200 = smul.u32 %s199, 2
        %v202 = vld [vmem:[%s188] sm:$0xff]
        %v203 = vld [vmem:[%s188 + $0x8] sm:$0xff]
        %v204 = vld [vmem:[%s188 + $0x10] sm:$0xff]
        %v205 = vld [vmem:[%s188 + $0x18] sm:$0xff]
        %v206 = vld [vmem:[%s188 + $0x20] sm:$0xff]
        %v207 = vld [vmem:[%s188 + $0x28] sm:$0xff]
        %v208 = vld [vmem:[%s188 + $0x30] sm:$0xf]
        %v209 = vld [vmem:[%s188 + $0x34] sm:$0xff]
        %v210 = vld [vmem:[%s188 + $0x3c] sm:$0xff]
        %v211 = vld [vmem:[%s188 + $0x44] sm:$0xff]
        %v212 = vld [vmem:[%s188 + $0x4c] sm:$0xff]
        %v213 = vld [vmem:[%s188 + $0x54] sm:$0xff]
        %v214 = vld [vmem:[%s188 + $0x5c] sm:$0xff]
        %v215 = vld [vmem:[%s188 + $0x64] sm:$0xf]
        %v216 = vld [vmem:[%s188 + $0x68] sm:$0xff]
        %v217 = vld [vmem:[%s188 + $0x70] sm:$0xff]
        %v218 = vld [vmem:[%s188 + $0x78] sm:$0xff]
        %v219 = vld [vmem:[%s188 + $0x80] sm:$0xff]
        %v220 = vld [vmem:[%s188 + $0x88] sm:$0xff]
        %v221 = vld [vmem:[%s188 + $0x90] sm:$0xff]
        %v222 = vld [vmem:[%s188 + $0x98] sm:$0xf]
        %v223 = vld [vmem:[%s188 + $0x9c] sm:$0xff]
        %v224 = vld [vmem:[%s188 + $0xa4] sm:$0xff]
        %v225 = vld [vmem:[%s188 + $0xac] sm:$0xff]
        %v226 = vld [vmem:[%s188 + $0xb4] sm:$0xff]
        %v227 = vld [vmem:[%s188 + $0xbc] sm:$0xff]
        %v228 = vld [vmem:[%s188 + $0xc4] sm:$0xff]
        %v229 = vld [vmem:[%s188 + $0xcc] sm:$0xf]
        %v230 = vld [vmem:[%s188 + $0xd0] sm:$0xff]
        %v231 = vld [vmem:[%s188 + $0xd8] sm:$0xff]
        %v232 = vld [vmem:[%s188 + $0xe0] sm:$0xff]
        %v233 = vld [vmem:[%s188 + $0xe8] sm:$0xff]
        %v234 = vld [vmem:[%s188 + $0xf0] sm:$0xff]
        %v235 = vld [vmem:[%s188 + $0xf8] sm:$0xff]
        %v236 = vld [vmem:[%s188 + $0x100] sm:$0xf]
        %v237 = vld [vmem:[%s188 + $0x104] sm:$0xff]
        %v238 = vld [vmem:[%s188 + $0x10c] sm:$0xff]
        %v239 = vld [vmem:[%s188 + $0x114] sm:$0xff]
        %v240 = vld [vmem:[%s188 + $0x11c] sm:$0xff]
        %v241 = vld [vmem:[%s188 + $0x124] sm:$0xff]
        %v242 = vld [vmem:[%s188 + $0x12c] sm:$0xff]
        %v243 = vld [vmem:[%s188 + $0x134] sm:$0xf]
        %v244 = vld [vmem:[%s188 + $0x138] sm:$0xff]
        %v245 = vld [vmem:[%s188 + $0x140] sm:$0xff]
        %v246 = vld [vmem:[%s188 + $0x148] sm:$0xff]
        %v247 = vld [vmem:[%s188 + $0x150] sm:$0xff]
        %v248 = vld [vmem:[%s188 + $0x158] sm:$0xff]
        %v249 = vld [vmem:[%s188 + $0x160] sm:$0xff]
        %v250 = vld [vmem:[%s188 + $0x168] sm:$0xf]
        %v251 = vld [vmem:[%s188 + $0x16c] sm:$0xff]
        %v252 = vld [vmem:[%s188 + $0x174] sm:$0xff]
        %v253 = vld [vmem:[%s188 + $0x17c] sm:$0xff]
        %v254 = vld [vmem:[%s188 + $0x184] sm:$0xff]
        %v255 = vld [vmem:[%s188 + $0x18c] sm:$0xff]
        %v256 = vld [vmem:[%s188 + $0x194] sm:$0xff]
        %v257 = vld [vmem:[%s188 + $0x19c] sm:$0xf]
        %v258 = vld [vmem:[%s1] sm:$0xff]
        %v259 = vld [vmem:[%s1 + $0x8] sm:$0xff]
        %v260 = vld [vmem:[%s1 + $0x10] sm:$0xff]
        %v261 = vld [vmem:[%s1 + $0x18] sm:$0xff]
        %v262 = vld [vmem:[%s1 + $0x20] sm:$0xff]
        %v263 = vld [vmem:[%s1 + $0x28] sm:$0xff]
        %v264 = vld [vmem:[%s1 + $0x30] sm:$0xff]
        %v265 = vld [vmem:[%s1 + $0x38] sm:$0xff]
        %v266 = vld [vmem:[%s1 + $0x40] sm:$0xff]
        %v267 = vld [vmem:[%s1 + $0x48] sm:$0xff]
        %v268 = vld [vmem:[%s1 + $0x50] sm:$0xff]
        %v269 = vld [vmem:[%s1 + $0x58] sm:$0xff]
        %v270 = vld [vmem:[%s1 + $0x60] sm:$0xff]
        %v271 = vld [vmem:[%s1 + $0x68] sm:$0xff]
        %v272 = vld [vmem:[%s1 + $0x70] sm:$0xff]
        %v273 = vld [vmem:[%s1 + $0x78] sm:$0xff]
        %v274 = vld [vmem:[%s1 + $0x80] sm:$0xff]
        %v275 = vld [vmem:[%s1 + $0x88] sm:$0xff]
        %v276 = vld [vmem:[%s1 + $0x90] sm:$0xff]
        %v277 = vld [vmem:[%s1 + $0x98] sm:$0xff]
        %v278 = vld [vmem:[%s1 + $0xa0] sm:$0xff]
        %v279 = vld [vmem:[%s1 + $0xa8] sm:$0xff]
        %v280 = vld [vmem:[%s1 + $0xb0] sm:$0xff]
        %v281 = vld [vmem:[%s1 + $0xb8] sm:$0xff]
        %v282 = vld [vmem:[%s1 + $0xc0] sm:$0xff]
        %v283 = vld [vmem:[%s1 + $0xc8] sm:$0xff]
        %v284 = vld [vmem:[%s1 + $0xd0] sm:$0xff]
        %v285 = vld [vmem:[%s1 + $0xd8] sm:$0xff]
        %v286 = vld [vmem:[%s1 + $0xe0] sm:$0xff]
        %v287 = vld [vmem:[%s1 + $0xe8] sm:$0xff]
        %v288 = vld [vmem:[%s1 + $0xf0] sm:$0xff]
        %v289 = vld [vmem:[%s1 + $0xf8] sm:$0xff]
        %v290 = vld [vmem:[%s1 + $0x100] sm:$0xff]
        %v291 = vld [vmem:[%s1 + $0x108] sm:$0xff]
        %v292 = vld [vmem:[%s1 + $0x110] sm:$0xff]
        %v293 = vld [vmem:[%s1 + $0x118] sm:$0xff]
        %v294 = vld [vmem:[%s1 + $0x120] sm:$0xff]
        %v295 = vld [vmem:[%s1 + $0x128] sm:$0xff]
        %v296 = vld [vmem:[%s1 + $0x130] sm:$0xff]
        %v297 = vld [vmem:[%s1 + $0x138] sm:$0xff]
        %v298 = vld [vmem:[%s1 + $0x140] sm:$0xff]
        %v299 = vld [vmem:[%s1 + $0x148] sm:$0xff]
        %v300 = vld [vmem:[%s1 + $0x150] sm:$0xff]
        %v301 = vld [vmem:[%s1 + $0x158] sm:$0xff]
        %v302 = vld [vmem:[%s1 + $0x160] sm:$0xff]
        %v303 = vld [vmem:[%s1 + $0x168] sm:$0xff]
        %v304 = vld [vmem:[%s1 + $0x170] sm:$0xff]
        %v305 = vld [vmem:[%s1 + $0x178] sm:$0xff]
        %v306 = vld [vmem:[%s1 + $0x180] sm:$0xff]
        %v307 = vld [vmem:[%s1 + $0x188] sm:$0xff]
        %v308 = vld [vmem:[%s1 + $0x190] sm:$0xff]
        %v309 = vld [vmem:[%s1 + $0x198] sm:$0xff]
        %v310 = vld [vmem:[%s1 + $0x1a0] sm:$0xff]
        %v311 = vld [vmem:[%s1 + $0x1a8] sm:$0xff]
        %v312 = vld [vmem:[%s1 + $0x1b0] sm:$0xff]
        %v313 = vld [vmem:[%s1 + $0x1b8] sm:$0xff]
        %v314 = vld [vmem:[%s1 + $0x1c0] sm:$0xff]
        %v315 = vld [vmem:[%s1 + $0x1c8] sm:$0xff]
        %v316 = vld [vmem:[%s1 + $0x1d0] sm:$0xff]
        %v317 = vld [vmem:[%s1 + $0x1d8] sm:$0xff]
        %v318 = vld [vmem:[%s1 + $0x1e0] sm:$0xff]
        %v319 = vld [vmem:[%s1 + $0x1e8] sm:$0xff]
        %v320 = vld [vmem:[%s1 + $0x1f0] sm:$0xff]
        %v321 = vld [vmem:[%s1 + $0x1f8] sm:$0xff]
        %v322 = vld [vmem:[%s1 + $0x200] sm:$0xff]
        %v323 = vld [vmem:[%s1 + $0x208] sm:$0xff]
        %v324 = vld [vmem:[%s1 + $0x210] sm:$0xff]
        %v325 = vld [vmem:[%s1 + $0x218] sm:$0xff]
        %v326 = vld [vmem:[%s1 + $0x220] sm:$0xff]
        %v327 = vld [vmem:[%s1 + $0x228] sm:$0xff]
        %v328 = vld [vmem:[%s1 + $0x230] sm:$0xff]
        %v329 = vld [vmem:[%s1 + $0x238] sm:$0xff]
        %v330 = vld [vmem:[%s1 + $0x240] sm:$0xff]
        %v331 = vld [vmem:[%s1 + $0x248] sm:$0xff]
        %v332 = vld [vmem:[%s1 + $0x250] sm:$0xff]
        %v333 = vld [vmem:[%s1 + $0x258] sm:$0xff]
        %v334 = vld [vmem:[%s1 + $0x260] sm:$0xff]
        %v335 = vld [vmem:[%s1 + $0x268] sm:$0xff]
        %v336 = vld [vmem:[%s1 + $0x270] sm:$0xff]
        %v337 = vld [vmem:[%s1 + $0x278] sm:$0xff]
        %v338 = vld [vmem:[%s1 + $0x280] sm:$0xff]
        %v339 = vld [vmem:[%s1 + $0x288] sm:$0xff]
        %v340 = vld [vmem:[%s1 + $0x290] sm:$0xff]
        %v341 = vld [vmem:[%s1 + $0x298] sm:$0xff]
        %v342 = vld [vmem:[%s1 + $0x2a0] sm:$0xff]
        %v343 = vld [vmem:[%s1 + $0x2a8] sm:$0xff]
        %v344 = vld [vmem:[%s1 + $0x2b0] sm:$0xff]
        %v345 = vld [vmem:[%s1 + $0x2b8] sm:$0xff]
        %v346 = vld [vmem:[%s1 + $0x2c0] sm:$0xff]
        %v347 = vld [vmem:[%s1 + $0x2c8] sm:$0xff]
        %v348 = vld [vmem:[%s1 + $0x2d0] sm:$0xff]
        %v349 = vld [vmem:[%s1 + $0x2d8] sm:$0xff]
        %v350 = vld [vmem:[%s1 + $0x2e0] sm:$0xff]
        %v351 = vld [vmem:[%s1 + $0x2e8] sm:$0xff]
        %v352 = vld [vmem:[%s1 + $0x2f0] sm:$0xff]
        %v353 = vld [vmem:[%s1 + $0x2f8] sm:$0xff]
        %v354 = vld [vmem:[%s1 + $0x300] sm:$0xff]
        %v355 = vld [vmem:[%s1 + $0x308] sm:$0xff]
        %v356 = vld [vmem:[%s1 + $0x310] sm:$0xff]
        %v357 = vld [vmem:[%s1 + $0x318] sm:$0xff]
        %v358 = vld [vmem:[%s1 + $0x320] sm:$0xff]
        %v359 = vld [vmem:[%s1 + $0x328] sm:$0xff]
        %v360 = vld [vmem:[%s1 + $0x330] sm:$0xff]
        %v361 = vld [vmem:[%s1 + $0x338] sm:$0xff]
        %v362 = vld [vmem:[%s1 + $0x340] sm:$0xff]
        %v363 = vld [vmem:[%s1 + $0x348] sm:$0xff]
        %v364 = vld [vmem:[%s1 + $0x350] sm:$0xff]
        %v365 = vld [vmem:[%s1 + $0x358] sm:$0xff]
        %v366 = vld [vmem:[%s1 + $0x360] sm:$0xff]
        %v367 = vld [vmem:[%s1 + $0x368] sm:$0xff]
        %v368 = vld [vmem:[%s1 + $0x370] sm:$0xff]
        %v369 = vld [vmem:[%s1 + $0x378] sm:$0xff]
        %v370 = vld [vmem:[%s1 + $0x380] sm:$0xff]
        %v371 = vld [vmem:[%s1 + $0x388] sm:$0xff]
        %v372 = vld [vmem:[%s1 + $0x390] sm:$0xff]
        %v373 = vld [vmem:[%s1 + $0x398] sm:$0xff]
        %v374 = vld [vmem:[%s1 + $0x3a0] sm:$0xff]
        %v375 = vld [vmem:[%s1 + $0x3a8] sm:$0xff]
        %v376 = vld [vmem:[%s1 + $0x3b0] sm:$0xff]
        %v377 = vld [vmem:[%s1 + $0x3b8] sm:$0xff]
        %v378 = vld [vmem:[%s1 + $0x3c0] sm:$0xff]
        %v379 = vld [vmem:[%s1 + $0x3c8] sm:$0xff]
        %v380 = vld [vmem:[%s1 + $0x3d0] sm:$0xff]
        %v381 = vld [vmem:[%s1 + $0x3d8] sm:$0xff]
        %v382 = vld [vmem:[%s1 + $0x3e0] sm:$0xff]
        %v383 = vld [vmem:[%s1 + $0x3e8] sm:$0xff]
        %v384 = vld [vmem:[%s1 + $0x3f0] sm:$0xff]
        %v385 = vld [vmem:[%s1 + $0x3f8] sm:$0xff]
        %v386 = vld [vmem:[%s1 + $0x400] sm:$0xff]
        %v387 = vld [vmem:[%s1 + $0x408] sm:$0xff]
        %v388 = vld [vmem:[%s1 + $0x410] sm:$0xff]
        %v389 = vld [vmem:[%s1 + $0x418] sm:$0xff]
        %v390 = vld [vmem:[%s1 + $0x420] sm:$0xff]
        %v391 = vld [vmem:[%s1 + $0x428] sm:$0xff]
        %v392 = vld [vmem:[%s1 + $0x430] sm:$0xff]
        %v393 = vld [vmem:[%s1 + $0x438] sm:$0xff]
        %v394 = vld [vmem:[%s1 + $0x440] sm:$0xff]
        %v395 = vld [vmem:[%s1 + $0x448] sm:$0xff]
        %v396 = vld [vmem:[%s1 + $0x450] sm:$0xff]
        %v397 = vld [vmem:[%s1 + $0x458] sm:$0xff]
        %v398 = vld [vmem:[%s1 + $0x460] sm:$0xff]
        %v399 = vld [vmem:[%s1 + $0x468] sm:$0xff]
        %v400 = vld [vmem:[%s1 + $0x470] sm:$0xff]
        %v401 = vld [vmem:[%s1 + $0x478] sm:$0xff]
        %v402 = vld [vmem:[%s1 + $0x480] sm:$0xff]
        %v403 = vld [vmem:[%s1 + $0x488] sm:$0xff]
        %v404 = vld [vmem:[%s1 + $0x490] sm:$0xff]
        %v405 = vld [vmem:[%s1 + $0x498] sm:$0xff]
        %v406 = vld [vmem:[%s1 + $0x4a0] sm:$0xff]
        %v407 = vld [vmem:[%s1 + $0x4a8] sm:$0xff]
        %v408 = vld [vmem:[%s1 + $0x4b0] sm:$0xff]
        %v409 = vld [vmem:[%s1 + $0x4b8] sm:$0xff]
        %v410 = vld [vmem:[%s1 + $0x4c0] sm:$0xff]
        %v411 = vld [vmem:[%s1 + $0x4c8] sm:$0xff]
        %v412 = vld [vmem:[%s1 + $0x4d0] sm:$0xff]
        %v413 = vld [vmem:[%s1 + $0x4d8] sm:$0xff]
        %v414 = vld [vmem:[%s1 + $0x4e0] sm:$0xff]
        %v415 = vld [vmem:[%s1 + $0x4e8] sm:$0xff]
        %v416 = vld [vmem:[%s1 + $0x4f0] sm:$0xff]
        %v417 = vld [vmem:[%s1 + $0x4f8] sm:$0xff]
        %v418 = vld [vmem:[%s1 + $0x500] sm:$0xff]
        %v419 = vld [vmem:[%s1 + $0x508] sm:$0xff]
        %v420 = vld [vmem:[%s1 + $0x510] sm:$0xff]
        %v421 = vld [vmem:[%s1 + $0x518] sm:$0xff]
        %v422 = vld [vmem:[%s1 + $0x520] sm:$0xff]
        %v423 = vld [vmem:[%s1 + $0x528] sm:$0xff]
        %v424 = vld [vmem:[%s1 + $0x530] sm:$0xff]
        %v425 = vld [vmem:[%s1 + $0x538] sm:$0xff]
        %v426 = vld [vmem:[%s1 + $0x540] sm:$0xff]
        %v427 = vld [vmem:[%s1 + $0x548] sm:$0xff]
        %v428 = vld [vmem:[%s1 + $0x550] sm:$0xff]
        %v429 = vld [vmem:[%s1 + $0x558] sm:$0xff]
        %v430 = vld [vmem:[%s1 + $0x560] sm:$0xff]
        %v431 = vld [vmem:[%s1 + $0x568] sm:$0xff]
        %v432 = vld [vmem:[%s1 + $0x570] sm:$0xff]
        %v433 = vld [vmem:[%s1 + $0x578] sm:$0xff]
        %v434 = vld [vmem:[%s1 + $0x580] sm:$0xff]
        %v435 = vld [vmem:[%s1 + $0x588] sm:$0xff]
        %v436 = vld [vmem:[%s1 + $0x590] sm:$0xff]
        %v437 = vld [vmem:[%s1 + $0x598] sm:$0xff]
        %v438 = vld [vmem:[%s1 + $0x5a0] sm:$0xff]
        %v439 = vld [vmem:[%s1 + $0x5a8] sm:$0xff]
        %v440 = vld [vmem:[%s1 + $0x5b0] sm:$0xff]
        %v441 = vld [vmem:[%s1 + $0x5b8] sm:$0xff]
        %v442 = vld [vmem:[%s1 + $0x5c0] sm:$0xff]
        %v443 = vld [vmem:[%s1 + $0x5c8] sm:$0xff]
        %v444 = vld [vmem:[%s1 + $0x5d0] sm:$0xff]
        %v445 = vld [vmem:[%s1 + $0x5d8] sm:$0xff]
        %v446 = vld [vmem:[%s1 + $0x5e0] sm:$0xff]
        %v447 = vld [vmem:[%s1 + $0x5e8] sm:$0xff]
        %v448 = vld [vmem:[%s1 + $0x5f0] sm:$0xff]
        %v449 = vld [vmem:[%s1 + $0x5f8] sm:$0xff]
        %v450 = vld [vmem:[%s1 + $0x600] sm:$0xff]
        %v451 = vld [vmem:[%s1 + $0x608] sm:$0xff]
        %v452 = vld [vmem:[%s1 + $0x610] sm:$0xff]
        %v453 = vld [vmem:[%s1 + $0x618] sm:$0xff]
        %v454 = vld [vmem:[%s1 + $0x620] sm:$0xff]
        %v455 = vld [vmem:[%s1 + $0x628] sm:$0xff]
        %v456 = vld [vmem:[%s1 + $0x630] sm:$0xff]
        %v457 = vld [vmem:[%s1 + $0x638] sm:$0xff]
        %v458 = vld [vmem:[%s2] sm:$0x3]
        %v460 = vlaneseq
        %v461 = vshrl.u32 %v460, 7
        %v462 = vsub.s32 0, %v461
        %v463 = vrot.slane %v458, %v462
        %v464 = vlaneseq
        %v465 = vshrl.u32 %v464, 7
        %v466 = vsub.s32 1, %v465
        %v467 = vrot.slane %v458, %v466
        %v526 = vunpack.c.l.b16 %v202
        %v527 = vunpack.c.h.b16 %v202
        %v528 = vunpack.c.l.b16 %v203
        %v529 = vunpack.c.h.b16 %v203
        %v530 = vunpack.c.l.b16 %v204
        %v531 = vunpack.c.h.b16 %v204
        %v532 = vunpack.c.l.b16 %v205
        %v533 = vunpack.c.h.b16 %v205
        %v534 = vunpack.c.l.b16 %v206
        %v535 = vunpack.c.h.b16 %v206
        %v536 = vunpack.c.l.b16 %v207
        %v537 = vunpack.c.h.b16 %v207
        %v538 = vunpack.c.l.b16 %v208
        %v539 = vunpack.c.l.b16 %v209
        %v540 = vunpack.c.h.b16 %v209
        %v541 = vunpack.c.l.b16 %v210
        %v542 = vunpack.c.h.b16 %v210
        %v543 = vunpack.c.l.b16 %v211
        %v544 = vunpack.c.h.b16 %v211
        %v545 = vunpack.c.l.b16 %v212
        %v546 = vunpack.c.h.b16 %v212
        %v547 = vunpack.c.l.b16 %v213
        %v548 = vunpack.c.h.b16 %v213
        %v549 = vunpack.c.l.b16 %v214
        %v550 = vunpack.c.h.b16 %v214
        %v551 = vunpack.c.l.b16 %v215
        %v552 = vunpack.c.l.b16 %v216
        %v553 = vunpack.c.h.b16 %v216
        %v554 = vunpack.c.l.b16 %v217
        %v555 = vunpack.c.h.b16 %v217
        %v556 = vunpack.c.l.b16 %v218
        %v557 = vunpack.c.h.b16 %v218
        %v558 = vunpack.c.l.b16 %v219
        %v559 = vunpack.c.h.b16 %v219
        %v560 = vunpack.c.l.b16 %v220
        %v561 = vunpack.c.h.b16 %v220
        %v562 = vunpack.c.l.b16 %v221
        %v563 = vunpack.c.h.b16 %v221
        %v564 = vunpack.c.l.b16 %v222
        %v565 = vunpack.c.l.b16 %v223
        %v566 = vunpack.c.h.b16 %v223
        %v567 = vunpack.c.l.b16 %v224
        %v568 = vunpack.c.h.b16 %v224
        %v569 = vunpack.c.l.b16 %v225
        %v570 = vunpack.c.h.b16 %v225
        %v571 = vunpack.c.l.b16 %v226
        %v572 = vunpack.c.h.b16 %v226
        %v573 = vunpack.c.l.b16 %v227
        %v574 = vunpack.c.h.b16 %v227
        %v575 = vunpack.c.l.b16 %v228
        %v576 = vunpack.c.h.b16 %v228
        %v577 = vunpack.c.l.b16 %v229
        %v578 = vunpack.c.l.b16 %v230
        %v579 = vunpack.c.h.b16 %v230
        %v580 = vunpack.c.l.b16 %v231
        %v581 = vunpack.c.h.b16 %v231
        %v582 = vunpack.c.l.b16 %v232
        %v583 = vunpack.c.h.b16 %v232
        %v584 = vunpack.c.l.b16 %v233
        %v585 = vunpack.c.h.b16 %v233
        %v586 = vunpack.c.l.b16 %v234
        %v587 = vunpack.c.h.b16 %v234
        %v588 = vunpack.c.l.b16 %v235
        %v589 = vunpack.c.h.b16 %v235
        %v590 = vunpack.c.l.b16 %v236
        %v591 = vunpack.c.l.b16 %v237
        %v592 = vunpack.c.h.b16 %v237
        %v593 = vunpack.c.l.b16 %v238
        %v594 = vunpack.c.h.b16 %v238
        %v595 = vunpack.c.l.b16 %v239
        %v596 = vunpack.c.h.b16 %v239
        %v597 = vunpack.c.l.b16 %v240
        %v598 = vunpack.c.h.b16 %v240
        %v599 = vunpack.c.l.b16 %v241
        %v600 = vunpack.c.h.b16 %v241
        %v601 = vunpack.c.l.b16 %v242
        %v602 = vunpack.c.h.b16 %v242
        %v603 = vunpack.c.l.b16 %v243
        %v604 = vunpack.c.l.b16 %v244
        %v605 = vunpack.c.h.b16 %v244
        %v606 = vunpack.c.l.b16 %v245
        %v607 = vunpack.c.h.b16 %v245
        %v608 = vunpack.c.l.b16 %v246
        %v609 = vunpack.c.h.b16 %v246
        %v610 = vunpack.c.l.b16 %v247
        %v611 = vunpack.c.h.b16 %v247
        %v612 = vunpack.c.l.b16 %v248
        %v613 = vunpack.c.h.b16 %v248
        %v614 = vunpack.c.l.b16 %v249
        %v615 = vunpack.c.h.b16 %v249
        %v616 = vunpack.c.l.b16 %v250
        %v617 = vunpack.c.l.b16 %v251
        %v618 = vunpack.c.h.b16 %v251
        %v619 = vunpack.c.l.b16 %v252
        %v620 = vunpack.c.h.b16 %v252
        %v621 = vunpack.c.l.b16 %v253
        %v622 = vunpack.c.h.b16 %v253
        %v623 = vunpack.c.l.b16 %v254
        %v624 = vunpack.c.h.b16 %v254
        %v625 = vunpack.c.l.b16 %v255
        %v626 = vunpack.c.h.b16 %v255
        %v627 = vunpack.c.l.b16 %v256
        %v628 = vunpack.c.h.b16 %v256
        %v629 = vunpack.c.l.b16 %v257
        %v630 = vpack.c.b16 %v539, %v526
        %v631 = vpack.c.b16 %v540, %v527
        %v632 = vpack.c.b16 %v541, %v528
        %v633 = vpack.c.b16 %v542, %v529
        %v634 = vpack.c.b16 %v543, %v530
        %v635 = vpack.c.b16 %v544, %v531
        %v636 = vpack.c.b16 %v545, %v532
        %v637 = vpack.c.b16 %v546, %v533
        %v638 = vpack.c.b16 %v547, %v534
        %v639 = vpack.c.b16 %v548, %v535
        %v640 = vpack.c.b16 %v549, %v536
        %v641 = vpack.c.b16 %v550, %v537
        %v642 = vpack.c.b16 %v551, %v538
        %v643 = vpack.c.b16 %v565, %v552
        %v644 = vpack.c.b16 %v566, %v553
        %v645 = vpack.c.b16 %v567, %v554
        %v646 = vpack.c.b16 %v568, %v555
        %v647 = vpack.c.b16 %v569, %v556
        %v648 = vpack.c.b16 %v570, %v557
        %v649 = vpack.c.b16 %v571, %v558
        %v650 = vpack.c.b16 %v572, %v559
        %v651 = vpack.c.b16 %v573, %v560
        %v652 = vpack.c.b16 %v574, %v561
        %v653 = vpack.c.b16 %v575, %v562
        %v654 = vpack.c.b16 %v576, %v563
        %v655 = vpack.c.b16 %v577, %v564
        %v656 = vpack.c.b16 %v591, %v578
        %v657 = vpack.c.b16 %v592, %v579
        %v658 = vpack.c.b16 %v593, %v580
        %v659 = vpack.c.b16 %v594, %v581
        %v660 = vpack.c.b16 %v595, %v582
        %v661 = vpack.c.b16 %v596, %v583
        %v662 = vpack.c.b16 %v597, %v584
        %v663 = vpack.c.b16 %v598, %v585
        %v664 = vpack.c.b16 %v599, %v586
        %v665 = vpack.c.b16 %v600, %v587
        %v666 = vpack.c.b16 %v601, %v588
        %v667 = vpack.c.b16 %v602, %v589
        %v668 = vpack.c.b16 %v603, %v590
        %v669 = vpack.c.b16 %v617, %v604
        %v670 = vpack.c.b16 %v618, %v605
        %v671 = vpack.c.b16 %v619, %v606
        %v672 = vpack.c.b16 %v620, %v607
        %v673 = vpack.c.b16 %v621, %v608
        %v674 = vpack.c.b16 %v622, %v609
        %v675 = vpack.c.b16 %v623, %v610
        %v676 = vpack.c.b16 %v624, %v611
        %v677 = vpack.c.b16 %v625, %v612
        %v678 = vpack.c.b16 %v626, %v613
        %v679 = vpack.c.b16 %v627, %v614
        %v680 = vpack.c.b16 %v628, %v615
        %v681 = vpack.c.b16 %v629, %v616
        %v930 = vunpack.c.l.b16 %v258
        %v931 = vunpack.c.h.b16 %v258
        %v932 = vunpack.c.l.b16 %v259
        %v933 = vunpack.c.h.b16 %v259
        %v934 = vunpack.c.l.b16 %v260
        %v935 = vunpack.c.h.b16 %v260
        %v936 = vunpack.c.l.b16 %v261
        %v937 = vunpack.c.h.b16 %v261
        %v938 = vunpack.c.l.b16 %v262
        %v939 = vunpack.c.h.b16 %v262
        %v940 = vunpack.c.l.b16 %v263
        %v941 = vunpack.c.h.b16 %v263
        %v942 = vunpack.c.l.b16 %v264
        %v943 = vunpack.c.h.b16 %v264
        %v944 = vunpack.c.l.b16 %v265
        %v945 = vunpack.c.h.b16 %v265
        %v946 = vunpack.c.l.b16 %v266
        %v947 = vunpack.c.h.b16 %v266
        %v948 = vunpack.c.l.b16 %v267
        %v949 = vunpack.c.h.b16 %v267
        %v950 = vunpack.c.l.b16 %v268
        %v951 = vunpack.c.h.b16 %v268
        %v952 = vunpack.c.l.b16 %v269
        %v953 = vunpack.c.h.b16 %v269
        %v954 = vunpack.c.l.b16 %v270
        %v955 = vunpack.c.h.b16 %v270
        %v956 = vunpack.c.l.b16 %v271
        %v957 = vunpack.c.h.b16 %v271
        %v958 = vunpack.c.l.b16 %v272
        %v959 = vunpack.c.h.b16 %v272
        %v960 = vunpack.c.l.b16 %v273
        %v961 = vunpack.c.h.b16 %v273
        %v962 = vunpack.c.l.b16 %v274
        %v963 = vunpack.c.h.b16 %v274
        %v964 = vunpack.c.l.b16 %v275
        %v965 = vunpack.c.h.b16 %v275
        %v966 = vunpack.c.l.b16 %v276
        %v967 = vunpack.c.h.b16 %v276
        %v968 = vunpack.c.l.b16 %v277
        %v969 = vunpack.c.h.b16 %v277
        %v970 = vunpack.c.l.b16 %v278
        %v971 = vunpack.c.h.b16 %v278
        %v972 = vunpack.c.l.b16 %v279
        %v973 = vunpack.c.h.b16 %v279
        %v974 = vunpack.c.l.b16 %v280
        %v975 = vunpack.c.h.b16 %v280
        %v976 = vunpack.c.l.b16 %v281
        %v977 = vunpack.c.h.b16 %v281
        %v978 = vunpack.c.l.b16 %v282
        %v979 = vunpack.c.h.b16 %v282
        %v980 = vunpack.c.l.b16 %v283
        %v981 = vunpack.c.h.b16 %v283
        %v982 = vunpack.c.l.b16 %v284
        %v983 = vunpack.c.h.b16 %v284
        %v984 = vunpack.c.l.b16 %v285
        %v985 = vunpack.c.h.b16 %v285
        %v986 = vunpack.c.l.b16 %v286
        %v987 = vunpack.c.h.b16 %v286
        %v988 = vunpack.c.l.b16 %v287
        %v989 = vunpack.c.h.b16 %v287
        %v990 = vunpack.c.l.b16 %v288
        %v991 = vunpack.c.h.b16 %v288
        %v992 = vunpack.c.l.b16 %v289
        %v993 = vunpack.c.h.b16 %v289
        %v994 = vunpack.c.l.b16 %v290
        %v995 = vunpack.c.h.b16 %v290
        %v996 = vunpack.c.l.b16 %v291
        %v997 = vunpack.c.h.b16 %v291
        %v998 = vunpack.c.l.b16 %v292
        %v999 = vunpack.c.h.b16 %v292
        %v1000 = vunpack.c.l.b16 %v293
        %v1001 = vunpack.c.h.b16 %v293
        %v1002 = vunpack.c.l.b16 %v294
        %v1003 = vunpack.c.h.b16 %v294
        %v1004 = vunpack.c.l.b16 %v295
        %v1005 = vunpack.c.h.b16 %v295
        %v1006 = vunpack.c.l.b16 %v296
        %v1007 = vunpack.c.h.b16 %v296
        %v1008 = vunpack.c.l.b16 %v297
        %v1009 = vunpack.c.h.b16 %v297
        %v1010 = vunpack.c.l.b16 %v298
        %v1011 = vunpack.c.h.b16 %v298
        %v1012 = vunpack.c.l.b16 %v299
        %v1013 = vunpack.c.h.b16 %v299
        %v1014 = vunpack.c.l.b16 %v300
        %v1015 = vunpack.c.h.b16 %v300
        %v1016 = vunpack.c.l.b16 %v301
        %v1017 = vunpack.c.h.b16 %v301
        %v1018 = vunpack.c.l.b16 %v302
        %v1019 = vunpack.c.h.b16 %v302
        %v1020 = vunpack.c.l.b16 %v303
        %v1021 = vunpack.c.h.b16 %v303
        %v1022 = vunpack.c.l.b16 %v304
        %v1023 = vunpack.c.h.b16 %v304
        %v1024 = vunpack.c.l.b16 %v305
        %v1025 = vunpack.c.h.b16 %v305
        %v1026 = vunpack.c.l.b16 %v306
        %v1027 = vunpack.c.h.b16 %v306
        %v1028 = vunpack.c.l.b16 %v307
        %v1029 = vunpack.c.h.b16 %v307
        %v1030 = vunpack.c.l.b16 %v308
        %v1031 = vunpack.c.h.b16 %v308
        %v1032 = vunpack.c.l.b16 %v309
        %v1033 = vunpack.c.h.b16 %v309
        %v1034 = vunpack.c.l.b16 %v310
        %v1035 = vunpack.c.h.b16 %v310
        %v1036 = vunpack.c.l.b16 %v311
        %v1037 = vunpack.c.h.b16 %v311
        %v1038 = vunpack.c.l.b16 %v312
        %v1039 = vunpack.c.h.b16 %v312
        %v1040 = vunpack.c.l.b16 %v313
        %v1041 = vunpack.c.h.b16 %v313
        %v1042 = vunpack.c.l.b16 %v314
        %v1043 = vunpack.c.h.b16 %v314
        %v1044 = vunpack.c.l.b16 %v315
        %v1045 = vunpack.c.h.b16 %v315
        %v1046 = vunpack.c.l.b16 %v316
        %v1047 = vunpack.c.h.b16 %v316
        %v1048 = vunpack.c.l.b16 %v317
        %v1049 = vunpack.c.h.b16 %v317
        %v1050 = vunpack.c.l.b16 %v318
        %v1051 = vunpack.c.h.b16 %v318
        %v1052 = vunpack.c.l.b16 %v319
        %v1053 = vunpack.c.h.b16 %v319
        %v1054 = vunpack.c.l.b16 %v320
        %v1055 = vunpack.c.h.b16 %v320
        %v1056 = vunpack.c.l.b16 %v321
        %v1057 = vunpack.c.h.b16 %v321
        %v1058 = vunpack.c.l.b16 %v322
        %v1059 = vunpack.c.h.b16 %v322
        %v1060 = vunpack.c.l.b16 %v323
        %v1061 = vunpack.c.h.b16 %v323
        %v1062 = vunpack.c.l.b16 %v324
        %v1063 = vunpack.c.h.b16 %v324
        %v1064 = vunpack.c.l.b16 %v325
        %v1065 = vunpack.c.h.b16 %v325
        %v1066 = vunpack.c.l.b16 %v326
        %v1067 = vunpack.c.h.b16 %v326
        %v1068 = vunpack.c.l.b16 %v327
        %v1069 = vunpack.c.h.b16 %v327
        %v1070 = vunpack.c.l.b16 %v328
        %v1071 = vunpack.c.h.b16 %v328
        %v1072 = vunpack.c.l.b16 %v329
        %v1073 = vunpack.c.h.b16 %v329
        %v1074 = vunpack.c.l.b16 %v330
        %v1075 = vunpack.c.h.b16 %v330
        %v1076 = vunpack.c.l.b16 %v331
        %v1077 = vunpack.c.h.b16 %v331
        %v1078 = vunpack.c.l.b16 %v332
        %v1079 = vunpack.c.h.b16 %v332
        %v1080 = vunpack.c.l.b16 %v333
        %v1081 = vunpack.c.h.b16 %v333
        %v1082 = vunpack.c.l.b16 %v334
        %v1083 = vunpack.c.h.b16 %v334
        %v1084 = vunpack.c.l.b16 %v335
        %v1085 = vunpack.c.h.b16 %v335
        %v1086 = vunpack.c.l.b16 %v336
        %v1087 = vunpack.c.h.b16 %v336
        %v1088 = vunpack.c.l.b16 %v337
        %v1089 = vunpack.c.h.b16 %v337
        %v1090 = vunpack.c.l.b16 %v338
        %v1091 = vunpack.c.h.b16 %v338
        %v1092 = vunpack.c.l.b16 %v339
        %v1093 = vunpack.c.h.b16 %v339
        %v1094 = vunpack.c.l.b16 %v340
        %v1095 = vunpack.c.h.b16 %v340
        %v1096 = vunpack.c.l.b16 %v341
        %v1097 = vunpack.c.h.b16 %v341
        %v1098 = vunpack.c.l.b16 %v342
        %v1099 = vunpack.c.h.b16 %v342
        %v1100 = vunpack.c.l.b16 %v343
        %v1101 = vunpack.c.h.b16 %v343
        %v1102 = vunpack.c.l.b16 %v344
        %v1103 = vunpack.c.h.b16 %v344
        %v1104 = vunpack.c.l.b16 %v345
        %v1105 = vunpack.c.h.b16 %v345
        %v1106 = vunpack.c.l.b16 %v346
        %v1107 = vunpack.c.h.b16 %v346
        %v1108 = vunpack.c.l.b16 %v347
        %v1109 = vunpack.c.h.b16 %v347
        %v1110 = vunpack.c.l.b16 %v348
        %v1111 = vunpack.c.h.b16 %v348
        %v1112 = vunpack.c.l.b16 %v349
        %v1113 = vunpack.c.h.b16 %v349
        %v1114 = vunpack.c.l.b16 %v350
        %v1115 = vunpack.c.h.b16 %v350
        %v1116 = vunpack.c.l.b16 %v351
        %v1117 = vunpack.c.h.b16 %v351
        %v1118 = vunpack.c.l.b16 %v352
        %v1119 = vunpack.c.h.b16 %v352
        %v1120 = vunpack.c.l.b16 %v353
        %v1121 = vunpack.c.h.b16 %v353
        %v1122 = vunpack.c.l.b16 %v354
        %v1123 = vunpack.c.h.b16 %v354
        %v1124 = vunpack.c.l.b16 %v355
        %v1125 = vunpack.c.h.b16 %v355
        %v1126 = vunpack.c.l.b16 %v356
        %v1127 = vunpack.c.h.b16 %v356
        %v1128 = vunpack.c.l.b16 %v357
        %v1129 = vunpack.c.h.b16 %v357
        %v1130 = vunpack.c.l.b16 %v358
        %v1131 = vunpack.c.h.b16 %v358
        %v1132 = vunpack.c.l.b16 %v359
        %v1133 = vunpack.c.h.b16 %v359
        %v1134 = vunpack.c.l.b16 %v360
        %v1135 = vunpack.c.h.b16 %v360
        %v1136 = vunpack.c.l.b16 %v361
        %v1137 = vunpack.c.h.b16 %v361
        %v1138 = vunpack.c.l.b16 %v362
        %v1139 = vunpack.c.h.b16 %v362
        %v1140 = vunpack.c.l.b16 %v363
        %v1141 = vunpack.c.h.b16 %v363
        %v1142 = vunpack.c.l.b16 %v364
        %v1143 = vunpack.c.h.b16 %v364
        %v1144 = vunpack.c.l.b16 %v365
        %v1145 = vunpack.c.h.b16 %v365
        %v1146 = vunpack.c.l.b16 %v366
        %v1147 = vunpack.c.h.b16 %v366
        %v1148 = vunpack.c.l.b16 %v367
        %v1149 = vunpack.c.h.b16 %v367
        %v1150 = vunpack.c.l.b16 %v368
        %v1151 = vunpack.c.h.b16 %v368
        %v1152 = vunpack.c.l.b16 %v369
        %v1153 = vunpack.c.h.b16 %v369
        %v1154 = vunpack.c.l.b16 %v370
        %v1155 = vunpack.c.h.b16 %v370
        %v1156 = vunpack.c.l.b16 %v371
        %v1157 = vunpack.c.h.b16 %v371
        %v1158 = vunpack.c.l.b16 %v372
        %v1159 = vunpack.c.h.b16 %v372
        %v1160 = vunpack.c.l.b16 %v373
        %v1161 = vunpack.c.h.b16 %v373
        %v1162 = vunpack.c.l.b16 %v374
        %v1163 = vunpack.c.h.b16 %v374
        %v1164 = vunpack.c.l.b16 %v375
        %v1165 = vunpack.c.h.b16 %v375
        %v1166 = vunpack.c.l.b16 %v376
        %v1167 = vunpack.c.h.b16 %v376
        %v1168 = vunpack.c.l.b16 %v377
        %v1169 = vunpack.c.h.b16 %v377
        %v1170 = vunpack.c.l.b16 %v378
        %v1171 = vunpack.c.h.b16 %v378
        %v1172 = vunpack.c.l.b16 %v379
        %v1173 = vunpack.c.h.b16 %v379
        %v1174 = vunpack.c.l.b16 %v380
        %v1175 = vunpack.c.h.b16 %v380
        %v1176 = vunpack.c.l.b16 %v381
        %v1177 = vunpack.c.h.b16 %v381
        %v1178 = vunpack.c.l.b16 %v382
        %v1179 = vunpack.c.h.b16 %v382
        %v1180 = vunpack.c.l.b16 %v383
        %v1181 = vunpack.c.h.b16 %v383
        %v1182 = vunpack.c.l.b16 %v384
        %v1183 = vunpack.c.h.b16 %v384
        %v1184 = vunpack.c.l.b16 %v385
        %v1185 = vunpack.c.h.b16 %v385
        %v1186 = vunpack.c.l.b16 %v386
        %v1187 = vunpack.c.h.b16 %v386
        %v1188 = vunpack.c.l.b16 %v387
        %v1189 = vunpack.c.h.b16 %v387
        %v1190 = vunpack.c.l.b16 %v388
        %v1191 = vunpack.c.h.b16 %v388
        %v1192 = vunpack.c.l.b16 %v389
        %v1193 = vunpack.c.h.b16 %v389
        %v1194 = vunpack.c.l.b16 %v390
        %v1195 = vunpack.c.h.b16 %v390
        %v1196 = vunpack.c.l.b16 %v391
        %v1197 = vunpack.c.h.b16 %v391
        %v1198 = vunpack.c.l.b16 %v392
        %v1199 = vunpack.c.h.b16 %v392
        %v1200 = vunpack.c.l.b16 %v393
        %v1201 = vunpack.c.h.b16 %v393
        %v1202 = vunpack.c.l.b16 %v394
        %v1203 = vunpack.c.h.b16 %v394
        %v1204 = vunpack.c.l.b16 %v395
        %v1205 = vunpack.c.h.b16 %v395
        %v1206 = vunpack.c.l.b16 %v396
        %v1207 = vunpack.c.h.b16 %v396
        %v1208 = vunpack.c.l.b16 %v397
        %v1209 = vunpack.c.h.b16 %v397
        %v1210 = vunpack.c.l.b16 %v398
        %v1211 = vunpack.c.h.b16 %v398
        %v1212 = vunpack.c.l.b16 %v399
        %v1213 = vunpack.c.h.b16 %v399
        %v1214 = vunpack.c.l.b16 %v400
        %v1215 = vunpack.c.h.b16 %v400
        %v1216 = vunpack.c.l.b16 %v401
        %v1217 = vunpack.c.h.b16 %v401
        %v1218 = vunpack.c.l.b16 %v402
        %v1219 = vunpack.c.h.b16 %v402
        %v1220 = vunpack.c.l.b16 %v403
        %v1221 = vunpack.c.h.b16 %v403
        %v1222 = vunpack.c.l.b16 %v404
        %v1223 = vunpack.c.h.b16 %v404
        %v1224 = vunpack.c.l.b16 %v405
        %v1225 = vunpack.c.h.b16 %v405
        %v1226 = vunpack.c.l.b16 %v406
        %v1227 = vunpack.c.h.b16 %v406
        %v1228 = vunpack.c.l.b16 %v407
        %v1229 = vunpack.c.h.b16 %v407
        %v1230 = vunpack.c.l.b16 %v408
        %v1231 = vunpack.c.h.b16 %v408
        %v1232 = vunpack.c.l.b16 %v409
        %v1233 = vunpack.c.h.b16 %v409
        %v1234 = vunpack.c.l.b16 %v410
        %v1235 = vunpack.c.h.b16 %v410
        %v1236 = vunpack.c.l.b16 %v411
        %v1237 = vunpack.c.h.b16 %v411
        %v1238 = vunpack.c.l.b16 %v412
        %v1239 = vunpack.c.h.b16 %v412
        %v1240 = vunpack.c.l.b16 %v413
        %v1241 = vunpack.c.h.b16 %v413
        %v1242 = vunpack.c.l.b16 %v414
        %v1243 = vunpack.c.h.b16 %v414
        %v1244 = vunpack.c.l.b16 %v415
        %v1245 = vunpack.c.h.b16 %v415
        %v1246 = vunpack.c.l.b16 %v416
        %v1247 = vunpack.c.h.b16 %v416
        %v1248 = vunpack.c.l.b16 %v417
        %v1249 = vunpack.c.h.b16 %v417
        %v1250 = vunpack.c.l.b16 %v418
        %v1251 = vunpack.c.h.b16 %v418
        %v1252 = vunpack.c.l.b16 %v419
        %v1253 = vunpack.c.h.b16 %v419
        %v1254 = vunpack.c.l.b16 %v420
        %v1255 = vunpack.c.h.b16 %v420
        %v1256 = vunpack.c.l.b16 %v421
        %v1257 = vunpack.c.h.b16 %v421
        %v1258 = vunpack.c.l.b16 %v422
        %v1259 = vunpack.c.h.b16 %v422
        %v1260 = vunpack.c.l.b16 %v423
        %v1261 = vunpack.c.h.b16 %v423
        %v1262 = vunpack.c.l.b16 %v424
        %v1263 = vunpack.c.h.b16 %v424
        %v1264 = vunpack.c.l.b16 %v425
        %v1265 = vunpack.c.h.b16 %v425
        %v1266 = vunpack.c.l.b16 %v426
        %v1267 = vunpack.c.h.b16 %v426
        %v1268 = vunpack.c.l.b16 %v427
        %v1269 = vunpack.c.h.b16 %v427
        %v1270 = vunpack.c.l.b16 %v428
        %v1271 = vunpack.c.h.b16 %v428
        %v1272 = vunpack.c.l.b16 %v429
        %v1273 = vunpack.c.h.b16 %v429
        %v1274 = vunpack.c.l.b16 %v430
        %v1275 = vunpack.c.h.b16 %v430
        %v1276 = vunpack.c.l.b16 %v431
        %v1277 = vunpack.c.h.b16 %v431
        %v1278 = vunpack.c.l.b16 %v432
        %v1279 = vunpack.c.h.b16 %v432
        %v1280 = vunpack.c.l.b16 %v433
        %v1281 = vunpack.c.h.b16 %v433
        %v1282 = vunpack.c.l.b16 %v434
        %v1283 = vunpack.c.h.b16 %v434
        %v1284 = vunpack.c.l.b16 %v435
        %v1285 = vunpack.c.h.b16 %v435
        %v1286 = vunpack.c.l.b16 %v436
        %v1287 = vunpack.c.h.b16 %v436
        %v1288 = vunpack.c.l.b16 %v437
        %v1289 = vunpack.c.h.b16 %v437
        %v1290 = vunpack.c.l.b16 %v438
        %v1291 = vunpack.c.h.b16 %v438
        %v1292 = vunpack.c.l.b16 %v439
        %v1293 = vunpack.c.h.b16 %v439
        %v1294 = vunpack.c.l.b16 %v440
        %v1295 = vunpack.c.h.b16 %v440
        %v1296 = vunpack.c.l.b16 %v441
        %v1297 = vunpack.c.h.b16 %v441
        %v1298 = vunpack.c.l.b16 %v442
        %v1299 = vunpack.c.h.b16 %v442
        %v1300 = vunpack.c.l.b16 %v443
        %v1301 = vunpack.c.h.b16 %v443
        %v1302 = vunpack.c.l.b16 %v444
        %v1303 = vunpack.c.h.b16 %v444
        %v1304 = vunpack.c.l.b16 %v445
        %v1305 = vunpack.c.h.b16 %v445
        %v1306 = vunpack.c.l.b16 %v446
        %v1307 = vunpack.c.h.b16 %v446
        %v1308 = vunpack.c.l.b16 %v447
        %v1309 = vunpack.c.h.b16 %v447
        %v1310 = vunpack.c.l.b16 %v448
        %v1311 = vunpack.c.h.b16 %v448
        %v1312 = vunpack.c.l.b16 %v449
        %v1313 = vunpack.c.h.b16 %v449
        %v1314 = vunpack.c.l.b16 %v450
        %v1315 = vunpack.c.h.b16 %v450
        %v1316 = vunpack.c.l.b16 %v451
        %v1317 = vunpack.c.h.b16 %v451
        %v1318 = vunpack.c.l.b16 %v452
        %v1319 = vunpack.c.h.b16 %v452
        %v1320 = vunpack.c.l.b16 %v453
        %v1321 = vunpack.c.h.b16 %v453
        %v1322 = vunpack.c.l.b16 %v454
        %v1323 = vunpack.c.h.b16 %v454
        %v1324 = vunpack.c.l.b16 %v455
        %v1325 = vunpack.c.h.b16 %v455
        %v1326 = vunpack.c.l.b16 %v456
        %v1327 = vunpack.c.h.b16 %v456
        %v1328 = vunpack.c.l.b16 %v457
        %v1329 = vunpack.c.h.b16 %v457
        %v1330 = vpack.c.b16 %v932, %v930
        %v1331 = vpack.c.b16 %v933, %v931
        %v1332 = vpack.c.b16 %v936, %v934
        %v1333 = vpack.c.b16 %v937, %v935
        %v1334 = vpack.c.b16 %v940, %v938
        %v1335 = vpack.c.b16 %v941, %v939
        %v1336 = vpack.c.b16 %v944, %v942
        %v1337 = vpack.c.b16 %v945, %v943
        %v1338 = vpack.c.b16 %v948, %v946
        %v1339 = vpack.c.b16 %v949, %v947
        %v1340 = vpack.c.b16 %v952, %v950
        %v1341 = vpack.c.b16 %v953, %v951
        %v1342 = vpack.c.b16 %v956, %v954
        %v1343 = vpack.c.b16 %v957, %v955
        %v1344 = vpack.c.b16 %v960, %v958
        %v1345 = vpack.c.b16 %v961, %v959
        %v1346 = vpack.c.b16 %v964, %v962
        %v1347 = vpack.c.b16 %v965, %v963
        %v1348 = vpack.c.b16 %v968, %v966
        %v1349 = vpack.c.b16 %v969, %v967
        %v1350 = vpack.c.b16 %v972, %v970
        %v1351 = vpack.c.b16 %v973, %v971
        %v1352 = vpack.c.b16 %v976, %v974
        %v1353 = vpack.c.b16 %v977, %v975
        %v1354 = vpack.c.b16 %v980, %v978
        %v1355 = vpack.c.b16 %v981, %v979
        %v1356 = vpack.c.b16 %v984, %v982
        %v1357 = vpack.c.b16 %v985, %v983
        %v1358 = vpack.c.b16 %v988, %v986
        %v1359 = vpack.c.b16 %v989, %v987
        %v1360 = vpack.c.b16 %v992, %v990
        %v1361 = vpack.c.b16 %v993, %v991
        %v1362 = vpack.c.b16 %v996, %v994
        %v1363 = vpack.c.b16 %v997, %v995
        %v1364 = vpack.c.b16 %v1000, %v998
        %v1365 = vpack.c.b16 %v1001, %v999
        %v1366 = vpack.c.b16 %v1004, %v1002
        %v1367 = vpack.c.b16 %v1005, %v1003
        %v1368 = vpack.c.b16 %v1008, %v1006
        %v1369 = vpack.c.b16 %v1009, %v1007
        %v1370 = vpack.c.b16 %v1012, %v1010
        %v1371 = vpack.c.b16 %v1013, %v1011
        %v1372 = vpack.c.b16 %v1016, %v1014
        %v1373 = vpack.c.b16 %v1017, %v1015
        %v1374 = vpack.c.b16 %v1020, %v1018
        %v1375 = vpack.c.b16 %v1021, %v1019
        %v1376 = vpack.c.b16 %v1024, %v1022
        %v1377 = vpack.c.b16 %v1025, %v1023
        %v1378 = vpack.c.b16 %v1028, %v1026
        %v1379 = vpack.c.b16 %v1029, %v1027
        %v1380 = vpack.c.b16 %v1032, %v1030
        %v1381 = vpack.c.b16 %v1033, %v1031
        %v1382 = vpack.c.b16 %v1036, %v1034
        %v1383 = vpack.c.b16 %v1037, %v1035
        %v1384 = vpack.c.b16 %v1040, %v1038
        %v1385 = vpack.c.b16 %v1041, %v1039
        %v1386 = vpack.c.b16 %v1044, %v1042
        %v1387 = vpack.c.b16 %v1045, %v1043
        %v1388 = vpack.c.b16 %v1048, %v1046
        %v1389 = vpack.c.b16 %v1049, %v1047
        %v1390 = vpack.c.b16 %v1052, %v1050
        %v1391 = vpack.c.b16 %v1053, %v1051
        %v1392 = vpack.c.b16 %v1056, %v1054
        %v1393 = vpack.c.b16 %v1057, %v1055
        %v1394 = vpack.c.b16 %v1060, %v1058
        %v1395 = vpack.c.b16 %v1061, %v1059
        %v1396 = vpack.c.b16 %v1064, %v1062
        %v1397 = vpack.c.b16 %v1065, %v1063
        %v1398 = vpack.c.b16 %v1068, %v1066
        %v1399 = vpack.c.b16 %v1069, %v1067
        %v1400 = vpack.c.b16 %v1072, %v1070
        %v1401 = vpack.c.b16 %v1073, %v1071
        %v1402 = vpack.c.b16 %v1076, %v1074
        %v1403 = vpack.c.b16 %v1077, %v1075
        %v1404 = vpack.c.b16 %v1080, %v1078
        %v1405 = vpack.c.b16 %v1081, %v1079
        %v1406 = vpack.c.b16 %v1084, %v1082
        %v1407 = vpack.c.b16 %v1085, %v1083
        %v1408 = vpack.c.b16 %v1088, %v1086
        %v1409 = vpack.c.b16 %v1089, %v1087
        %v1410 = vpack.c.b16 %v1092, %v1090
        %v1411 = vpack.c.b16 %v1093, %v1091
        %v1412 = vpack.c.b16 %v1096, %v1094
        %v1413 = vpack.c.b16 %v1097, %v1095
        %v1414 = vpack.c.b16 %v1100, %v1098
        %v1415 = vpack.c.b16 %v1101, %v1099
        %v1416 = vpack.c.b16 %v1104, %v1102
        %v1417 = vpack.c.b16 %v1105, %v1103
        %v1418 = vpack.c.b16 %v1108, %v1106
        %v1419 = vpack.c.b16 %v1109, %v1107
        %v1420 = vpack.c.b16 %v1112, %v1110
        %v1421 = vpack.c.b16 %v1113, %v1111
        %v1422 = vpack.c.b16 %v1116, %v1114
        %v1423 = vpack.c.b16 %v1117, %v1115
        %v1424 = vpack.c.b16 %v1120, %v1118
        %v1425 = vpack.c.b16 %v1121, %v1119
        %v1426 = vpack.c.b16 %v1124, %v1122
        %v1427 = vpack.c.b16 %v1125, %v1123
        %v1428 = vpack.c.b16 %v1128, %v1126
        %v1429 = vpack.c.b16 %v1129, %v1127
        %v1430 = vpack.c.b16 %v1132, %v1130
        %v1431 = vpack.c.b16 %v1133, %v1131
        %v1432 = vpack.c.b16 %v1136, %v1134
        %v1433 = vpack.c.b16 %v1137, %v1135
        %v1434 = vpack.c.b16 %v1140, %v1138
        %v1435 = vpack.c.b16 %v1141, %v1139
        %v1436 = vpack.c.b16 %v1144, %v1142
        %v1437 = vpack.c.b16 %v1145, %v1143
        %v1438 = vpack.c.b16 %v1148, %v1146
        %v1439 = vpack.c.b16 %v1149, %v1147
        %v1440 = vpack.c.b16 %v1152, %v1150
        %v1441 = vpack.c.b16 %v1153, %v1151
        %v1442 = vpack.c.b16 %v1156, %v1154
        %v1443 = vpack.c.b16 %v1157, %v1155
        %v1444 = vpack.c.b16 %v1160, %v1158
        %v1445 = vpack.c.b16 %v1161, %v1159
        %v1446 = vpack.c.b16 %v1164, %v1162
        %v1447 = vpack.c.b16 %v1165, %v1163
        %v1448 = vpack.c.b16 %v1168, %v1166
        %v1449 = vpack.c.b16 %v1169, %v1167
        %v1450 = vpack.c.b16 %v1172, %v1170
        %v1451 = vpack.c.b16 %v1173, %v1171
        %v1452 = vpack.c.b16 %v1176, %v1174
        %v1453 = vpack.c.b16 %v1177, %v1175
        %v1454 = vpack.c.b16 %v1180, %v1178
        %v1455 = vpack.c.b16 %v1181, %v1179
        %v1456 = vpack.c.b16 %v1184, %v1182
        %v1457 = vpack.c.b16 %v1185, %v1183
        %v1458 = vpack.c.b16 %v1188, %v1186
        %v1459 = vpack.c.b16 %v1189, %v1187
        %v1460 = vpack.c.b16 %v1192, %v1190
        %v1461 = vpack.c.b16 %v1193, %v1191
        %v1462 = vpack.c.b16 %v1196, %v1194
        %v1463 = vpack.c.b16 %v1197, %v1195
        %v1464 = vpack.c.b16 %v1200, %v1198
        %v1465 = vpack.c.b16 %v1201, %v1199
        %v1466 = vpack.c.b16 %v1204, %v1202
        %v1467 = vpack.c.b16 %v1205, %v1203
        %v1468 = vpack.c.b16 %v1208, %v1206
        %v1469 = vpack.c.b16 %v1209, %v1207
        %v1470 = vpack.c.b16 %v1212, %v1210
        %v1471 = vpack.c.b16 %v1213, %v1211
        %v1472 = vpack.c.b16 %v1216, %v1214
        %v1473 = vpack.c.b16 %v1217, %v1215
        %v1474 = vpack.c.b16 %v1220, %v1218
        %v1475 = vpack.c.b16 %v1221, %v1219
        %v1476 = vpack.c.b16 %v1224, %v1222
        %v1477 = vpack.c.b16 %v1225, %v1223
        %v1478 = vpack.c.b16 %v1228, %v1226
        %v1479 = vpack.c.b16 %v1229, %v1227
        %v1480 = vpack.c.b16 %v1232, %v1230
        %v1481 = vpack.c.b16 %v1233, %v1231
        %v1482 = vpack.c.b16 %v1236, %v1234
        %v1483 = vpack.c.b16 %v1237, %v1235
        %v1484 = vpack.c.b16 %v1240, %v1238
        %v1485 = vpack.c.b16 %v1241, %v1239
        %v1486 = vpack.c.b16 %v1244, %v1242
        %v1487 = vpack.c.b16 %v1245, %v1243
        %v1488 = vpack.c.b16 %v1248, %v1246
        %v1489 = vpack.c.b16 %v1249, %v1247
        %v1490 = vpack.c.b16 %v1252, %v1250
        %v1491 = vpack.c.b16 %v1253, %v1251
        %v1492 = vpack.c.b16 %v1256, %v1254
        %v1493 = vpack.c.b16 %v1257, %v1255
        %v1494 = vpack.c.b16 %v1260, %v1258
        %v1495 = vpack.c.b16 %v1261, %v1259
        %v1496 = vpack.c.b16 %v1264, %v1262
        %v1497 = vpack.c.b16 %v1265, %v1263
        %v1498 = vpack.c.b16 %v1268, %v1266
        %v1499 = vpack.c.b16 %v1269, %v1267
        %v1500 = vpack.c.b16 %v1272, %v1270
        %v1501 = vpack.c.b16 %v1273, %v1271
        %v1502 = vpack.c.b16 %v1276, %v1274
        %v1503 = vpack.c.b16 %v1277, %v1275
        %v1504 = vpack.c.b16 %v1280, %v1278
        %v1505 = vpack.c.b16 %v1281, %v1279
        %v1506 = vpack.c.b16 %v1284, %v1282
        %v1507 = vpack.c.b16 %v1285, %v1283
        %v1508 = vpack.c.b16 %v1288, %v1286
        %v1509 = vpack.c.b16 %v1289, %v1287
        %v1510 = vpack.c.b16 %v1292, %v1290
        %v1511 = vpack.c.b16 %v1293, %v1291
        %v1512 = vpack.c.b16 %v1296, %v1294
        %v1513 = vpack.c.b16 %v1297, %v1295
        %v1514 = vpack.c.b16 %v1300, %v1298
        %v1515 = vpack.c.b16 %v1301, %v1299
        %v1516 = vpack.c.b16 %v1304, %v1302
        %v1517 = vpack.c.b16 %v1305, %v1303
        %v1518 = vpack.c.b16 %v1308, %v1306
        %v1519 = vpack.c.b16 %v1309, %v1307
        %v1520 = vpack.c.b16 %v1312, %v1310
        %v1521 = vpack.c.b16 %v1313, %v1311
        %v1522 = vpack.c.b16 %v1316, %v1314
        %v1523 = vpack.c.b16 %v1317, %v1315
        %v1524 = vpack.c.b16 %v1320, %v1318
        %v1525 = vpack.c.b16 %v1321, %v1319
        %v1526 = vpack.c.b16 %v1324, %v1322
        %v1527 = vpack.c.b16 %v1325, %v1323
        %v1528 = vpack.c.b16 %v1328, %v1326
        %v1529 = vpack.c.b16 %v1329, %v1327
        %vm1730 = vcmask 523264
        %v1732 = vsel %vm1730, %v642, 0
        %v1735 = vsel %vm1730, %v655, 0
        %v1738 = vsel %vm1730, %v668, 0
        %v1741 = vsel %vm1730, %v681, 0
        %1743 = vmatprep.subr.bf16.mxu0 %v1331
        %1744 = vmatpush1.bf16.msra.mxu0 %v1330
        %1745 = vmatprep.subr.bf16.mxu0 %v1333
        %1746 = vmatpush1.bf16.msra.mxu0 %v1332
        %1747 = vmatprep.subr.bf16.mxu0 %v1335
        %1748 = vmatpush1.bf16.msra.mxu0 %v1334
        %1749 = vmatprep.subr.bf16.mxu0 %v1337
        %1750 = vmatpush1.bf16.msra.mxu0 %v1336
        %1751 = vmatprep.subr.bf16.mxu0 %v1339
        %1752 = vmatpush1.bf16.msra.mxu0 %v1338
        %1753 = vmatprep.subr.bf16.mxu0 %v1341
        %1754 = vmatpush1.bf16.msra.mxu0 %v1340
        %1755 = vmatprep.subr.bf16.mxu0 %v1343
        %1756 = vmatpush1.bf16.msra.mxu0 %v1342
        %1757 = vmatprep.subr.bf16.mxu0 %v1345
        %1758 = vmatpush1.bf16.msra.mxu0 %v1344
        %1759 = vmatprep.subr.bf16.mxu0 %v1347
        %1760 = vmatpush1.bf16.msra.mxu0 %v1346
        %1761 = vmatprep.subr.bf16.mxu0 %v1349
        %1762 = vmatpush1.bf16.msra.mxu0 %v1348
        %1763 = vmatprep.subr.bf16.mxu0 %v1351
        %1764 = vmatpush1.bf16.msra.mxu0 %v1350
        %1765 = vmatprep.subr.bf16.mxu0 %v1353
        %1766 = vmatpush1.bf16.msra.mxu0 %v1352
        %1767 = vmatprep.subr.bf16.mxu0 %v1355
        %1768 = vmatpush1.bf16.msra.mxu0 %v1354
        %1769 = vmatprep.subr.bf16.mxu0 %v1357
        %1770 = vmatpush1.bf16.msra.mxu0 %v1356
        %1771 = vmatprep.subr.bf16.mxu0 %v1359
        %1772 = vmatpush1.bf16.msra.mxu0 %v1358
        %1773 = vmatprep.subr.bf16.mxu0 %v1361
        %1774 = vmatpush1.bf16.msra.mxu0 %v1360
        %1775 = vmatprep.mubr.bf16.mxu0 %v631
        %1776 = vmatmul.mubr.bf16.gmra.mrb[0].mxu0 %v630
        %v1777 = vpop.f32.mrb[0].mxu0
        %v1778 = vadd.f32 %v463, %v1777
        %v1779 = vpop.f32.mrb[0].mxu0
        %v1780 = vadd.f32 %v467, %v1779
        %v1781 = vpop.f32.mrb[0].mxu0
        %v1782 = vadd.f32 %v463, %v1781
        %v1783 = vpop.f32.mrb[0].mxu0
        %v1784 = vadd.f32 %v467, %v1783
        %1785 = vmatprep.mubr.bf16.mxu0 %v644
        %1786 = vmatmul.mubr.bf16.gmra.mrb[0].mxu0 %v643
        %v1787 = vpop.f32.mrb[0].mxu0
        %v1788 = vadd.f32 %v463, %v1787
        %v1789 = vpop.f32.mrb[0].mxu0
        %v1790 = vadd.f32 %v467, %v1789
        %v1791 = vpop.f32.mrb[0].mxu0
        %v1792 = vadd.f32 %v463, %v1791
        %v1793 = vpop.f32.mrb[0].mxu0
        %v1794 = vadd.f32 %v467, %v1793
        %1795 = vmatprep.mubr.bf16.mxu0 %v657
        %1796 = vmatmul.mubr.bf16.gmra.mrb[0].mxu0 %v656
        %v1797 = vpop.f32.mrb[0].mxu0
        %v1798 = vadd.f32 %v463, %v1797
        %v1799 = vpop.f32.mrb[0].mxu0
        %v1800 = vadd.f32 %v467, %v1799
        %v1801 = vpop.f32.mrb[0].mxu0
        %v1802 = vadd.f32 %v463, %v1801
        %v1803 = vpop.f32.mrb[0].mxu0
        %v1804 = vadd.f32 %v467, %v1803
        %1805 = vmatprep.mubr.bf16.mxu0 %v670
        %1806 = vmatmul.mubr.bf16.gmra.mrb[0].mxu0 %v669
        %v1807 = vpop.f32.mrb[0].mxu0
        %v1808 = vadd.f32 %v463, %v1807
        %v1809 = vpop.f32.mrb[0].mxu0
        %v1810 = vadd.f32 %v467, %v1809
        %v1811 = vpop.f32.mrb[0].mxu0
        %v1812 = vadd.f32 %v463, %v1811
        %v1813 = vpop.f32.mrb[0].mxu0
        %v1814 = vadd.f32 %v467, %v1813
        %1815 = vdwg.mxu0
        %1816 = vmatprep.subr.bf16.mxu0 %v1363
        %1817 = vmatpush1.bf16.msra.mxu0 %v1362
        %1818 = vmatprep.subr.bf16.mxu0 %v1365
        %1819 = vmatpush1.bf16.msra.mxu0 %v1364
        %1820 = vmatprep.subr.bf16.mxu0 %v1367
        %1821 = vmatpush1.bf16.msra.mxu0 %v1366
        %1822 = vmatprep.subr.bf16.mxu0 %v1369
        %1823 = vmatpush1.bf16.msra.mxu0 %v1368
        %1824 = vmatprep.subr.bf16.mxu0 %v1371
        %1825 = vmatpush1.bf16.msra.mxu0 %v1370
        %1826 = vmatprep.subr.bf16.mxu0 %v1373
        %1827 = vmatpush1.bf16.msra.mxu0 %v1372
        %1828 = vmatprep.subr.bf16.mxu0 %v1375
        %1829 = vmatpush1.bf16.msra.mxu0 %v1374
        %1830 = vmatprep.subr.bf16.mxu0 %v1377
        %1831 = vmatpush1.bf16.msra.mxu0 %v1376
        %1832 = vmatprep.subr.bf16.mxu0 %v1379
        %1833 = vmatpush1.bf16.msra.mxu0 %v1378
        %1834 = vmatprep.subr.bf16.mxu0 %v1381
        %1835 = vmatpush1.bf16.msra.mxu0 %v1380
        %1836 = vmatprep.subr.bf16.mxu0 %v1383
        %1837 = vmatpush1.bf16.msra.mxu0 %v1382
        %1838 = vmatprep.subr.bf16.mxu0 %v1385
        %1839 = vmatpush1.bf16.msra.mxu0 %v1384
        %1840 = vmatprep.subr.bf16.mxu0 %v1387
        %1841 = vmatpush1.bf16.msra.mxu0 %v1386
        %1842 = vmatprep.subr.bf16.mxu0 %v1389
        %1843 = vmatpush1.bf16.msra.mxu0 %v1388
        %1844 = vmatprep.subr.bf16.mxu0 %v1391
        %1845 = vmatpush1.bf16.msra.mxu0 %v1390
        %1846 = vmatprep.subr.bf16.mxu0 %v1393
        %1847 = vmatpush1.bf16.msra.mxu0 %v1392
        %1848 = vmatprep.mubr.bf16.mxu0 %v633
        %1849 = vmatmul.mubr.bf16.gmra.mrb[0].mxu0 %v632
        %v1850 = vpop.f32.mrb[0].mxu0
        %v1851 = vadd.f32 %v1778, %v1850
        %v1852 = vpop.f32.mrb[0].mxu0
        %v1853 = vadd.f32 %v1780, %v1852
        %v1854 = vpop.f32.mrb[0].mxu0
        %v1855 = vadd.f32 %v1782, %v1854
        %v1856 = vpop.f32.mrb[0].mxu0
        %v1857 = vadd.f32 %v1784, %v1856
        %1858 = vmatprep.mubr.bf16.mxu0 %v646
        %1859 = vmatmul.mubr.bf16.gmra.mrb[0].mxu0 %v645
        %v1860 = vpop.f32.mrb[0].mxu0
        %v1861 = vadd.f32 %v1788, %v1860
        %v1862 = vpop.f32.mrb[0].mxu0
        %v1863 = vadd.f32 %v1790, %v1862
        %v1864 = vpop.f32.mrb[0].mxu0
        %v1865 = vadd.f32 %v1792, %v1864
        %v1866 = vpop.f32.mrb[0].mxu0
        %v1867 = vadd.f32 %v1794, %v1866
        %1868 = vmatprep.mubr.bf16.mxu0 %v659
        %1869 = vmatmul.mubr.bf16.gmra.mrb[0].mxu0 %v658
        %v1870 = vpop.f32.mrb[0].mxu0
        %v1871 = vadd.f32 %v1798, %v1870
        %v1872 = vpop.f32.mrb[0].mxu0
        %v1873 = vadd.f32 %v1800, %v1872
        %v1874 = vpop.f32.mrb[0].mxu0
        %v1875 = vadd.f32 %v1802, %v1874
        %v1876 = vpop.f32.mrb[0].mxu0
        %v1877 = vadd.f32 %v1804, %v1876
        %1878 = vmatprep.mubr.bf16.mxu0 %v672
        %1879 = vmatmul.mubr.bf16.gmra.mrb[0].mxu0 %v671
        %v1880 = vpop.f32.mrb[0].mxu0
        %v1881 = vadd.f32 %v1808, %v1880
        %v1882 = vpop.f32.mrb[0].mxu0
        %v1883 = vadd.f32 %v1810, %v1882
        %v1884 = vpop.f32.mrb[0].mxu0
        %v1885 = vadd.f32 %v1812, %v1884
        %v1886 = vpop.f32.mrb[0].mxu0
        %v1887 = vadd.f32 %v1814, %v1886
        %1888 = vdwg.mxu0
        %1889 = vmatprep.subr.bf16.mxu0 %v1395
        %1890 = vmatpush1.bf16.msra.mxu0 %v1394
        %1891 = vmatprep.subr.bf16.mxu0 %v1397
        %1892 = vmatpush1.bf16.msra.mxu0 %v1396
        %1893 = vmatprep.subr.bf16.mxu0 %v1399
        %1894 = vmatpush1.bf16.msra.mxu0 %v1398
        %1895 = vmatprep.subr.bf16.mxu0 %v1401
        %1896 = vmatpush1.bf16.msra.mxu0 %v1400
        %1897 = vmatprep.subr.bf16.mxu0 %v1403
        %1898 = vmatpush1.bf16.msra.mxu0 %v1402
        %1899 = vmatprep.subr.bf16.mxu0 %v1405
        %1900 = vmatpush1.bf16.msra.mxu0 %v1404
        %1901 = vmatprep.subr.bf16.mxu0 %v1407
        %1902 = vmatpush1.bf16.msra.mxu0 %v1406
        %1903 = vmatprep.subr.bf16.mxu0 %v1409
        %1904 = vmatpush1.bf16.msra.mxu0 %v1408
        %1905 = vmatprep.subr.bf16.mxu0 %v1411
        %1906 = vmatpush1.bf16.msra.mxu0 %v1410
        %1907 = vmatprep.subr.bf16.mxu0 %v1413
        %1908 = vmatpush1.bf16.msra.mxu0 %v1412
        %1909 = vmatprep.subr.bf16.mxu0 %v1415
        %1910 = vmatpush1.bf16.msra.mxu0 %v1414
        %1911 = vmatprep.subr.bf16.mxu0 %v1417
        %1912 = vmatpush1.bf16.msra.mxu0 %v1416
        %1913 = vmatprep.subr.bf16.mxu0 %v1419
        %1914 = vmatpush1.bf16.msra.mxu0 %v1418
        %1915 = vmatprep.subr.bf16.mxu0 %v1421
        %1916 = vmatpush1.bf16.msra.mxu0 %v1420
        %1917 = vmatprep.subr.bf16.mxu0 %v1423
        %1918 = vmatpush1.bf16.msra.mxu0 %v1422
        %1919 = vmatprep.subr.bf16.mxu0 %v1425
        %1920 = vmatpush1.bf16.msra.mxu0 %v1424
        %1921 = vmatprep.mubr.bf16.mxu0 %v635
        %1922 = vmatmul.mubr.bf16.gmra.mrb[0].mxu0 %v634
        %v1923 = vpop.f32.mrb[0].mxu0
        %v1924 = vadd.f32 %v1851, %v1923
        %v1925 = vpop.f32.mrb[0].mxu0
        %v1926 = vadd.f32 %v1853, %v1925
        %v1927 = vpop.f32.mrb[0].mxu0
        %v1928 = vadd.f32 %v1855, %v1927
        %v1929 = vpop.f32.mrb[0].mxu0
        %v1930 = vadd.f32 %v1857, %v1929
        %1931 = vmatprep.mubr.bf16.mxu0 %v648
        %1932 = vmatmul.mubr.bf16.gmra.mrb[0].mxu0 %v647
        %v1933 = vpop.f32.mrb[0].mxu0
        %v1934 = vadd.f32 %v1861, %v1933
        %v1935 = vpop.f32.mrb[0].mxu0
        %v1936 = vadd.f32 %v1863, %v1935
        %v1937 = vpop.f32.mrb[0].mxu0
        %v1938 = vadd.f32 %v1865, %v1937
        %v1939 = vpop.f32.mrb[0].mxu0
        %v1940 = vadd.f32 %v1867, %v1939
        %1941 = vmatprep.mubr.bf16.mxu0 %v661
        %1942 = vmatmul.mubr.bf16.gmra.mrb[0].mxu0 %v660
        %v1943 = vpop.f32.mrb[0].mxu0
        %v1944 = vadd.f32 %v1871, %v1943
        %v1945 = vpop.f32.mrb[0].mxu0
        %v1946 = vadd.f32 %v1873, %v1945
        %v1947 = vpop.f32.mrb[0].mxu0
        %v1948 = vadd.f32 %v1875, %v1947
        %v1949 = vpop.f32.mrb[0].mxu0
        %v1950 = vadd.f32 %v1877, %v1949
        %1951 = vmatprep.mubr.bf16.mxu0 %v674
        %1952 = vmatmul.mubr.bf16.gmra.mrb[0].mxu0 %v673
        %v1953 = vpop.f32.mrb[0].mxu0
        %v1954 = vadd.f32 %v1881, %v1953
        %v1955 = vpop.f32.mrb[0].mxu0
        %v1956 = vadd.f32 %v1883, %v1955
        %v1957 = vpop.f32.mrb[0].mxu0
        %v1958 = vadd.f32 %v1885, %v1957
        %v1959 = vpop.f32.mrb[0].mxu0
        %v1960 = vadd.f32 %v1887, %v1959
        %1961 = vdwg.mxu0
        %1962 = vmatprep.subr.bf16.mxu0 %v1427
        %1963 = vmatpush1.bf16.msra.mxu0 %v1426
        %1964 = vmatprep.subr.bf16.mxu0 %v1429
        %1965 = vmatpush1.bf16.msra.mxu0 %v1428
        %1966 = vmatprep.subr.bf16.mxu0 %v1431
        %1967 = vmatpush1.bf16.msra.mxu0 %v1430
        %1968 = vmatprep.subr.bf16.mxu0 %v1433
        %1969 = vmatpush1.bf16.msra.mxu0 %v1432
        %1970 = vmatprep.subr.bf16.mxu0 %v1435
        %1971 = vmatpush1.bf16.msra.mxu0 %v1434
        %1972 = vmatprep.subr.bf16.mxu0 %v1437
        %1973 = vmatpush1.bf16.msra.mxu0 %v1436
        %1974 = vmatprep.subr.bf16.mxu0 %v1439
        %1975 = vmatpush1.bf16.msra.mxu0 %v1438
        %1976 = vmatprep.subr.bf16.mxu0 %v1441
        %1977 = vmatpush1.bf16.msra.mxu0 %v1440
        %1978 = vmatprep.subr.bf16.mxu0 %v1443
        %1979 = vmatpush1.bf16.msra.mxu0 %v1442
        %1980 = vmatprep.subr.bf16.mxu0 %v1445
        %1981 = vmatpush1.bf16.msra.mxu0 %v1444
        %1982 = vmatprep.subr.bf16.mxu0 %v1447
        %1983 = vmatpush1.bf16.msra.mxu0 %v1446
        %1984 = vmatprep.subr.bf16.mxu0 %v1449
        %1985 = vmatpush1.bf16.msra.mxu0 %v1448
        %1986 = vmatprep.subr.bf16.mxu0 %v1451
        %1987 = vmatpush1.bf16.msra.mxu0 %v1450
        %1988 = vmatprep.subr.bf16.mxu0 %v1453
        %1989 = vmatpush1.bf16.msra.mxu0 %v1452
        %1990 = vmatprep.subr.bf16.mxu0 %v1455
        %1991 = vmatpush1.bf16.msra.mxu0 %v1454
        %1992 = vmatprep.subr.bf16.mxu0 %v1457
        %1993 = vmatpush1.bf16.msra.mxu0 %v1456
        %1994 = vmatprep.mubr.bf16.mxu0 %v637
        %1995 = vmatmul.mubr.bf16.gmra.mrb[0].mxu0 %v636
        %v1996 = vpop.f32.mrb[0].mxu0
        %v1997 = vadd.f32 %v1924, %v1996
        %v1998 = vpop.f32.mrb[0].mxu0
        %v1999 = vadd.f32 %v1926, %v1998
        %v2000 = vpop.f32.mrb[0].mxu0
        %v2001 = vadd.f32 %v1928, %v2000
        %v2002 = vpop.f32.mrb[0].mxu0
        %v2003 = vadd.f32 %v1930, %v2002
        %2004 = vmatprep.mubr.bf16.mxu0 %v650
        %2005 = vmatmul.mubr.bf16.gmra.mrb[0].mxu0 %v649
        %v2006 = vpop.f32.mrb[0].mxu0
        %v2007 = vadd.f32 %v1934, %v2006
        %v2008 = vpop.f32.mrb[0].mxu0
        %v2009 = vadd.f32 %v1936, %v2008
        %v2010 = vpop.f32.mrb[0].mxu0
        %v2011 = vadd.f32 %v1938, %v2010
        %v2012 = vpop.f32.mrb[0].mxu0
        %v2013 = vadd.f32 %v1940, %v2012
        %2014 = vmatprep.mubr.bf16.mxu0 %v663
        %2015 = vmatmul.mubr.bf16.gmra.mrb[0].mxu0 %v662
        %v2016 = vpop.f32.mrb[0].mxu0
        %v2017 = vadd.f32 %v1944, %v2016
        %v2018 = vpop.f32.mrb[0].mxu0
        %v2019 = vadd.f32 %v1946, %v2018
        %v2020 = vpop.f32.mrb[0].mxu0
        %v2021 = vadd.f32 %v1948, %v2020
        %v2022 = vpop.f32.mrb[0].mxu0
        %v2023 = vadd.f32 %v1950, %v2022
        %2024 = vmatprep.mubr.bf16.mxu0 %v676
        %2025 = vmatmul.mubr.bf16.gmra.mrb[0].mxu0 %v675
        %v2026 = vpop.f32.mrb[0].mxu0
        %v2027 = vadd.f32 %v1954, %v2026
        %v2028 = vpop.f32.mrb[0].mxu0
        %v2029 = vadd.f32 %v1956, %v2028
        %v2030 = vpop.f32.mrb[0].mxu0
        %v2031 = vadd.f32 %v1958, %v2030
        %v2032 = vpop.f32.mrb[0].mxu0
        %v2033 = vadd.f32 %v1960, %v2032
        %2034 = vdwg.mxu0
        %2035 = vmatprep.subr.bf16.mxu0 %v1459
        %2036 = vmatpush1.bf16.msra.mxu0 %v1458
        %2037 = vmatprep.subr.bf16.mxu0 %v1461
        %2038 = vmatpush1.bf16.msra.mxu0 %v1460
        %2039 = vmatprep.subr.bf16.mxu0 %v1463
        %2040 = vmatpush1.bf16.msra.mxu0 %v1462
        %2041 = vmatprep.subr.bf16.mxu0 %v1465
        %2042 = vmatpush1.bf16.msra.mxu0 %v1464
        %2043 = vmatprep.subr.bf16.mxu0 %v1467
        %2044 = vmatpush1.bf16.msra.mxu0 %v1466
        %2045 = vmatprep.subr.bf16.mxu0 %v1469
        %2046 = vmatpush1.bf16.msra.mxu0 %v1468
        %2047 = vmatprep.subr.bf16.mxu0 %v1471
        %2048 = vmatpush1.bf16.msra.mxu0 %v1470
        %2049 = vmatprep.subr.bf16.mxu0 %v1473
        %2050 = vmatpush1.bf16.msra.mxu0 %v1472
        %2051 = vmatprep.subr.bf16.mxu0 %v1475
        %2052 = vmatpush1.bf16.msra.mxu0 %v1474
        %2053 = vmatprep.subr.bf16.mxu0 %v1477
        %2054 = vmatpush1.bf16.msra.mxu0 %v1476
        %2055 = vmatprep.subr.bf16.mxu0 %v1479
        %2056 = vmatpush1.bf16.msra.mxu0 %v1478
        %2057 = vmatprep.subr.bf16.mxu0 %v1481
        %2058 = vmatpush1.bf16.msra.mxu0 %v1480
        %2059 = vmatprep.subr.bf16.mxu0 %v1483
        %2060 = vmatpush1.bf16.msra.mxu0 %v1482
        %2061 = vmatprep.subr.bf16.mxu0 %v1485
        %2062 = vmatpush1.bf16.msra.mxu0 %v1484
        %2063 = vmatprep.subr.bf16.mxu0 %v1487
        %2064 = vmatpush1.bf16.msra.mxu0 %v1486
        %2065 = vmatprep.subr.bf16.mxu0 %v1489
        %2066 = vmatpush1.bf16.msra.mxu0 %v1488
        %2067 = vmatprep.mubr.bf16.mxu0 %v639
        %2068 = vmatmul.mubr.bf16.gmra.mrb[0].mxu0 %v638
        %v2069 = vpop.f32.mrb[0].mxu0
        %v2070 = vadd.f32 %v1997, %v2069
        %v2071 = vpop.f32.mrb[0].mxu0
        %v2072 = vadd.f32 %v1999, %v2071
        %v2073 = vpop.f32.mrb[0].mxu0
        %v2074 = vadd.f32 %v2001, %v2073
        %v2075 = vpop.f32.mrb[0].mxu0
        %v2076 = vadd.f32 %v2003, %v2075
        %2077 = vmatprep.mubr.bf16.mxu0 %v652
        %2078 = vmatmul.mubr.bf16.gmra.mrb[0].mxu0 %v651
        %v2079 = vpop.f32.mrb[0].mxu0
        %v2080 = vadd.f32 %v2007, %v2079
        %v2081 = vpop.f32.mrb[0].mxu0
        %v2082 = vadd.f32 %v2009, %v2081
        %v2083 = vpop.f32.mrb[0].mxu0
        %v2084 = vadd.f32 %v2011, %v2083
        %v2085 = vpop.f32.mrb[0].mxu0
        %v2086 = vadd.f32 %v2013, %v2085
        %2087 = vmatprep.mubr.bf16.mxu0 %v665
        %2088 = vmatmul.mubr.bf16.gmra.mrb[0].mxu0 %v664
        %v2089 = vpop.f32.mrb[0].mxu0
        %v2090 = vadd.f32 %v2017, %v2089
        %v2091 = vpop.f32.mrb[0].mxu0
        %v2092 = vadd.f32 %v2019, %v2091
        %v2093 = vpop.f32.mrb[0].mxu0
        %v2094 = vadd.f32 %v2021, %v2093
        %v2095 = vpop.f32.mrb[0].mxu0
        %v2096 = vadd.f32 %v2023, %v2095
        %2097 = vmatprep.mubr.bf16.mxu0 %v678
        %2098 = vmatmul.mubr.bf16.gmra.mrb[0].mxu0 %v677
        %v2099 = vpop.f32.mrb[0].mxu0
        %v2100 = vadd.f32 %v2027, %v2099
        %v2101 = vpop.f32.mrb[0].mxu0
        %v2102 = vadd.f32 %v2029, %v2101
        %v2103 = vpop.f32.mrb[0].mxu0
        %v2104 = vadd.f32 %v2031, %v2103
        %v2105 = vpop.f32.mrb[0].mxu0
        %v2106 = vadd.f32 %v2033, %v2105
        %2107 = vdwg.mxu0
        %2108 = vmatprep.subr.bf16.mxu0 %v1491
        %2109 = vmatpush1.bf16.msra.mxu0 %v1490
        %2110 = vmatprep.subr.bf16.mxu0 %v1493
        %2111 = vmatpush1.bf16.msra.mxu0 %v1492
        %2112 = vmatprep.subr.bf16.mxu0 %v1495
        %2113 = vmatpush1.bf16.msra.mxu0 %v1494
        %2114 = vmatprep.subr.bf16.mxu0 %v1497
        %2115 = vmatpush1.bf16.msra.mxu0 %v1496
        %2116 = vmatprep.subr.bf16.mxu0 %v1499
        %2117 = vmatpush1.bf16.msra.mxu0 %v1498
        %2118 = vmatprep.subr.bf16.mxu0 %v1501
        %2119 = vmatpush1.bf16.msra.mxu0 %v1500
        %2120 = vmatprep.subr.bf16.mxu0 %v1503
        %2121 = vmatpush1.bf16.msra.mxu0 %v1502
        %2122 = vmatprep.subr.bf16.mxu0 %v1505
        %2123 = vmatpush1.bf16.msra.mxu0 %v1504
        %2124 = vmatprep.subr.bf16.mxu0 %v1507
        %2125 = vmatpush1.bf16.msra.mxu0 %v1506
        %2126 = vmatprep.subr.bf16.mxu0 %v1509
        %2127 = vmatpush1.bf16.msra.mxu0 %v1508
        %2128 = vmatprep.subr.bf16.mxu0 %v1511
        %2129 = vmatpush1.bf16.msra.mxu0 %v1510
        %2130 = vmatprep.subr.bf16.mxu0 %v1513
        %2131 = vmatpush1.bf16.msra.mxu0 %v1512
        %2132 = vmatprep.subr.bf16.mxu0 %v1515
        %2133 = vmatpush1.bf16.msra.mxu0 %v1514
        %2134 = vmatprep.subr.bf16.mxu0 %v1517
        %2135 = vmatpush1.bf16.msra.mxu0 %v1516
        %2136 = vmatprep.subr.bf16.mxu0 %v1519
        %2137 = vmatpush1.bf16.msra.mxu0 %v1518
        %2138 = vmatprep.subr.bf16.mxu0 %v1521
        %2139 = vmatpush1.bf16.msra.mxu0 %v1520
        %2140 = vmatprep.mubr.bf16.mxu0 %v641
        %2141 = vmatmul.mubr.bf16.gmra.mrb[0].mxu0 %v640
        %v2142 = vpop.f32.mrb[0].mxu0
        %v2143 = vadd.f32 %v2070, %v2142
        %v2144 = vpop.f32.mrb[0].mxu0
        %v2145 = vadd.f32 %v2072, %v2144
        %v2146 = vpop.f32.mrb[0].mxu0
        %v2147 = vadd.f32 %v2074, %v2146
        %v2148 = vpop.f32.mrb[0].mxu0
        %v2149 = vadd.f32 %v2076, %v2148
        %2150 = vmatprep.mubr.bf16.mxu0 %v654
        %2151 = vmatmul.mubr.bf16.gmra.mrb[0].mxu0 %v653
        %v2152 = vpop.f32.mrb[0].mxu0
        %v2153 = vadd.f32 %v2080, %v2152
        %v2154 = vpop.f32.mrb[0].mxu0
        %v2155 = vadd.f32 %v2082, %v2154
        %v2156 = vpop.f32.mrb[0].mxu0
        %v2157 = vadd.f32 %v2084, %v2156
        %v2158 = vpop.f32.mrb[0].mxu0
        %v2159 = vadd.f32 %v2086, %v2158
        %2160 = vmatprep.mubr.bf16.mxu0 %v667
        %2161 = vmatmul.mubr.bf16.gmra.mrb[0].mxu0 %v666
        %v2162 = vpop.f32.mrb[0].mxu0
        %v2163 = vadd.f32 %v2090, %v2162
        %v2164 = vpop.f32.mrb[0].mxu0
        %v2165 = vadd.f32 %v2092, %v2164
        %v2166 = vpop.f32.mrb[0].mxu0
        %v2167 = vadd.f32 %v2094, %v2166
        %v2168 = vpop.f32.mrb[0].mxu0
        %v2169 = vadd.f32 %v2096, %v2168
        %2170 = vmatprep.mubr.bf16.mxu0 %v680
        %2171 = vmatmul.mubr.bf16.gmra.mrb[0].mxu0 %v679
        %v2172 = vpop.f32.mrb[0].mxu0
        %v2173 = vadd.f32 %v2100, %v2172
        %v2174 = vpop.f32.mrb[0].mxu0
        %v2175 = vadd.f32 %v2102, %v2174
        %v2176 = vpop.f32.mrb[0].mxu0
        %v2177 = vadd.f32 %v2104, %v2176
        %v2178 = vpop.f32.mrb[0].mxu0
        %v2179 = vadd.f32 %v2106, %v2178
        %2180 = vdwg.mxu0
        %2181 = vmatprep.subr.bf16.mxu0 %v1523
        %2182 = vmatpush1.bf16.msra.mxu0 %v1522
        %2183 = vmatprep.subr.bf16.mxu0 %v1525
        %2184 = vmatpush1.bf16.msra.mxu0 %v1524
        %2185 = vmatprep.subr.bf16.mxu0 %v1527
        %2186 = vmatpush1.bf16.msra.mxu0 %v1526
        %2187 = vmatprep.subr.bf16.mxu0 %v1529
        %2188 = vmatpush1.bf16.msra.mxu0 %v1528
        %2189 = vmatprep.subr.bf16.mxu0 0
        %2190 = vmatpush1.bf16.msra.mxu0 0
        %2191 = vmatprep.subr.bf16.mxu0 0
        %2192 = vmatpush1.bf16.msra.mxu0 0
        %2193 = vmatprep.subr.bf16.mxu0 0
        %2194 = vmatpush1.bf16.msra.mxu0 0
        %2195 = vmatprep.subr.bf16.mxu0 0
        %2196 = vmatpush1.bf16.msra.mxu0 0
        %2197 = vmatprep.subr.bf16.mxu0 0
        %2198 = vmatpush1.bf16.msra.mxu0 0
        %2199 = vmatprep.subr.bf16.mxu0 0
        %2200 = vmatpush1.bf16.msra.mxu0 0
        %2201 = vmatprep.subr.bf16.mxu0 0
        %2202 = vmatpush1.bf16.msra.mxu0 0
        %2203 = vmatprep.subr.bf16.mxu0 0
        %2204 = vmatpush1.bf16.msra.mxu0 0
        %2205 = vmatprep.subr.bf16.mxu0 0
        %2206 = vmatpush1.bf16.msra.mxu0 0
        %2207 = vmatprep.subr.bf16.mxu0 0
        %2208 = vmatpush1.bf16.msra.mxu0 0
        %2209 = vmatprep.subr.bf16.mxu0 0
        %2210 = vmatpush1.bf16.msra.mxu0 0
        %2211 = vmatprep.subr.bf16.mxu0 0
        %2212 = vmatpush1.bf16.msra.mxu0 0
        %2213 = vmatprep.mubr.bf16.mxu0 0
        %2214 = vmatmul.mubr.bf16.gmra.mrb[0].mxu0 %v1732
        %v2215 = vpop.f32.mrb[0].mxu0
        %v2216 = vadd.f32 %v2143, %v2215
        %v2217 = vpop.f32.mrb[0].mxu0
        %v2218 = vadd.f32 %v2145, %v2217
        %v2219 = vpop.f32.mrb[0].mxu0
        %v2220 = vadd.f32 %v2147, %v2219
        %v2221 = vpop.f32.mrb[0].mxu0
        %v2222 = vadd.f32 %v2149, %v2221
        %2223 = vmatprep.mubr.bf16.mxu0 0
        %2224 = vmatmul.mubr.bf16.gmra.mrb[0].mxu0 %v1735
        %v2225 = vpop.f32.mrb[0].mxu0
        %v2226 = vadd.f32 %v2153, %v2225
        %v2227 = vpop.f32.mrb[0].mxu0
        %v2228 = vadd.f32 %v2155, %v2227
        %v2229 = vpop.f32.mrb[0].mxu0
        %v2230 = vadd.f32 %v2157, %v2229
        %v2231 = vpop.f32.mrb[0].mxu0
        %v2232 = vadd.f32 %v2159, %v2231
        %2233 = vmatprep.mubr.bf16.mxu0 0
        %2234 = vmatmul.mubr.bf16.gmra.mrb[0].mxu0 %v1738
        %v2235 = vpop.f32.mrb[0].mxu0
        %v2236 = vadd.f32 %v2163, %v2235
        %v2237 = vpop.f32.mrb[0].mxu0
        %v2238 = vadd.f32 %v2165, %v2237
        %v2239 = vpop.f32.mrb[0].mxu0
        %v2240 = vadd.f32 %v2167, %v2239
        %v2241 = vpop.f32.mrb[0].mxu0
        %v2242 = vadd.f32 %v2169, %v2241
        %2243 = vmatprep.mubr.bf16.mxu0 0
        %2244 = vmatmul.mubr.bf16.gmra.mrb[0].mxu0 %v1741
        %v2245 = vpop.f32.mrb[0].mxu0
        %v2246 = vadd.f32 %v2173, %v2245
        %v2247 = vpop.f32.mrb[0].mxu0
        %v2248 = vadd.f32 %v2175, %v2247
        %v2249 = vpop.f32.mrb[0].mxu0
        %v2250 = vadd.f32 %v2177, %v2249
        %v2251 = vpop.f32.mrb[0].mxu0
        %v2252 = vadd.f32 %v2179, %v2251
        %2253 = vdwg.mxu0
        %v2254 = vmax.f32 %v2216, 0.0
        %v2255 = vmax.f32 %v2218, 0.0
        %v2256 = vmax.f32 %v2220, 0.0
        %v2257 = vmax.f32 %v2222, 0.0
        %v2258 = vmax.f32 %v2226, 0.0
        %v2259 = vmax.f32 %v2228, 0.0
        %v2260 = vmax.f32 %v2230, 0.0
        %v2261 = vmax.f32 %v2232, 0.0
        %v2262 = vmax.f32 %v2236, 0.0
        %v2263 = vmax.f32 %v2238, 0.0
        %v2264 = vmax.f32 %v2240, 0.0
        %v2265 = vmax.f32 %v2242, 0.0
        %v2266 = vmax.f32 %v2246, 0.0
        %v2267 = vmax.f32 %v2248, 0.0
        %v2268 = vmax.f32 %v2250, 0.0
        %v2269 = vmax.f32 %v2252, 0.0
        %v2270 = vpack.c.bf16 %v2256, %v2254
        %v2271 = vpack.c.bf16 %v2257, %v2255
        %v2272 = vpack.c.bf16 %v2260, %v2258
        %v2273 = vpack.c.bf16 %v2261, %v2259
        %v2274 = vpack.c.bf16 %v2264, %v2262
        %v2275 = vpack.c.bf16 %v2265, %v2263
        %v2276 = vpack.c.bf16 %v2268, %v2266
        %v2277 = vpack.c.bf16 %v2269, %v2267
        %v2286 = vunpack.c.l.b16 %v2270
        %v2287 = vunpack.c.l.b16 %v2271
        %v2288 = vunpack.c.h.b16 %v2270
        %v2289 = vunpack.c.h.b16 %v2271
        %v2290 = vunpack.c.l.b16 %v2272
        %v2291 = vunpack.c.l.b16 %v2273
        %v2292 = vunpack.c.h.b16 %v2272
        %v2293 = vunpack.c.h.b16 %v2273
        %v2294 = vunpack.c.l.b16 %v2274
        %v2295 = vunpack.c.l.b16 %v2275
        %v2296 = vunpack.c.h.b16 %v2274
        %v2297 = vunpack.c.h.b16 %v2275
        %v2298 = vunpack.c.l.b16 %v2276
        %v2299 = vunpack.c.l.b16 %v2277
        %v2300 = vunpack.c.h.b16 %v2276
        %v2301 = vunpack.c.h.b16 %v2277
        %v2302 = vpack.c.b16 %v2287, %v2286
        %v2303 = vpack.c.b16 %v2289, %v2288
        %v2304 = vpack.c.b16 %v2291, %v2290
        %v2305 = vpack.c.b16 %v2293, %v2292
        %v2306 = vpack.c.b16 %v2295, %v2294
        %v2307 = vpack.c.b16 %v2297, %v2296
        %v2308 = vpack.c.b16 %v2299, %v2298
        %v2309 = vpack.c.b16 %v2301, %v2300
        %vm2318 = vcmask 1043456
        %vm2319 = vcmask 523268
        %vm2320 = vmor %vm2319, %vm2318
        %2321 = vst.msk [vmem:[%s177] sm:$0xff] %vm2320, %v2302
        %2322 = vst.msk [vmem:[%s177 + $0x8] sm:$0xff] %vm2320, %v2303
        %2323 = vst.msk [vmem:[%s177 + $0x10] sm:$0xff] %vm2320, %v2304
        %2324 = vst.msk [vmem:[%s177 + $0x18] sm:$0xff] %vm2320, %v2305
        %2325 = vst.msk [vmem:[%s177 + $0x20] sm:$0xff] %vm2320, %v2306
        %2326 = vst.msk [vmem:[%s177 + $0x28] sm:$0xff] %vm2320, %v2307
        %2327 = vst.msk [vmem:[%s177 + $0x30] sm:$0xff] %vm2320, %v2308
        %2328 = vst.msk [vmem:[%s177 + $0x38] sm:$0xff] %vm2320, %v2309
        %s2329 = sand.u32 %s90, 1
        %s2330 = sand.u32 %s90, 1
        %s2331 = smul.addr %s2330, 64
        %s2332 = scalar_lea.vmem [#allocation2], %s2331
        // Predicated region
        $region33: #{alnet_feature_extractor.7} parent=31 // pred_check
          %p2333 = pneg %p100
        $region34: #{alnet_feature_extractor.7} parent=31 // pred_check_branch
          %2335 = sbr.rel (%p2333) target = $region36
        $region35: #{alnet_feature_extractor.7} parent=31 // pred_region
          %s2336 = smul.u32 8, %s14
          %s2337 = ssub.s32 13, %s2336
          %p2338 = scmp.lt.s32.totalorder %s2337, 8
          %s2339 = scalar_select %p2338, %s2337, 8
          %s2340 = smul.u32 64, %s2339
          %s2341 = smul.u32 %s2340, 2
          %p2342 = scmp.ne.s32.totalorder 0, %s2341
          %s2343 = smul.addr %s2336, 2
          %s2344 = smul.addr %s2343, 4
          %s2345 = scalar_lea.vmem %s3, %s2344
          // Predicated region
          $region37: #{alnet_feature_extractor.7} parent=35 // pred_check
            %p2346 = pneg %p2342
          $region38: #{alnet_feature_extractor.7} parent=35 // pred_check_branch
            %2348 = sbr.rel (%p2346) target = $region40
          $region39: #{alnet_feature_extractor.7} parent=35 // pred_region
            // Predicated region
            $region41: #{alnet_feature_extractor.7} parent=39 // pred_check
              _
            $region42: #{alnet_feature_extractor.7} parent=39 // pred_check_branch
              %2350 = sbr.rel (0) target = $region44
            $region43: #{alnet_feature_extractor.7} parent=39 // pred_region
              // Predicated region
              $region63: #{alnet_feature_extractor.7} parent=43 // pred_check
                _
              $region64: #{alnet_feature_extractor.7} parent=43 // pred_check_branch
                %2413 = sbr.rel (0) target = $region66
              $region65: #{alnet_feature_extractor.7} parent=43 // pred_region
                %s2414 = sshrl.u32 %s2339, 3
                // While loop
                $region67: #{alnet_feature_extractor.7} parent=65 // loop_pre_header
                  _
                $region68: #{alnet_feature_extractor.7} parent=65 // loop_header
                  %s2416 = sphi 0, %s2418
                  %p2417 = scmp.ge.s32.totalorder %s2416, %s2414
                  %s2421 = sphi 0, %s2442
                  %s2422 = sphi %s2332, %s2445
                  %s2423 = sphi %s2345, %s2446
                $region69: #{alnet_feature_extractor.7} parent=65 // loop_header_branch
                  %2420 = sbr.rel (%p2417) target = $region73
                $region70: #{alnet_feature_extractor.7} parent=65 // loop_body
                  %v2424 = vld [vmem:[%s2422] sm:$0xff]
                  %2425 = vst [vmem:[%s2423] sm:$0xff] %v2424
                  %v2426 = vld [vmem:[%s2422 + $0x8] sm:$0xff]
                  %2427 = vst [vmem:[%s2423 + $0x8] sm:$0xff] %v2426
                  %v2428 = vld [vmem:[%s2422 + $0x10] sm:$0xff]
                  %2429 = vst [vmem:[%s2423 + $0x10] sm:$0xff] %v2428
                  %v2430 = vld [vmem:[%s2422 + $0x18] sm:$0xff]
                  %2431 = vst [vmem:[%s2423 + $0x18] sm:$0xff] %v2430
                  %v2432 = vld [vmem:[%s2422 + $0x20] sm:$0xff]
                  %2433 = vst [vmem:[%s2423 + $0x20] sm:$0xff] %v2432
                  %v2434 = vld [vmem:[%s2422 + $0x28] sm:$0xff]
                  %2435 = vst [vmem:[%s2423 + $0x28] sm:$0xff] %v2434
                  %v2436 = vld [vmem:[%s2422 + $0x30] sm:$0xff]
                  %2437 = vst [vmem:[%s2423 + $0x30] sm:$0xff] %v2436
                  %v2438 = vld [vmem:[%s2422 + $0x38] sm:$0xff]
                  %2439 = vst [vmem:[%s2423 + $0x38] sm:$0xff] %v2438
                  %s2440 = sadd.s32 1, %s2421
                  %p2441 = scmp.ge.s32.totalorder %s2440, %s2414
                  %s2442 = scalar_select %p2441, 0, %s2440
                  %s2443 = smul.u32 %s2442, 64
                  %s2444 = smul.u32 %s2442, 64
                  %s2445 = scalar_lea.vmem %s2332, %s2443 [#allocation2]
                  %s2446 = scalar_lea.vmem %s2345, %s2444
                $region71: #{alnet_feature_extractor.7} parent=65 // loop_footer
                  %s2418 = sadd.s32 %s2416, 1
                $region72: #{alnet_feature_extractor.7} parent=65 // loop_footer_branch
                  %2415 = sbr.rel target = $region68
                $region73: #{alnet_feature_extractor.7} parent=65 // loop_exit
                  _
                %s2447 = sshrl.u32 %s2339, 3
                %s2448 = sand.u32 %s2339, 7
                %s2449 = smul.u32 %s2447, 8
                %s2450 = smul.u32 8, %s2449
                %s2451 = scalar_lea.vmem %s2332, %s2450 [#allocation2]
                %s2452 = smul.u32 8, %s2449
                %s2453 = scalar_lea.vmem %s2345, %s2452
                // While loop
                $region74: #{alnet_feature_extractor.7} parent=65 // loop_pre_header
                  _
                $region75: #{alnet_feature_extractor.7} parent=65 // loop_header
                  %s2455 = sphi 0, %s2457
                  %p2456 = scmp.ge.s32.totalorder %s2455, %s2448
                  %s2460 = sphi 0, %s2467
                  %s2461 = sphi %s2451, %s2470
                  %s2462 = sphi %s2453, %s2471
                $region76: #{alnet_feature_extractor.7} parent=65 // loop_header_branch
                  %2459 = sbr.rel (%p2456) target = $region80
                $region77: #{alnet_feature_extractor.7} parent=65 // loop_body
                  %v2463 = vld [vmem:[%s2461] sm:$0xff]
                  %2464 = vst [vmem:[%s2462] sm:$0xff] %v2463
                  %s2465 = sadd.s32 1, %s2460
                  %p2466 = scmp.ge.s32.totalorder %s2465, %s2448
                  %s2467 = scalar_select %p2466, 0, %s2465
                  %s2468 = smul.u32 %s2467, 8
                  %s2469 = smul.u32 %s2467, 8
                  %s2470 = scalar_lea.vmem %s2451, %s2468 [#allocation2]
                  %s2471 = scalar_lea.vmem %s2453, %s2469
                $region78: #{alnet_feature_extractor.7} parent=65 // loop_footer
                  %s2457 = sadd.s32 %s2455, 1
                $region79: #{alnet_feature_extractor.7} parent=65 // loop_footer_branch
                  %2454 = sbr.rel target = $region75
                $region80: #{alnet_feature_extractor.7} parent=65 // loop_exit
                  _
              $region66: #{alnet_feature_extractor.7} parent=43 // pred_fallthru
                _
              // Predicated region
              $region81: #{alnet_feature_extractor.7} parent=43 // pred_check
                _
              $region82: #{alnet_feature_extractor.7} parent=43 // pred_check_branch
                %2473 = sbr.rel target = $region84
              $region83: #{alnet_feature_extractor.7} parent=43 // pred_region
                _
              $region84: #{alnet_feature_extractor.7} parent=43 // pred_fallthru
                _
            $region44: #{alnet_feature_extractor.7} parent=39 // pred_fallthru
              _
            // Predicated region
            $region45: #{alnet_feature_extractor.7} parent=39 // pred_check
              _
            $region46: #{alnet_feature_extractor.7} parent=39 // pred_check_branch
              %2352 = sbr.rel target = $region48
            $region47: #{alnet_feature_extractor.7} parent=39 // pred_region
              %s2354 = sshrl.u32 %s2339, 3
              // While loop
              $region49: #{alnet_feature_extractor.7} parent=47 // loop_pre_header
                _
              $region50: #{alnet_feature_extractor.7} parent=47 // loop_header
                %s2356 = sphi 0, %s2358
                %p2357 = scmp.ge.s32.totalorder %s2356, %s2354
                %s2361 = sphi 0, %s2382
                %s2362 = sphi %s2332, %s2385
                %s2363 = sphi %s2345, %s2386
              $region51: #{alnet_feature_extractor.7} parent=47 // loop_header_branch
                %2360 = sbr.rel (%p2357) target = $region55
              $region52: #{alnet_feature_extractor.7} parent=47 // loop_body
                %v2364 = vld [vmem:[%s2362] sm:$0xff]
                %2365 = vst [vmem:[%s2363] sm:$0xff] %v2364
                %v2366 = vld [vmem:[%s2362 + $0x8] sm:$0xff]
                %2367 = vst [vmem:[%s2363 + $0x8] sm:$0xff] %v2366
                %v2368 = vld [vmem:[%s2362 + $0x10] sm:$0xff]
                %2369 = vst [vmem:[%s2363 + $0x10] sm:$0xff] %v2368
                %v2370 = vld [vmem:[%s2362 + $0x18] sm:$0xff]
                %2371 = vst [vmem:[%s2363 + $0x18] sm:$0xff] %v2370
                %v2372 = vld [vmem:[%s2362 + $0x20] sm:$0xff]
                %2373 = vst [vmem:[%s2363 + $0x20] sm:$0xff] %v2372
                %v2374 = vld [vmem:[%s2362 + $0x28] sm:$0xff]
                %2375 = vst [vmem:[%s2363 + $0x28] sm:$0xff] %v2374
                %v2376 = vld [vmem:[%s2362 + $0x30] sm:$0xff]
                %2377 = vst [vmem:[%s2363 + $0x30] sm:$0xff] %v2376
                %v2378 = vld [vmem:[%s2362 + $0x38] sm:$0xff]
                %2379 = vst [vmem:[%s2363 + $0x38] sm:$0xff] %v2378
                %s2380 = sadd.s32 1, %s2361
                %p2381 = scmp.ge.s32.totalorder %s2380, %s2354
                %s2382 = scalar_select %p2381, 0, %s2380
                %s2383 = smul.u32 %s2382, 64
                %s2384 = smul.u32 %s2382, 64
                %s2385 = scalar_lea.vmem %s2332, %s2383 [#allocation2]
                %s2386 = scalar_lea.vmem %s2345, %s2384
              $region53: #{alnet_feature_extractor.7} parent=47 // loop_footer
                %s2358 = sadd.s32 %s2356, 1
              $region54: #{alnet_feature_extractor.7} parent=47 // loop_footer_branch
                %2355 = sbr.rel target = $region50
              $region55: #{alnet_feature_extractor.7} parent=47 // loop_exit
                _
              %s2387 = sshrl.u32 %s2339, 3
              %s2388 = sand.u32 %s2339, 7
              %s2389 = smul.u32 %s2387, 8
              %s2390 = smul.u32 8, %s2389
              %s2391 = scalar_lea.vmem %s2332, %s2390 [#allocation2]
              %s2392 = smul.u32 8, %s2389
              %s2393 = scalar_lea.vmem %s2345, %s2392
              // While loop
              $region56: #{alnet_feature_extractor.7} parent=47 // loop_pre_header
                _
              $region57: #{alnet_feature_extractor.7} parent=47 // loop_header
                %s2395 = sphi 0, %s2397
                %p2396 = scmp.ge.s32.totalorder %s2395, %s2388
                %s2400 = sphi 0, %s2407
                %s2401 = sphi %s2391, %s2410
                %s2402 = sphi %s2393, %s2411
              $region58: #{alnet_feature_extractor.7} parent=47 // loop_header_branch
                %2399 = sbr.rel (%p2396) target = $region62
              $region59: #{alnet_feature_extractor.7} parent=47 // loop_body
                %v2403 = vld [vmem:[%s2401] sm:$0xff]
                %2404 = vst [vmem:[%s2402] sm:$0xff] %v2403
                %s2405 = sadd.s32 1, %s2400
                %p2406 = scmp.ge.s32.totalorder %s2405, %s2388
                %s2407 = scalar_select %p2406, 0, %s2405
                %s2408 = smul.u32 %s2407, 8
                %s2409 = smul.u32 %s2407, 8
                %s2410 = scalar_lea.vmem %s2391, %s2408 [#allocation2]
                %s2411 = scalar_lea.vmem %s2393, %s2409
              $region60: #{alnet_feature_extractor.7} parent=47 // loop_footer
                %s2397 = sadd.s32 %s2395, 1
              $region61: #{alnet_feature_extractor.7} parent=47 // loop_footer_branch
                %2394 = sbr.rel target = $region57
              $region62: #{alnet_feature_extractor.7} parent=47 // loop_exit
                _
            $region48: #{alnet_feature_extractor.7} parent=39 // pred_fallthru
              _
          $region40: #{alnet_feature_extractor.7} parent=35 // pred_fallthru
            _
          %2474 = vnop
        $region36: #{alnet_feature_extractor.7} parent=31 // pred_fallthru
          _
      $region32: #{alnet_feature_extractor.7} parent=5 // pred_fallthru
        _
      %p2475 = scmp.le.s32.totalorder 2, %s9
      // Predicated region
      $region85: #{alnet_feature_extractor.7} parent=5 // pred_check
        %p2476 = pneg %p2475
      $region86: #{alnet_feature_extractor.7} parent=5 // pred_check_branch
        %2478 = sbr.rel (%p2476) target = $region88
      $region87: #{alnet_feature_extractor.7} parent=5 // pred_region
        %s2479 = ssub.s32 %s9, 2
        // Predicated region
        $region89: #{alnet_feature_extractor.7} parent=87 // pred_check
          %p2480 = pneg %p106
        $region90: #{alnet_feature_extractor.7} parent=87 // pred_check_branch
          %2482 = sbr.rel (%p2480) target = $region92
        $region91: #{alnet_feature_extractor.7} parent=87 // pred_region
          %s2483 = sand.u32 %s91, 1
          %s2484 = sand.u32 %s91, 1
          %s2485 = smul.addr %s2484, 64
          %s2486 = scalar_lea.vmem [#allocation2], %s2485
        $region92: #{alnet_feature_extractor.7} parent=87 // pred_fallthru
          _
      $region88: #{alnet_feature_extractor.7} parent=5 // pred_fallthru
        _
    $region6: #{alnet_feature_extractor.7} parent=1 // loop_footer
      %s13 = sadd.s32 1, %s9
    $region7: #{alnet_feature_extractor.7} parent=1 // loop_footer_branch
      %8 = sbr.rel target = $region3
    $region8: #{alnet_feature_extractor.7} parent=1 // loop_exit
      _

// kernel: alnet_feature_extractor.8
$region0: #{alnet_feature_extractor.8}
  #allocation0 [shape = 'u32[]', space=smem, size = 0x4, offset = 0x4, fixed_abs, tag = 'smem constant byte address 0x4 - core index']
  #allocation1 [shape = 'u32[144,128]{1,0:T(1,128)}', space=vmem, size = 0x12000, scoped, tag = 'internal scratch']
  %s0 = inlined_call_operand.vmem [shape: bf16[8,2,4,384], index: 0, kind: input, shape index: {}]
  %s1 = inlined_call_operand.vmem [shape: bf16[6,3,192], index: 1, kind: output, shape index: {}]
  %s2 = sld [smem:[#allocation0]]
  $region37: #{alnet_feature_extractor.8} parent=0
    _
  %s4 = ssub.s32 1, %s2
  %s5 = scalar_select 0, %s4, %s2
  loop: start=0, step=1, limit=4
  $region2: #{alnet_feature_extractor.8} parent=0 // loop_pre_header
    _
  $region3: #{alnet_feature_extractor.8} parent=0 // loop_header
    %s7 = sphi 0, %s11
    %p8 = scmp.ge.s32.totalorder %s7, 4
    %s17 = sphi 0, %s19
    %s20 = sphi 0, %s17
    %s21 = sphi 0, %s20
    %s37 = sphi 0, %s21
    %s43 = sphi 0, %s45
    %s46 = sphi 0, %s43
    %s47 = sphi 0, %s46
    %s63 = sphi 0, %s47
  $region4: #{alnet_feature_extractor.8} parent=0 // loop_header_branch
    %10 = sbr.rel (%p8) target = $region8
  $region5: #{alnet_feature_extractor.8} parent=0 // loop_body
    %s12 = ssub.s32 %s7, 1
    %s13 = ssub.s32 %s7, 2
    %s14 = sadd.s32 %s7, 1
    %s15 = ssub.s32 %s7, %s14
    %p16 = scmp.eq.s32.totalorder %s15, 0
    %s18 = sadd.s32 %s17, 1
    %s19 = scalar_select %p16, %s17, %s18
    %p22 = pneg %p16
    %p23 = scmp.eq.s32.totalorder %s7, 1
    %p24 = por %p22, %p23
    %p25 = scmp.ne.s32.totalorder %s17, %s20
    %p26 = scmp.eq.s32.totalorder %s7, 0
    %p27 = por %p25, %p26
    %p28 = scmp.ne.s32.totalorder %s17, %s20
    %p29 = scmp.eq.s32.totalorder %s12, 1
    %p30 = por %p28, %p29
    %p31 = scmp.ne.s32.totalorder %s20, %s21
    %p32 = scmp.eq.s32.totalorder %s12, 0
    %p33 = por %p31, %p32
    %p34 = scmp.ne.s32.totalorder %s20, %s21
    %p35 = scmp.eq.s32.totalorder %s13, 1
    %p36 = por %p34, %p35
    %p38 = scmp.ne.s32.totalorder %s21, %s37
    %p39 = scmp.eq.s32.totalorder %s13, 0
    %p40 = por %p38, %p39
    %s41 = ssub.s32 %s7, %s14
    %p42 = scmp.eq.s32.totalorder %s41, 0
    %s44 = sadd.s32 %s43, 1
    %s45 = scalar_select %p42, %s43, %s44
    %p48 = pneg %p42
    %p49 = scmp.eq.s32.totalorder %s7, 1
    %p50 = por %p48, %p49
    %p51 = scmp.ne.s32.totalorder %s43, %s46
    %p52 = scmp.eq.s32.totalorder %s7, 0
    %p53 = por %p51, %p52
    %p54 = scmp.ne.s32.totalorder %s43, %s46
    %p55 = scmp.eq.s32.totalorder %s12, 1
    %p56 = por %p54, %p55
    %p57 = scmp.ne.s32.totalorder %s46, %s47
    %p58 = scmp.eq.s32.totalorder %s12, 0
    %p59 = por %p57, %p58
    %p60 = scmp.ne.s32.totalorder %s46, %s47
    %p61 = scmp.eq.s32.totalorder %s13, 1
    %p62 = por %p60, %p61
    %p64 = scmp.ne.s32.totalorder %s47, %s63
    %p65 = scmp.eq.s32.totalorder %s13, 0
    %p66 = por %p64, %p65
    %p67 = scmp.le.s32.totalorder 1, %s7
    %p68 = scmp.lt.s32.totalorder %s7, 3
    %p69 = pnand %p67, %p68
    %p70 = pneg %p69
    // Predicated region
    $region9: #{alnet_feature_extractor.8} parent=5 // pred_check
      _
    $region10: #{alnet_feature_extractor.8} parent=5 // pred_check_branch
      %72 = sbr.rel (%p69) target = $region12
    $region11: #{alnet_feature_extractor.8} parent=5 // pred_region
      %s73 = ssub.s32 %s7, 1
    $region12: #{alnet_feature_extractor.8} parent=5 // pred_fallthru
      _
    %p74 = scmp.lt.s32.totalorder %s7, 2
    // Predicated region
    $region13: #{alnet_feature_extractor.8} parent=5 // pred_check
      %p75 = pneg %p74
    $region14: #{alnet_feature_extractor.8} parent=5 // pred_check_branch
      %77 = sbr.rel (%p75) target = $region16
    $region15: #{alnet_feature_extractor.8} parent=5 // pred_region
      // Predicated region
      $region17: #{alnet_feature_extractor.8} parent=15 // pred_check
        %p78 = pneg %p27
      $region18: #{alnet_feature_extractor.8} parent=15 // pred_check_branch
        %80 = sbr.rel (%p78) target = $region20
      $region19: #{alnet_feature_extractor.8} parent=15 // pred_region
        %s81 = smul.u32 4, %s7
        %p82 = scmp.lt.s32.totalorder %s81, 7
        %s83 = scalar_select %p82, %s81, 7
        %s84 = smul.addr %s83, 6
        %s85 = smul.addr %s84, 2
        %s86 = scalar_lea.vmem %s0, %s85
        %s87 = smul.u32 4, %s7
      $region20: #{alnet_feature_extractor.8} parent=15 // pred_fallthru
        _
    $region16: #{alnet_feature_extractor.8} parent=5 // pred_fallthru
      _
    %p88 = scmp.le.s32.totalorder 1, %s7
    %p89 = scmp.lt.s32.totalorder %s7, 3
    %p90 = pnand %p88, %p89
    %p91 = pneg %p90
    // Predicated region
    $region21: #{alnet_feature_extractor.8} parent=5 // pred_check
      _
    $region22: #{alnet_feature_extractor.8} parent=5 // pred_check_branch
      %93 = sbr.rel (%p90) target = $region24
    $region23: #{alnet_feature_extractor.8} parent=5 // pred_region
      %s94 = ssub.s32 %s7, 1
      %s95 = smul.u32 4, %s12
      %p96 = scmp.lt.s32.totalorder %s95, 7
      %s97 = scalar_select %p96, %s95, 7
      %s98 = smul.addr %s97, 6
      %s99 = smul.addr %s98, 2
      %s100 = scalar_lea.vmem %s0, %s99
      %p101 = pneg %p33
      %p102 = pneg %p30
      %p103 = pneg %p59
      %p104 = pneg %p56
      %s105 = smul.u32 3, %s12
      %p106 = scmp.lt.s32.totalorder %s105, 5
      %s107 = scalar_select %p106, %s105, 5
      %s108 = smul.addr %s107, 2
      %s109 = smul.addr %s108, 2
      %s110 = scalar_lea.vmem %s1, %s109
      %s111 = smul.u32 4, %s12
      %p112 = scmp.lt.s32.totalorder %s111, 7
      %s113 = scalar_select %p112, %s111, 7
      %s114 = smul.addr %s113, 6
      %s115 = smul.addr %s114, 2
      %s116 = scalar_lea.vmem %s0, %s115
      %s117 = smul.u32 4, %s12
      %s118 = smul.u32 3, %s12
      %p119 = scmp.lt.s32.totalorder %s118, 5
      %s120 = scalar_select %p119, %s118, 5
      %s121 = smul.addr %s120, 2
      %s122 = smul.addr %s121, 2
      %s123 = scalar_lea.vmem %s1, %s122
      %s124 = smul.u32 3, %s12
      %v125 = vld [vmem:[%s116] sm:$0x3f]
      %v126 = vld [vmem:[%s116 + $0x6] sm:$0x3f]
      %v127 = vld [vmem:[%s116 + $0xc] sm:$0x3f]
      %v128 = vld [vmem:[%s116 + $0x12] sm:$0x3f]
      %v129 = vld [vmem:[%s116 + $0x18] sm:$0x3f]
      %v130 = vld [vmem:[%s116 + $0x1e] sm:$0x3f]
      %v131 = vld [vmem:[%s116 + $0x24] sm:$0x3f]
      %v132 = vmax.bf16 %v125, %v126
      %v133 = vmax.bf16 %v127, %v128
      %v134 = vmax.bf16 %v129, %v130
      %v135 = vmax.bf16 %v132, %v127
      %v136 = vmax.bf16 %v133, %v129
      %v137 = vmax.bf16 %v134, %v131
      %141 = vrot.lane.b32.xlu0 %v135, 64
      %v142 = vpop.permute.xlu0 %141
      %143 = vrot.lane.b32.xlu0 %v136, 64
      %v144 = vpop.permute.xlu0 %143
      %145 = vrot.lane.b32.xlu0 %v137, 64
      %v146 = vpop.permute.xlu0 %145
      %v147 = vrot.slane %v142, 2
      %v148 = vrot.slane %v144, 2
      %v149 = vrot.slane %v146, 2
      %v150 = vrot.slane %v142, 4
      %v151 = vrot.slane %v144, 4
      %v152 = vrot.slane %v146, 4
      %vm153 = vcmask 523264
      %v154 = vsel %vm153, %v147, %v150
      %v155 = vsel %vm153, %v148, %v151
      %v156 = vsel %vm153, %v149, %v152
      %v160 = vmax.bf16 %v135, %v154
      %v161 = vmax.bf16 %v136, %v155
      %v162 = vmax.bf16 %v137, %v156
      %v164 = vshrl.u32 %v135, 16
      %v166 = vrot.slane %v164, 6
      %v167 = vshll.u32 %v135, 16
      %v169 = vrot.slane %v167, 7
      %v170 = vor.u32 %v166, %v169
      %v171 = vrot.slane %v170, 2
      %v173 = vshrl.u32 %v136, 16
      %v175 = vrot.slane %v173, 6
      %v176 = vshll.u32 %v136, 16
      %v178 = vrot.slane %v176, 7
      %v179 = vor.u32 %v175, %v178
      %v180 = vrot.slane %v179, 2
      %v182 = vshrl.u32 %v137, 16
      %v184 = vrot.slane %v182, 6
      %v185 = vshll.u32 %v137, 16
      %v187 = vrot.slane %v185, 7
      %v188 = vor.u32 %v184, %v187
      %v189 = vrot.slane %v188, 2
      %v193 = vmax.bf16 %v160, %v171
      %v194 = vmax.bf16 %v161, %v180
      %v195 = vmax.bf16 %v162, %v189
      %vm196 = vcmask 1041408
      %vm197 = vsmask.f32 1280
      %vm198 = vmand %vm196, %vm197
      %vm199 = vcmask 519170
      %vm200 = vsmask.f32 3328
      %vm201 = vmand %vm199, %vm200
      %vm202 = vmor %vm201, %vm198
      %v203 = vld [vmem:[%s123] sm:$0xf]
      %v204 = vsel %vm202, %v193, %v203
      %205 = vst [vmem:[%s123] sm:$0xf] %v204
      %v206 = vld [vmem:[%s123 + $0x4] sm:$0xf]
      %v207 = vsel %vm202, %v194, %v206
      %208 = vst [vmem:[%s123 + $0x4] sm:$0xf] %v207
      %v209 = vld [vmem:[%s123 + $0x8] sm:$0xf]
      %v210 = vsel %vm202, %v195, %v209
      %211 = vst [vmem:[%s123 + $0x8] sm:$0xf] %v210
      %s212 = smul.u32 3, %s12
      %p213 = scmp.lt.s32.totalorder %s212, 5
      %s214 = scalar_select %p213, %s212, 5
      %s215 = smul.addr %s214, 2
      %s216 = smul.addr %s215, 2
      %s217 = scalar_lea.vmem %s1, %s216
      // Predicated region
      $region25: #{alnet_feature_extractor.8} parent=23 // pred_check
        %p218 = pneg %p56
      $region26: #{alnet_feature_extractor.8} parent=23 // pred_check_branch
        %220 = sbr.rel (%p218) target = $region28
      $region27: #{alnet_feature_extractor.8} parent=23 // pred_region
        %s221 = smul.u32 3, %s12
      $region28: #{alnet_feature_extractor.8} parent=23 // pred_fallthru
        _
    $region24: #{alnet_feature_extractor.8} parent=5 // pred_fallthru
      _
    %p222 = scmp.le.s32.totalorder 2, %s7
    // Predicated region
    $region29: #{alnet_feature_extractor.8} parent=5 // pred_check
      %p223 = pneg %p222
    $region30: #{alnet_feature_extractor.8} parent=5 // pred_check_branch
      %225 = sbr.rel (%p223) target = $region32
    $region31: #{alnet_feature_extractor.8} parent=5 // pred_region
      %s226 = ssub.s32 %s7, 2
      // Predicated region
      $region33: #{alnet_feature_extractor.8} parent=31 // pred_check
        %p227 = pneg %p62
      $region34: #{alnet_feature_extractor.8} parent=31 // pred_check_branch
        %229 = sbr.rel (%p227) target = $region36
      $region35: #{alnet_feature_extractor.8} parent=31 // pred_region
        %s230 = smul.u32 3, %s13
        %p231 = scmp.lt.s32.totalorder %s230, 5
        %s232 = scalar_select %p231, %s230, 5
        %s233 = smul.addr %s232, 2
        %s234 = smul.addr %s233, 2
        %s235 = scalar_lea.vmem %s1, %s234
      $region36: #{alnet_feature_extractor.8} parent=31 // pred_fallthru
        _
    $region32: #{alnet_feature_extractor.8} parent=5 // pred_fallthru
      _
  $region6: #{alnet_feature_extractor.8} parent=0 // loop_footer
    %s11 = sadd.s32 1, %s7
  $region7: #{alnet_feature_extractor.8} parent=0 // loop_footer_branch
    %6 = sbr.rel target = $region3
  $region8: #{alnet_feature_extractor.8} parent=0 // loop_exit
    _

// kernel: alnet_feature_extractor.9
$region0: #{alnet_feature_extractor.9}
  #allocation0 [shape = 'u32[]', space=smem, size = 0x4, offset = 0x4, fixed_abs, tag = 'smem constant byte address 0x4 - core index']
  #allocation1 [shape = 'u32[144,128]{1,0:T(1,128)}', space=vmem, size = 0x12000, scoped, tag = 'internal scratch']
  %s0 = inlined_call_operand.vmem [shape: bf16[18,1728], index: 0, kind: input, shape index: {}]
  %s1 = inlined_call_operand.vmem [shape: bf16[1728,384], index: 1, kind: input, shape index: {}]
  %s2 = inlined_call_operand.vmem [shape: f32[1,384], index: 2, kind: input, shape index: {}]
  %s3 = inlined_call_operand.vmem [shape: f32[18,384], index: 3, kind: output, shape index: {}]
  %s4 = sld [smem:[#allocation0]]
  $region71: #{alnet_feature_extractor.9} parent=0
    _
  %s6 = ssub.s32 1, %s4
  %s7 = scalar_select 0, %s6, %s4
  $region1: #{alnet_feature_extractor.9} parent=0
    #allocation2 [shape = 'u8[49152]{0}', space=vmem, size = 0xc000, scoped, tag = 'output window, operand 0']
    loop: start=0, step=1, limit=4
    $region2: #{alnet_feature_extractor.9} parent=1 // loop_pre_header
      _
    $region3: #{alnet_feature_extractor.9} parent=1 // loop_header
      %s9 = sphi 0, %s13
      %p10 = scmp.ge.s32.totalorder %s9, 4
      %s19 = sphi 0, %s21
      %s22 = sphi 0, %s19
      %s23 = sphi 0, %s22
      %s39 = sphi 0, %s23
      %s43 = sphi 0, %s43
      %s45 = sphi 0, %s43
      %s46 = sphi 0, %s45
      %s60 = sphi 0, %s46
      %s64 = sphi 0, %s64
      %s66 = sphi 0, %s64
      %s67 = sphi 0, %s66
      %s81 = sphi 0, %s67
      %s87 = sphi 0, %s89
      %s90 = sphi 0, %s87
      %s91 = sphi 0, %s90
      %s107 = sphi 0, %s91
    $region4: #{alnet_feature_extractor.9} parent=1 // loop_header_branch
      %12 = sbr.rel (%p10) target = $region8
    $region5: #{alnet_feature_extractor.9} parent=1 // loop_body
      %s14 = ssub.s32 %s9, 1
      %s15 = ssub.s32 %s9, 2
      %s16 = sadd.s32 %s9, 1
      %s17 = ssub.s32 %s9, %s16
      %p18 = scmp.eq.s32.totalorder %s17, 0
      %s20 = sadd.s32 %s19, 1
      %s21 = scalar_select %p18, %s19, %s20
      %p24 = pneg %p18
      %p25 = scmp.eq.s32.totalorder %s9, 1
      %p26 = por %p24, %p25
      %p27 = scmp.ne.s32.totalorder %s19, %s22
      %p28 = scmp.eq.s32.totalorder %s9, 0
      %p29 = por %p27, %p28
      %p30 = scmp.ne.s32.totalorder %s19, %s22
      %p31 = scmp.eq.s32.totalorder %s14, 1
      %p32 = por %p30, %p31
      %p33 = scmp.ne.s32.totalorder %s22, %s23
      %p34 = scmp.eq.s32.totalorder %s14, 0
      %p35 = por %p33, %p34
      %p36 = scmp.ne.s32.totalorder %s22, %s23
      %p37 = scmp.eq.s32.totalorder %s15, 1
      %p38 = por %p36, %p37
      %p40 = scmp.ne.s32.totalorder %s23, %s39
      %p41 = scmp.eq.s32.totalorder %s15, 0
      %p42 = por %p40, %p41
      %s44 = sadd.s32 %s43, 1
      %p47 = scmp.eq.s32.totalorder %s9, 1
      %p48 = scmp.ne.s32.totalorder %s43, %s45
      %p49 = scmp.eq.s32.totalorder %s9, 0
      %p50 = por %p48, %p49
      %p51 = scmp.ne.s32.totalorder %s43, %s45
      %p52 = scmp.eq.s32.totalorder %s14, 1
      %p53 = por %p51, %p52
      %p54 = scmp.ne.s32.totalorder %s45, %s46
      %p55 = scmp.eq.s32.totalorder %s14, 0
      %p56 = por %p54, %p55
      %p57 = scmp.ne.s32.totalorder %s45, %s46
      %p58 = scmp.eq.s32.totalorder %s15, 1
      %p59 = por %p57, %p58
      %p61 = scmp.ne.s32.totalorder %s46, %s60
      %p62 = scmp.eq.s32.totalorder %s15, 0
      %p63 = por %p61, %p62
      %s65 = sadd.s32 %s64, 1
      %p68 = scmp.eq.s32.totalorder %s9, 1
      %p69 = scmp.ne.s32.totalorder %s64, %s66
      %p70 = scmp.eq.s32.totalorder %s9, 0
      %p71 = por %p69, %p70
      %p72 = scmp.ne.s32.totalorder %s64, %s66
      %p73 = scmp.eq.s32.totalorder %s14, 1
      %p74 = por %p72, %p73
      %p75 = scmp.ne.s32.totalorder %s66, %s67
      %p76 = scmp.eq.s32.totalorder %s14, 0
      %p77 = por %p75, %p76
      %p78 = scmp.ne.s32.totalorder %s66, %s67
      %p79 = scmp.eq.s32.totalorder %s15, 1
      %p80 = por %p78, %p79
      %p82 = scmp.ne.s32.totalorder %s67, %s81
      %p83 = scmp.eq.s32.totalorder %s15, 0
      %p84 = por %p82, %p83
      %s85 = ssub.s32 %s9, %s16
      %p86 = scmp.eq.s32.totalorder %s85, 0
      %s88 = sadd.s32 %s87, 1
      %s89 = scalar_select %p86, %s87, %s88
      %p92 = pneg %p86
      %p93 = scmp.eq.s32.totalorder %s9, 1
      %p94 = por %p92, %p93
      %p95 = scmp.ne.s32.totalorder %s87, %s90
      %p96 = scmp.eq.s32.totalorder %s9, 0
      %p97 = por %p95, %p96
      %p98 = scmp.ne.s32.totalorder %s87, %s90
      %p99 = scmp.eq.s32.totalorder %s14, 1
      %p100 = por %p98, %p99
      %p101 = scmp.ne.s32.totalorder %s90, %s91
      %p102 = scmp.eq.s32.totalorder %s14, 0
      %p103 = por %p101, %p102
      %p104 = scmp.ne.s32.totalorder %s90, %s91
      %p105 = scmp.eq.s32.totalorder %s15, 1
      %p106 = por %p104, %p105
      %p108 = scmp.ne.s32.totalorder %s91, %s107
      %p109 = scmp.eq.s32.totalorder %s15, 0
      %p110 = por %p108, %p109
      %p111 = scmp.le.s32.totalorder 1, %s9
      %p112 = scmp.lt.s32.totalorder %s9, 3
      %p113 = pnand %p111, %p112
      %p114 = pneg %p113
      // Predicated region
      $region9: #{alnet_feature_extractor.9} parent=5 // pred_check
        _
      $region10: #{alnet_feature_extractor.9} parent=5 // pred_check_branch
        %116 = sbr.rel (%p113) target = $region12
      $region11: #{alnet_feature_extractor.9} parent=5 // pred_region
        %s117 = ssub.s32 %s9, 1
        // Predicated region
        $region13: #{alnet_feature_extractor.9} parent=11 // pred_check
          %p118 = pneg %p56
        $region14: #{alnet_feature_extractor.9} parent=11 // pred_check_branch
          %120 = sbr.rel (%p118) target = $region16
        $region15: #{alnet_feature_extractor.9} parent=11 // pred_region
          _
        $region16: #{alnet_feature_extractor.9} parent=11 // pred_fallthru
          _
        // Predicated region
        $region17: #{alnet_feature_extractor.9} parent=11 // pred_check
          %p121 = pneg %p77
        $region18: #{alnet_feature_extractor.9} parent=11 // pred_check_branch
          %123 = sbr.rel (%p121) target = $region20
        $region19: #{alnet_feature_extractor.9} parent=11 // pred_region
          _
        $region20: #{alnet_feature_extractor.9} parent=11 // pred_fallthru
          _
      $region12: #{alnet_feature_extractor.9} parent=5 // pred_fallthru
        _
      %p124 = scmp.lt.s32.totalorder %s9, 2
      // Predicated region
      $region21: #{alnet_feature_extractor.9} parent=5 // pred_check
        %p125 = pneg %p124
      $region22: #{alnet_feature_extractor.9} parent=5 // pred_check_branch
        %127 = sbr.rel (%p125) target = $region24
      $region23: #{alnet_feature_extractor.9} parent=5 // pred_region
        // Predicated region
        $region25: #{alnet_feature_extractor.9} parent=23 // pred_check
          %p128 = pneg %p29
        $region26: #{alnet_feature_extractor.9} parent=23 // pred_check_branch
          %130 = sbr.rel (%p128) target = $region28
        $region27: #{alnet_feature_extractor.9} parent=23 // pred_region
          %s131 = smul.u32 2, %s9
          %s132 = ssub.s32 3, %s131
          %p133 = scmp.lt.s32.totalorder %s132, 2
          %s134 = scalar_select %p133, %s132, 2
          %s135 = smul.u32 64, %s134
          %s136 = smul.u32 %s135, 14
          %p137 = scmp.lt.s32.totalorder %s131, 2
          %s138 = scalar_select %p137, %s131, 2
          %s139 = smul.addr %s138, 14
          %s140 = smul.addr %s139, 4
          %s141 = scalar_lea.vmem %s0, %s140
          %s142 = smul.u32 2, %s9
          %s143 = ssub.s32 3, %s142
          %p144 = scmp.lt.s32.totalorder %s143, 2
          %s145 = scalar_select %p144, %s143, 2
          %s146 = smul.u32 64, %s145
          %s147 = smul.u32 %s146, 14
        $region28: #{alnet_feature_extractor.9} parent=23 // pred_fallthru
          _
      $region24: #{alnet_feature_extractor.9} parent=5 // pred_fallthru
        _
      %p148 = scmp.le.s32.totalorder 1, %s9
      %p149 = scmp.lt.s32.totalorder %s9, 3
      %p150 = pnand %p148, %p149
      %p151 = pneg %p150
      // Predicated region
      $region29: #{alnet_feature_extractor.9} parent=5 // pred_check
        _
      $region30: #{alnet_feature_extractor.9} parent=5 // pred_check_branch
        %153 = sbr.rel (%p150) target = $region32
      $region31: #{alnet_feature_extractor.9} parent=5 // pred_region
        %s154 = ssub.s32 %s9, 1
        %s155 = smul.u32 2, %s14
        %s156 = ssub.s32 3, %s155
        %p157 = scmp.lt.s32.totalorder %s156, 2
        %s158 = scalar_select %p157, %s156, 2
        %s159 = smul.u32 64, %s158
        %s160 = smul.u32 %s159, 14
        %p161 = scmp.lt.s32.totalorder %s155, 2
        %s162 = scalar_select %p161, %s155, 2
        %s163 = smul.addr %s162, 14
        %s164 = smul.addr %s163, 4
        %s165 = scalar_lea.vmem %s0, %s164
        %p166 = pneg %p35
        %p167 = pneg %p32
        %p168 = pneg %p56
        %p169 = pneg %p53
        %p170 = pneg %p77
        %p171 = pneg %p74
        %p172 = pneg %p103
        %p173 = pneg %p100
        %s174 = sand.u32 %s90, 1
        %s175 = sand.u32 %s90, 1
        %s176 = smul.addr %s175, 48
        %s177 = scalar_lea.vmem [#allocation2], %s176
        %s178 = smul.u32 2, %s14
        %s179 = ssub.s32 3, %s178
        %p180 = scmp.lt.s32.totalorder %s179, 2
        %s181 = scalar_select %p180, %s179, 2
        %s182 = smul.u32 64, %s181
        %s183 = smul.u32 %s182, 14
        %p184 = scmp.lt.s32.totalorder %s178, 2
        %s185 = scalar_select %p184, %s178, 2
        %s186 = smul.addr %s185, 14
        %s187 = smul.addr %s186, 4
        %s188 = scalar_lea.vmem %s0, %s187
        %s189 = smul.u32 2, %s14
        %s190 = ssub.s32 3, %s189
        %p191 = scmp.lt.s32.totalorder %s190, 2
        %s192 = scalar_select %p191, %s190, 2
        %s193 = smul.u32 64, %s192
        %s194 = smul.u32 %s193, 14
        %s195 = smul.u32 2, %s14
        %s196 = ssub.s32 3, %s195
        %p197 = scmp.lt.s32.totalorder %s196, 2
        %s198 = scalar_select %p197, %s196, 2
        %s199 = smul.u32 128, %s198
        %s200 = smul.u32 %s199, 3
        %v202 = vld [vmem:[%s188] sm:$0xff]
        %v203 = vld [vmem:[%s188 + $0x8] sm:$0xff]
        %v204 = vld [vmem:[%s188 + $0x10] sm:$0xff]
        %v205 = vld [vmem:[%s188 + $0x18] sm:$0xff]
        %v206 = vld [vmem:[%s188 + $0x20] sm:$0xff]
        %v207 = vld [vmem:[%s188 + $0x28] sm:$0xff]
        %v208 = vld [vmem:[%s188 + $0x30] sm:$0xff]
        %v209 = vld [vmem:[%s188 + $0x38] sm:$0xff]
        %v210 = vld [vmem:[%s188 + $0x40] sm:$0xff]
        %v211 = vld [vmem:[%s188 + $0x48] sm:$0xff]
        %v212 = vld [vmem:[%s188 + $0x50] sm:$0xff]
        %v213 = vld [vmem:[%s188 + $0x58] sm:$0xff]
        %v214 = vld [vmem:[%s188 + $0x60] sm:$0xff]
        %v215 = vld [vmem:[%s188 + $0x68] sm:$0xff]
        %v216 = vld [vmem:[%s1] sm:$0xff]
        %v217 = vld [vmem:[%s1 + $0x8] sm:$0xf]
        %v218 = vld [vmem:[%s1 + $0xc] sm:$0xff]
        %v219 = vld [vmem:[%s1 + $0x14] sm:$0xf]
        %v220 = vld [vmem:[%s1 + $0x18] sm:$0xff]
        %v221 = vld [vmem:[%s1 + $0x20] sm:$0xf]
        %v222 = vld [vmem:[%s1 + $0x24] sm:$0xff]
        %v223 = vld [vmem:[%s1 + $0x2c] sm:$0xf]
        %v224 = vld [vmem:[%s1 + $0x30] sm:$0xff]
        %v225 = vld [vmem:[%s1 + $0x38] sm:$0xf]
        %v226 = vld [vmem:[%s1 + $0x3c] sm:$0xff]
        %v227 = vld [vmem:[%s1 + $0x44] sm:$0xf]
        %v228 = vld [vmem:[%s1 + $0x48] sm:$0xff]
        %v229 = vld [vmem:[%s1 + $0x50] sm:$0xf]
        %v230 = vld [vmem:[%s1 + $0x54] sm:$0xff]
        %v231 = vld [vmem:[%s1 + $0x5c] sm:$0xf]
        %v232 = vld [vmem:[%s1 + $0x60] sm:$0xff]
        %v233 = vld [vmem:[%s1 + $0x68] sm:$0xf]
        %v234 = vld [vmem:[%s1 + $0x6c] sm:$0xff]
        %v235 = vld [vmem:[%s1 + $0x74] sm:$0xf]
        %v236 = vld [vmem:[%s1 + $0x78] sm:$0xff]
        %v237 = vld [vmem:[%s1 + $0x80] sm:$0xf]
        %v238 = vld [vmem:[%s1 + $0x84] sm:$0xff]
        %v239 = vld [vmem:[%s1 + $0x8c] sm:$0xf]
        %v240 = vld [vmem:[%s1 + $0x90] sm:$0xff]
        %v241 = vld [vmem:[%s1 + $0x98] sm:$0xf]
        %v242 = vld [vmem:[%s1 + $0x9c] sm:$0xff]
        %v243 = vld [vmem:[%s1 + $0xa4] sm:$0xf]
        %v244 = vld [vmem:[%s1 + $0xa8] sm:$0xff]
        %v245 = vld [vmem:[%s1 + $0xb0] sm:$0xf]
        %v246 = vld [vmem:[%s1 + $0xb4] sm:$0xff]
        %v247 = vld [vmem:[%s1 + $0xbc] sm:$0xf]
        %v248 = vld [vmem:[%s1 + $0xc0] sm:$0xff]
        %v249 = vld [vmem:[%s1 + $0xc8] sm:$0xf]
        %v250 = vld [vmem:[%s1 + $0xcc] sm:$0xff]
        %v251 = vld [vmem:[%s1 + $0xd4] sm:$0xf]
        %v252 = vld [vmem:[%s1 + $0xd8] sm:$0xff]
        %v253 = vld [vmem:[%s1 + $0xe0] sm:$0xf]
        %v254 = vld [vmem:[%s1 + $0xe4] sm:$0xff]
        %v255 = vld [vmem:[%s1 + $0xec] sm:$0xf]
        %v256 = vld [vmem:[%s1 + $0xf0] sm:$0xff]
        %v257 = vld [vmem:[%s1 + $0xf8] sm:$0xf]
        %v258 = vld [vmem:[%s1 + $0xfc] sm:$0xff]
        %v259 = vld [vmem:[%s1 + $0x104] sm:$0xf]
        %v260 = vld [vmem:[%s1 + $0x108] sm:$0xff]
        %v261 = vld [vmem:[%s1 + $0x110] sm:$0xf]
        %v262 = vld [vmem:[%s1 + $0x114] sm:$0xff]
        %v263 = vld [vmem:[%s1 + $0x11c] sm:$0xf]
        %v264 = vld [vmem:[%s1 + $0x120] sm:$0xff]
        %v265 = vld [vmem:[%s1 + $0x128] sm:$0xf]
        %v266 = vld [vmem:[%s1 + $0x12c] sm:$0xff]
        %v267 = vld [vmem:[%s1 + $0x134] sm:$0xf]
        %v268 = vld [vmem:[%s1 + $0x138] sm:$0xff]
        %v269 = vld [vmem:[%s1 + $0x140] sm:$0xf]
        %v270 = vld [vmem:[%s1 + $0x144] sm:$0xff]
        %v271 = vld [vmem:[%s1 + $0x14c] sm:$0xf]
        %v272 = vld [vmem:[%s1 + $0x150] sm:$0xff]
        %v273 = vld [vmem:[%s1 + $0x158] sm:$0xf]
        %v274 = vld [vmem:[%s1 + $0x15c] sm:$0xff]
        %v275 = vld [vmem:[%s1 + $0x164] sm:$0xf]
        %v276 = vld [vmem:[%s1 + $0x168] sm:$0xff]
        %v277 = vld [vmem:[%s1 + $0x170] sm:$0xf]
        %v278 = vld [vmem:[%s1 + $0x174] sm:$0xff]
        %v279 = vld [vmem:[%s1 + $0x17c] sm:$0xf]
        %v280 = vld [vmem:[%s1 + $0x180] sm:$0xff]
        %v281 = vld [vmem:[%s1 + $0x188] sm:$0xf]
        %v282 = vld [vmem:[%s1 + $0x18c] sm:$0xff]
        %v283 = vld [vmem:[%s1 + $0x194] sm:$0xf]
        %v284 = vld [vmem:[%s1 + $0x198] sm:$0xff]
        %v285 = vld [vmem:[%s1 + $0x1a0] sm:$0xf]
        %v286 = vld [vmem:[%s1 + $0x1a4] sm:$0xff]
        %v287 = vld [vmem:[%s1 + $0x1ac] sm:$0xf]
        %v288 = vld [vmem:[%s1 + $0x1b0] sm:$0xff]
        %v289 = vld [vmem:[%s1 + $0x1b8] sm:$0xf]
        %v290 = vld [vmem:[%s1 + $0x1bc] sm:$0xff]
        %v291 = vld [vmem:[%s1 + $0x1c4] sm:$0xf]
        %v292 = vld [vmem:[%s1 + $0x1c8] sm:$0xff]
        %v293 = vld [vmem:[%s1 + $0x1d0] sm:$0xf]
        %v294 = vld [vmem:[%s1 + $0x1d4] sm:$0xff]
        %v295 = vld [vmem:[%s1 + $0x1dc] sm:$0xf]
        %v296 = vld [vmem:[%s1 + $0x1e0] sm:$0xff]
        %v297 = vld [vmem:[%s1 + $0x1e8] sm:$0xf]
        %v298 = vld [vmem:[%s1 + $0x1ec] sm:$0xff]
        %v299 = vld [vmem:[%s1 + $0x1f4] sm:$0xf]
        %v300 = vld [vmem:[%s1 + $0x1f8] sm:$0xff]
        %v301 = vld [vmem:[%s1 + $0x200] sm:$0xf]
        %v302 = vld [vmem:[%s1 + $0x204] sm:$0xff]
        %v303 = vld [vmem:[%s1 + $0x20c] sm:$0xf]
        %v304 = vld [vmem:[%s1 + $0x210] sm:$0xff]
        %v305 = vld [vmem:[%s1 + $0x218] sm:$0xf]
        %v306 = vld [vmem:[%s1 + $0x21c] sm:$0xff]
        %v307 = vld [vmem:[%s1 + $0x224] sm:$0xf]
        %v308 = vld [vmem:[%s1 + $0x228] sm:$0xff]
        %v309 = vld [vmem:[%s1 + $0x230] sm:$0xf]
        %v310 = vld [vmem:[%s1 + $0x234] sm:$0xff]
        %v311 = vld [vmem:[%s1 + $0x23c] sm:$0xf]
        %v312 = vld [vmem:[%s1 + $0x240] sm:$0xff]
        %v313 = vld [vmem:[%s1 + $0x248] sm:$0xf]
        %v314 = vld [vmem:[%s1 + $0x24c] sm:$0xff]
        %v315 = vld [vmem:[%s1 + $0x254] sm:$0xf]
        %v316 = vld [vmem:[%s1 + $0x258] sm:$0xff]
        %v317 = vld [vmem:[%s1 + $0x260] sm:$0xf]
        %v318 = vld [vmem:[%s1 + $0x264] sm:$0xff]
        %v319 = vld [vmem:[%s1 + $0x26c] sm:$0xf]
        %v320 = vld [vmem:[%s1 + $0x270] sm:$0xff]
        %v321 = vld [vmem:[%s1 + $0x278] sm:$0xf]
        %v322 = vld [vmem:[%s1 + $0x27c] sm:$0xff]
        %v323 = vld [vmem:[%s1 + $0x284] sm:$0xf]
        %v324 = vld [vmem:[%s1 + $0x288] sm:$0xff]
        %v325 = vld [vmem:[%s1 + $0x290] sm:$0xf]
        %v326 = vld [vmem:[%s1 + $0x294] sm:$0xff]
        %v327 = vld [vmem:[%s1 + $0x29c] sm:$0xf]
        %v328 = vld [vmem:[%s1 + $0x2a0] sm:$0xff]
        %v329 = vld [vmem:[%s1 + $0x2a8] sm:$0xf]
        %v330 = vld [vmem:[%s1 + $0x2ac] sm:$0xff]
        %v331 = vld [vmem:[%s1 + $0x2b4] sm:$0xf]
        %v332 = vld [vmem:[%s1 + $0x2b8] sm:$0xff]
        %v333 = vld [vmem:[%s1 + $0x2c0] sm:$0xf]
        %v334 = vld [vmem:[%s1 + $0x2c4] sm:$0xff]
        %v335 = vld [vmem:[%s1 + $0x2cc] sm:$0xf]
        %v336 = vld [vmem:[%s1 + $0x2d0] sm:$0xff]
        %v337 = vld [vmem:[%s1 + $0x2d8] sm:$0xf]
        %v338 = vld [vmem:[%s1 + $0x2dc] sm:$0xff]
        %v339 = vld [vmem:[%s1 + $0x2e4] sm:$0xf]
        %v340 = vld [vmem:[%s1 + $0x2e8] sm:$0xff]
        %v341 = vld [vmem:[%s1 + $0x2f0] sm:$0xf]
        %v342 = vld [vmem:[%s1 + $0x2f4] sm:$0xff]
        %v343 = vld [vmem:[%s1 + $0x2fc] sm:$0xf]
        %v344 = vld [vmem:[%s1 + $0x300] sm:$0xff]
        %v345 = vld [vmem:[%s1 + $0x308] sm:$0xf]
        %v346 = vld [vmem:[%s1 + $0x30c] sm:$0xff]
        %v347 = vld [vmem:[%s1 + $0x314] sm:$0xf]
        %v348 = vld [vmem:[%s1 + $0x318] sm:$0xff]
        %v349 = vld [vmem:[%s1 + $0x320] sm:$0xf]
        %v350 = vld [vmem:[%s1 + $0x324] sm:$0xff]
        %v351 = vld [vmem:[%s1 + $0x32c] sm:$0xf]
        %v352 = vld [vmem:[%s1 + $0x330] sm:$0xff]
        %v353 = vld [vmem:[%s1 + $0x338] sm:$0xf]
        %v354 = vld [vmem:[%s1 + $0x33c] sm:$0xff]
        %v355 = vld [vmem:[%s1 + $0x344] sm:$0xf]
        %v356 = vld [vmem:[%s1 + $0x348] sm:$0xff]
        %v357 = vld [vmem:[%s1 + $0x350] sm:$0xf]
        %v358 = vld [vmem:[%s1 + $0x354] sm:$0xff]
        %v359 = vld [vmem:[%s1 + $0x35c] sm:$0xf]
        %v360 = vld [vmem:[%s1 + $0x360] sm:$0xff]
        %v361 = vld [vmem:[%s1 + $0x368] sm:$0xf]
        %v362 = vld [vmem:[%s1 + $0x36c] sm:$0xff]
        %v363 = vld [vmem:[%s1 + $0x374] sm:$0xf]
        %v364 = vld [vmem:[%s1 + $0x378] sm:$0xff]
        %v365 = vld [vmem:[%s1 + $0x380] sm:$0xf]
        %v366 = vld [vmem:[%s1 + $0x384] sm:$0xff]
        %v367 = vld [vmem:[%s1 + $0x38c] sm:$0xf]
        %v368 = vld [vmem:[%s1 + $0x390] sm:$0xff]
        %v369 = vld [vmem:[%s1 + $0x398] sm:$0xf]
        %v370 = vld [vmem:[%s1 + $0x39c] sm:$0xff]
        %v371 = vld [vmem:[%s1 + $0x3a4] sm:$0xf]
        %v372 = vld [vmem:[%s1 + $0x3a8] sm:$0xff]
        %v373 = vld [vmem:[%s1 + $0x3b0] sm:$0xf]
        %v374 = vld [vmem:[%s1 + $0x3b4] sm:$0xff]
        %v375 = vld [vmem:[%s1 + $0x3bc] sm:$0xf]
        %v376 = vld [vmem:[%s1 + $0x3c0] sm:$0xff]
        %v377 = vld [vmem:[%s1 + $0x3c8] sm:$0xf]
        %v378 = vld [vmem:[%s1 + $0x3cc] sm:$0xff]
        %v379 = vld [vmem:[%s1 + $0x3d4] sm:$0xf]
        %v380 = vld [vmem:[%s1 + $0x3d8] sm:$0xff]
        %v381 = vld [vmem:[%s1 + $0x3e0] sm:$0xf]
        %v382 = vld [vmem:[%s1 + $0x3e4] sm:$0xff]
        %v383 = vld [vmem:[%s1 + $0x3ec] sm:$0xf]
        %v384 = vld [vmem:[%s1 + $0x3f0] sm:$0xff]
        %v385 = vld [vmem:[%s1 + $0x3f8] sm:$0xf]
        %v386 = vld [vmem:[%s1 + $0x3fc] sm:$0xff]
        %v387 = vld [vmem:[%s1 + $0x404] sm:$0xf]
        %v388 = vld [vmem:[%s1 + $0x408] sm:$0xff]
        %v389 = vld [vmem:[%s1 + $0x410] sm:$0xf]
        %v390 = vld [vmem:[%s1 + $0x414] sm:$0xff]
        %v391 = vld [vmem:[%s1 + $0x41c] sm:$0xf]
        %v392 = vld [vmem:[%s1 + $0x420] sm:$0xff]
        %v393 = vld [vmem:[%s1 + $0x428] sm:$0xf]
        %v394 = vld [vmem:[%s1 + $0x42c] sm:$0xff]
        %v395 = vld [vmem:[%s1 + $0x434] sm:$0xf]
        %v396 = vld [vmem:[%s1 + $0x438] sm:$0xff]
        %v397 = vld [vmem:[%s1 + $0x440] sm:$0xf]
        %v398 = vld [vmem:[%s1 + $0x444] sm:$0xff]
        %v399 = vld [vmem:[%s1 + $0x44c] sm:$0xf]
        %v400 = vld [vmem:[%s1 + $0x450] sm:$0xff]
        %v401 = vld [vmem:[%s1 + $0x458] sm:$0xf]
        %v402 = vld [vmem:[%s1 + $0x45c] sm:$0xff]
        %v403 = vld [vmem:[%s1 + $0x464] sm:$0xf]
        %v404 = vld [vmem:[%s1 + $0x468] sm:$0xff]
        %v405 = vld [vmem:[%s1 + $0x470] sm:$0xf]
        %v406 = vld [vmem:[%s1 + $0x474] sm:$0xff]
        %v407 = vld [vmem:[%s1 + $0x47c] sm:$0xf]
        %v408 = vld [vmem:[%s1 + $0x480] sm:$0xff]
        %v409 = vld [vmem:[%s1 + $0x488] sm:$0xf]
        %v410 = vld [vmem:[%s1 + $0x48c] sm:$0xff]
        %v411 = vld [vmem:[%s1 + $0x494] sm:$0xf]
        %v412 = vld [vmem:[%s1 + $0x498] sm:$0xff]
        %v413 = vld [vmem:[%s1 + $0x4a0] sm:$0xf]
        %v414 = vld [vmem:[%s1 + $0x4a4] sm:$0xff]
        %v415 = vld [vmem:[%s1 + $0x4ac] sm:$0xf]
        %v416 = vld [vmem:[%s1 + $0x4b0] sm:$0xff]
        %v417 = vld [vmem:[%s1 + $0x4b8] sm:$0xf]
        %v418 = vld [vmem:[%s1 + $0x4bc] sm:$0xff]
        %v419 = vld [vmem:[%s1 + $0x4c4] sm:$0xf]
        %v420 = vld [vmem:[%s1 + $0x4c8] sm:$0xff]
        %v421 = vld [vmem:[%s1 + $0x4d0] sm:$0xf]
        %v422 = vld [vmem:[%s1 + $0x4d4] sm:$0xff]
        %v423 = vld [vmem:[%s1 + $0x4dc] sm:$0xf]
        %v424 = vld [vmem:[%s1 + $0x4e0] sm:$0xff]
        %v425 = vld [vmem:[%s1 + $0x4e8] sm:$0xf]
        %v426 = vld [vmem:[%s1 + $0x4ec] sm:$0xff]
        %v427 = vld [vmem:[%s1 + $0x4f4] sm:$0xf]
        %v428 = vld [vmem:[%s1 + $0x4f8] sm:$0xff]
        %v429 = vld [vmem:[%s1 + $0x500] sm:$0xf]
        %v430 = vld [vmem:[%s1 + $0x504] sm:$0xff]
        %v431 = vld [vmem:[%s1 + $0x50c] sm:$0xf]
        %v432 = vld [vmem:[%s1 + $0x510] sm:$0xff]
        %v433 = vld [vmem:[%s1 + $0x518] sm:$0xf]
        %v434 = vld [vmem:[%s1 + $0x51c] sm:$0xff]
        %v435 = vld [vmem:[%s1 + $0x524] sm:$0xf]
        %v436 = vld [vmem:[%s1 + $0x528] sm:$0xff]
        %v437 = vld [vmem:[%s1 + $0x530] sm:$0xf]
        %v438 = vld [vmem:[%s1 + $0x534] sm:$0xff]
        %v439 = vld [vmem:[%s1 + $0x53c] sm:$0xf]
        %v440 = vld [vmem:[%s1 + $0x540] sm:$0xff]
        %v441 = vld [vmem:[%s1 + $0x548] sm:$0xf]
        %v442 = vld [vmem:[%s1 + $0x54c] sm:$0xff]
        %v443 = vld [vmem:[%s1 + $0x554] sm:$0xf]
        %v444 = vld [vmem:[%s1 + $0x558] sm:$0xff]
        %v445 = vld [vmem:[%s1 + $0x560] sm:$0xf]
        %v446 = vld [vmem:[%s1 + $0x564] sm:$0xff]
        %v447 = vld [vmem:[%s1 + $0x56c] sm:$0xf]
        %v448 = vld [vmem:[%s1 + $0x570] sm:$0xff]
        %v449 = vld [vmem:[%s1 + $0x578] sm:$0xf]
        %v450 = vld [vmem:[%s1 + $0x57c] sm:$0xff]
        %v451 = vld [vmem:[%s1 + $0x584] sm:$0xf]
        %v452 = vld [vmem:[%s1 + $0x588] sm:$0xff]
        %v453 = vld [vmem:[%s1 + $0x590] sm:$0xf]
        %v454 = vld [vmem:[%s1 + $0x594] sm:$0xff]
        %v455 = vld [vmem:[%s1 + $0x59c] sm:$0xf]
        %v456 = vld [vmem:[%s1 + $0x5a0] sm:$0xff]
        %v457 = vld [vmem:[%s1 + $0x5a8] sm:$0xf]
        %v458 = vld [vmem:[%s1 + $0x5ac] sm:$0xff]
        %v459 = vld [vmem:[%s1 + $0x5b4] sm:$0xf]
        %v460 = vld [vmem:[%s1 + $0x5b8] sm:$0xff]
        %v461 = vld [vmem:[%s1 + $0x5c0] sm:$0xf]
        %v462 = vld [vmem:[%s1 + $0x5c4] sm:$0xff]
        %v463 = vld [vmem:[%s1 + $0x5cc] sm:$0xf]
        %v464 = vld [vmem:[%s1 + $0x5d0] sm:$0xff]
        %v465 = vld [vmem:[%s1 + $0x5d8] sm:$0xf]
        %v466 = vld [vmem:[%s1 + $0x5dc] sm:$0xff]
        %v467 = vld [vmem:[%s1 + $0x5e4] sm:$0xf]
        %v468 = vld [vmem:[%s1 + $0x5e8] sm:$0xff]
        %v469 = vld [vmem:[%s1 + $0x5f0] sm:$0xf]
        %v470 = vld [vmem:[%s1 + $0x5f4] sm:$0xff]
        %v471 = vld [vmem:[%s1 + $0x5fc] sm:$0xf]
        %v472 = vld [vmem:[%s1 + $0x600] sm:$0xff]
        %v473 = vld [vmem:[%s1 + $0x608] sm:$0xf]
        %v474 = vld [vmem:[%s1 + $0x60c] sm:$0xff]
        %v475 = vld [vmem:[%s1 + $0x614] sm:$0xf]
        %v476 = vld [vmem:[%s1 + $0x618] sm:$0xff]
        %v477 = vld [vmem:[%s1 + $0x620] sm:$0xf]
        %v478 = vld [vmem:[%s1 + $0x624] sm:$0xff]
        %v479 = vld [vmem:[%s1 + $0x62c] sm:$0xf]
        %v480 = vld [vmem:[%s1 + $0x630] sm:$0xff]
        %v481 = vld [vmem:[%s1 + $0x638] sm:$0xf]
        %v482 = vld [vmem:[%s1 + $0x63c] sm:$0xff]
        %v483 = vld [vmem:[%s1 + $0x644] sm:$0xf]
        %v484 = vld [vmem:[%s1 + $0x648] sm:$0xff]
        %v485 = vld [vmem:[%s1 + $0x650] sm:$0xf]
        %v486 = vld [vmem:[%s1 + $0x654] sm:$0xff]
        %v487 = vld [vmem:[%s1 + $0x65c] sm:$0xf]
        %v488 = vld [vmem:[%s1 + $0x660] sm:$0xff]
        %v489 = vld [vmem:[%s1 + $0x668] sm:$0xf]
        %v490 = vld [vmem:[%s1 + $0x66c] sm:$0xff]
        %v491 = vld [vmem:[%s1 + $0x674] sm:$0xf]
        %v492 = vld [vmem:[%s1 + $0x678] sm:$0xff]
        %v493 = vld [vmem:[%s1 + $0x680] sm:$0xf]
        %v494 = vld [vmem:[%s1 + $0x684] sm:$0xff]
        %v495 = vld [vmem:[%s1 + $0x68c] sm:$0xf]
        %v496 = vld [vmem:[%s1 + $0x690] sm:$0xff]
        %v497 = vld [vmem:[%s1 + $0x698] sm:$0xf]
        %v498 = vld [vmem:[%s1 + $0x69c] sm:$0xff]
        %v499 = vld [vmem:[%s1 + $0x6a4] sm:$0xf]
        %v500 = vld [vmem:[%s1 + $0x6a8] sm:$0xff]
        %v501 = vld [vmem:[%s1 + $0x6b0] sm:$0xf]
        %v502 = vld [vmem:[%s1 + $0x6b4] sm:$0xff]
        %v503 = vld [vmem:[%s1 + $0x6bc] sm:$0xf]
        %v504 = vld [vmem:[%s1 + $0x6c0] sm:$0xff]
        %v505 = vld [vmem:[%s1 + $0x6c8] sm:$0xf]
        %v506 = vld [vmem:[%s1 + $0x6cc] sm:$0xff]
        %v507 = vld [vmem:[%s1 + $0x6d4] sm:$0xf]
        %v508 = vld [vmem:[%s1 + $0x6d8] sm:$0xff]
        %v509 = vld [vmem:[%s1 + $0x6e0] sm:$0xf]
        %v510 = vld [vmem:[%s1 + $0x6e4] sm:$0xff]
        %v511 = vld [vmem:[%s1 + $0x6ec] sm:$0xf]
        %v512 = vld [vmem:[%s1 + $0x6f0] sm:$0xff]
        %v513 = vld [vmem:[%s1 + $0x6f8] sm:$0xf]
        %v514 = vld [vmem:[%s1 + $0x6fc] sm:$0xff]
        %v515 = vld [vmem:[%s1 + $0x704] sm:$0xf]
        %v516 = vld [vmem:[%s1 + $0x708] sm:$0xff]
        %v517 = vld [vmem:[%s1 + $0x710] sm:$0xf]
        %v518 = vld [vmem:[%s1 + $0x714] sm:$0xff]
        %v519 = vld [vmem:[%s1 + $0x71c] sm:$0xf]
        %v520 = vld [vmem:[%s1 + $0x720] sm:$0xff]
        %v521 = vld [vmem:[%s1 + $0x728] sm:$0xf]
        %v522 = vld [vmem:[%s1 + $0x72c] sm:$0xff]
        %v523 = vld [vmem:[%s1 + $0x734] sm:$0xf]
        %v524 = vld [vmem:[%s1 + $0x738] sm:$0xff]
        %v525 = vld [vmem:[%s1 + $0x740] sm:$0xf]
        %v526 = vld [vmem:[%s1 + $0x744] sm:$0xff]
        %v527 = vld [vmem:[%s1 + $0x74c] sm:$0xf]
        %v528 = vld [vmem:[%s1 + $0x750] sm:$0xff]
        %v529 = vld [vmem:[%s1 + $0x758] sm:$0xf]
        %v530 = vld [vmem:[%s1 + $0x75c] sm:$0xff]
        %v531 = vld [vmem:[%s1 + $0x764] sm:$0xf]
        %v532 = vld [vmem:[%s1 + $0x768] sm:$0xff]
        %v533 = vld [vmem:[%s1 + $0x770] sm:$0xf]
        %v534 = vld [vmem:[%s1 + $0x774] sm:$0xff]
        %v535 = vld [vmem:[%s1 + $0x77c] sm:$0xf]
        %v536 = vld [vmem:[%s1 + $0x780] sm:$0xff]
        %v537 = vld [vmem:[%s1 + $0x788] sm:$0xf]
        %v538 = vld [vmem:[%s1 + $0x78c] sm:$0xff]
        %v539 = vld [vmem:[%s1 + $0x794] sm:$0xf]
        %v540 = vld [vmem:[%s1 + $0x798] sm:$0xff]
        %v541 = vld [vmem:[%s1 + $0x7a0] sm:$0xf]
        %v542 = vld [vmem:[%s1 + $0x7a4] sm:$0xff]
        %v543 = vld [vmem:[%s1 + $0x7ac] sm:$0xf]
        %v544 = vld [vmem:[%s1 + $0x7b0] sm:$0xff]
        %v545 = vld [vmem:[%s1 + $0x7b8] sm:$0xf]
        %v546 = vld [vmem:[%s1 + $0x7bc] sm:$0xff]
        %v547 = vld [vmem:[%s1 + $0x7c4] sm:$0xf]
        %v548 = vld [vmem:[%s1 + $0x7c8] sm:$0xff]
        %v549 = vld [vmem:[%s1 + $0x7d0] sm:$0xf]
        %v550 = vld [vmem:[%s1 + $0x7d4] sm:$0xff]
        %v551 = vld [vmem:[%s1 + $0x7dc] sm:$0xf]
        %v552 = vld [vmem:[%s1 + $0x7e0] sm:$0xff]
        %v553 = vld [vmem:[%s1 + $0x7e8] sm:$0xf]
        %v554 = vld [vmem:[%s1 + $0x7ec] sm:$0xff]
        %v555 = vld [vmem:[%s1 + $0x7f4] sm:$0xf]
        %v556 = vld [vmem:[%s1 + $0x7f8] sm:$0xff]
        %v557 = vld [vmem:[%s1 + $0x800] sm:$0xf]
        %v558 = vld [vmem:[%s1 + $0x804] sm:$0xff]
        %v559 = vld [vmem:[%s1 + $0x80c] sm:$0xf]
        %v560 = vld [vmem:[%s1 + $0x810] sm:$0xff]
        %v561 = vld [vmem:[%s1 + $0x818] sm:$0xf]
        %v562 = vld [vmem:[%s1 + $0x81c] sm:$0xff]
        %v563 = vld [vmem:[%s1 + $0x824] sm:$0xf]
        %v564 = vld [vmem:[%s1 + $0x828] sm:$0xff]
        %v565 = vld [vmem:[%s1 + $0x830] sm:$0xf]
        %v566 = vld [vmem:[%s1 + $0x834] sm:$0xff]
        %v567 = vld [vmem:[%s1 + $0x83c] sm:$0xf]
        %v568 = vld [vmem:[%s1 + $0x840] sm:$0xff]
        %v569 = vld [vmem:[%s1 + $0x848] sm:$0xf]
        %v570 = vld [vmem:[%s1 + $0x84c] sm:$0xff]
        %v571 = vld [vmem:[%s1 + $0x854] sm:$0xf]
        %v572 = vld [vmem:[%s1 + $0x858] sm:$0xff]
        %v573 = vld [vmem:[%s1 + $0x860] sm:$0xf]
        %v574 = vld [vmem:[%s1 + $0x864] sm:$0xff]
        %v575 = vld [vmem:[%s1 + $0x86c] sm:$0xf]
        %v576 = vld [vmem:[%s1 + $0x870] sm:$0xff]
        %v577 = vld [vmem:[%s1 + $0x878] sm:$0xf]
        %v578 = vld [vmem:[%s1 + $0x87c] sm:$0xff]
        %v579 = vld [vmem:[%s1 + $0x884] sm:$0xf]
        %v580 = vld [vmem:[%s1 + $0x888] sm:$0xff]
        %v581 = vld [vmem:[%s1 + $0x890] sm:$0xf]
        %v582 = vld [vmem:[%s1 + $0x894] sm:$0xff]
        %v583 = vld [vmem:[%s1 + $0x89c] sm:$0xf]
        %v584 = vld [vmem:[%s1 + $0x8a0] sm:$0xff]
        %v585 = vld [vmem:[%s1 + $0x8a8] sm:$0xf]
        %v586 = vld [vmem:[%s1 + $0x8ac] sm:$0xff]
        %v587 = vld [vmem:[%s1 + $0x8b4] sm:$0xf]
        %v588 = vld [vmem:[%s1 + $0x8b8] sm:$0xff]
        %v589 = vld [vmem:[%s1 + $0x8c0] sm:$0xf]
        %v590 = vld [vmem:[%s1 + $0x8c4] sm:$0xff]
        %v591 = vld [vmem:[%s1 + $0x8cc] sm:$0xf]
        %v592 = vld [vmem:[%s1 + $0x8d0] sm:$0xff]
        %v593 = vld [vmem:[%s1 + $0x8d8] sm:$0xf]
        %v594 = vld [vmem:[%s1 + $0x8dc] sm:$0xff]
        %v595 = vld [vmem:[%s1 + $0x8e4] sm:$0xf]
        %v596 = vld [vmem:[%s1 + $0x8e8] sm:$0xff]
        %v597 = vld [vmem:[%s1 + $0x8f0] sm:$0xf]
        %v598 = vld [vmem:[%s1 + $0x8f4] sm:$0xff]
        %v599 = vld [vmem:[%s1 + $0x8fc] sm:$0xf]
        %v600 = vld [vmem:[%s1 + $0x900] sm:$0xff]
        %v601 = vld [vmem:[%s1 + $0x908] sm:$0xf]
        %v602 = vld [vmem:[%s1 + $0x90c] sm:$0xff]
        %v603 = vld [vmem:[%s1 + $0x914] sm:$0xf]
        %v604 = vld [vmem:[%s1 + $0x918] sm:$0xff]
        %v605 = vld [vmem:[%s1 + $0x920] sm:$0xf]
        %v606 = vld [vmem:[%s1 + $0x924] sm:$0xff]
        %v607 = vld [vmem:[%s1 + $0x92c] sm:$0xf]
        %v608 = vld [vmem:[%s1 + $0x930] sm:$0xff]
        %v609 = vld [vmem:[%s1 + $0x938] sm:$0xf]
        %v610 = vld [vmem:[%s1 + $0x93c] sm:$0xff]
        %v611 = vld [vmem:[%s1 + $0x944] sm:$0xf]
        %v612 = vld [vmem:[%s1 + $0x948] sm:$0xff]
        %v613 = vld [vmem:[%s1 + $0x950] sm:$0xf]
        %v614 = vld [vmem:[%s1 + $0x954] sm:$0xff]
        %v615 = vld [vmem:[%s1 + $0x95c] sm:$0xf]
        %v616 = vld [vmem:[%s1 + $0x960] sm:$0xff]
        %v617 = vld [vmem:[%s1 + $0x968] sm:$0xf]
        %v618 = vld [vmem:[%s1 + $0x96c] sm:$0xff]
        %v619 = vld [vmem:[%s1 + $0x974] sm:$0xf]
        %v620 = vld [vmem:[%s1 + $0x978] sm:$0xff]
        %v621 = vld [vmem:[%s1 + $0x980] sm:$0xf]
        %v622 = vld [vmem:[%s1 + $0x984] sm:$0xff]
        %v623 = vld [vmem:[%s1 + $0x98c] sm:$0xf]
        %v624 = vld [vmem:[%s1 + $0x990] sm:$0xff]
        %v625 = vld [vmem:[%s1 + $0x998] sm:$0xf]
        %v626 = vld [vmem:[%s1 + $0x99c] sm:$0xff]
        %v627 = vld [vmem:[%s1 + $0x9a4] sm:$0xf]
        %v628 = vld [vmem:[%s1 + $0x9a8] sm:$0xff]
        %v629 = vld [vmem:[%s1 + $0x9b0] sm:$0xf]
        %v630 = vld [vmem:[%s1 + $0x9b4] sm:$0xff]
        %v631 = vld [vmem:[%s1 + $0x9bc] sm:$0xf]
        %v632 = vld [vmem:[%s1 + $0x9c0] sm:$0xff]
        %v633 = vld [vmem:[%s1 + $0x9c8] sm:$0xf]
        %v634 = vld [vmem:[%s1 + $0x9cc] sm:$0xff]
        %v635 = vld [vmem:[%s1 + $0x9d4] sm:$0xf]
        %v636 = vld [vmem:[%s1 + $0x9d8] sm:$0xff]
        %v637 = vld [vmem:[%s1 + $0x9e0] sm:$0xf]
        %v638 = vld [vmem:[%s1 + $0x9e4] sm:$0xff]
        %v639 = vld [vmem:[%s1 + $0x9ec] sm:$0xf]
        %v640 = vld [vmem:[%s1 + $0x9f0] sm:$0xff]
        %v641 = vld [vmem:[%s1 + $0x9f8] sm:$0xf]
        %v642 = vld [vmem:[%s1 + $0x9fc] sm:$0xff]
        %v643 = vld [vmem:[%s1 + $0xa04] sm:$0xf]
        %v644 = vld [vmem:[%s1 + $0xa08] sm:$0xff]
        %v645 = vld [vmem:[%s1 + $0xa10] sm:$0xf]
        %v646 = vld [vmem:[%s1 + $0xa14] sm:$0xff]
        %v647 = vld [vmem:[%s1 + $0xa1c] sm:$0xf]
        %v648 = vld [vmem:[%s2] sm:$0x7]
        %v650 = vlaneseq
        %v651 = vshrl.u32 %v650, 7
        %v652 = vsub.s32 0, %v651
        %v653 = vrot.slane %v648, %v652
        %v654 = vlaneseq
        %v655 = vshrl.u32 %v654, 7
        %v656 = vsub.s32 1, %v655
        %v657 = vrot.slane %v648, %v656
        %v658 = vlaneseq
        %v659 = vshrl.u32 %v658, 7
        %v660 = vsub.s32 2, %v659
        %v661 = vrot.slane %v648, %v660
        %v679 = vunpack.c.l.b16 %v202
        %v680 = vunpack.c.h.b16 %v202
        %v681 = vunpack.c.l.b16 %v203
        %v682 = vunpack.c.h.b16 %v203
        %v683 = vunpack.c.l.b16 %v204
        %v684 = vunpack.c.h.b16 %v204
        %v685 = vunpack.c.l.b16 %v205
        %v686 = vunpack.c.h.b16 %v205
        %v687 = vunpack.c.l.b16 %v206
        %v688 = vunpack.c.h.b16 %v206
        %v689 = vunpack.c.l.b16 %v207
        %v690 = vunpack.c.h.b16 %v207
        %v691 = vunpack.c.l.b16 %v208
        %v692 = vunpack.c.h.b16 %v208
        %v693 = vunpack.c.l.b16 %v209
        %v694 = vunpack.c.h.b16 %v209
        %v695 = vunpack.c.l.b16 %v210
        %v696 = vunpack.c.h.b16 %v210
        %v697 = vunpack.c.l.b16 %v211
        %v698 = vunpack.c.h.b16 %v211
        %v699 = vunpack.c.l.b16 %v212
        %v700 = vunpack.c.h.b16 %v212
        %v701 = vunpack.c.l.b16 %v213
        %v702 = vunpack.c.h.b16 %v213
        %v703 = vunpack.c.l.b16 %v214
        %v704 = vunpack.c.h.b16 %v214
        %v705 = vunpack.c.l.b16 %v215
        %v706 = vunpack.c.h.b16 %v215
        %v707 = vpack.c.b16 %v693, %v679
        %v708 = vpack.c.b16 %v694, %v680
        %v709 = vpack.c.b16 %v695, %v681
        %v710 = vpack.c.b16 %v696, %v682
        %v711 = vpack.c.b16 %v697, %v683
        %v712 = vpack.c.b16 %v698, %v684
        %v713 = vpack.c.b16 %v699, %v685
        %v714 = vpack.c.b16 %v700, %v686
        %v715 = vpack.c.b16 %v701, %v687
        %v716 = vpack.c.b16 %v702, %v688
        %v717 = vpack.c.b16 %v703, %v689
        %v718 = vpack.c.b16 %v704, %v690
        %v719 = vpack.c.b16 %v705, %v691
        %v720 = vpack.c.b16 %v706, %v692
        %v1166 = vunpack.c.l.b16 %v216
        %v1167 = vunpack.c.h.b16 %v216
        %v1168 = vunpack.c.l.b16 %v217
        %v1169 = vunpack.c.l.b16 %v218
        %v1170 = vunpack.c.h.b16 %v218
        %v1171 = vunpack.c.l.b16 %v219
        %v1172 = vunpack.c.l.b16 %v220
        %v1173 = vunpack.c.h.b16 %v220
        %v1174 = vunpack.c.l.b16 %v221
        %v1175 = vunpack.c.l.b16 %v222
        %v1176 = vunpack.c.h.b16 %v222
        %v1177 = vunpack.c.l.b16 %v223
        %v1178 = vunpack.c.l.b16 %v224
        %v1179 = vunpack.c.h.b16 %v224
        %v1180 = vunpack.c.l.b16 %v225
        %v1181 = vunpack.c.l.b16 %v226
        %v1182 = vunpack.c.h.b16 %v226
        %v1183 = vunpack.c.l.b16 %v227
        %v1184 = vunpack.c.l.b16 %v228
        %v1185 = vunpack.c.h.b16 %v228
        %v1186 = vunpack.c.l.b16 %v229
        %v1187 = vunpack.c.l.b16 %v230
        %v1188 = vunpack.c.h.b16 %v230
        %v1189 = vunpack.c.l.b16 %v231
        %v1190 = vunpack.c.l.b16 %v232
        %v1191 = vunpack.c.h.b16 %v232
        %v1192 = vunpack.c.l.b16 %v233
        %v1193 = vunpack.c.l.b16 %v234
        %v1194 = vunpack.c.h.b16 %v234
        %v1195 = vunpack.c.l.b16 %v235
        %v1196 = vunpack.c.l.b16 %v236
        %v1197 = vunpack.c.h.b16 %v236
        %v1198 = vunpack.c.l.b16 %v237
        %v1199 = vunpack.c.l.b16 %v238
        %v1200 = vunpack.c.h.b16 %v238
        %v1201 = vunpack.c.l.b16 %v239
        %v1202 = vunpack.c.l.b16 %v240
        %v1203 = vunpack.c.h.b16 %v240
        %v1204 = vunpack.c.l.b16 %v241
        %v1205 = vunpack.c.l.b16 %v242
        %v1206 = vunpack.c.h.b16 %v242
        %v1207 = vunpack.c.l.b16 %v243
        %v1208 = vunpack.c.l.b16 %v244
        %v1209 = vunpack.c.h.b16 %v244
        %v1210 = vunpack.c.l.b16 %v245
        %v1211 = vunpack.c.l.b16 %v246
        %v1212 = vunpack.c.h.b16 %v246
        %v1213 = vunpack.c.l.b16 %v247
        %v1214 = vunpack.c.l.b16 %v248
        %v1215 = vunpack.c.h.b16 %v248
        %v1216 = vunpack.c.l.b16 %v249
        %v1217 = vunpack.c.l.b16 %v250
        %v1218 = vunpack.c.h.b16 %v250
        %v1219 = vunpack.c.l.b16 %v251
        %v1220 = vunpack.c.l.b16 %v252
        %v1221 = vunpack.c.h.b16 %v252
        %v1222 = vunpack.c.l.b16 %v253
        %v1223 = vunpack.c.l.b16 %v254
        %v1224 = vunpack.c.h.b16 %v254
        %v1225 = vunpack.c.l.b16 %v255
        %v1226 = vunpack.c.l.b16 %v256
        %v1227 = vunpack.c.h.b16 %v256
        %v1228 = vunpack.c.l.b16 %v257
        %v1229 = vunpack.c.l.b16 %v258
        %v1230 = vunpack.c.h.b16 %v258
        %v1231 = vunpack.c.l.b16 %v259
        %v1232 = vunpack.c.l.b16 %v260
        %v1233 = vunpack.c.h.b16 %v260
        %v1234 = vunpack.c.l.b16 %v261
        %v1235 = vunpack.c.l.b16 %v262
        %v1236 = vunpack.c.h.b16 %v262
        %v1237 = vunpack.c.l.b16 %v263
        %v1238 = vunpack.c.l.b16 %v264
        %v1239 = vunpack.c.h.b16 %v264
        %v1240 = vunpack.c.l.b16 %v265
        %v1241 = vunpack.c.l.b16 %v266
        %v1242 = vunpack.c.h.b16 %v266
        %v1243 = vunpack.c.l.b16 %v267
        %v1244 = vunpack.c.l.b16 %v268
        %v1245 = vunpack.c.h.b16 %v268
        %v1246 = vunpack.c.l.b16 %v269
        %v1247 = vunpack.c.l.b16 %v270
        %v1248 = vunpack.c.h.b16 %v270
        %v1249 = vunpack.c.l.b16 %v271
        %v1250 = vunpack.c.l.b16 %v272
        %v1251 = vunpack.c.h.b16 %v272
        %v1252 = vunpack.c.l.b16 %v273
        %v1253 = vunpack.c.l.b16 %v274
        %v1254 = vunpack.c.h.b16 %v274
        %v1255 = vunpack.c.l.b16 %v275
        %v1256 = vunpack.c.l.b16 %v276
        %v1257 = vunpack.c.h.b16 %v276
        %v1258 = vunpack.c.l.b16 %v277
        %v1259 = vunpack.c.l.b16 %v278
        %v1260 = vunpack.c.h.b16 %v278
        %v1261 = vunpack.c.l.b16 %v279
        %v1262 = vunpack.c.l.b16 %v280
        %v1263 = vunpack.c.h.b16 %v280
        %v1264 = vunpack.c.l.b16 %v281
        %v1265 = vunpack.c.l.b16 %v282
        %v1266 = vunpack.c.h.b16 %v282
        %v1267 = vunpack.c.l.b16 %v283
        %v1268 = vunpack.c.l.b16 %v284
        %v1269 = vunpack.c.h.b16 %v284
        %v1270 = vunpack.c.l.b16 %v285
        %v1271 = vunpack.c.l.b16 %v286
        %v1272 = vunpack.c.h.b16 %v286
        %v1273 = vunpack.c.l.b16 %v287
        %v1274 = vunpack.c.l.b16 %v288
        %v1275 = vunpack.c.h.b16 %v288
        %v1276 = vunpack.c.l.b16 %v289
        %v1277 = vunpack.c.l.b16 %v290
        %v1278 = vunpack.c.h.b16 %v290
        %v1279 = vunpack.c.l.b16 %v291
        %v1280 = vunpack.c.l.b16 %v292
        %v1281 = vunpack.c.h.b16 %v292
        %v1282 = vunpack.c.l.b16 %v293
        %v1283 = vunpack.c.l.b16 %v294
        %v1284 = vunpack.c.h.b16 %v294
        %v1285 = vunpack.c.l.b16 %v295
        %v1286 = vunpack.c.l.b16 %v296
        %v1287 = vunpack.c.h.b16 %v296
        %v1288 = vunpack.c.l.b16 %v297
        %v1289 = vunpack.c.l.b16 %v298
        %v1290 = vunpack.c.h.b16 %v298
        %v1291 = vunpack.c.l.b16 %v299
        %v1292 = vunpack.c.l.b16 %v300
        %v1293 = vunpack.c.h.b16 %v300
        %v1294 = vunpack.c.l.b16 %v301
        %v1295 = vunpack.c.l.b16 %v302
        %v1296 = vunpack.c.h.b16 %v302
        %v1297 = vunpack.c.l.b16 %v303
        %v1298 = vunpack.c.l.b16 %v304
        %v1299 = vunpack.c.h.b16 %v304
        %v1300 = vunpack.c.l.b16 %v305
        %v1301 = vunpack.c.l.b16 %v306
        %v1302 = vunpack.c.h.b16 %v306
        %v1303 = vunpack.c.l.b16 %v307
        %v1304 = vunpack.c.l.b16 %v308
        %v1305 = vunpack.c.h.b16 %v308
        %v1306 = vunpack.c.l.b16 %v309
        %v1307 = vunpack.c.l.b16 %v310
        %v1308 = vunpack.c.h.b16 %v310
        %v1309 = vunpack.c.l.b16 %v311
        %v1310 = vunpack.c.l.b16 %v312
        %v1311 = vunpack.c.h.b16 %v312
        %v1312 = vunpack.c.l.b16 %v313
        %v1313 = vunpack.c.l.b16 %v314
        %v1314 = vunpack.c.h.b16 %v314
        %v1315 = vunpack.c.l.b16 %v315
        %v1316 = vunpack.c.l.b16 %v316
        %v1317 = vunpack.c.h.b16 %v316
        %v1318 = vunpack.c.l.b16 %v317
        %v1319 = vunpack.c.l.b16 %v318
        %v1320 = vunpack.c.h.b16 %v318
        %v1321 = vunpack.c.l.b16 %v319
        %v1322 = vunpack.c.l.b16 %v320
        %v1323 = vunpack.c.h.b16 %v320
        %v1324 = vunpack.c.l.b16 %v321
        %v1325 = vunpack.c.l.b16 %v322
        %v1326 = vunpack.c.h.b16 %v322
        %v1327 = vunpack.c.l.b16 %v323
        %v1328 = vunpack.c.l.b16 %v324
        %v1329 = vunpack.c.h.b16 %v324
        %v1330 = vunpack.c.l.b16 %v325
        %v1331 = vunpack.c.l.b16 %v326
        %v1332 = vunpack.c.h.b16 %v326
        %v1333 = vunpack.c.l.b16 %v327
        %v1334 = vunpack.c.l.b16 %v328
        %v1335 = vunpack.c.h.b16 %v328
        %v1336 = vunpack.c.l.b16 %v329
        %v1337 = vunpack.c.l.b16 %v330
        %v1338 = vunpack.c.h.b16 %v330
        %v1339 = vunpack.c.l.b16 %v331
        %v1340 = vunpack.c.l.b16 %v332
        %v1341 = vunpack.c.h.b16 %v332
        %v1342 = vunpack.c.l.b16 %v333
        %v1343 = vunpack.c.l.b16 %v334
        %v1344 = vunpack.c.h.b16 %v334
        %v1345 = vunpack.c.l.b16 %v335
        %v1346 = vunpack.c.l.b16 %v336
        %v1347 = vunpack.c.h.b16 %v336
        %v1348 = vunpack.c.l.b16 %v337
        %v1349 = vunpack.c.l.b16 %v338
        %v1350 = vunpack.c.h.b16 %v338
        %v1351 = vunpack.c.l.b16 %v339
        %v1352 = vunpack.c.l.b16 %v340
        %v1353 = vunpack.c.h.b16 %v340
        %v1354 = vunpack.c.l.b16 %v341
        %v1355 = vunpack.c.l.b16 %v342
        %v1356 = vunpack.c.h.b16 %v342
        %v1357 = vunpack.c.l.b16 %v343
        %v1358 = vunpack.c.l.b16 %v344
        %v1359 = vunpack.c.h.b16 %v344
        %v1360 = vunpack.c.l.b16 %v345
        %v1361 = vunpack.c.l.b16 %v346
        %v1362 = vunpack.c.h.b16 %v346
        %v1363 = vunpack.c.l.b16 %v347
        %v1364 = vunpack.c.l.b16 %v348
        %v1365 = vunpack.c.h.b16 %v348
        %v1366 = vunpack.c.l.b16 %v349
        %v1367 = vunpack.c.l.b16 %v350
        %v1368 = vunpack.c.h.b16 %v350
        %v1369 = vunpack.c.l.b16 %v351
        %v1370 = vunpack.c.l.b16 %v352
        %v1371 = vunpack.c.h.b16 %v352
        %v1372 = vunpack.c.l.b16 %v353
        %v1373 = vunpack.c.l.b16 %v354
        %v1374 = vunpack.c.h.b16 %v354
        %v1375 = vunpack.c.l.b16 %v355
        %v1376 = vunpack.c.l.b16 %v356
        %v1377 = vunpack.c.h.b16 %v356
        %v1378 = vunpack.c.l.b16 %v357
        %v1379 = vunpack.c.l.b16 %v358
        %v1380 = vunpack.c.h.b16 %v358
        %v1381 = vunpack.c.l.b16 %v359
        %v1382 = vunpack.c.l.b16 %v360
        %v1383 = vunpack.c.h.b16 %v360
        %v1384 = vunpack.c.l.b16 %v361
        %v1385 = vunpack.c.l.b16 %v362
        %v1386 = vunpack.c.h.b16 %v362
        %v1387 = vunpack.c.l.b16 %v363
        %v1388 = vunpack.c.l.b16 %v364
        %v1389 = vunpack.c.h.b16 %v364
        %v1390 = vunpack.c.l.b16 %v365
        %v1391 = vunpack.c.l.b16 %v366
        %v1392 = vunpack.c.h.b16 %v366
        %v1393 = vunpack.c.l.b16 %v367
        %v1394 = vunpack.c.l.b16 %v368
        %v1395 = vunpack.c.h.b16 %v368
        %v1396 = vunpack.c.l.b16 %v369
        %v1397 = vunpack.c.l.b16 %v370
        %v1398 = vunpack.c.h.b16 %v370
        %v1399 = vunpack.c.l.b16 %v371
        %v1400 = vunpack.c.l.b16 %v372
        %v1401 = vunpack.c.h.b16 %v372
        %v1402 = vunpack.c.l.b16 %v373
        %v1403 = vunpack.c.l.b16 %v374
        %v1404 = vunpack.c.h.b16 %v374
        %v1405 = vunpack.c.l.b16 %v375
        %v1406 = vunpack.c.l.b16 %v376
        %v1407 = vunpack.c.h.b16 %v376
        %v1408 = vunpack.c.l.b16 %v377
        %v1409 = vunpack.c.l.b16 %v378
        %v1410 = vunpack.c.h.b16 %v378
        %v1411 = vunpack.c.l.b16 %v379
        %v1412 = vunpack.c.l.b16 %v380
        %v1413 = vunpack.c.h.b16 %v380
        %v1414 = vunpack.c.l.b16 %v381
        %v1415 = vunpack.c.l.b16 %v382
        %v1416 = vunpack.c.h.b16 %v382
        %v1417 = vunpack.c.l.b16 %v383
        %v1418 = vunpack.c.l.b16 %v384
        %v1419 = vunpack.c.h.b16 %v384
        %v1420 = vunpack.c.l.b16 %v385
        %v1421 = vunpack.c.l.b16 %v386
        %v1422 = vunpack.c.h.b16 %v386
        %v1423 = vunpack.c.l.b16 %v387
        %v1424 = vunpack.c.l.b16 %v388
        %v1425 = vunpack.c.h.b16 %v388
        %v1426 = vunpack.c.l.b16 %v389
        %v1427 = vunpack.c.l.b16 %v390
        %v1428 = vunpack.c.h.b16 %v390
        %v1429 = vunpack.c.l.b16 %v391
        %v1430 = vunpack.c.l.b16 %v392
        %v1431 = vunpack.c.h.b16 %v392
        %v1432 = vunpack.c.l.b16 %v393
        %v1433 = vunpack.c.l.b16 %v394
        %v1434 = vunpack.c.h.b16 %v394
        %v1435 = vunpack.c.l.b16 %v395
        %v1436 = vunpack.c.l.b16 %v396
        %v1437 = vunpack.c.h.b16 %v396
        %v1438 = vunpack.c.l.b16 %v397
        %v1439 = vunpack.c.l.b16 %v398
        %v1440 = vunpack.c.h.b16 %v398
        %v1441 = vunpack.c.l.b16 %v399
        %v1442 = vunpack.c.l.b16 %v400
        %v1443 = vunpack.c.h.b16 %v400
        %v1444 = vunpack.c.l.b16 %v401
        %v1445 = vunpack.c.l.b16 %v402
        %v1446 = vunpack.c.h.b16 %v402
        %v1447 = vunpack.c.l.b16 %v403
        %v1448 = vunpack.c.l.b16 %v404
        %v1449 = vunpack.c.h.b16 %v404
        %v1450 = vunpack.c.l.b16 %v405
        %v1451 = vunpack.c.l.b16 %v406
        %v1452 = vunpack.c.h.b16 %v406
        %v1453 = vunpack.c.l.b16 %v407
        %v1454 = vunpack.c.l.b16 %v408
        %v1455 = vunpack.c.h.b16 %v408
        %v1456 = vunpack.c.l.b16 %v409
        %v1457 = vunpack.c.l.b16 %v410
        %v1458 = vunpack.c.h.b16 %v410
        %v1459 = vunpack.c.l.b16 %v411
        %v1460 = vunpack.c.l.b16 %v412
        %v1461 = vunpack.c.h.b16 %v412
        %v1462 = vunpack.c.l.b16 %v413
        %v1463 = vunpack.c.l.b16 %v414
        %v1464 = vunpack.c.h.b16 %v414
        %v1465 = vunpack.c.l.b16 %v415
        %v1466 = vunpack.c.l.b16 %v416
        %v1467 = vunpack.c.h.b16 %v416
        %v1468 = vunpack.c.l.b16 %v417
        %v1469 = vunpack.c.l.b16 %v418
        %v1470 = vunpack.c.h.b16 %v418
        %v1471 = vunpack.c.l.b16 %v419
        %v1472 = vunpack.c.l.b16 %v420
        %v1473 = vunpack.c.h.b16 %v420
        %v1474 = vunpack.c.l.b16 %v421
        %v1475 = vunpack.c.l.b16 %v422
        %v1476 = vunpack.c.h.b16 %v422
        %v1477 = vunpack.c.l.b16 %v423
        %v1478 = vunpack.c.l.b16 %v424
        %v1479 = vunpack.c.h.b16 %v424
        %v1480 = vunpack.c.l.b16 %v425
        %v1481 = vunpack.c.l.b16 %v426
        %v1482 = vunpack.c.h.b16 %v426
        %v1483 = vunpack.c.l.b16 %v427
        %v1484 = vunpack.c.l.b16 %v428
        %v1485 = vunpack.c.h.b16 %v428
        %v1486 = vunpack.c.l.b16 %v429
        %v1487 = vunpack.c.l.b16 %v430
        %v1488 = vunpack.c.h.b16 %v430
        %v1489 = vunpack.c.l.b16 %v431
        %v1490 = vunpack.c.l.b16 %v432
        %v1491 = vunpack.c.h.b16 %v432
        %v1492 = vunpack.c.l.b16 %v433
        %v1493 = vunpack.c.l.b16 %v434
        %v1494 = vunpack.c.h.b16 %v434
        %v1495 = vunpack.c.l.b16 %v435
        %v1496 = vunpack.c.l.b16 %v436
        %v1497 = vunpack.c.h.b16 %v436
        %v1498 = vunpack.c.l.b16 %v437
        %v1499 = vunpack.c.l.b16 %v438
        %v1500 = vunpack.c.h.b16 %v438
        %v1501 = vunpack.c.l.b16 %v439
        %v1502 = vunpack.c.l.b16 %v440
        %v1503 = vunpack.c.h.b16 %v440
        %v1504 = vunpack.c.l.b16 %v441
        %v1505 = vunpack.c.l.b16 %v442
        %v1506 = vunpack.c.h.b16 %v442
        %v1507 = vunpack.c.l.b16 %v443
        %v1508 = vunpack.c.l.b16 %v444
        %v1509 = vunpack.c.h.b16 %v444
        %v1510 = vunpack.c.l.b16 %v445
        %v1511 = vunpack.c.l.b16 %v446
        %v1512 = vunpack.c.h.b16 %v446
        %v1513 = vunpack.c.l.b16 %v447
        %v1514 = vunpack.c.l.b16 %v448
        %v1515 = vunpack.c.h.b16 %v448
        %v1516 = vunpack.c.l.b16 %v449
        %v1517 = vunpack.c.l.b16 %v450
        %v1518 = vunpack.c.h.b16 %v450
        %v1519 = vunpack.c.l.b16 %v451
        %v1520 = vunpack.c.l.b16 %v452
        %v1521 = vunpack.c.h.b16 %v452
        %v1522 = vunpack.c.l.b16 %v453
        %v1523 = vunpack.c.l.b16 %v454
        %v1524 = vunpack.c.h.b16 %v454
        %v1525 = vunpack.c.l.b16 %v455
        %v1526 = vunpack.c.l.b16 %v456
        %v1527 = vunpack.c.h.b16 %v456
        %v1528 = vunpack.c.l.b16 %v457
        %v1529 = vunpack.c.l.b16 %v458
        %v1530 = vunpack.c.h.b16 %v458
        %v1531 = vunpack.c.l.b16 %v459
        %v1532 = vunpack.c.l.b16 %v460
        %v1533 = vunpack.c.h.b16 %v460
        %v1534 = vunpack.c.l.b16 %v461
        %v1535 = vunpack.c.l.b16 %v462
        %v1536 = vunpack.c.h.b16 %v462
        %v1537 = vunpack.c.l.b16 %v463
        %v1538 = vunpack.c.l.b16 %v464
        %v1539 = vunpack.c.h.b16 %v464
        %v1540 = vunpack.c.l.b16 %v465
        %v1541 = vunpack.c.l.b16 %v466
        %v1542 = vunpack.c.h.b16 %v466
        %v1543 = vunpack.c.l.b16 %v467
        %v1544 = vunpack.c.l.b16 %v468
        %v1545 = vunpack.c.h.b16 %v468
        %v1546 = vunpack.c.l.b16 %v469
        %v1547 = vunpack.c.l.b16 %v470
        %v1548 = vunpack.c.h.b16 %v470
        %v1549 = vunpack.c.l.b16 %v471
        %v1550 = vunpack.c.l.b16 %v472
        %v1551 = vunpack.c.h.b16 %v472
        %v1552 = vunpack.c.l.b16 %v473
        %v1553 = vunpack.c.l.b16 %v474
        %v1554 = vunpack.c.h.b16 %v474
        %v1555 = vunpack.c.l.b16 %v475
        %v1556 = vunpack.c.l.b16 %v476
        %v1557 = vunpack.c.h.b16 %v476
        %v1558 = vunpack.c.l.b16 %v477
        %v1559 = vunpack.c.l.b16 %v478
        %v1560 = vunpack.c.h.b16 %v478
        %v1561 = vunpack.c.l.b16 %v479
        %v1562 = vunpack.c.l.b16 %v480
        %v1563 = vunpack.c.h.b16 %v480
        %v1564 = vunpack.c.l.b16 %v481
        %v1565 = vunpack.c.l.b16 %v482
        %v1566 = vunpack.c.h.b16 %v482
        %v1567 = vunpack.c.l.b16 %v483
        %v1568 = vunpack.c.l.b16 %v484
        %v1569 = vunpack.c.h.b16 %v484
        %v1570 = vunpack.c.l.b16 %v485
        %v1571 = vunpack.c.l.b16 %v486
        %v1572 = vunpack.c.h.b16 %v486
        %v1573 = vunpack.c.l.b16 %v487
        %v1574 = vunpack.c.l.b16 %v488
        %v1575 = vunpack.c.h.b16 %v488
        %v1576 = vunpack.c.l.b16 %v489
        %v1577 = vunpack.c.l.b16 %v490
        %v1578 = vunpack.c.h.b16 %v490
        %v1579 = vunpack.c.l.b16 %v491
        %v1580 = vunpack.c.l.b16 %v492
        %v1581 = vunpack.c.h.b16 %v492
        %v1582 = vunpack.c.l.b16 %v493
        %v1583 = vunpack.c.l.b16 %v494
        %v1584 = vunpack.c.h.b16 %v494
        %v1585 = vunpack.c.l.b16 %v495
        %v1586 = vunpack.c.l.b16 %v496
        %v1587 = vunpack.c.h.b16 %v496
        %v1588 = vunpack.c.l.b16 %v497
        %v1589 = vunpack.c.l.b16 %v498
        %v1590 = vunpack.c.h.b16 %v498
        %v1591 = vunpack.c.l.b16 %v499
        %v1592 = vunpack.c.l.b16 %v500
        %v1593 = vunpack.c.h.b16 %v500
        %v1594 = vunpack.c.l.b16 %v501
        %v1595 = vunpack.c.l.b16 %v502
        %v1596 = vunpack.c.h.b16 %v502
        %v1597 = vunpack.c.l.b16 %v503
        %v1598 = vunpack.c.l.b16 %v504
        %v1599 = vunpack.c.h.b16 %v504
        %v1600 = vunpack.c.l.b16 %v505
        %v1601 = vunpack.c.l.b16 %v506
        %v1602 = vunpack.c.h.b16 %v506
        %v1603 = vunpack.c.l.b16 %v507
        %v1604 = vunpack.c.l.b16 %v508
        %v1605 = vunpack.c.h.b16 %v508
        %v1606 = vunpack.c.l.b16 %v509
        %v1607 = vunpack.c.l.b16 %v510
        %v1608 = vunpack.c.h.b16 %v510
        %v1609 = vunpack.c.l.b16 %v511
        %v1610 = vunpack.c.l.b16 %v512
        %v1611 = vunpack.c.h.b16 %v512
        %v1612 = vunpack.c.l.b16 %v513
        %v1613 = vunpack.c.l.b16 %v514
        %v1614 = vunpack.c.h.b16 %v514
        %v1615 = vunpack.c.l.b16 %v515
        %v1616 = vunpack.c.l.b16 %v516
        %v1617 = vunpack.c.h.b16 %v516
        %v1618 = vunpack.c.l.b16 %v517
        %v1619 = vunpack.c.l.b16 %v518
        %v1620 = vunpack.c.h.b16 %v518
        %v1621 = vunpack.c.l.b16 %v519
        %v1622 = vunpack.c.l.b16 %v520
        %v1623 = vunpack.c.h.b16 %v520
        %v1624 = vunpack.c.l.b16 %v521
        %v1625 = vunpack.c.l.b16 %v522
        %v1626 = vunpack.c.h.b16 %v522
        %v1627 = vunpack.c.l.b16 %v523
        %v1628 = vunpack.c.l.b16 %v524
        %v1629 = vunpack.c.h.b16 %v524
        %v1630 = vunpack.c.l.b16 %v525
        %v1631 = vunpack.c.l.b16 %v526
        %v1632 = vunpack.c.h.b16 %v526
        %v1633 = vunpack.c.l.b16 %v527
        %v1634 = vunpack.c.l.b16 %v528
        %v1635 = vunpack.c.h.b16 %v528
        %v1636 = vunpack.c.l.b16 %v529
        %v1637 = vunpack.c.l.b16 %v530
        %v1638 = vunpack.c.h.b16 %v530
        %v1639 = vunpack.c.l.b16 %v531
        %v1640 = vunpack.c.l.b16 %v532
        %v1641 = vunpack.c.h.b16 %v532
        %v1642 = vunpack.c.l.b16 %v533
        %v1643 = vunpack.c.l.b16 %v534
        %v1644 = vunpack.c.h.b16 %v534
        %v1645 = vunpack.c.l.b16 %v535
        %v1646 = vunpack.c.l.b16 %v536
        %v1647 = vunpack.c.h.b16 %v536
        %v1648 = vunpack.c.l.b16 %v537
        %v1649 = vunpack.c.l.b16 %v538
        %v1650 = vunpack.c.h.b16 %v538
        %v1651 = vunpack.c.l.b16 %v539
        %v1652 = vunpack.c.l.b16 %v540
        %v1653 = vunpack.c.h.b16 %v540
        %v1654 = vunpack.c.l.b16 %v541
        %v1655 = vunpack.c.l.b16 %v542
        %v1656 = vunpack.c.h.b16 %v542
        %v1657 = vunpack.c.l.b16 %v543
        %v1658 = vunpack.c.l.b16 %v544
        %v1659 = vunpack.c.h.b16 %v544
        %v1660 = vunpack.c.l.b16 %v545
        %v1661 = vunpack.c.l.b16 %v546
        %v1662 = vunpack.c.h.b16 %v546
        %v1663 = vunpack.c.l.b16 %v547
        %v1664 = vunpack.c.l.b16 %v548
        %v1665 = vunpack.c.h.b16 %v548
        %v1666 = vunpack.c.l.b16 %v549
        %v1667 = vunpack.c.l.b16 %v550
        %v1668 = vunpack.c.h.b16 %v550
        %v1669 = vunpack.c.l.b16 %v551
        %v1670 = vunpack.c.l.b16 %v552
        %v1671 = vunpack.c.h.b16 %v552
        %v1672 = vunpack.c.l.b16 %v553
        %v1673 = vunpack.c.l.b16 %v554
        %v1674 = vunpack.c.h.b16 %v554
        %v1675 = vunpack.c.l.b16 %v555
        %v1676 = vunpack.c.l.b16 %v556
        %v1677 = vunpack.c.h.b16 %v556
        %v1678 = vunpack.c.l.b16 %v557
        %v1679 = vunpack.c.l.b16 %v558
        %v1680 = vunpack.c.h.b16 %v558
        %v1681 = vunpack.c.l.b16 %v559
        %v1682 = vunpack.c.l.b16 %v560
        %v1683 = vunpack.c.h.b16 %v560
        %v1684 = vunpack.c.l.b16 %v561
        %v1685 = vunpack.c.l.b16 %v562
        %v1686 = vunpack.c.h.b16 %v562
        %v1687 = vunpack.c.l.b16 %v563
        %v1688 = vunpack.c.l.b16 %v564
        %v1689 = vunpack.c.h.b16 %v564
        %v1690 = vunpack.c.l.b16 %v565
        %v1691 = vunpack.c.l.b16 %v566
        %v1692 = vunpack.c.h.b16 %v566
        %v1693 = vunpack.c.l.b16 %v567
        %v1694 = vunpack.c.l.b16 %v568
        %v1695 = vunpack.c.h.b16 %v568
        %v1696 = vunpack.c.l.b16 %v569
        %v1697 = vunpack.c.l.b16 %v570
        %v1698 = vunpack.c.h.b16 %v570
        %v1699 = vunpack.c.l.b16 %v571
        %v1700 = vunpack.c.l.b16 %v572
        %v1701 = vunpack.c.h.b16 %v572
        %v1702 = vunpack.c.l.b16 %v573
        %v1703 = vunpack.c.l.b16 %v574
        %v1704 = vunpack.c.h.b16 %v574
        %v1705 = vunpack.c.l.b16 %v575
        %v1706 = vunpack.c.l.b16 %v576
        %v1707 = vunpack.c.h.b16 %v576
        %v1708 = vunpack.c.l.b16 %v577
        %v1709 = vunpack.c.l.b16 %v578
        %v1710 = vunpack.c.h.b16 %v578
        %v1711 = vunpack.c.l.b16 %v579
        %v1712 = vunpack.c.l.b16 %v580
        %v1713 = vunpack.c.h.b16 %v580
        %v1714 = vunpack.c.l.b16 %v581
        %v1715 = vunpack.c.l.b16 %v582
        %v1716 = vunpack.c.h.b16 %v582
        %v1717 = vunpack.c.l.b16 %v583
        %v1718 = vunpack.c.l.b16 %v584
        %v1719 = vunpack.c.h.b16 %v584
        %v1720 = vunpack.c.l.b16 %v585
        %v1721 = vunpack.c.l.b16 %v586
        %v1722 = vunpack.c.h.b16 %v586
        %v1723 = vunpack.c.l.b16 %v587
        %v1724 = vunpack.c.l.b16 %v588
        %v1725 = vunpack.c.h.b16 %v588
        %v1726 = vunpack.c.l.b16 %v589
        %v1727 = vunpack.c.l.b16 %v590
        %v1728 = vunpack.c.h.b16 %v590
        %v1729 = vunpack.c.l.b16 %v591
        %v1730 = vunpack.c.l.b16 %v592
        %v1731 = vunpack.c.h.b16 %v592
        %v1732 = vunpack.c.l.b16 %v593
        %v1733 = vunpack.c.l.b16 %v594
        %v1734 = vunpack.c.h.b16 %v594
        %v1735 = vunpack.c.l.b16 %v595
        %v1736 = vunpack.c.l.b16 %v596
        %v1737 = vunpack.c.h.b16 %v596
        %v1738 = vunpack.c.l.b16 %v597
        %v1739 = vunpack.c.l.b16 %v598
        %v1740 = vunpack.c.h.b16 %v598
        %v1741 = vunpack.c.l.b16 %v599
        %v1742 = vunpack.c.l.b16 %v600
        %v1743 = vunpack.c.h.b16 %v600
        %v1744 = vunpack.c.l.b16 %v601
        %v1745 = vunpack.c.l.b16 %v602
        %v1746 = vunpack.c.h.b16 %v602
        %v1747 = vunpack.c.l.b16 %v603
        %v1748 = vunpack.c.l.b16 %v604
        %v1749 = vunpack.c.h.b16 %v604
        %v1750 = vunpack.c.l.b16 %v605
        %v1751 = vunpack.c.l.b16 %v606
        %v1752 = vunpack.c.h.b16 %v606
        %v1753 = vunpack.c.l.b16 %v607
        %v1754 = vunpack.c.l.b16 %v608
        %v1755 = vunpack.c.h.b16 %v608
        %v1756 = vunpack.c.l.b16 %v609
        %v1757 = vunpack.c.l.b16 %v610
        %v1758 = vunpack.c.h.b16 %v610
        %v1759 = vunpack.c.l.b16 %v611
        %v1760 = vunpack.c.l.b16 %v612
        %v1761 = vunpack.c.h.b16 %v612
        %v1762 = vunpack.c.l.b16 %v613
        %v1763 = vunpack.c.l.b16 %v614
        %v1764 = vunpack.c.h.b16 %v614
        %v1765 = vunpack.c.l.b16 %v615
        %v1766 = vunpack.c.l.b16 %v616
        %v1767 = vunpack.c.h.b16 %v616
        %v1768 = vunpack.c.l.b16 %v617
        %v1769 = vunpack.c.l.b16 %v618
        %v1770 = vunpack.c.h.b16 %v618
        %v1771 = vunpack.c.l.b16 %v619
        %v1772 = vunpack.c.l.b16 %v620
        %v1773 = vunpack.c.h.b16 %v620
        %v1774 = vunpack.c.l.b16 %v621
        %v1775 = vunpack.c.l.b16 %v622
        %v1776 = vunpack.c.h.b16 %v622
        %v1777 = vunpack.c.l.b16 %v623
        %v1778 = vunpack.c.l.b16 %v624
        %v1779 = vunpack.c.h.b16 %v624
        %v1780 = vunpack.c.l.b16 %v625
        %v1781 = vunpack.c.l.b16 %v626
        %v1782 = vunpack.c.h.b16 %v626
        %v1783 = vunpack.c.l.b16 %v627
        %v1784 = vunpack.c.l.b16 %v628
        %v1785 = vunpack.c.h.b16 %v628
        %v1786 = vunpack.c.l.b16 %v629
        %v1787 = vunpack.c.l.b16 %v630
        %v1788 = vunpack.c.h.b16 %v630
        %v1789 = vunpack.c.l.b16 %v631
        %v1790 = vunpack.c.l.b16 %v632
        %v1791 = vunpack.c.h.b16 %v632
        %v1792 = vunpack.c.l.b16 %v633
        %v1793 = vunpack.c.l.b16 %v634
        %v1794 = vunpack.c.h.b16 %v634
        %v1795 = vunpack.c.l.b16 %v635
        %v1796 = vunpack.c.l.b16 %v636
        %v1797 = vunpack.c.h.b16 %v636
        %v1798 = vunpack.c.l.b16 %v637
        %v1799 = vunpack.c.l.b16 %v638
        %v1800 = vunpack.c.h.b16 %v638
        %v1801 = vunpack.c.l.b16 %v639
        %v1802 = vunpack.c.l.b16 %v640
        %v1803 = vunpack.c.h.b16 %v640
        %v1804 = vunpack.c.l.b16 %v641
        %v1805 = vunpack.c.l.b16 %v642
        %v1806 = vunpack.c.h.b16 %v642
        %v1807 = vunpack.c.l.b16 %v643
        %v1808 = vunpack.c.l.b16 %v644
        %v1809 = vunpack.c.h.b16 %v644
        %v1810 = vunpack.c.l.b16 %v645
        %v1811 = vunpack.c.l.b16 %v646
        %v1812 = vunpack.c.h.b16 %v646
        %v1813 = vunpack.c.l.b16 %v647
        %v1814 = vpack.c.b16 %v1169, %v1166
        %v1815 = vpack.c.b16 %v1170, %v1167
        %v1816 = vpack.c.b16 %v1171, %v1168
        %v1817 = vpack.c.b16 %v1175, %v1172
        %v1818 = vpack.c.b16 %v1176, %v1173
        %v1819 = vpack.c.b16 %v1177, %v1174
        %v1820 = vpack.c.b16 %v1181, %v1178
        %v1821 = vpack.c.b16 %v1182, %v1179
        %v1822 = vpack.c.b16 %v1183, %v1180
        %v1823 = vpack.c.b16 %v1187, %v1184
        %v1824 = vpack.c.b16 %v1188, %v1185
        %v1825 = vpack.c.b16 %v1189, %v1186
        %v1826 = vpack.c.b16 %v1193, %v1190
        %v1827 = vpack.c.b16 %v1194, %v1191
        %v1828 = vpack.c.b16 %v1195, %v1192
        %v1829 = vpack.c.b16 %v1199, %v1196
        %v1830 = vpack.c.b16 %v1200, %v1197
        %v1831 = vpack.c.b16 %v1201, %v1198
        %v1832 = vpack.c.b16 %v1205, %v1202
        %v1833 = vpack.c.b16 %v1206, %v1203
        %v1834 = vpack.c.b16 %v1207, %v1204
        %v1835 = vpack.c.b16 %v1211, %v1208
        %v1836 = vpack.c.b16 %v1212, %v1209
        %v1837 = vpack.c.b16 %v1213, %v1210
        %v1838 = vpack.c.b16 %v1217, %v1214
        %v1839 = vpack.c.b16 %v1218, %v1215
        %v1840 = vpack.c.b16 %v1219, %v1216
        %v1841 = vpack.c.b16 %v1223, %v1220
        %v1842 = vpack.c.b16 %v1224, %v1221
        %v1843 = vpack.c.b16 %v1225, %v1222
        %v1844 = vpack.c.b16 %v1229, %v1226
        %v1845 = vpack.c.b16 %v1230, %v1227
        %v1846 = vpack.c.b16 %v1231, %v1228
        %v1847 = vpack.c.b16 %v1235, %v1232
        %v1848 = vpack.c.b16 %v1236, %v1233
        %v1849 = vpack.c.b16 %v1237, %v1234
        %v1850 = vpack.c.b16 %v1241, %v1238
        %v1851 = vpack.c.b16 %v1242, %v1239
        %v1852 = vpack.c.b16 %v1243, %v1240
        %v1853 = vpack.c.b16 %v1247, %v1244
        %v1854 = vpack.c.b16 %v1248, %v1245
        %v1855 = vpack.c.b16 %v1249, %v1246
        %v1856 = vpack.c.b16 %v1253, %v1250
        %v1857 = vpack.c.b16 %v1254, %v1251
        %v1858 = vpack.c.b16 %v1255, %v1252
        %v1859 = vpack.c.b16 %v1259, %v1256
        %v1860 = vpack.c.b16 %v1260, %v1257
        %v1861 = vpack.c.b16 %v1261, %v1258
        %v1862 = vpack.c.b16 %v1265, %v1262
        %v1863 = vpack.c.b16 %v1266, %v1263
        %v1864 = vpack.c.b16 %v1267, %v1264
        %v1865 = vpack.c.b16 %v1271, %v1268
        %v1866 = vpack.c.b16 %v1272, %v1269
        %v1867 = vpack.c.b16 %v1273, %v1270
        %v1868 = vpack.c.b16 %v1277, %v1274
        %v1869 = vpack.c.b16 %v1278, %v1275
        %v1870 = vpack.c.b16 %v1279, %v1276
        %v1871 = vpack.c.b16 %v1283, %v1280
        %v1872 = vpack.c.b16 %v1284, %v1281
        %v1873 = vpack.c.b16 %v1285, %v1282
        %v1874 = vpack.c.b16 %v1289, %v1286
        %v1875 = vpack.c.b16 %v1290, %v1287
        %v1876 = vpack.c.b16 %v1291, %v1288
        %v1877 = vpack.c.b16 %v1295, %v1292
        %v1878 = vpack.c.b16 %v1296, %v1293
        %v1879 = vpack.c.b16 %v1297, %v1294
        %v1880 = vpack.c.b16 %v1301, %v1298
        %v1881 = vpack.c.b16 %v1302, %v1299
        %v1882 = vpack.c.b16 %v1303, %v1300
        %v1883 = vpack.c.b16 %v1307, %v1304
        %v1884 = vpack.c.b16 %v1308, %v1305
        %v1885 = vpack.c.b16 %v1309, %v1306
        %v1886 = vpack.c.b16 %v1313, %v1310
        %v1887 = vpack.c.b16 %v1314, %v1311
        %v1888 = vpack.c.b16 %v1315, %v1312
        %v1889 = vpack.c.b16 %v1319, %v1316
        %v1890 = vpack.c.b16 %v1320, %v1317
        %v1891 = vpack.c.b16 %v1321, %v1318
        %v1892 = vpack.c.b16 %v1325, %v1322
        %v1893 = vpack.c.b16 %v1326, %v1323
        %v1894 = vpack.c.b16 %v1327, %v1324
        %v1895 = vpack.c.b16 %v1331, %v1328
        %v1896 = vpack.c.b16 %v1332, %v1329
        %v1897 = vpack.c.b16 %v1333, %v1330
        %v1898 = vpack.c.b16 %v1337, %v1334
        %v1899 = vpack.c.b16 %v1338, %v1335
        %v1900 = vpack.c.b16 %v1339, %v1336
        %v1901 = vpack.c.b16 %v1343, %v1340
        %v1902 = vpack.c.b16 %v1344, %v1341
        %v1903 = vpack.c.b16 %v1345, %v1342
        %v1904 = vpack.c.b16 %v1349, %v1346
        %v1905 = vpack.c.b16 %v1350, %v1347
        %v1906 = vpack.c.b16 %v1351, %v1348
        %v1907 = vpack.c.b16 %v1355, %v1352
        %v1908 = vpack.c.b16 %v1356, %v1353
        %v1909 = vpack.c.b16 %v1357, %v1354
        %v1910 = vpack.c.b16 %v1361, %v1358
        %v1911 = vpack.c.b16 %v1362, %v1359
        %v1912 = vpack.c.b16 %v1363, %v1360
        %v1913 = vpack.c.b16 %v1367, %v1364
        %v1914 = vpack.c.b16 %v1368, %v1365
        %v1915 = vpack.c.b16 %v1369, %v1366
        %v1916 = vpack.c.b16 %v1373, %v1370
        %v1917 = vpack.c.b16 %v1374, %v1371
        %v1918 = vpack.c.b16 %v1375, %v1372
        %v1919 = vpack.c.b16 %v1379, %v1376
        %v1920 = vpack.c.b16 %v1380, %v1377
        %v1921 = vpack.c.b16 %v1381, %v1378
        %v1922 = vpack.c.b16 %v1385, %v1382
        %v1923 = vpack.c.b16 %v1386, %v1383
        %v1924 = vpack.c.b16 %v1387, %v1384
        %v1925 = vpack.c.b16 %v1391, %v1388
        %v1926 = vpack.c.b16 %v1392, %v1389
        %v1927 = vpack.c.b16 %v1393, %v1390
        %v1928 = vpack.c.b16 %v1397, %v1394
        %v1929 = vpack.c.b16 %v1398, %v1395
        %v1930 = vpack.c.b16 %v1399, %v1396
        %v1931 = vpack.c.b16 %v1403, %v1400
        %v1932 = vpack.c.b16 %v1404, %v1401
        %v1933 = vpack.c.b16 %v1405, %v1402
        %v1934 = vpack.c.b16 %v1409, %v1406
        %v1935 = vpack.c.b16 %v1410, %v1407
        %v1936 = vpack.c.b16 %v1411, %v1408
        %v1937 = vpack.c.b16 %v1415, %v1412
        %v1938 = vpack.c.b16 %v1416, %v1413
        %v1939 = vpack.c.b16 %v1417, %v1414
        %v1940 = vpack.c.b16 %v1421, %v1418
        %v1941 = vpack.c.b16 %v1422, %v1419
        %v1942 = vpack.c.b16 %v1423, %v1420
        %v1943 = vpack.c.b16 %v1427, %v1424
        %v1944 = vpack.c.b16 %v1428, %v1425
        %v1945 = vpack.c.b16 %v1429, %v1426
        %v1946 = vpack.c.b16 %v1433, %v1430
        %v1947 = vpack.c.b16 %v1434, %v1431
        %v1948 = vpack.c.b16 %v1435, %v1432
        %v1949 = vpack.c.b16 %v1439, %v1436
        %v1950 = vpack.c.b16 %v1440, %v1437
        %v1951 = vpack.c.b16 %v1441, %v1438
        %v1952 = vpack.c.b16 %v1445, %v1442
        %v1953 = vpack.c.b16 %v1446, %v1443
        %v1954 = vpack.c.b16 %v1447, %v1444
        %v1955 = vpack.c.b16 %v1451, %v1448
        %v1956 = vpack.c.b16 %v1452, %v1449
        %v1957 = vpack.c.b16 %v1453, %v1450
        %v1958 = vpack.c.b16 %v1457, %v1454
        %v1959 = vpack.c.b16 %v1458, %v1455
        %v1960 = vpack.c.b16 %v1459, %v1456
        %v1961 = vpack.c.b16 %v1463, %v1460
        %v1962 = vpack.c.b16 %v1464, %v1461
        %v1963 = vpack.c.b16 %v1465, %v1462
        %v1964 = vpack.c.b16 %v1469, %v1466
        %v1965 = vpack.c.b16 %v1470, %v1467
        %v1966 = vpack.c.b16 %v1471, %v1468
        %v1967 = vpack.c.b16 %v1475, %v1472
        %v1968 = vpack.c.b16 %v1476, %v1473
        %v1969 = vpack.c.b16 %v1477, %v1474
        %v1970 = vpack.c.b16 %v1481, %v1478
        %v1971 = vpack.c.b16 %v1482, %v1479
        %v1972 = vpack.c.b16 %v1483, %v1480
        %v1973 = vpack.c.b16 %v1487, %v1484
        %v1974 = vpack.c.b16 %v1488, %v1485
        %v1975 = vpack.c.b16 %v1489, %v1486
        %v1976 = vpack.c.b16 %v1493, %v1490
        %v1977 = vpack.c.b16 %v1494, %v1491
        %v1978 = vpack.c.b16 %v1495, %v1492
        %v1979 = vpack.c.b16 %v1499, %v1496
        %v1980 = vpack.c.b16 %v1500, %v1497
        %v1981 = vpack.c.b16 %v1501, %v1498
        %v1982 = vpack.c.b16 %v1505, %v1502
        %v1983 = vpack.c.b16 %v1506, %v1503
        %v1984 = vpack.c.b16 %v1507, %v1504
        %v1985 = vpack.c.b16 %v1511, %v1508
        %v1986 = vpack.c.b16 %v1512, %v1509
        %v1987 = vpack.c.b16 %v1513, %v1510
        %v1988 = vpack.c.b16 %v1517, %v1514
        %v1989 = vpack.c.b16 %v1518, %v1515
        %v1990 = vpack.c.b16 %v1519, %v1516
        %v1991 = vpack.c.b16 %v1523, %v1520
        %v1992 = vpack.c.b16 %v1524, %v1521
        %v1993 = vpack.c.b16 %v1525, %v1522
        %v1994 = vpack.c.b16 %v1529, %v1526
        %v1995 = vpack.c.b16 %v1530, %v1527
        %v1996 = vpack.c.b16 %v1531, %v1528
        %v1997 = vpack.c.b16 %v1535, %v1532
        %v1998 = vpack.c.b16 %v1536, %v1533
        %v1999 = vpack.c.b16 %v1537, %v1534
        %v2000 = vpack.c.b16 %v1541, %v1538
        %v2001 = vpack.c.b16 %v1542, %v1539
        %v2002 = vpack.c.b16 %v1543, %v1540
        %v2003 = vpack.c.b16 %v1547, %v1544
        %v2004 = vpack.c.b16 %v1548, %v1545
        %v2005 = vpack.c.b16 %v1549, %v1546
        %v2006 = vpack.c.b16 %v1553, %v1550
        %v2007 = vpack.c.b16 %v1554, %v1551
        %v2008 = vpack.c.b16 %v1555, %v1552
        %v2009 = vpack.c.b16 %v1559, %v1556
        %v2010 = vpack.c.b16 %v1560, %v1557
        %v2011 = vpack.c.b16 %v1561, %v1558
        %v2012 = vpack.c.b16 %v1565, %v1562
        %v2013 = vpack.c.b16 %v1566, %v1563
        %v2014 = vpack.c.b16 %v1567, %v1564
        %v2015 = vpack.c.b16 %v1571, %v1568
        %v2016 = vpack.c.b16 %v1572, %v1569
        %v2017 = vpack.c.b16 %v1573, %v1570
        %v2018 = vpack.c.b16 %v1577, %v1574
        %v2019 = vpack.c.b16 %v1578, %v1575
        %v2020 = vpack.c.b16 %v1579, %v1576
        %v2021 = vpack.c.b16 %v1583, %v1580
        %v2022 = vpack.c.b16 %v1584, %v1581
        %v2023 = vpack.c.b16 %v1585, %v1582
        %v2024 = vpack.c.b16 %v1589, %v1586
        %v2025 = vpack.c.b16 %v1590, %v1587
        %v2026 = vpack.c.b16 %v1591, %v1588
        %v2027 = vpack.c.b16 %v1595, %v1592
        %v2028 = vpack.c.b16 %v1596, %v1593
        %v2029 = vpack.c.b16 %v1597, %v1594
        %v2030 = vpack.c.b16 %v1601, %v1598
        %v2031 = vpack.c.b16 %v1602, %v1599
        %v2032 = vpack.c.b16 %v1603, %v1600
        %v2033 = vpack.c.b16 %v1607, %v1604
        %v2034 = vpack.c.b16 %v1608, %v1605
        %v2035 = vpack.c.b16 %v1609, %v1606
        %v2036 = vpack.c.b16 %v1613, %v1610
        %v2037 = vpack.c.b16 %v1614, %v1611
        %v2038 = vpack.c.b16 %v1615, %v1612
        %v2039 = vpack.c.b16 %v1619, %v1616
        %v2040 = vpack.c.b16 %v1620, %v1617
        %v2041 = vpack.c.b16 %v1621, %v1618
        %v2042 = vpack.c.b16 %v1625, %v1622
        %v2043 = vpack.c.b16 %v1626, %v1623
        %v2044 = vpack.c.b16 %v1627, %v1624
        %v2045 = vpack.c.b16 %v1631, %v1628
        %v2046 = vpack.c.b16 %v1632, %v1629
        %v2047 = vpack.c.b16 %v1633, %v1630
        %v2048 = vpack.c.b16 %v1637, %v1634
        %v2049 = vpack.c.b16 %v1638, %v1635
        %v2050 = vpack.c.b16 %v1639, %v1636
        %v2051 = vpack.c.b16 %v1643, %v1640
        %v2052 = vpack.c.b16 %v1644, %v1641
        %v2053 = vpack.c.b16 %v1645, %v1642
        %v2054 = vpack.c.b16 %v1649, %v1646
        %v2055 = vpack.c.b16 %v1650, %v1647
        %v2056 = vpack.c.b16 %v1651, %v1648
        %v2057 = vpack.c.b16 %v1655, %v1652
        %v2058 = vpack.c.b16 %v1656, %v1653
        %v2059 = vpack.c.b16 %v1657, %v1654
        %v2060 = vpack.c.b16 %v1661, %v1658
        %v2061 = vpack.c.b16 %v1662, %v1659
        %v2062 = vpack.c.b16 %v1663, %v1660
        %v2063 = vpack.c.b16 %v1667, %v1664
        %v2064 = vpack.c.b16 %v1668, %v1665
        %v2065 = vpack.c.b16 %v1669, %v1666
        %v2066 = vpack.c.b16 %v1673, %v1670
        %v2067 = vpack.c.b16 %v1674, %v1671
        %v2068 = vpack.c.b16 %v1675, %v1672
        %v2069 = vpack.c.b16 %v1679, %v1676
        %v2070 = vpack.c.b16 %v1680, %v1677
        %v2071 = vpack.c.b16 %v1681, %v1678
        %v2072 = vpack.c.b16 %v1685, %v1682
        %v2073 = vpack.c.b16 %v1686, %v1683
        %v2074 = vpack.c.b16 %v1687, %v1684
        %v2075 = vpack.c.b16 %v1691, %v1688
        %v2076 = vpack.c.b16 %v1692, %v1689
        %v2077 = vpack.c.b16 %v1693, %v1690
        %v2078 = vpack.c.b16 %v1697, %v1694
        %v2079 = vpack.c.b16 %v1698, %v1695
        %v2080 = vpack.c.b16 %v1699, %v1696
        %v2081 = vpack.c.b16 %v1703, %v1700
        %v2082 = vpack.c.b16 %v1704, %v1701
        %v2083 = vpack.c.b16 %v1705, %v1702
        %v2084 = vpack.c.b16 %v1709, %v1706
        %v2085 = vpack.c.b16 %v1710, %v1707
        %v2086 = vpack.c.b16 %v1711, %v1708
        %v2087 = vpack.c.b16 %v1715, %v1712
        %v2088 = vpack.c.b16 %v1716, %v1713
        %v2089 = vpack.c.b16 %v1717, %v1714
        %v2090 = vpack.c.b16 %v1721, %v1718
        %v2091 = vpack.c.b16 %v1722, %v1719
        %v2092 = vpack.c.b16 %v1723, %v1720
        %v2093 = vpack.c.b16 %v1727, %v1724
        %v2094 = vpack.c.b16 %v1728, %v1725
        %v2095 = vpack.c.b16 %v1729, %v1726
        %v2096 = vpack.c.b16 %v1733, %v1730
        %v2097 = vpack.c.b16 %v1734, %v1731
        %v2098 = vpack.c.b16 %v1735, %v1732
        %v2099 = vpack.c.b16 %v1739, %v1736
        %v2100 = vpack.c.b16 %v1740, %v1737
        %v2101 = vpack.c.b16 %v1741, %v1738
        %v2102 = vpack.c.b16 %v1745, %v1742
        %v2103 = vpack.c.b16 %v1746, %v1743
        %v2104 = vpack.c.b16 %v1747, %v1744
        %v2105 = vpack.c.b16 %v1751, %v1748
        %v2106 = vpack.c.b16 %v1752, %v1749
        %v2107 = vpack.c.b16 %v1753, %v1750
        %v2108 = vpack.c.b16 %v1757, %v1754
        %v2109 = vpack.c.b16 %v1758, %v1755
        %v2110 = vpack.c.b16 %v1759, %v1756
        %v2111 = vpack.c.b16 %v1763, %v1760
        %v2112 = vpack.c.b16 %v1764, %v1761
        %v2113 = vpack.c.b16 %v1765, %v1762
        %v2114 = vpack.c.b16 %v1769, %v1766
        %v2115 = vpack.c.b16 %v1770, %v1767
        %v2116 = vpack.c.b16 %v1771, %v1768
        %v2117 = vpack.c.b16 %v1775, %v1772
        %v2118 = vpack.c.b16 %v1776, %v1773
        %v2119 = vpack.c.b16 %v1777, %v1774
        %v2120 = vpack.c.b16 %v1781, %v1778
        %v2121 = vpack.c.b16 %v1782, %v1779
        %v2122 = vpack.c.b16 %v1783, %v1780
        %v2123 = vpack.c.b16 %v1787, %v1784
        %v2124 = vpack.c.b16 %v1788, %v1785
        %v2125 = vpack.c.b16 %v1789, %v1786
        %v2126 = vpack.c.b16 %v1793, %v1790
        %v2127 = vpack.c.b16 %v1794, %v1791
        %v2128 = vpack.c.b16 %v1795, %v1792
        %v2129 = vpack.c.b16 %v1799, %v1796
        %v2130 = vpack.c.b16 %v1800, %v1797
        %v2131 = vpack.c.b16 %v1801, %v1798
        %v2132 = vpack.c.b16 %v1805, %v1802
        %v2133 = vpack.c.b16 %v1806, %v1803
        %v2134 = vpack.c.b16 %v1807, %v1804
        %v2135 = vpack.c.b16 %v1811, %v1808
        %v2136 = vpack.c.b16 %v1812, %v1809
        %v2137 = vpack.c.b16 %v1813, %v1810
        %vm2462 = vcmask 523264
        %v2464 = vsel %vm2462, %v720, 0
        %2466 = vmatprep.subr.bf16.mxu0 %v1815
        %2467 = vmatpush1.bf16.msra.mxu0 %v1814
        %2468 = vmatprep.subr.bf16.mxu0 %v1818
        %2469 = vmatpush1.bf16.msra.mxu0 %v1817
        %2470 = vmatprep.subr.bf16.mxu0 %v1821
        %2471 = vmatpush1.bf16.msra.mxu0 %v1820
        %2472 = vmatprep.subr.bf16.mxu0 %v1824
        %2473 = vmatpush1.bf16.msra.mxu0 %v1823
        %2474 = vmatprep.subr.bf16.mxu0 %v1827
        %2475 = vmatpush1.bf16.msra.mxu0 %v1826
        %2476 = vmatprep.subr.bf16.mxu0 %v1830
        %2477 = vmatpush1.bf16.msra.mxu0 %v1829
        %2478 = vmatprep.subr.bf16.mxu0 %v1833
        %2479 = vmatpush1.bf16.msra.mxu0 %v1832
        %2480 = vmatprep.subr.bf16.mxu0 %v1836
        %2481 = vmatpush1.bf16.msra.mxu0 %v1835
        %2482 = vmatprep.subr.bf16.mxu0 %v1839
        %2483 = vmatpush1.bf16.msra.mxu0 %v1838
        %2484 = vmatprep.subr.bf16.mxu0 %v1842
        %2485 = vmatpush1.bf16.msra.mxu0 %v1841
        %2486 = vmatprep.subr.bf16.mxu0 %v1845
        %2487 = vmatpush1.bf16.msra.mxu0 %v1844
        %2488 = vmatprep.subr.bf16.mxu0 %v1848
        %2489 = vmatpush1.bf16.msra.mxu0 %v1847
        %2490 = vmatprep.subr.bf16.mxu0 %v1851
        %2491 = vmatpush1.bf16.msra.mxu0 %v1850
        %2492 = vmatprep.subr.bf16.mxu0 %v1854
        %2493 = vmatpush1.bf16.msra.mxu0 %v1853
        %2494 = vmatprep.subr.bf16.mxu0 %v1857
        %2495 = vmatpush1.bf16.msra.mxu0 %v1856
        %2496 = vmatprep.subr.bf16.mxu0 %v1860
        %2497 = vmatpush1.bf16.msra.mxu0 %v1859
        %2498 = vmatprep.mubr.bf16.mxu0 %v708
        %2499 = vmatmul.mubr.bf16.gmra.mrb[0].mxu0 %v707
        %v2500 = vpop.f32.mrb[0].mxu0
        %v2501 = vadd.f32 %v653, %v2500
        %v2502 = vpop.f32.mrb[0].mxu0
        %v2503 = vadd.f32 %v657, %v2502
        %v2504 = vpop.f32.mrb[0].mxu0
        %v2505 = vadd.f32 %v653, %v2504
        %v2506 = vpop.f32.mrb[0].mxu0
        %v2507 = vadd.f32 %v657, %v2506
        %2508 = vdwg.mxu0
        %2509 = vmatprep.subr.bf16.mxu0 %v1863
        %2510 = vmatpush1.bf16.msra.mxu0 %v1862
        %2511 = vmatprep.subr.bf16.mxu0 %v1866
        %2512 = vmatpush1.bf16.msra.mxu0 %v1865
        %2513 = vmatprep.subr.bf16.mxu0 %v1869
        %2514 = vmatpush1.bf16.msra.mxu0 %v1868
        %2515 = vmatprep.subr.bf16.mxu0 %v1872
        %2516 = vmatpush1.bf16.msra.mxu0 %v1871
        %2517 = vmatprep.subr.bf16.mxu0 %v1875
        %2518 = vmatpush1.bf16.msra.mxu0 %v1874
        %2519 = vmatprep.subr.bf16.mxu0 %v1878
        %2520 = vmatpush1.bf16.msra.mxu0 %v1877
        %2521 = vmatprep.subr.bf16.mxu0 %v1881
        %2522 = vmatpush1.bf16.msra.mxu0 %v1880
        %2523 = vmatprep.subr.bf16.mxu0 %v1884
        %2524 = vmatpush1.bf16.msra.mxu0 %v1883
        %2525 = vmatprep.subr.bf16.mxu0 %v1887
        %2526 = vmatpush1.bf16.msra.mxu0 %v1886
        %2527 = vmatprep.subr.bf16.mxu0 %v1890
        %2528 = vmatpush1.bf16.msra.mxu0 %v1889
        %2529 = vmatprep.subr.bf16.mxu0 %v1893
        %2530 = vmatpush1.bf16.msra.mxu0 %v1892
        %2531 = vmatprep.subr.bf16.mxu0 %v1896
        %2532 = vmatpush1.bf16.msra.mxu0 %v1895
        %2533 = vmatprep.subr.bf16.mxu0 %v1899
        %2534 = vmatpush1.bf16.msra.mxu0 %v1898
        %2535 = vmatprep.subr.bf16.mxu0 %v1902
        %2536 = vmatpush1.bf16.msra.mxu0 %v1901
        %2537 = vmatprep.subr.bf16.mxu0 %v1905
        %2538 = vmatpush1.bf16.msra.mxu0 %v1904
        %2539 = vmatprep.subr.bf16.mxu0 %v1908
        %2540 = vmatpush1.bf16.msra.mxu0 %v1907
        %2541 = vmatprep.mubr.bf16.mxu0 %v710
        %2542 = vmatmul.mubr.bf16.gmra.mrb[0].mxu0 %v709
        %v2543 = vpop.f32.mrb[0].mxu0
        %v2544 = vadd.f32 %v2501, %v2543
        %v2545 = vpop.f32.mrb[0].mxu0
        %v2546 = vadd.f32 %v2503, %v2545
        %v2547 = vpop.f32.mrb[0].mxu0
        %v2548 = vadd.f32 %v2505, %v2547
        %v2549 = vpop.f32.mrb[0].mxu0
        %v2550 = vadd.f32 %v2507, %v2549
        %2551 = vdwg.mxu0
        %2552 = vmatprep.subr.bf16.mxu0 %v1911
        %2553 = vmatpush1.bf16.msra.mxu0 %v1910
        %2554 = vmatprep.subr.bf16.mxu0 %v1914
        %2555 = vmatpush1.bf16.msra.mxu0 %v1913
        %2556 = vmatprep.subr.bf16.mxu0 %v1917
        %2557 = vmatpush1.bf16.msra.mxu0 %v1916
        %2558 = vmatprep.subr.bf16.mxu0 %v1920
        %2559 = vmatpush1.bf16.msra.mxu0 %v1919
        %2560 = vmatprep.subr.bf16.mxu0 %v1923
        %2561 = vmatpush1.bf16.msra.mxu0 %v1922
        %2562 = vmatprep.subr.bf16.mxu0 %v1926
        %2563 = vmatpush1.bf16.msra.mxu0 %v1925
        %2564 = vmatprep.subr.bf16.mxu0 %v1929
        %2565 = vmatpush1.bf16.msra.mxu0 %v1928
        %2566 = vmatprep.subr.bf16.mxu0 %v1932
        %2567 = vmatpush1.bf16.msra.mxu0 %v1931
        %2568 = vmatprep.subr.bf16.mxu0 %v1935
        %2569 = vmatpush1.bf16.msra.mxu0 %v1934
        %2570 = vmatprep.subr.bf16.mxu0 %v1938
        %2571 = vmatpush1.bf16.msra.mxu0 %v1937
        %2572 = vmatprep.subr.bf16.mxu0 %v1941
        %2573 = vmatpush1.bf16.msra.mxu0 %v1940
        %2574 = vmatprep.subr.bf16.mxu0 %v1944
        %2575 = vmatpush1.bf16.msra.mxu0 %v1943
        %2576 = vmatprep.subr.bf16.mxu0 %v1947
        %2577 = vmatpush1.bf16.msra.mxu0 %v1946
        %2578 = vmatprep.subr.bf16.mxu0 %v1950
        %2579 = vmatpush1.bf16.msra.mxu0 %v1949
        %2580 = vmatprep.subr.bf16.mxu0 %v1953
        %2581 = vmatpush1.bf16.msra.mxu0 %v1952
        %2582 = vmatprep.subr.bf16.mxu0 %v1956
        %2583 = vmatpush1.bf16.msra.mxu0 %v1955
        %2584 = vmatprep.mubr.bf16.mxu0 %v712
        %2585 = vmatmul.mubr.bf16.gmra.mrb[0].mxu0 %v711
        %v2586 = vpop.f32.mrb[0].mxu0
        %v2587 = vadd.f32 %v2544, %v2586
        %v2588 = vpop.f32.mrb[0].mxu0
        %v2589 = vadd.f32 %v2546, %v2588
        %v2590 = vpop.f32.mrb[0].mxu0
        %v2591 = vadd.f32 %v2548, %v2590
        %v2592 = vpop.f32.mrb[0].mxu0
        %v2593 = vadd.f32 %v2550, %v2592
        %2594 = vdwg.mxu0
        %2595 = vmatprep.subr.bf16.mxu0 %v1959
        %2596 = vmatpush1.bf16.msra.mxu0 %v1958
        %2597 = vmatprep.subr.bf16.mxu0 %v1962
        %2598 = vmatpush1.bf16.msra.mxu0 %v1961
        %2599 = vmatprep.subr.bf16.mxu0 %v1965
        %2600 = vmatpush1.bf16.msra.mxu0 %v1964
        %2601 = vmatprep.subr.bf16.mxu0 %v1968
        %2602 = vmatpush1.bf16.msra.mxu0 %v1967
        %2603 = vmatprep.subr.bf16.mxu0 %v1971
        %2604 = vmatpush1.bf16.msra.mxu0 %v1970
        %2605 = vmatprep.subr.bf16.mxu0 %v1974
        %2606 = vmatpush1.bf16.msra.mxu0 %v1973
        %2607 = vmatprep.subr.bf16.mxu0 %v1977
        %2608 = vmatpush1.bf16.msra.mxu0 %v1976
        %2609 = vmatprep.subr.bf16.mxu0 %v1980
        %2610 = vmatpush1.bf16.msra.mxu0 %v1979
        %2611 = vmatprep.subr.bf16.mxu0 %v1983
        %2612 = vmatpush1.bf16.msra.mxu0 %v1982
        %2613 = vmatprep.subr.bf16.mxu0 %v1986
        %2614 = vmatpush1.bf16.msra.mxu0 %v1985
        %2615 = vmatprep.subr.bf16.mxu0 %v1989
        %2616 = vmatpush1.bf16.msra.mxu0 %v1988
        %2617 = vmatprep.subr.bf16.mxu0 %v1992
        %2618 = vmatpush1.bf16.msra.mxu0 %v1991
        %2619 = vmatprep.subr.bf16.mxu0 %v1995
        %2620 = vmatpush1.bf16.msra.mxu0 %v1994
        %2621 = vmatprep.subr.bf16.mxu0 %v1998
        %2622 = vmatpush1.bf16.msra.mxu0 %v1997
        %2623 = vmatprep.subr.bf16.mxu0 %v2001
        %2624 = vmatpush1.bf16.msra.mxu0 %v2000
        %2625 = vmatprep.subr.bf16.mxu0 %v2004
        %2626 = vmatpush1.bf16.msra.mxu0 %v2003
        %2627 = vmatprep.mubr.bf16.mxu0 %v714
        %2628 = vmatmul.mubr.bf16.gmra.mrb[0].mxu0 %v713
        %v2629 = vpop.f32.mrb[0].mxu0
        %v2630 = vadd.f32 %v2587, %v2629
        %v2631 = vpop.f32.mrb[0].mxu0
        %v2632 = vadd.f32 %v2589, %v2631
        %v2633 = vpop.f32.mrb[0].mxu0
        %v2634 = vadd.f32 %v2591, %v2633
        %v2635 = vpop.f32.mrb[0].mxu0
        %v2636 = vadd.f32 %v2593, %v2635
        %2637 = vdwg.mxu0
        %2638 = vmatprep.subr.bf16.mxu0 %v2007
        %2639 = vmatpush1.bf16.msra.mxu0 %v2006
        %2640 = vmatprep.subr.bf16.mxu0 %v2010
        %2641 = vmatpush1.bf16.msra.mxu0 %v2009
        %2642 = vmatprep.subr.bf16.mxu0 %v2013
        %2643 = vmatpush1.bf16.msra.mxu0 %v2012
        %2644 = vmatprep.subr.bf16.mxu0 %v2016
        %2645 = vmatpush1.bf16.msra.mxu0 %v2015
        %2646 = vmatprep.subr.bf16.mxu0 %v2019
        %2647 = vmatpush1.bf16.msra.mxu0 %v2018
        %2648 = vmatprep.subr.bf16.mxu0 %v2022
        %2649 = vmatpush1.bf16.msra.mxu0 %v2021
        %2650 = vmatprep.subr.bf16.mxu0 %v2025
        %2651 = vmatpush1.bf16.msra.mxu0 %v2024
        %2652 = vmatprep.subr.bf16.mxu0 %v2028
        %2653 = vmatpush1.bf16.msra.mxu0 %v2027
        %2654 = vmatprep.subr.bf16.mxu0 %v2031
        %2655 = vmatpush1.bf16.msra.mxu0 %v2030
        %2656 = vmatprep.subr.bf16.mxu0 %v2034
        %2657 = vmatpush1.bf16.msra.mxu0 %v2033
        %2658 = vmatprep.subr.bf16.mxu0 %v2037
        %2659 = vmatpush1.bf16.msra.mxu0 %v2036
        %2660 = vmatprep.subr.bf16.mxu0 %v2040
        %2661 = vmatpush1.bf16.msra.mxu0 %v2039
        %2662 = vmatprep.subr.bf16.mxu0 %v2043
        %2663 = vmatpush1.bf16.msra.mxu0 %v2042
        %2664 = vmatprep.subr.bf16.mxu0 %v2046
        %2665 = vmatpush1.bf16.msra.mxu0 %v2045
        %2666 = vmatprep.subr.bf16.mxu0 %v2049
        %2667 = vmatpush1.bf16.msra.mxu0 %v2048
        %2668 = vmatprep.subr.bf16.mxu0 %v2052
        %2669 = vmatpush1.bf16.msra.mxu0 %v2051
        %2670 = vmatprep.mubr.bf16.mxu0 %v716
        %2671 = vmatmul.mubr.bf16.gmra.mrb[0].mxu0 %v715
        %v2672 = vpop.f32.mrb[0].mxu0
        %v2673 = vadd.f32 %v2630, %v2672
        %v2674 = vpop.f32.mrb[0].mxu0
        %v2675 = vadd.f32 %v2632, %v2674
        %v2676 = vpop.f32.mrb[0].mxu0
        %v2677 = vadd.f32 %v2634, %v2676
        %v2678 = vpop.f32.mrb[0].mxu0
        %v2679 = vadd.f32 %v2636, %v2678
        %2680 = vdwg.mxu0
        %2681 = vmatprep.subr.bf16.mxu0 %v2055
        %2682 = vmatpush1.bf16.msra.mxu0 %v2054
        %2683 = vmatprep.subr.bf16.mxu0 %v2058
        %2684 = vmatpush1.bf16.msra.mxu0 %v2057
        %2685 = vmatprep.subr.bf16.mxu0 %v2061
        %2686 = vmatpush1.bf16.msra.mxu0 %v2060
        %2687 = vmatprep.subr.bf16.mxu0 %v2064
        %2688 = vmatpush1.bf16.msra.mxu0 %v2063
        %2689 = vmatprep.subr.bf16.mxu0 %v2067
        %2690 = vmatpush1.bf16.msra.mxu0 %v2066
        %2691 = vmatprep.subr.bf16.mxu0 %v2070
        %2692 = vmatpush1.bf16.msra.mxu0 %v2069
        %2693 = vmatprep.subr.bf16.mxu0 %v2073
        %2694 = vmatpush1.bf16.msra.mxu0 %v2072
        %2695 = vmatprep.subr.bf16.mxu0 %v2076
        %2696 = vmatpush1.bf16.msra.mxu0 %v2075
        %2697 = vmatprep.subr.bf16.mxu0 %v2079
        %2698 = vmatpush1.bf16.msra.mxu0 %v2078
        %2699 = vmatprep.subr.bf16.mxu0 %v2082
        %2700 = vmatpush1.bf16.msra.mxu0 %v2081
        %2701 = vmatprep.subr.bf16.mxu0 %v2085
        %2702 = vmatpush1.bf16.msra.mxu0 %v2084
        %2703 = vmatprep.subr.bf16.mxu0 %v2088
        %2704 = vmatpush1.bf16.msra.mxu0 %v2087
        %2705 = vmatprep.subr.bf16.mxu0 %v2091
        %2706 = vmatpush1.bf16.msra.mxu0 %v2090
        %2707 = vmatprep.subr.bf16.mxu0 %v2094
        %2708 = vmatpush1.bf16.msra.mxu0 %v2093
        %2709 = vmatprep.subr.bf16.mxu0 %v2097
        %2710 = vmatpush1.bf16.msra.mxu0 %v2096
        %2711 = vmatprep.subr.bf16.mxu0 %v2100
        %2712 = vmatpush1.bf16.msra.mxu0 %v2099
        %2713 = vmatprep.mubr.bf16.mxu0 %v718
        %2714 = vmatmul.mubr.bf16.gmra.mrb[0].mxu0 %v717
        %v2715 = vpop.f32.mrb[0].mxu0
        %v2716 = vadd.f32 %v2673, %v2715
        %v2717 = vpop.f32.mrb[0].mxu0
        %v2718 = vadd.f32 %v2675, %v2717
        %v2719 = vpop.f32.mrb[0].mxu0
        %v2720 = vadd.f32 %v2677, %v2719
        %v2721 = vpop.f32.mrb[0].mxu0
        %v2722 = vadd.f32 %v2679, %v2721
        %2723 = vdwg.mxu0
        %2724 = vmatprep.subr.bf16.mxu0 %v2103
        %2725 = vmatpush1.bf16.msra.mxu0 %v2102
        %2726 = vmatprep.subr.bf16.mxu0 %v2106
        %2727 = vmatpush1.bf16.msra.mxu0 %v2105
        %2728 = vmatprep.subr.bf16.mxu0 %v2109
        %2729 = vmatpush1.bf16.msra.mxu0 %v2108
        %2730 = vmatprep.subr.bf16.mxu0 %v2112
        %2731 = vmatpush1.bf16.msra.mxu0 %v2111
        %2732 = vmatprep.subr.bf16.mxu0 %v2115
        %2733 = vmatpush1.bf16.msra.mxu0 %v2114
        %2734 = vmatprep.subr.bf16.mxu0 %v2118
        %2735 = vmatpush1.bf16.msra.mxu0 %v2117
        %2736 = vmatprep.subr.bf16.mxu0 %v2121
        %2737 = vmatpush1.bf16.msra.mxu0 %v2120
        %2738 = vmatprep.subr.bf16.mxu0 %v2124
        %2739 = vmatpush1.bf16.msra.mxu0 %v2123
        %2740 = vmatprep.subr.bf16.mxu0 %v2127
        %2741 = vmatpush1.bf16.msra.mxu0 %v2126
        %2742 = vmatprep.subr.bf16.mxu0 %v2130
        %2743 = vmatpush1.bf16.msra.mxu0 %v2129
        %2744 = vmatprep.subr.bf16.mxu0 %v2133
        %2745 = vmatpush1.bf16.msra.mxu0 %v2132
        %2746 = vmatprep.subr.bf16.mxu0 %v2136
        %2747 = vmatpush1.bf16.msra.mxu0 %v2135
        %2748 = vmatprep.subr.bf16.mxu0 0
        %2749 = vmatpush1.bf16.msra.mxu0 0
        %2750 = vmatprep.subr.bf16.mxu0 0
        %2751 = vmatpush1.bf16.msra.mxu0 0
        %2752 = vmatprep.subr.bf16.mxu0 0
        %2753 = vmatpush1.bf16.msra.mxu0 0
        %2754 = vmatprep.subr.bf16.mxu0 0
        %2755 = vmatpush1.bf16.msra.mxu0 0
        %2756 = vmatprep.mubr.bf16.mxu0 %v2464
        %2757 = vmatmul.mubr.bf16.gmra.mrb[0].mxu0 %v719
        %v2758 = vpop.f32.mrb[0].mxu0
        %v2759 = vadd.f32 %v2716, %v2758
        %v2760 = vpop.f32.mrb[0].mxu0
        %v2761 = vadd.f32 %v2718, %v2760
        %v2762 = vpop.f32.mrb[0].mxu0
        %v2763 = vadd.f32 %v2720, %v2762
        %v2764 = vpop.f32.mrb[0].mxu0
        %v2765 = vadd.f32 %v2722, %v2764
        %2766 = vdwg.mxu0
        %2767 = vmatprep.subr.bf16.mxu0 0
        %2768 = vmatpush1.bf16.msra.mxu0 %v1816
        %2769 = vmatprep.subr.bf16.mxu0 0
        %2770 = vmatpush1.bf16.msra.mxu0 %v1819
        %2771 = vmatprep.subr.bf16.mxu0 0
        %2772 = vmatpush1.bf16.msra.mxu0 %v1822
        %2773 = vmatprep.subr.bf16.mxu0 0
        %2774 = vmatpush1.bf16.msra.mxu0 %v1825
        %2775 = vmatprep.subr.bf16.mxu0 0
        %2776 = vmatpush1.bf16.msra.mxu0 %v1828
        %2777 = vmatprep.subr.bf16.mxu0 0
        %2778 = vmatpush1.bf16.msra.mxu0 %v1831
        %2779 = vmatprep.subr.bf16.mxu0 0
        %2780 = vmatpush1.bf16.msra.mxu0 %v1834
        %2781 = vmatprep.subr.bf16.mxu0 0
        %2782 = vmatpush1.bf16.msra.mxu0 %v1837
        %2783 = vmatprep.subr.bf16.mxu0 0
        %2784 = vmatpush1.bf16.msra.mxu0 %v1840
        %2785 = vmatprep.subr.bf16.mxu0 0
        %2786 = vmatpush1.bf16.msra.mxu0 %v1843
        %2787 = vmatprep.subr.bf16.mxu0 0
        %2788 = vmatpush1.bf16.msra.mxu0 %v1846
        %2789 = vmatprep.subr.bf16.mxu0 0
        %2790 = vmatpush1.bf16.msra.mxu0 %v1849
        %2791 = vmatprep.subr.bf16.mxu0 0
        %2792 = vmatpush1.bf16.msra.mxu0 %v1852
        %2793 = vmatprep.subr.bf16.mxu0 0
        %2794 = vmatpush1.bf16.msra.mxu0 %v1855
        %2795 = vmatprep.subr.bf16.mxu0 0
        %2796 = vmatpush1.bf16.msra.mxu0 %v1858
        %2797 = vmatprep.subr.bf16.mxu0 0
        %2798 = vmatpush1.bf16.msra.mxu0 %v1861
        %2799 = vmatprep.mubr.bf16.mxu0 %v708
        %2800 = vmatmul.mubr.bf16.gmra.mrb[0].mxu0 %v707
        %v2801 = vpop.f32.mrb[0].mxu0
        %v2802 = vadd.f32 %v661, %v2801
        %v2803 = vpop.f32.mrb[0].mxu0
        %v2804 = vpop.f32.mrb[0].mxu0
        %v2805 = vadd.f32 %v661, %v2804
        %v2806 = vpop.f32.mrb[0].mxu0
        %2807 = vdwg.mxu0
        %2808 = vmatprep.subr.bf16.mxu0 0
        %2809 = vmatpush1.bf16.msra.mxu0 %v1864
        %2810 = vmatprep.subr.bf16.mxu0 0
        %2811 = vmatpush1.bf16.msra.mxu0 %v1867
        %2812 = vmatprep.subr.bf16.mxu0 0
        %2813 = vmatpush1.bf16.msra.mxu0 %v1870
        %2814 = vmatprep.subr.bf16.mxu0 0
        %2815 = vmatpush1.bf16.msra.mxu0 %v1873
        %2816 = vmatprep.subr.bf16.mxu0 0
        %2817 = vmatpush1.bf16.msra.mxu0 %v1876
        %2818 = vmatprep.subr.bf16.mxu0 0
        %2819 = vmatpush1.bf16.msra.mxu0 %v1879
        %2820 = vmatprep.subr.bf16.mxu0 0
        %2821 = vmatpush1.bf16.msra.mxu0 %v1882
        %2822 = vmatprep.subr.bf16.mxu0 0
        %2823 = vmatpush1.bf16.msra.mxu0 %v1885
        %2824 = vmatprep.subr.bf16.mxu0 0
        %2825 = vmatpush1.bf16.msra.mxu0 %v1888
        %2826 = vmatprep.subr.bf16.mxu0 0
        %2827 = vmatpush1.bf16.msra.mxu0 %v1891
        %2828 = vmatprep.subr.bf16.mxu0 0
        %2829 = vmatpush1.bf16.msra.mxu0 %v1894
        %2830 = vmatprep.subr.bf16.mxu0 0
        %2831 = vmatpush1.bf16.msra.mxu0 %v1897
        %2832 = vmatprep.subr.bf16.mxu0 0
        %2833 = vmatpush1.bf16.msra.mxu0 %v1900
        %2834 = vmatprep.subr.bf16.mxu0 0
        %2835 = vmatpush1.bf16.msra.mxu0 %v1903
        %2836 = vmatprep.subr.bf16.mxu0 0
        %2837 = vmatpush1.bf16.msra.mxu0 %v1906
        %2838 = vmatprep.subr.bf16.mxu0 0
        %2839 = vmatpush1.bf16.msra.mxu0 %v1909
        %2840 = vmatprep.mubr.bf16.mxu0 %v710
        %2841 = vmatmul.mubr.bf16.gmra.mrb[0].mxu0 %v709
        %v2842 = vpop.f32.mrb[0].mxu0
        %v2843 = vadd.f32 %v2802, %v2842
        %v2844 = vpop.f32.mrb[0].mxu0
        %v2845 = vpop.f32.mrb[0].mxu0
        %v2846 = vadd.f32 %v2805, %v2845
        %v2847 = vpop.f32.mrb[0].mxu0
        %2848 = vdwg.mxu0
        %2849 = vmatprep.subr.bf16.mxu0 0
        %2850 = vmatpush1.bf16.msra.mxu0 %v1912
        %2851 = vmatprep.subr.bf16.mxu0 0
        %2852 = vmatpush1.bf16.msra.mxu0 %v1915
        %2853 = vmatprep.subr.bf16.mxu0 0
        %2854 = vmatpush1.bf16.msra.mxu0 %v1918
        %2855 = vmatprep.subr.bf16.mxu0 0
        %2856 = vmatpush1.bf16.msra.mxu0 %v1921
        %2857 = vmatprep.subr.bf16.mxu0 0
        %2858 = vmatpush1.bf16.msra.mxu0 %v1924
        %2859 = vmatprep.subr.bf16.mxu0 0
        %2860 = vmatpush1.bf16.msra.mxu0 %v1927
        %2861 = vmatprep.subr.bf16.mxu0 0
        %2862 = vmatpush1.bf16.msra.mxu0 %v1930
        %2863 = vmatprep.subr.bf16.mxu0 0
        %2864 = vmatpush1.bf16.msra.mxu0 %v1933
        %2865 = vmatprep.subr.bf16.mxu0 0
        %2866 = vmatpush1.bf16.msra.mxu0 %v1936
        %2867 = vmatprep.subr.bf16.mxu0 0
        %2868 = vmatpush1.bf16.msra.mxu0 %v1939
        %2869 = vmatprep.subr.bf16.mxu0 0
        %2870 = vmatpush1.bf16.msra.mxu0 %v1942
        %2871 = vmatprep.subr.bf16.mxu0 0
        %2872 = vmatpush1.bf16.msra.mxu0 %v1945
        %2873 = vmatprep.subr.bf16.mxu0 0
        %2874 = vmatpush1.bf16.msra.mxu0 %v1948
        %2875 = vmatprep.subr.bf16.mxu0 0
        %2876 = vmatpush1.bf16.msra.mxu0 %v1951
        %2877 = vmatprep.subr.bf16.mxu0 0
        %2878 = vmatpush1.bf16.msra.mxu0 %v1954
        %2879 = vmatprep.subr.bf16.mxu0 0
        %2880 = vmatpush1.bf16.msra.mxu0 %v1957
        %2881 = vmatprep.mubr.bf16.mxu0 %v712
        %2882 = vmatmul.mubr.bf16.gmra.mrb[0].mxu0 %v711
        %v2883 = vpop.f32.mrb[0].mxu0
        %v2884 = vadd.f32 %v2843, %v2883
        %v2885 = vpop.f32.mrb[0].mxu0
        %v2886 = vpop.f32.mrb[0].mxu0
        %v2887 = vadd.f32 %v2846, %v2886
        %v2888 = vpop.f32.mrb[0].mxu0
        %2889 = vdwg.mxu0
        %2890 = vmatprep.subr.bf16.mxu0 0
        %2891 = vmatpush1.bf16.msra.mxu0 %v1960
        %2892 = vmatprep.subr.bf16.mxu0 0
        %2893 = vmatpush1.bf16.msra.mxu0 %v1963
        %2894 = vmatprep.subr.bf16.mxu0 0
        %2895 = vmatpush1.bf16.msra.mxu0 %v1966
        %2896 = vmatprep.subr.bf16.mxu0 0
        %2897 = vmatpush1.bf16.msra.mxu0 %v1969
        %2898 = vmatprep.subr.bf16.mxu0 0
        %2899 = vmatpush1.bf16.msra.mxu0 %v1972
        %2900 = vmatprep.subr.bf16.mxu0 0
        %2901 = vmatpush1.bf16.msra.mxu0 %v1975
        %2902 = vmatprep.subr.bf16.mxu0 0
        %2903 = vmatpush1.bf16.msra.mxu0 %v1978
        %2904 = vmatprep.subr.bf16.mxu0 0
        %2905 = vmatpush1.bf16.msra.mxu0 %v1981
        %2906 = vmatprep.subr.bf16.mxu0 0
        %2907 = vmatpush1.bf16.msra.mxu0 %v1984
        %2908 = vmatprep.subr.bf16.mxu0 0
        %2909 = vmatpush1.bf16.msra.mxu0 %v1987
        %2910 = vmatprep.subr.bf16.mxu0 0
        %2911 = vmatpush1.bf16.msra.mxu0 %v1990
        %2912 = vmatprep.subr.bf16.mxu0 0
        %2913 = vmatpush1.bf16.msra.mxu0 %v1993
        %2914 = vmatprep.subr.bf16.mxu0 0
        %2915 = vmatpush1.bf16.msra.mxu0 %v1996
        %2916 = vmatprep.subr.bf16.mxu0 0
        %2917 = vmatpush1.bf16.msra.mxu0 %v1999
        %2918 = vmatprep.subr.bf16.mxu0 0
        %2919 = vmatpush1.bf16.msra.mxu0 %v2002
        %2920 = vmatprep.subr.bf16.mxu0 0
        %2921 = vmatpush1.bf16.msra.mxu0 %v2005
        %2922 = vmatprep.mubr.bf16.mxu0 %v714
        %2923 = vmatmul.mubr.bf16.gmra.mrb[0].mxu0 %v713
        %v2924 = vpop.f32.mrb[0].mxu0
        %v2925 = vadd.f32 %v2884, %v2924
        %v2926 = vpop.f32.mrb[0].mxu0
        %v2927 = vpop.f32.mrb[0].mxu0
        %v2928 = vadd.f32 %v2887, %v2927
        %v2929 = vpop.f32.mrb[0].mxu0
        %2930 = vdwg.mxu0
        %2931 = vmatprep.subr.bf16.mxu0 0
        %2932 = vmatpush1.bf16.msra.mxu0 %v2008
        %2933 = vmatprep.subr.bf16.mxu0 0
        %2934 = vmatpush1.bf16.msra.mxu0 %v2011
        %2935 = vmatprep.subr.bf16.mxu0 0
        %2936 = vmatpush1.bf16.msra.mxu0 %v2014
        %2937 = vmatprep.subr.bf16.mxu0 0
        %2938 = vmatpush1.bf16.msra.mxu0 %v2017
        %2939 = vmatprep.subr.bf16.mxu0 0
        %2940 = vmatpush1.bf16.msra.mxu0 %v2020
        %2941 = vmatprep.subr.bf16.mxu0 0
        %2942 = vmatpush1.bf16.msra.mxu0 %v2023
        %2943 = vmatprep.subr.bf16.mxu0 0
        %2944 = vmatpush1.bf16.msra.mxu0 %v2026
        %2945 = vmatprep.subr.bf16.mxu0 0
        %2946 = vmatpush1.bf16.msra.mxu0 %v2029
        %2947 = vmatprep.subr.bf16.mxu0 0
        %2948 = vmatpush1.bf16.msra.mxu0 %v2032
        %2949 = vmatprep.subr.bf16.mxu0 0
        %2950 = vmatpush1.bf16.msra.mxu0 %v2035
        %2951 = vmatprep.subr.bf16.mxu0 0
        %2952 = vmatpush1.bf16.msra.mxu0 %v2038
        %2953 = vmatprep.subr.bf16.mxu0 0
        %2954 = vmatpush1.bf16.msra.mxu0 %v2041
        %2955 = vmatprep.subr.bf16.mxu0 0
        %2956 = vmatpush1.bf16.msra.mxu0 %v2044
        %2957 = vmatprep.subr.bf16.mxu0 0
        %2958 = vmatpush1.bf16.msra.mxu0 %v2047
        %2959 = vmatprep.subr.bf16.mxu0 0
        %2960 = vmatpush1.bf16.msra.mxu0 %v2050
        %2961 = vmatprep.subr.bf16.mxu0 0
        %2962 = vmatpush1.bf16.msra.mxu0 %v2053
        %2963 = vmatprep.mubr.bf16.mxu0 %v716
        %2964 = vmatmul.mubr.bf16.gmra.mrb[0].mxu0 %v715
        %v2965 = vpop.f32.mrb[0].mxu0
        %v2966 = vadd.f32 %v2925, %v2965
        %v2967 = vpop.f32.mrb[0].mxu0
        %v2968 = vpop.f32.mrb[0].mxu0
        %v2969 = vadd.f32 %v2928, %v2968
        %v2970 = vpop.f32.mrb[0].mxu0
        %2971 = vdwg.mxu0
        %2972 = vmatprep.subr.bf16.mxu0 0
        %2973 = vmatpush1.bf16.msra.mxu0 %v2056
        %2974 = vmatprep.subr.bf16.mxu0 0
        %2975 = vmatpush1.bf16.msra.mxu0 %v2059
        %2976 = vmatprep.subr.bf16.mxu0 0
        %2977 = vmatpush1.bf16.msra.mxu0 %v2062
        %2978 = vmatprep.subr.bf16.mxu0 0
        %2979 = vmatpush1.bf16.msra.mxu0 %v2065
        %2980 = vmatprep.subr.bf16.mxu0 0
        %2981 = vmatpush1.bf16.msra.mxu0 %v2068
        %2982 = vmatprep.subr.bf16.mxu0 0
        %2983 = vmatpush1.bf16.msra.mxu0 %v2071
        %2984 = vmatprep.subr.bf16.mxu0 0
        %2985 = vmatpush1.bf16.msra.mxu0 %v2074
        %2986 = vmatprep.subr.bf16.mxu0 0
        %2987 = vmatpush1.bf16.msra.mxu0 %v2077
        %2988 = vmatprep.subr.bf16.mxu0 0
        %2989 = vmatpush1.bf16.msra.mxu0 %v2080
        %2990 = vmatprep.subr.bf16.mxu0 0
        %2991 = vmatpush1.bf16.msra.mxu0 %v2083
        %2992 = vmatprep.subr.bf16.mxu0 0
        %2993 = vmatpush1.bf16.msra.mxu0 %v2086
        %2994 = vmatprep.subr.bf16.mxu0 0
        %2995 = vmatpush1.bf16.msra.mxu0 %v2089
        %2996 = vmatprep.subr.bf16.mxu0 0
        %2997 = vmatpush1.bf16.msra.mxu0 %v2092
        %2998 = vmatprep.subr.bf16.mxu0 0
        %2999 = vmatpush1.bf16.msra.mxu0 %v2095
        %3000 = vmatprep.subr.bf16.mxu0 0
        %3001 = vmatpush1.bf16.msra.mxu0 %v2098
        %3002 = vmatprep.subr.bf16.mxu0 0
        %3003 = vmatpush1.bf16.msra.mxu0 %v2101
        %3004 = vmatprep.mubr.bf16.mxu0 %v718
        %3005 = vmatmul.mubr.bf16.gmra.mrb[0].mxu0 %v717
        %v3006 = vpop.f32.mrb[0].mxu0
        %v3007 = vadd.f32 %v2966, %v3006
        %v3008 = vpop.f32.mrb[0].mxu0
        %v3009 = vpop.f32.mrb[0].mxu0
        %v3010 = vadd.f32 %v2969, %v3009
        %v3011 = vpop.f32.mrb[0].mxu0
        %3012 = vdwg.mxu0
        %3013 = vmatprep.subr.bf16.mxu0 0
        %3014 = vmatpush1.bf16.msra.mxu0 %v2104
        %3015 = vmatprep.subr.bf16.mxu0 0
        %3016 = vmatpush1.bf16.msra.mxu0 %v2107
        %3017 = vmatprep.subr.bf16.mxu0 0
        %3018 = vmatpush1.bf16.msra.mxu0 %v2110
        %3019 = vmatprep.subr.bf16.mxu0 0
        %3020 = vmatpush1.bf16.msra.mxu0 %v2113
        %3021 = vmatprep.subr.bf16.mxu0 0
        %3022 = vmatpush1.bf16.msra.mxu0 %v2116
        %3023 = vmatprep.subr.bf16.mxu0 0
        %3024 = vmatpush1.bf16.msra.mxu0 %v2119
        %3025 = vmatprep.subr.bf16.mxu0 0
        %3026 = vmatpush1.bf16.msra.mxu0 %v2122
        %3027 = vmatprep.subr.bf16.mxu0 0
        %3028 = vmatpush1.bf16.msra.mxu0 %v2125
        %3029 = vmatprep.subr.bf16.mxu0 0
        %3030 = vmatpush1.bf16.msra.mxu0 %v2128
        %3031 = vmatprep.subr.bf16.mxu0 0
        %3032 = vmatpush1.bf16.msra.mxu0 %v2131
        %3033 = vmatprep.subr.bf16.mxu0 0
        %3034 = vmatpush1.bf16.msra.mxu0 %v2134
        %3035 = vmatprep.subr.bf16.mxu0 0
        %3036 = vmatpush1.bf16.msra.mxu0 %v2137
        %3037 = vmatprep.subr.bf16.mxu0 0
        %3038 = vmatpush1.bf16.msra.mxu0 0
        %3039 = vmatprep.subr.bf16.mxu0 0
        %3040 = vmatpush1.bf16.msra.mxu0 0
        %3041 = vmatprep.subr.bf16.mxu0 0
        %3042 = vmatpush1.bf16.msra.mxu0 0
        %3043 = vmatprep.subr.bf16.mxu0 0
        %3044 = vmatpush1.bf16.msra.mxu0 0
        %3045 = vmatprep.mubr.bf16.mxu0 %v2464
        %3046 = vmatmul.mubr.bf16.gmra.mrb[0].mxu0 %v719
        %v3047 = vpop.f32.mrb[0].mxu0
        %v3048 = vadd.f32 %v3007, %v3047
        %v3049 = vpop.f32.mrb[0].mxu0
        %v3050 = vpop.f32.mrb[0].mxu0
        %v3051 = vadd.f32 %v3010, %v3050
        %v3052 = vpop.f32.mrb[0].mxu0
        %3053 = vdwg.mxu0
        %3054 = vst [vmem:[%s177] sm:$0xff] %v2759
        %3055 = vst [vmem:[%s177 + $0x8] sm:$0xff] %v2761
        %3056 = vst [vmem:[%s177 + $0x10] sm:$0xff] %v3048
        %3057 = vst [vmem:[%s177 + $0x18] sm:$0xff] %v2763
        %3058 = vst [vmem:[%s177 + $0x20] sm:$0xff] %v2765
        %3059 = vst [vmem:[%s177 + $0x28] sm:$0xff] %v3051
        %s3060 = sand.u32 %s90, 1
        %s3061 = sand.u32 %s90, 1
        %s3062 = smul.addr %s3061, 48
        %s3063 = scalar_lea.vmem [#allocation2], %s3062
        // Predicated region
        $region33: #{alnet_feature_extractor.9} parent=31 // pred_check
          %p3064 = pneg %p100
        $region34: #{alnet_feature_extractor.9} parent=31 // pred_check_branch
          %3066 = sbr.rel (%p3064) target = $region36
        $region35: #{alnet_feature_extractor.9} parent=31 // pred_region
          %s3067 = smul.u32 2, %s14
          %s3068 = ssub.s32 3, %s3067
          %p3069 = scmp.lt.s32.totalorder %s3068, 2
          %s3070 = scalar_select %p3069, %s3068, 2
          %s3071 = smul.u32 128, %s3070
          %s3072 = smul.u32 %s3071, 3
          %p3073 = scmp.ne.s32.totalorder 0, %s3072
          %s3074 = smul.addr %s3067, 3
          %s3075 = smul.addr %s3074, 8
          %s3076 = scalar_lea.vmem %s3, %s3075
          // Predicated region
          $region37: #{alnet_feature_extractor.9} parent=35 // pred_check
            %p3077 = pneg %p3073
          $region38: #{alnet_feature_extractor.9} parent=35 // pred_check_branch
            %3079 = sbr.rel (%p3077) target = $region40
          $region39: #{alnet_feature_extractor.9} parent=35 // pred_region
            // Predicated region
            $region41: #{alnet_feature_extractor.9} parent=39 // pred_check
              _
            $region42: #{alnet_feature_extractor.9} parent=39 // pred_check_branch
              %3081 = sbr.rel (0) target = $region44
            $region43: #{alnet_feature_extractor.9} parent=39 // pred_region
              %s3082 = sshrl.u32 %s3070, 1
              // While loop
              $region45: #{alnet_feature_extractor.9} parent=43 // loop_pre_header
                _
              $region46: #{alnet_feature_extractor.9} parent=43 // loop_header
                %s3084 = sphi 0, %s3086
                %p3085 = scmp.ge.s32.totalorder %s3084, %s3082
                %s3089 = sphi 0, %s3106
                %s3090 = sphi %s3063, %s3109
                %s3091 = sphi %s3076, %s3110
              $region47: #{alnet_feature_extractor.9} parent=43 // loop_header_branch
                %3088 = sbr.rel (%p3085) target = $region51
              $region48: #{alnet_feature_extractor.9} parent=43 // loop_body
                %v3092 = vld [vmem:[%s3090] sm:$0xff]
                %3093 = vst [vmem:[%s3091] sm:$0xff] %v3092
                %v3094 = vld [vmem:[%s3090 + $0x18] sm:$0xff]
                %3095 = vst [vmem:[%s3091 + $0x18] sm:$0xff] %v3094
                %v3096 = vld [vmem:[%s3090 + $0x8] sm:$0xff]
                %3097 = vst [vmem:[%s3091 + $0x8] sm:$0xff] %v3096
                %v3098 = vld [vmem:[%s3090 + $0x20] sm:$0xff]
                %3099 = vst [vmem:[%s3091 + $0x20] sm:$0xff] %v3098
                %v3100 = vld [vmem:[%s3090 + $0x10] sm:$0xff]
                %3101 = vst [vmem:[%s3091 + $0x10] sm:$0xff] %v3100
                %v3102 = vld [vmem:[%s3090 + $0x28] sm:$0xff]
                %3103 = vst [vmem:[%s3091 + $0x28] sm:$0xff] %v3102
                %s3104 = sadd.s32 1, %s3089
                %p3105 = scmp.ge.s32.totalorder %s3104, %s3082
                %s3106 = scalar_select %p3105, 0, %s3104
                %s3107 = smul.u32 %s3106, 48
                %s3108 = smul.u32 %s3106, 48
                %s3109 = scalar_lea.vmem %s3063, %s3107 [#allocation2]
                %s3110 = scalar_lea.vmem %s3076, %s3108
              $region49: #{alnet_feature_extractor.9} parent=43 // loop_footer
                %s3086 = sadd.s32 %s3084, 1
              $region50: #{alnet_feature_extractor.9} parent=43 // loop_footer_branch
                %3083 = sbr.rel target = $region46
              $region51: #{alnet_feature_extractor.9} parent=43 // loop_exit
                _
              %s3111 = sshrl.u32 %s3070, 1
              %s3112 = sand.u32 %s3070, 1
              %s3113 = smul.u32 %s3111, 2
              %s3114 = smul.u32 24, %s3113
              %s3115 = scalar_lea.vmem %s3063, %s3114 [#allocation2]
              %s3116 = smul.u32 24, %s3113
              %s3117 = scalar_lea.vmem %s3076, %s3116
              // While loop
              $region52: #{alnet_feature_extractor.9} parent=43 // loop_pre_header
                _
              $region53: #{alnet_feature_extractor.9} parent=43 // loop_header
                %s3119 = sphi 0, %s3121
                %p3120 = scmp.ge.s32.totalorder %s3119, %s3112
                %s3124 = sphi 0, %s3135
                %s3125 = sphi %s3115, %s3138
                %s3126 = sphi %s3117, %s3139
              $region54: #{alnet_feature_extractor.9} parent=43 // loop_header_branch
                %3123 = sbr.rel (%p3120) target = $region58
              $region55: #{alnet_feature_extractor.9} parent=43 // loop_body
                %v3127 = vld [vmem:[%s3125] sm:$0xff]
                %3128 = vst [vmem:[%s3126] sm:$0xff] %v3127
                %v3129 = vld [vmem:[%s3125 + $0x8] sm:$0xff]
                %3130 = vst [vmem:[%s3126 + $0x8] sm:$0xff] %v3129
                %v3131 = vld [vmem:[%s3125 + $0x10] sm:$0xff]
                %3132 = vst [vmem:[%s3126 + $0x10] sm:$0xff] %v3131
                %s3133 = sadd.s32 1, %s3124
                %p3134 = scmp.ge.s32.totalorder %s3133, %s3112
                %s3135 = scalar_select %p3134, 0, %s3133
                %s3136 = smul.u32 %s3135, 24
                %s3137 = smul.u32 %s3135, 24
                %s3138 = scalar_lea.vmem %s3115, %s3136 [#allocation2]
                %s3139 = scalar_lea.vmem %s3117, %s3137
              $region56: #{alnet_feature_extractor.9} parent=43 // loop_footer
                %s3121 = sadd.s32 %s3119, 1
              $region57: #{alnet_feature_extractor.9} parent=43 // loop_footer_branch
                %3118 = sbr.rel target = $region53
              $region58: #{alnet_feature_extractor.9} parent=43 // loop_exit
                _
            $region44: #{alnet_feature_extractor.9} parent=39 // pred_fallthru
              _
            // Predicated region
            $region59: #{alnet_feature_extractor.9} parent=39 // pred_check
              _
            $region60: #{alnet_feature_extractor.9} parent=39 // pred_check_branch
              %3141 = sbr.rel target = $region62
            $region61: #{alnet_feature_extractor.9} parent=39 // pred_region
              _
            $region62: #{alnet_feature_extractor.9} parent=39 // pred_fallthru
              _
          $region40: #{alnet_feature_extractor.9} parent=35 // pred_fallthru
            _
          %3142 = vnop
        $region36: #{alnet_feature_extractor.9} parent=31 // pred_fallthru
          _
      $region32: #{alnet_feature_extractor.9} parent=5 // pred_fallthru
        _
      %p3143 = scmp.le.s32.totalorder 2, %s9
      // Predicated region
      $region63: #{alnet_feature_extractor.9} parent=5 // pred_check
        %p3144 = pneg %p3143
      $region64: #{alnet_feature_extractor.9} parent=5 // pred_check_branch
        %3146 = sbr.rel (%p3144) target = $region66
      $region65: #{alnet_feature_extractor.9} parent=5 // pred_region
        %s3147 = ssub.s32 %s9, 2
        // Predicated region
        $region67: #{alnet_feature_extractor.9} parent=65 // pred_check
          %p3148 = pneg %p106
        $region68: #{alnet_feature_extractor.9} parent=65 // pred_check_branch
          %3150 = sbr.rel (%p3148) target = $region70
        $region69: #{alnet_feature_extractor.9} parent=65 // pred_region
          %s3151 = sand.u32 %s91, 1
          %s3152 = sand.u32 %s91, 1
          %s3153 = smul.addr %s3152, 48
          %s3154 = scalar_lea.vmem [#allocation2], %s3153
        $region70: #{alnet_feature_extractor.9} parent=65 // pred_fallthru
          _
      $region66: #{alnet_feature_extractor.9} parent=5 // pred_fallthru
        _
    $region6: #{alnet_feature_extractor.9} parent=1 // loop_footer
      %s13 = sadd.s32 1, %s9
    $region7: #{alnet_feature_extractor.9} parent=1 // loop_footer_branch
      %8 = sbr.rel target = $region3
    $region8: #{alnet_feature_extractor.9} parent=1 // loop_exit
      _

</llo_original>
